<compile_context>
chip_gen: v6e
topology: v6e:2x2x1
jax: 0.10.0
libtpu: 0.0.40
codegen_flags: <defaults>
</compile_context>

<pallas_src>
import functools

import jax
import jax.numpy as jnp
from jax.experimental import pallas as pl
from jax.experimental.pallas import tpu as pltpu

LANE = 128  # TPU vreg lane width


# -----------------------------------------------------------------------------
# Kernel factory (H, W, Cp, row_chunk are static)
#   x_ref   : (H, W, Cp)       bf16  input image (channels lane-padded)
#   w1,w2   : (9*Cp, Cp)       bf16  BN-folded conv weights, rows = (ky,kx,ci)
#   b1,b2   : (1, Cp)          f32   BN-folded biases
#   out_ref : (H, W, Cp)       bf16
#   xpad1/2 : (H+2, W+16, Cp)  bf16  VMEM pad scratches (conv1 / conv2 input)
# -----------------------------------------------------------------------------
def make_resblock2_kernel(H, W, Cp, row_chunk):
    Hp = H + 2
    Wp = W + 16      # 8-col left offset (sublane aligned) + >=1 zero col right
    X0 = 8           # column where the image starts inside the pad buffer

    # static row chunks of the output (Python loop -> fully unrolled)
    chunks = [(r0, min(row_chunk, H - r0)) for r0 in range(0, H, row_chunk)]

    def zero_border(pad_ref):
        # only rows/cols the 3x3 taps actually read need to be zero
        pad_ref[0:1, :, :] = jnp.zeros((1, Wp, Cp), jnp.bfloat16)
        pad_ref[Hp - 1:Hp, :, :] = jnp.zeros((1, Wp, Cp), jnp.bfloat16)
        pad_ref[:, X0 - 1:X0, :] = jnp.zeros((Hp, 1, Cp), jnp.bfloat16)
        pad_ref[:, X0 + W:X0 + W + 1, :] = jnp.zeros((Hp, 1, Cp), jnp.bfloat16)

    def conv_chunk(pad_ref, w_ref, r0, rt):
        """3x3 conv (pad=1) for output rows [r0, r0+rt): 3 accumulated matmuls,
        one per kernel row ky, each with K = 3*Cp (taps sliced from the ref)."""
        acc = jnp.zeros((rt * W, Cp), jnp.float32)
        for ky in range(3):
            taps = [pad_ref[r0 + ky:r0 + ky + rt,
                            X0 - 1 + kx:X0 - 1 + kx + W, :]
                    for kx in range(3)]
            patch = jnp.concatenate(taps, axis=-1).reshape(rt * W, 3 * Cp)
            w_ky = w_ref[ky * 3 * Cp:(ky + 1) * 3 * Cp, :]
            acc = acc + jnp.dot(patch, w_ky,
                                preferred_element_type=jnp.float32)
        return acc  # (rt*W, Cp) f32, pre-bias

    def kernel(x_ref, w1_ref, b1_ref, w2_ref, b2_ref, out_ref,
               xpad1_ref, xpad2_ref):
        # scratches persist across the "parallel" batch grid axis -> re-zero
        zero_border(xpad1_ref)
        zero_border(xpad2_ref)

        # stage the bf16 input into the padded conv1 input buffer (aligned W
        # offset -> unmasked stores); value not kept live afterwards.
        xpad1_ref[1:H + 1, X0:X0 + W, :] = x_ref[...]

        # ---- conv_1 + BN1 + ReLU : chunk output rows, stage into xpad2 ------
        for r0, rt in chunks:
            acc = conv_chunk(xpad1_ref, w1_ref, r0, rt)
            h = jnp.maximum(acc + b1_ref[...], 0.0)
            xpad2_ref[1 + r0:1 + r0 + rt, X0:X0 + W, :] = (
                h.reshape(rt, W, Cp).astype(jnp.bfloat16))

        # ---- conv_2 + BN2, + residual, + final ReLU, straight to out_ref ----
        for r0, rt in chunks:
            acc = conv_chunk(xpad2_ref, w2_ref, r0, rt)
            y = acc + b2_ref[...]
            res = x_ref[r0:r0 + rt, :, :].astype(jnp.float32)
            out = jnp.maximum(y + res.reshape(rt * W, Cp), 0.0)
            out_ref[r0:r0 + rt, :, :] = (
                out.reshape(rt, W, Cp).astype(out_ref.dtype))

    return kernel


# -----------------------------------------------------------------------------
# Glue: BN folding + channel padding, layout transposes, pallas_call wrapper
# -----------------------------------------------------------------------------
def fold_conv_bn(w_oihw, gamma, beta, mean, var, cp_in, cp_out, eps=1e-5):
    """Fold eval-mode BatchNorm into the conv, pad channels to lane multiples.

    Returns a (9*cp_in, cp_out) bf16 matmul weight (row order (ky, kx, ci))
    and a (1, cp_out) f32 bias."""
    cout, cin = w_oihw.shape[0], w_oihw.shape[1]
    scale = gamma / jnp.sqrt(var + eps)                         # (Cout,)
    w_hwio = jnp.transpose(w_oihw, (2, 3, 1, 0)) * scale        # (3,3,Cin,Cout)
    w_pad = jnp.pad(w_hwio, ((0, 0), (0, 0),
                             (0, cp_in - cin), (0, cp_out - cout)))
    w_mat = w_pad.reshape(9 * cp_in, cp_out).astype(jnp.bfloat16)
    b = beta - mean * scale
    b_pad = jnp.pad(b, (0, cp_out - cout)).reshape(1, cp_out).astype(jnp.float32)
    return w_mat, b_pad


@jax.jit
def resblock2_forward(x_nchw, w1m, b1v, w2m, b2v):
    N, C, H, W = x_nchw.shape
    Cp = w1m.shape[1]

    # NCHW -> NHWC, lane-pad channels, cast I/O to bf16 (halves DMA bytes).
    x = jnp.transpose(x_nchw, (0, 2, 3, 1)).astype(jnp.bfloat16)
    x = jnp.pad(x, ((0, 0), (0, 0), (0, 0), (0, Cp - C)))        # (N,H,W,Cp)

    # rows per inner matmul chunk: cap the (rt*W, 3*Cp) bf16 patch at ~1.5 MiB
    row_chunk = max(1, min(H, (1536 * 1024) // max(1, W * 3 * Cp * 2)))

    kernel = make_resblock2_kernel(H, W, Cp, row_chunk)

    flops = 2 * (2 * N * H * W * 9 * Cp * Cp)                    # two convs
    bytes_accessed = (2 * N * H * W * Cp * 2                     # x + out, bf16
                      + 2 * 9 * Cp * Cp * 2                      # weights, bf16
                      + 2 * Cp * 4)                              # biases, f32

    out = pl.pallas_call(
        kernel,
        out_shape=jax.ShapeDtypeStruct((N, H, W, Cp), jnp.bfloat16),
        grid=(N,),
        in_specs=[
            pl.BlockSpec((None, H, W, Cp), lambda n: (n, 0, 0, 0)),
            pl.BlockSpec((9 * Cp, Cp), lambda n: (0, 0)),   # constant index map
            pl.BlockSpec((1, Cp), lambda n: (0, 0)),        #  -> fetched once
            pl.BlockSpec((9 * Cp, Cp), lambda n: (0, 0)),
            pl.BlockSpec((1, Cp), lambda n: (0, 0)),
        ],
        out_specs=pl.BlockSpec((None, H, W, Cp), lambda n: (n, 0, 0, 0)),
        scratch_shapes=[pltpu.VMEM((H + 2, W + 16, Cp), jnp.bfloat16),
                        pltpu.VMEM((H + 2, W + 16, Cp), jnp.bfloat16)],
        compiler_params=pltpu.CompilerParams(
            dimension_semantics=("parallel",),     # megacore / v7x 2-TC batch
            vmem_limit_bytes=48 * 1024 * 1024,     # below v7x 64 MiB physical
        ),
        cost_estimate=pl.CostEstimate(flops=flops, transcendentals=0,
                                      bytes_accessed=bytes_accessed),
    )(x, w1m, b1v, w2m, b2v)

    # drop channel padding, back to NCHW f32 for the PyTorch-facing API
    return jnp.transpose(out[..., :C].astype(jnp.float32), (0, 3, 1, 2))


# -----------------------------------------------------------------------------
# Pure-JAX reference (XLA conv, f32) for correctness checking
# -----------------------------------------------------------------------------
def ref_forward(x_nchw, w1, bn1, w2, bn2, eps=1e-5):
    def conv_bn(x, w, bn):
        gamma, beta, mean, var = bn
        y = jax.lax.conv_general_dilated(
            x, w, window_strides=(1, 1), padding=((1, 1), (1, 1)),
            dimension_numbers=("NCHW", "OIHW", "NCHW"))
        scale = gamma / jnp.sqrt(var + eps)
        return (y * scale[None, :, None, None]
                + (beta - mean * scale)[None, :, None, None])

    res = x_nchw
    h = jax.nn.relu(conv_bn(x_nchw, w1, bn1))
    y = conv_bn(h, w2, bn2)
    return jax.nn.relu(y + res)


if __name__ == "__main__":
    key = jax.random.PRNGKey(0)
    ks = jax.random.split(key, 12)

    N, C, H, W = 2, 4, 16, 16      # in_channels = out_channels = 4, downsample=False
    x = jax.random.normal(ks[0], (N, C, H, W), jnp.float32)

    # conv weights (OIHW), deterministic init
    w1 = jax.random.normal(ks[1], (C, C, 3, 3), jnp.float32) * 0.1
    w2 = jax.random.normal(ks[2], (C, C, 3, 3), jnp.float32) * 0.1

    # batchnorm params: (gamma, beta, running_mean, running_var)
    bn1 = (jax.random.uniform(ks[3], (C,), minval=0.5, maxval=1.5),
           jax.random.normal(ks[4], (C,)) * 0.1,
           jax.random.normal(ks[5], (C,)) * 0.1,
           jax.random.uniform(ks[6], (C,), minval=0.5, maxval=1.5))
    bn2 = (jax.random.uniform(ks[7], (C,), minval=0.5, maxval=1.5),
           jax.random.normal(ks[8], (C,)) * 0.1,
           jax.random.normal(ks[9], (C,)) * 0.1,
           jax.random.uniform(ks[10], (C,), minval=0.5, maxval=1.5))

    Cp = ((C + LANE - 1) // LANE) * LANE    # lane-dense channel count
    w1m, b1v = fold_conv_bn(w1, *bn1, cp_in=Cp, cp_out=Cp)
    w2m, b2v = fold_conv_bn(w2, *bn2, cp_in=Cp, cp_out=Cp)

    out = resblock2_forward(x, w1m, b1v, w2m, b2v)
    out = jax.block_until_ready(out)

    ref = ref_forward(x, w1, bn1, w2, bn2)
    assert out.shape == (N, C, H, W)
    # bf16 MXU operands + bf16 I/O (f32 accumulate / f32 epilogue) -> few e-2.
    err = float(jnp.max(jnp.abs(out - ref)))
    assert jnp.allclose(out, ref, atol=3e-2, rtol=3e-2), \
        f"mismatch vs reference, max |err|={err}"

    print("KERNEL_OK")
</pallas_src>

<mosaic_0001>
module attributes {stable_mosaic.version = 11 : i64} {
  func.func @kernel(%arg0: i32, %arg1: memref<1x16x16x128xbf16, #tpu.memory_space<vmem>>, %arg2: memref<1152x128xbf16, #tpu.memory_space<vmem>>, %arg3: memref<1x128xf32, #tpu.memory_space<vmem>>, %arg4: memref<1152x128xbf16, #tpu.memory_space<vmem>>, %arg5: memref<1x128xf32, #tpu.memory_space<vmem>>, %arg6: memref<1x16x16x128xbf16, #tpu.memory_space<vmem>>, %arg7: memref<18x32x128xbf16, #tpu.memory_space<vmem>>, %arg8: memref<18x32x128xbf16, #tpu.memory_space<vmem>>) attributes {dimension_semantics = [#tpu.dimension_semantics<parallel>], iteration_bounds = array<i64: 2>, scalar_prefetch = 0 : i64, scratch_operands = 2 : i64, tpu.core_type = #tpu.core_type<tc>, window_params = [{transform_indices = @transform_0, window_bounds = array<i64: 1, 16, 16, 128>}, {pipeline_mode = #tpu.pipeline_mode<synchronous>, transform_indices = @transform_1, window_bounds = array<i64: 1152, 128>}, {pipeline_mode = #tpu.pipeline_mode<synchronous>, transform_indices = @transform_2, window_bounds = array<i64: 1, 128>}, {pipeline_mode = #tpu.pipeline_mode<synchronous>, transform_indices = @transform_3, window_bounds = array<i64: 1152, 128>}, {pipeline_mode = #tpu.pipeline_mode<synchronous>, transform_indices = @transform_4, window_bounds = array<i64: 1, 128>}, {transform_indices = @transform_5, window_bounds = array<i64: 1, 16, 16, 128>}]} {
    %cst = arith.constant 0.000000e+00 : bf16
    %0 = vector.broadcast %cst : bf16 to vector<1x32x128xbf16>
    %c0 = arith.constant 0 : index
    %c0_0 = arith.constant 0 : index
    %c0_1 = arith.constant 0 : index
    %1 = vector.load %arg7[%c0, %c0_0, %c0_1] : memref<18x32x128xbf16, #tpu.memory_space<vmem>>, vector<1x32x128xbf16>
    tpu.vector_store %arg7[%c0, %c0_0, %c0_1], %0 {strides = array<i32>} : memref<18x32x128xbf16, #tpu.memory_space<vmem>>, vector<1x32x128xbf16>,
    %cst_2 = arith.constant 0.000000e+00 : bf16
    %2 = vector.broadcast %cst_2 : bf16 to vector<1x32x128xbf16>
    %c17 = arith.constant 17 : index
    %c0_3 = arith.constant 0 : index
    %c0_4 = arith.constant 0 : index
    %3 = vector.load %arg7[%c17, %c0_3, %c0_4] : memref<18x32x128xbf16, #tpu.memory_space<vmem>>, vector<1x32x128xbf16>
    tpu.vector_store %arg7[%c17, %c0_3, %c0_4], %2 {strides = array<i32>} : memref<18x32x128xbf16, #tpu.memory_space<vmem>>, vector<1x32x128xbf16>,
    %cst_5 = arith.constant 0.000000e+00 : bf16
    %4 = vector.broadcast %cst_5 : bf16 to vector<18x1x128xbf16>
    %c0_6 = arith.constant 0 : index
    %c7 = arith.constant 7 : index
    %c0_7 = arith.constant 0 : index
    %5 = vector.load %arg7[%c0_6, %c7, %c0_7] : memref<18x32x128xbf16, #tpu.memory_space<vmem>>, vector<18x1x128xbf16>
    tpu.vector_store %arg7[%c0_6, %c7, %c0_7], %4 {strides = array<i32>} : memref<18x32x128xbf16, #tpu.memory_space<vmem>>, vector<18x1x128xbf16>,
    %cst_8 = arith.constant 0.000000e+00 : bf16
    %6 = vector.broadcast %cst_8 : bf16 to vector<18x1x128xbf16>
    %c0_9 = arith.constant 0 : index
    %c24 = arith.constant 24 : index
    %c0_10 = arith.constant 0 : index
    %7 = vector.load %arg7[%c0_9, %c24, %c0_10] : memref<18x32x128xbf16, #tpu.memory_space<vmem>>, vector<18x1x128xbf16>
    tpu.vector_store %arg7[%c0_9, %c24, %c0_10], %6 {strides = array<i32>} : memref<18x32x128xbf16, #tpu.memory_space<vmem>>, vector<18x1x128xbf16>,
    %cst_11 = arith.constant 0.000000e+00 : bf16
    %8 = vector.broadcast %cst_11 : bf16 to vector<1x32x128xbf16>
    %c0_12 = arith.constant 0 : index
    %c0_13 = arith.constant 0 : index
    %c0_14 = arith.constant 0 : index
    %9 = vector.load %arg8[%c0_12, %c0_13, %c0_14] : memref<18x32x128xbf16, #tpu.memory_space<vmem>>, vector<1x32x128xbf16>
    tpu.vector_store %arg8[%c0_12, %c0_13, %c0_14], %8 {strides = array<i32>} : memref<18x32x128xbf16, #tpu.memory_space<vmem>>, vector<1x32x128xbf16>,
    %cst_15 = arith.constant 0.000000e+00 : bf16
    %10 = vector.broadcast %cst_15 : bf16 to vector<1x32x128xbf16>
    %c17_16 = arith.constant 17 : index
    %c0_17 = arith.constant 0 : index
    %c0_18 = arith.constant 0 : index
    %11 = vector.load %arg8[%c17_16, %c0_17, %c0_18] : memref<18x32x128xbf16, #tpu.memory_space<vmem>>, vector<1x32x128xbf16>
    tpu.vector_store %arg8[%c17_16, %c0_17, %c0_18], %10 {strides = array<i32>} : memref<18x32x128xbf16, #tpu.memory_space<vmem>>, vector<1x32x128xbf16>,
    %cst_19 = arith.constant 0.000000e+00 : bf16
    %12 = vector.broadcast %cst_19 : bf16 to vector<18x1x128xbf16>
    %c0_20 = arith.constant 0 : index
    %c7_21 = arith.constant 7 : index
    %c0_22 = arith.constant 0 : index
    %13 = vector.load %arg8[%c0_20, %c7_21, %c0_22] : memref<18x32x128xbf16, #tpu.memory_space<vmem>>, vector<18x1x128xbf16>
    tpu.vector_store %arg8[%c0_20, %c7_21, %c0_22], %12 {strides = array<i32>} : memref<18x32x128xbf16, #tpu.memory_space<vmem>>, vector<18x1x128xbf16>,
    %cst_23 = arith.constant 0.000000e+00 : bf16
    %14 = vector.broadcast %cst_23 : bf16 to vector<18x1x128xbf16>
    %c0_24 = arith.constant 0 : index
    %c24_25 = arith.constant 24 : index
    %c0_26 = arith.constant 0 : index
    %15 = vector.load %arg8[%c0_24, %c24_25, %c0_26] : memref<18x32x128xbf16, #tpu.memory_space<vmem>>, vector<18x1x128xbf16>
    tpu.vector_store %arg8[%c0_24, %c24_25, %c0_26], %14 {strides = array<i32>} : memref<18x32x128xbf16, #tpu.memory_space<vmem>>, vector<18x1x128xbf16>,
    %c0_27 = arith.constant 0 : index
    %c0_28 = arith.constant 0 : index
    %c0_29 = arith.constant 0 : index
    %c0_30 = arith.constant 0 : index
    %16 = vector.load %arg1[%c0_27, %c0_28, %c0_29, %c0_30] : memref<1x16x16x128xbf16, #tpu.memory_space<vmem>>, vector<1x16x16x128xbf16>
    %17 = vector.shape_cast %16 : vector<1x16x16x128xbf16> to vector<16x16x128xbf16>
    %c1 = arith.constant 1 : index
    %c8 = arith.constant 8 : index
    %c0_31 = arith.constant 0 : index
    %18 = vector.load %arg7[%c1, %c8, %c0_31] : memref<18x32x128xbf16, #tpu.memory_space<vmem>>, vector<16x16x128xbf16>
    tpu.vector_store %arg7[%c1, %c8, %c0_31], %17 {strides = array<i32>} : memref<18x32x128xbf16, #tpu.memory_space<vmem>>, vector<16x16x128xbf16>,
    %cst_32 = arith.constant 0.000000e+00 : f32
    %19 = vector.broadcast %cst_32 : f32 to vector<256x128xf32>
    %c0_33 = arith.constant 0 : index
    %c7_34 = arith.constant 7 : index
    %c0_35 = arith.constant 0 : index
    %20 = vector.load %arg7[%c0_33, %c7_34, %c0_35] : memref<18x32x128xbf16, #tpu.memory_space<vmem>>, vector<16x16x128xbf16>
    %c0_36 = arith.constant 0 : index
    %c8_37 = arith.constant 8 : index
    %c0_38 = arith.constant 0 : index
    %21 = vector.load %arg7[%c0_36, %c8_37, %c0_38] : memref<18x32x128xbf16, #tpu.memory_space<vmem>>, vector<16x16x128xbf16>
    %c0_39 = arith.constant 0 : index
    %c9 = arith.constant 9 : index
    %c0_40 = arith.constant 0 : index
    %22 = vector.load %arg7[%c0_39, %c9, %c0_40] : memref<18x32x128xbf16, #tpu.memory_space<vmem>>, vector<16x16x128xbf16>
    %23 = tpu.concatenate %20, %21, %22 in 2 : vector<16x16x128xbf16>, vector<16x16x128xbf16>, vector<16x16x128xbf16> -> vector<16x16x384xbf16>
    %24 = vector.shape_cast %23 : vector<16x16x384xbf16> to vector<256x384xbf16>
    %c0_41 = arith.constant 0 : index
    %c0_42 = arith.constant 0 : index
    %25 = vector.load %arg2[%c0_41, %c0_42] : memref<1152x128xbf16, #tpu.memory_space<vmem>>, vector<384x128xbf16>
    %cst_43 = arith.constant dense<0.000000e+00> : vector<256x128xf32>
    %26 = tpu.matmul %24, %25, %cst_43 {dimension_numbers = #tpu.dot_dimension_numbers<[1], [0], [0], [1], [0, 0, 1, 1], [], []>} : vector<256x384xbf16>, vector<384x128xbf16>, vector<256x128xf32> -> vector<256x128xf32>
    %27 = arith.addf %19, %26 : vector<256x128xf32>
    %c1_44 = arith.constant 1 : index
    %c7_45 = arith.constant 7 : index
    %c0_46 = arith.constant 0 : index
    %28 = vector.load %arg7[%c1_44, %c7_45, %c0_46] : memref<18x32x128xbf16, #tpu.memory_space<vmem>>, vector<16x16x128xbf16>
    %c1_47 = arith.constant 1 : index
    %c8_48 = arith.constant 8 : index
    %c0_49 = arith.constant 0 : index
    %29 = vector.load %arg7[%c1_47, %c8_48, %c0_49] : memref<18x32x128xbf16, #tpu.memory_space<vmem>>, vector<16x16x128xbf16>
    %c1_50 = arith.constant 1 : index
    %c9_51 = arith.constant 9 : index
    %c0_52 = arith.constant 0 : index
    %30 = vector.load %arg7[%c1_50, %c9_51, %c0_52] : memref<18x32x128xbf16, #tpu.memory_space<vmem>>, vector<16x16x128xbf16>
    %31 = tpu.concatenate %28, %29, %30 in 2 : vector<16x16x128xbf16>, vector<16x16x128xbf16>, vector<16x16x128xbf16> -> vector<16x16x384xbf16>
    %32 = vector.shape_cast %31 : vector<16x16x384xbf16> to vector<256x384xbf16>
    %c384 = arith.constant 384 : index
    %c0_53 = arith.constant 0 : index
    %33 = vector.load %arg2[%c384, %c0_53] : memref<1152x128xbf16, #tpu.memory_space<vmem>>, vector<384x128xbf16>
    %cst_54 = arith.constant dense<0.000000e+00> : vector<256x128xf32>
    %34 = tpu.matmul %32, %33, %cst_54 {dimension_numbers = #tpu.dot_dimension_numbers<[1], [0], [0], [1], [0, 0, 1, 1], [], []>} : vector<256x384xbf16>, vector<384x128xbf16>, vector<256x128xf32> -> vector<256x128xf32>
    %35 = arith.addf %27, %34 : vector<256x128xf32>
    %c2 = arith.constant 2 : index
    %c7_55 = arith.constant 7 : index
    %c0_56 = arith.constant 0 : index
    %36 = vector.load %arg7[%c2, %c7_55, %c0_56] : memref<18x32x128xbf16, #tpu.memory_space<vmem>>, vector<16x16x128xbf16>
    %c2_57 = arith.constant 2 : index
    %c8_58 = arith.constant 8 : index
    %c0_59 = arith.constant 0 : index
    %37 = vector.load %arg7[%c2_57, %c8_58, %c0_59] : memref<18x32x128xbf16, #tpu.memory_space<vmem>>, vector<16x16x128xbf16>
    %c2_60 = arith.constant 2 : index
    %c9_61 = arith.constant 9 : index
    %c0_62 = arith.constant 0 : index
    %38 = vector.load %arg7[%c2_60, %c9_61, %c0_62] : memref<18x32x128xbf16, #tpu.memory_space<vmem>>, vector<16x16x128xbf16>
    %39 = tpu.concatenate %36, %37, %38 in 2 : vector<16x16x128xbf16>, vector<16x16x128xbf16>, vector<16x16x128xbf16> -> vector<16x16x384xbf16>
    %40 = vector.shape_cast %39 : vector<16x16x384xbf16> to vector<256x384xbf16>
    %c768 = arith.constant 768 : index
    %c0_63 = arith.constant 0 : index
    %41 = vector.load %arg2[%c768, %c0_63] : memref<1152x128xbf16, #tpu.memory_space<vmem>>, vector<384x128xbf16>
    %cst_64 = arith.constant dense<0.000000e+00> : vector<256x128xf32>
    %42 = tpu.matmul %40, %41, %cst_64 {dimension_numbers = #tpu.dot_dimension_numbers<[1], [0], [0], [1], [0, 0, 1, 1], [], []>} : vector<256x384xbf16>, vector<384x128xbf16>, vector<256x128xf32> -> vector<256x128xf32>
    %43 = arith.addf %35, %42 : vector<256x128xf32>
    %c0_65 = arith.constant 0 : index
    %c0_66 = arith.constant 0 : index
    %44 = vector.load %arg3[%c0_65, %c0_66] : memref<1x128xf32, #tpu.memory_space<vmem>>, vector<1x128xf32>
    %45 = vector.broadcast %44 : vector<1x128xf32> to vector<256x128xf32>
    %46 = arith.addf %43, %45 : vector<256x128xf32>
    %cst_67 = arith.constant 0.000000e+00 : f32
    %47 = vector.broadcast %cst_67 : f32 to vector<256x128xf32>
    %48 = arith.maximumf %46, %47 : vector<256x128xf32>
    %49 = vector.shape_cast %48 : vector<256x128xf32> to vector<16x16x128xf32>
    %50 = arith.truncf %49 : vector<16x16x128xf32> to vector<16x16x128xbf16>
    %c1_68 = arith.constant 1 : index
    %c8_69 = arith.constant 8 : index
    %c0_70 = arith.constant 0 : index
    %51 = vector.load %arg8[%c1_68, %c8_69, %c0_70] : memref<18x32x128xbf16, #tpu.memory_space<vmem>>, vector<16x16x128xbf16>
    tpu.vector_store %arg8[%c1_68, %c8_69, %c0_70], %50 {strides = array<i32>} : memref<18x32x128xbf16, #tpu.memory_space<vmem>>, vector<16x16x128xbf16>,
    %cst_71 = arith.constant 0.000000e+00 : f32
    %52 = vector.broadcast %cst_71 : f32 to vector<256x128xf32>
    %c0_72 = arith.constant 0 : index
    %c7_73 = arith.constant 7 : index
    %c0_74 = arith.constant 0 : index
    %53 = vector.load %arg8[%c0_72, %c7_73, %c0_74] : memref<18x32x128xbf16, #tpu.memory_space<vmem>>, vector<16x16x128xbf16>
    %c0_75 = arith.constant 0 : index
    %c8_76 = arith.constant 8 : index
    %c0_77 = arith.constant 0 : index
    %54 = vector.load %arg8[%c0_75, %c8_76, %c0_77] : memref<18x32x128xbf16, #tpu.memory_space<vmem>>, vector<16x16x128xbf16>
    %c0_78 = arith.constant 0 : index
    %c9_79 = arith.constant 9 : index
    %c0_80 = arith.constant 0 : index
    %55 = vector.load %arg8[%c0_78, %c9_79, %c0_80] : memref<18x32x128xbf16, #tpu.memory_space<vmem>>, vector<16x16x128xbf16>
    %56 = tpu.concatenate %53, %54, %55 in 2 : vector<16x16x128xbf16>, vector<16x16x128xbf16>, vector<16x16x128xbf16> -> vector<16x16x384xbf16>
    %57 = vector.shape_cast %56 : vector<16x16x384xbf16> to vector<256x384xbf16>
    %c0_81 = arith.constant 0 : index
    %c0_82 = arith.constant 0 : index
    %58 = vector.load %arg4[%c0_81, %c0_82] : memref<1152x128xbf16, #tpu.memory_space<vmem>>, vector<384x128xbf16>
    %cst_83 = arith.constant dense<0.000000e+00> : vector<256x128xf32>
    %59 = tpu.matmul %57, %58, %cst_83 {dimension_numbers = #tpu.dot_dimension_numbers<[1], [0], [0], [1], [0, 0, 1, 1], [], []>} : vector<256x384xbf16>, vector<384x128xbf16>, vector<256x128xf32> -> vector<256x128xf32>
    %60 = arith.addf %52, %59 : vector<256x128xf32>
    %c1_84 = arith.constant 1 : index
    %c7_85 = arith.constant 7 : index
    %c0_86 = arith.constant 0 : index
    %61 = vector.load %arg8[%c1_84, %c7_85, %c0_86] : memref<18x32x128xbf16, #tpu.memory_space<vmem>>, vector<16x16x128xbf16>
    %c1_87 = arith.constant 1 : index
    %c8_88 = arith.constant 8 : index
    %c0_89 = arith.constant 0 : index
    %62 = vector.load %arg8[%c1_87, %c8_88, %c0_89] : memref<18x32x128xbf16, #tpu.memory_space<vmem>>, vector<16x16x128xbf16>
    %c1_90 = arith.constant 1 : index
    %c9_91 = arith.constant 9 : index
    %c0_92 = arith.constant 0 : index
    %63 = vector.load %arg8[%c1_90, %c9_91, %c0_92] : memref<18x32x128xbf16, #tpu.memory_space<vmem>>, vector<16x16x128xbf16>
    %64 = tpu.concatenate %61, %62, %63 in 2 : vector<16x16x128xbf16>, vector<16x16x128xbf16>, vector<16x16x128xbf16> -> vector<16x16x384xbf16>
    %65 = vector.shape_cast %64 : vector<16x16x384xbf16> to vector<256x384xbf16>
    %c384_93 = arith.constant 384 : index
    %c0_94 = arith.constant 0 : index
    %66 = vector.load %arg4[%c384_93, %c0_94] : memref<1152x128xbf16, #tpu.memory_space<vmem>>, vector<384x128xbf16>
    %cst_95 = arith.constant dense<0.000000e+00> : vector<256x128xf32>
    %67 = tpu.matmul %65, %66, %cst_95 {dimension_numbers = #tpu.dot_dimension_numbers<[1], [0], [0], [1], [0, 0, 1, 1], [], []>} : vector<256x384xbf16>, vector<384x128xbf16>, vector<256x128xf32> -> vector<256x128xf32>
    %68 = arith.addf %60, %67 : vector<256x128xf32>
    %c2_96 = arith.constant 2 : index
    %c7_97 = arith.constant 7 : index
    %c0_98 = arith.constant 0 : index
    %69 = vector.load %arg8[%c2_96, %c7_97, %c0_98] : memref<18x32x128xbf16, #tpu.memory_space<vmem>>, vector<16x16x128xbf16>
    %c2_99 = arith.constant 2 : index
    %c8_100 = arith.constant 8 : index
    %c0_101 = arith.constant 0 : index
    %70 = vector.load %arg8[%c2_99, %c8_100, %c0_101] : memref<18x32x128xbf16, #tpu.memory_space<vmem>>, vector<16x16x128xbf16>
    %c2_102 = arith.constant 2 : index
    %c9_103 = arith.constant 9 : index
    %c0_104 = arith.constant 0 : index
    %71 = vector.load %arg8[%c2_102, %c9_103, %c0_104] : memref<18x32x128xbf16, #tpu.memory_space<vmem>>, vector<16x16x128xbf16>
    %72 = tpu.concatenate %69, %70, %71 in 2 : vector<16x16x128xbf16>, vector<16x16x128xbf16>, vector<16x16x128xbf16> -> vector<16x16x384xbf16>
    %73 = vector.shape_cast %72 : vector<16x16x384xbf16> to vector<256x384xbf16>
    %c768_105 = arith.constant 768 : index
    %c0_106 = arith.constant 0 : index
    %74 = vector.load %arg4[%c768_105, %c0_106] : memref<1152x128xbf16, #tpu.memory_space<vmem>>, vector<384x128xbf16>
    %cst_107 = arith.constant dense<0.000000e+00> : vector<256x128xf32>
    %75 = tpu.matmul %73, %74, %cst_107 {dimension_numbers = #tpu.dot_dimension_numbers<[1], [0], [0], [1], [0, 0, 1, 1], [], []>} : vector<256x384xbf16>, vector<384x128xbf16>, vector<256x128xf32> -> vector<256x128xf32>
    %76 = arith.addf %68, %75 : vector<256x128xf32>
    %c0_108 = arith.constant 0 : index
    %c0_109 = arith.constant 0 : index
    %77 = vector.load %arg5[%c0_108, %c0_109] : memref<1x128xf32, #tpu.memory_space<vmem>>, vector<1x128xf32>
    %78 = vector.broadcast %77 : vector<1x128xf32> to vector<256x128xf32>
    %79 = arith.addf %76, %78 : vector<256x128xf32>
    %c0_110 = arith.constant 0 : index
    %c0_111 = arith.constant 0 : index
    %c0_112 = arith.constant 0 : index
    %c0_113 = arith.constant 0 : index
    %80 = vector.load %arg1[%c0_110, %c0_111, %c0_112, %c0_113] : memref<1x16x16x128xbf16, #tpu.memory_space<vmem>>, vector<1x16x16x128xbf16>
    %81 = vector.shape_cast %80 : vector<1x16x16x128xbf16> to vector<16x16x128xbf16>
    %82 = arith.extf %81 : vector<16x16x128xbf16> to vector<16x16x128xf32>
    %83 = vector.shape_cast %82 : vector<16x16x128xf32> to vector<256x128xf32>
    %84 = arith.addf %79, %83 : vector<256x128xf32>
    %cst_114 = arith.constant 0.000000e+00 : f32
    %85 = vector.broadcast %cst_114 : f32 to vector<256x128xf32>
    %86 = arith.maximumf %84, %85 : vector<256x128xf32>
    %87 = vector.shape_cast %86 : vector<256x128xf32> to vector<16x16x128xf32>
    %88 = arith.truncf %87 : vector<16x16x128xf32> to vector<16x16x128xbf16>
    %c0_115 = arith.constant 0 : index
    %c0_116 = arith.constant 0 : index
    %c0_117 = arith.constant 0 : index
    %c0_118 = arith.constant 0 : index
    %89 = vector.load %arg6[%c0_115, %c0_116, %c0_117, %c0_118] : memref<1x16x16x128xbf16, #tpu.memory_space<vmem>>, vector<1x16x16x128xbf16>
    %90 = vector.shape_cast %89 : vector<1x16x16x128xbf16> to vector<16x16x128xbf16>
    %91 = vector.shape_cast %88 : vector<16x16x128xbf16> to vector<1x16x16x128xbf16>
    tpu.vector_store %arg6[%c0_115, %c0_116, %c0_117, %c0_118], %91 {strides = array<i32>} : memref<1x16x16x128xbf16, #tpu.memory_space<vmem>>, vector<1x16x16x128xbf16>,
    return
  }
  func.func @transform_0(%arg0: i32) -> (i32, i32, i32, i32) {
    %c0_i32 = arith.constant 0 : i32
    %c0_i32_0 = arith.constant 0 : i32
    %c0_i32_1 = arith.constant 0 : i32
    %c0_i32_2 = arith.constant 0 : i32
    return %arg0, %c0_i32, %c0_i32_0, %c0_i32_1 : i32, i32, i32, i32
  }
  func.func @transform_1(%arg0: i32) -> (i32, i32) {
    %c0_i32 = arith.constant 0 : i32
    %c0_i32_0 = arith.constant 0 : i32
    %c0_i32_1 = arith.constant 0 : i32
    return %c0_i32, %c0_i32_0 : i32, i32
  }
  func.func @transform_2(%arg0: i32) -> (i32, i32) {
    %c0_i32 = arith.constant 0 : i32
    %c0_i32_0 = arith.constant 0 : i32
    %c0_i32_1 = arith.constant 0 : i32
    return %c0_i32, %c0_i32_0 : i32, i32
  }
  func.func @transform_3(%arg0: i32) -> (i32, i32) {
    %c0_i32 = arith.constant 0 : i32
    %c0_i32_0 = arith.constant 0 : i32
    %c0_i32_1 = arith.constant 0 : i32
    return %c0_i32, %c0_i32_0 : i32, i32
  }
  func.func @transform_4(%arg0: i32) -> (i32, i32) {
    %c0_i32 = arith.constant 0 : i32
    %c0_i32_0 = arith.constant 0 : i32
    %c0_i32_1 = arith.constant 0 : i32
    return %c0_i32, %c0_i32_0 : i32, i32
  }
  func.func @transform_5(%arg0: i32) -> (i32, i32, i32, i32) {
    %c0_i32 = arith.constant 0 : i32
    %c0_i32_0 = arith.constant 0 : i32
    %c0_i32_1 = arith.constant 0 : i32
    %c0_i32_2 = arith.constant 0 : i32
    return %arg0, %c0_i32, %c0_i32_0, %c0_i32_1 : i32, i32, i32, i32
  }
}

</mosaic_0001>

<llo_original>
// kernel: resblock2_forward.1
$region0: #{resblock2_forward.1}
  #allocation0 [shape = 'u32[]', space=smem, size = 0x4, offset = 0x4, fixed_abs, tag = 'smem constant byte address 0x4 - core index']
  #allocation1 [shape = 'u32[144,128]{1,0:T(1,128)}', space=vmem, size = 0x12000, scoped, tag = 'internal scratch']
  #allocation2 [shape = 'bf16[18,32,128]{2,1,0:T(8,128)(2,1)}', space=vmem, size = 0x24000, scoped, tag = 'scratch operand']
  #allocation3 [shape = 'bf16[18,32,128]{2,1,0:T(8,128)(2,1)}', space=vmem, size = 0x24000, scoped, tag = 'scratch operand']
  %s0 = inlined_call_operand.vmem [shape: bf16[2,16,16,128], index: 0, kind: input, shape index: {}]
  %s1 = inlined_call_operand.vmem [shape: bf16[1152,128], index: 1, kind: input, shape index: {}]
  %s2 = inlined_call_operand.vmem [shape: f32[1,128], index: 2, kind: input, shape index: {}]
  %s3 = inlined_call_operand.hbm [shape: bf16[1152,128], index: 3, kind: input, shape index: {}]
  %s4 = inlined_call_operand.vmem [shape: f32[1,128], index: 4, kind: input, shape index: {}]
  %s5 = inlined_call_operand.vmem [shape: bf16[2,16,16,128], index: 5, kind: output, shape index: {}]
  %s6 = sld [smem:[#allocation0]]
  $region57: #{resblock2_forward.1} parent=0
    _
  %s8 = ssub.s32 1, %s6
  %s9 = scalar_select 0, %s8, %s6
  $region1: #{resblock2_forward.1} parent=0
    #allocation4 [shape = 'u8[294912]{0}', space=vmem, size = 0x48000, scoped, tag = 'input window, operand 3, single buffered']
    #allocation5 [shape = 's32[2]{0}', space=sflag, size = 0x8, scoped, tag = 'scoped memory for resblock2_forward.1']
    %10 = vsyncpa [#allocation5], 0
    loop: start=0, step=1, limit=4
    $region2: #{resblock2_forward.1} parent=1 // loop_pre_header
      _
    $region3: #{resblock2_forward.1} parent=1 // loop_header
      %s12 = sphi 0, %s16
      %p13 = scmp.ge.s32.totalorder %s12, 4
      %s22 = sphi 0, %s24
      %s25 = sphi 0, %s22
      %s26 = sphi 0, %s25
      %s42 = sphi 0, %s26
      %s46 = sphi 0, %s46
      %s48 = sphi 0, %s46
      %s49 = sphi 0, %s48
      %s63 = sphi 0, %s49
      %s67 = sphi 0, %s67
      %s69 = sphi 0, %s67
      %s70 = sphi 0, %s69
      %s84 = sphi 0, %s70
      %s88 = sphi 0, %s88
      %s90 = sphi 0, %s88
      %s91 = sphi 0, %s90
      %s105 = sphi 0, %s91
      %s109 = sphi 0, %s109
      %s111 = sphi 0, %s109
      %s112 = sphi 0, %s111
      %s126 = sphi 0, %s112
      %s132 = sphi 0, %s134
      %s135 = sphi 0, %s132
      %s136 = sphi 0, %s135
      %s152 = sphi 0, %s136
    $region4: #{resblock2_forward.1} parent=1 // loop_header_branch
      %15 = sbr.rel (%p13) target = $region8
    $region5: #{resblock2_forward.1} parent=1 // loop_body
      %s17 = ssub.s32 %s12, 1
      %s18 = ssub.s32 %s12, 2
      %s19 = sadd.s32 %s12, 1
      %s20 = ssub.s32 %s12, %s19
      %p21 = scmp.eq.s32.totalorder %s20, 0
      %s23 = sadd.s32 %s22, 1
      %s24 = scalar_select %p21, %s22, %s23
      %p27 = pneg %p21
      %p28 = scmp.eq.s32.totalorder %s12, 1
      %p29 = por %p27, %p28
      %p30 = scmp.ne.s32.totalorder %s22, %s25
      %p31 = scmp.eq.s32.totalorder %s12, 0
      %p32 = por %p30, %p31
      %p33 = scmp.ne.s32.totalorder %s22, %s25
      %p34 = scmp.eq.s32.totalorder %s17, 1
      %p35 = por %p33, %p34
      %p36 = scmp.ne.s32.totalorder %s25, %s26
      %p37 = scmp.eq.s32.totalorder %s17, 0
      %p38 = por %p36, %p37
      %p39 = scmp.ne.s32.totalorder %s25, %s26
      %p40 = scmp.eq.s32.totalorder %s18, 1
      %p41 = por %p39, %p40
      %p43 = scmp.ne.s32.totalorder %s26, %s42
      %p44 = scmp.eq.s32.totalorder %s18, 0
      %p45 = por %p43, %p44
      %s47 = sadd.s32 %s46, 1
      %p50 = scmp.eq.s32.totalorder %s12, 1
      %p51 = scmp.ne.s32.totalorder %s46, %s48
      %p52 = scmp.eq.s32.totalorder %s12, 0
      %p53 = por %p51, %p52
      %p54 = scmp.ne.s32.totalorder %s46, %s48
      %p55 = scmp.eq.s32.totalorder %s17, 1
      %p56 = por %p54, %p55
      %p57 = scmp.ne.s32.totalorder %s48, %s49
      %p58 = scmp.eq.s32.totalorder %s17, 0
      %p59 = por %p57, %p58
      %p60 = scmp.ne.s32.totalorder %s48, %s49
      %p61 = scmp.eq.s32.totalorder %s18, 1
      %p62 = por %p60, %p61
      %p64 = scmp.ne.s32.totalorder %s49, %s63
      %p65 = scmp.eq.s32.totalorder %s18, 0
      %p66 = por %p64, %p65
      %s68 = sadd.s32 %s67, 1
      %p71 = scmp.eq.s32.totalorder %s12, 1
      %p72 = scmp.ne.s32.totalorder %s67, %s69
      %p73 = scmp.eq.s32.totalorder %s12, 0
      %p74 = por %p72, %p73
      %p75 = scmp.ne.s32.totalorder %s67, %s69
      %p76 = scmp.eq.s32.totalorder %s17, 1
      %p77 = por %p75, %p76
      %p78 = scmp.ne.s32.totalorder %s69, %s70
      %p79 = scmp.eq.s32.totalorder %s17, 0
      %p80 = por %p78, %p79
      %p81 = scmp.ne.s32.totalorder %s69, %s70
      %p82 = scmp.eq.s32.totalorder %s18, 1
      %p83 = por %p81, %p82
      %p85 = scmp.ne.s32.totalorder %s70, %s84
      %p86 = scmp.eq.s32.totalorder %s18, 0
      %p87 = por %p85, %p86
      %s89 = sadd.s32 %s88, 1
      %p92 = scmp.eq.s32.totalorder %s12, 1
      %p93 = scmp.ne.s32.totalorder %s88, %s90
      %p94 = scmp.eq.s32.totalorder %s12, 0
      %p95 = por %p93, %p94
      %p96 = scmp.ne.s32.totalorder %s88, %s90
      %p97 = scmp.eq.s32.totalorder %s17, 1
      %p98 = por %p96, %p97
      %p99 = scmp.ne.s32.totalorder %s90, %s91
      %p100 = scmp.eq.s32.totalorder %s17, 0
      %p101 = por %p99, %p100
      %p102 = scmp.ne.s32.totalorder %s90, %s91
      %p103 = scmp.eq.s32.totalorder %s18, 1
      %p104 = por %p102, %p103
      %p106 = scmp.ne.s32.totalorder %s91, %s105
      %p107 = scmp.eq.s32.totalorder %s18, 0
      %p108 = por %p106, %p107
      %s110 = sadd.s32 %s109, 1
      %p113 = scmp.eq.s32.totalorder %s12, 1
      %p114 = scmp.ne.s32.totalorder %s109, %s111
      %p115 = scmp.eq.s32.totalorder %s12, 0
      %p116 = por %p114, %p115
      %p117 = scmp.ne.s32.totalorder %s109, %s111
      %p118 = scmp.eq.s32.totalorder %s17, 1
      %p119 = por %p117, %p118
      %p120 = scmp.ne.s32.totalorder %s111, %s112
      %p121 = scmp.eq.s32.totalorder %s17, 0
      %p122 = por %p120, %p121
      %p123 = scmp.ne.s32.totalorder %s111, %s112
      %p124 = scmp.eq.s32.totalorder %s18, 1
      %p125 = por %p123, %p124
      %p127 = scmp.ne.s32.totalorder %s112, %s126
      %p128 = scmp.eq.s32.totalorder %s18, 0
      %p129 = por %p127, %p128
      %s130 = ssub.s32 %s12, %s19
      %p131 = scmp.eq.s32.totalorder %s130, 0
      %s133 = sadd.s32 %s132, 1
      %s134 = scalar_select %p131, %s132, %s133
      %p137 = pneg %p131
      %p138 = scmp.eq.s32.totalorder %s12, 1
      %p139 = por %p137, %p138
      %p140 = scmp.ne.s32.totalorder %s132, %s135
      %p141 = scmp.eq.s32.totalorder %s12, 0
      %p142 = por %p140, %p141
      %p143 = scmp.ne.s32.totalorder %s132, %s135
      %p144 = scmp.eq.s32.totalorder %s17, 1
      %p145 = por %p143, %p144
      %p146 = scmp.ne.s32.totalorder %s135, %s136
      %p147 = scmp.eq.s32.totalorder %s17, 0
      %p148 = por %p146, %p147
      %p149 = scmp.ne.s32.totalorder %s135, %s136
      %p150 = scmp.eq.s32.totalorder %s18, 1
      %p151 = por %p149, %p150
      %p153 = scmp.ne.s32.totalorder %s136, %s152
      %p154 = scmp.eq.s32.totalorder %s18, 0
      %p155 = por %p153, %p154
      %p156 = scmp.le.s32.totalorder 1, %s12
      %p157 = scmp.lt.s32.totalorder %s12, 3
      %p158 = pnand %p156, %p157
      %p159 = pneg %p158
      // Predicated region
      $region9: #{resblock2_forward.1} parent=5 // pred_check
        _
      $region10: #{resblock2_forward.1} parent=5 // pred_check_branch
        %161 = sbr.rel (%p158) target = $region12
      $region11: #{resblock2_forward.1} parent=5 // pred_region
        %s162 = ssub.s32 %s12, 1
        // Predicated region
        $region13: #{resblock2_forward.1} parent=11 // pred_check
          %p163 = pneg %p59
        $region14: #{resblock2_forward.1} parent=11 // pred_check_branch
          %165 = sbr.rel (%p163) target = $region16
        $region15: #{resblock2_forward.1} parent=11 // pred_region
          _
        $region16: #{resblock2_forward.1} parent=11 // pred_fallthru
          _
        // Predicated region
        $region17: #{resblock2_forward.1} parent=11 // pred_check
          %p166 = pneg %p80
        $region18: #{resblock2_forward.1} parent=11 // pred_check_branch
          %168 = sbr.rel (%p166) target = $region20
        $region19: #{resblock2_forward.1} parent=11 // pred_region
          _
        $region20: #{resblock2_forward.1} parent=11 // pred_fallthru
          _
        // Predicated region
        $region21: #{resblock2_forward.1} parent=11 // pred_check
          %p169 = pneg %p101
        $region22: #{resblock2_forward.1} parent=11 // pred_check_branch
          %171 = sbr.rel (%p169) target = $region24
        $region23: #{resblock2_forward.1} parent=11 // pred_region
          %s173 = ssub.s32 9216, 9216
          %174 = vsyncadd [#allocation5], %s173
          %s175 = sshll.u32 [#allocation4], 4
          %s176 = int_to_ptr.vmem [resolvable:$true] %s175
          %181 = dma.hbm_to_vmem [thread:$0]  %s3, 9216, %s176, [#allocation5], 64, 64, 4
        $region24: #{resblock2_forward.1} parent=11 // pred_fallthru
          _
        // Predicated region
        $region25: #{resblock2_forward.1} parent=11 // pred_check
          %p182 = pneg %p122
        $region26: #{resblock2_forward.1} parent=11 // pred_check_branch
          %184 = sbr.rel (%p182) target = $region28
        $region27: #{resblock2_forward.1} parent=11 // pred_region
          _
        $region28: #{resblock2_forward.1} parent=11 // pred_fallthru
          _
      $region12: #{resblock2_forward.1} parent=5 // pred_fallthru
        _
      %p185 = scmp.lt.s32.totalorder %s12, 2
      // Predicated region
      $region29: #{resblock2_forward.1} parent=5 // pred_check
        %p186 = pneg %p185
      $region30: #{resblock2_forward.1} parent=5 // pred_check_branch
        %188 = sbr.rel (%p186) target = $region32
      $region31: #{resblock2_forward.1} parent=5 // pred_region
        // Predicated region
        $region33: #{resblock2_forward.1} parent=31 // pred_check
          %p189 = pneg %p32
        $region34: #{resblock2_forward.1} parent=31 // pred_check_branch
          %191 = sbr.rel (%p189) target = $region36
        $region35: #{resblock2_forward.1} parent=31 // pred_region
          %p192 = scmp.lt.s32.totalorder %s12, 1
          %s193 = scalar_select %p192, %s12, 1
          %s194 = smul.addr %s193, 32
          %s195 = smul.addr %s194, 4
          %s196 = scalar_lea.vmem %s0, %s195
        $region36: #{resblock2_forward.1} parent=31 // pred_fallthru
          _
      $region32: #{resblock2_forward.1} parent=5 // pred_fallthru
        _
      %p197 = scmp.le.s32.totalorder 1, %s12
      %p198 = scmp.lt.s32.totalorder %s12, 3
      %p199 = pnand %p197, %p198
      %p200 = pneg %p199
      // Predicated region
      $region37: #{resblock2_forward.1} parent=5 // pred_check
        _
      $region38: #{resblock2_forward.1} parent=5 // pred_check_branch
        %202 = sbr.rel (%p199) target = $region40
      $region39: #{resblock2_forward.1} parent=5 // pred_region
        %s203 = ssub.s32 %s12, 1
        // Predicated region
        $region41: #{resblock2_forward.1} parent=39 // pred_check
          %p204 = pneg %p101
        $region42: #{resblock2_forward.1} parent=39 // pred_check_branch
          %206 = sbr.rel (%p204) target = $region44
        $region43: #{resblock2_forward.1} parent=39 // pred_region
          %207 = dma.done [#allocation5], 9216
        $region44: #{resblock2_forward.1} parent=39 // pred_fallthru
          _
        %p208 = scmp.lt.s32.totalorder %s17, 1
        %s209 = scalar_select %p208, %s17, 1
        %s210 = smul.addr %s209, 32
        %s211 = smul.addr %s210, 4
        %s212 = scalar_lea.vmem %s0, %s211
        %p213 = pneg %p38
        %p214 = pneg %p35
        %p215 = pneg %p59
        %p216 = pneg %p56
        %p217 = pneg %p80
        %p218 = pneg %p77
        %p219 = pneg %p101
        %p220 = pneg %p98
        %p221 = pneg %p122
        %p222 = pneg %p119
        %p223 = pneg %p148
        %p224 = pneg %p145
        %p225 = scmp.lt.s32.totalorder %s17, 1
        %s226 = scalar_select %p225, %s17, 1
        %s227 = smul.addr %s226, 32
        %s228 = smul.addr %s227, 4
        %s229 = scalar_lea.vmem %s5, %s228
        %p230 = scmp.lt.s32.totalorder %s17, 1
        %s231 = scalar_select %p230, %s17, 1
        %s232 = smul.addr %s231, 32
        %s233 = smul.addr %s232, 4
        %s234 = scalar_lea.vmem %s0, %s233
        %p235 = scmp.lt.s32.totalorder %s17, 1
        %s236 = scalar_select %p235, %s17, 1
        %s237 = smul.addr %s236, 32
        %s238 = smul.addr %s237, 4
        %s239 = scalar_lea.vmem %s5, %s238
        %241 = vst [vmem:[#allocation2] sm:$0xf] 0
        %242 = vst [vmem:[#allocation2 + $0x4] sm:$0xf] 0
        %243 = vst [vmem:[#allocation2 + $0x8] sm:$0xf] 0
        %244 = vst [vmem:[#allocation2 + $0xc] sm:$0xf] 0
        %s245 = scalar_lea.vmem [#allocation2], 272
        %246 = vst [vmem:[%s245] sm:$0xf] 0
        %247 = vst [vmem:[%s245 + $0x4] sm:$0xf] 0
        %248 = vst [vmem:[%s245 + $0x8] sm:$0xf] 0
        %249 = vst [vmem:[%s245 + $0xc] sm:$0xf] 0
        %vm250 = vcmask 1043459
        %vm251 = vsmask.f32 7950
        %vm252 = vmand %vm250, %vm251
        %v253 = vld [vmem:[#allocation2] sm:$0x8]
        %v254 = vsel %vm252, 0, %v253
        %255 = vst [vmem:[#allocation2] sm:$0x8] %v254
        %v256 = vld [vmem:[#allocation2 + $0x10] sm:$0x8]
        %v257 = vsel %vm252, 0, %v256
        %258 = vst [vmem:[#allocation2 + $0x10] sm:$0x8] %v257
        %v259 = vld [vmem:[#allocation2 + $0x20] sm:$0x8]
        %v260 = vsel %vm252, 0, %v259
        %261 = vst [vmem:[#allocation2 + $0x20] sm:$0x8] %v260
        %v262 = vld [vmem:[#allocation2 + $0x30] sm:$0x8]
        %v263 = vsel %vm252, 0, %v262
        %264 = vst [vmem:[#allocation2 + $0x30] sm:$0x8] %v263
        %v265 = vld [vmem:[#allocation2 + $0x40] sm:$0x8]
        %v266 = vsel %vm252, 0, %v265
        %267 = vst [vmem:[#allocation2 + $0x40] sm:$0x8] %v266
        %v268 = vld [vmem:[#allocation2 + $0x50] sm:$0x8]
        %v269 = vsel %vm252, 0, %v268
        %270 = vst [vmem:[#allocation2 + $0x50] sm:$0x8] %v269
        %v271 = vld [vmem:[#allocation2 + $0x60] sm:$0x8]
        %v272 = vsel %vm252, 0, %v271
        %273 = vst [vmem:[#allocation2 + $0x60] sm:$0x8] %v272
        %v274 = vld [vmem:[#allocation2 + $0x70] sm:$0x8]
        %v275 = vsel %vm252, 0, %v274
        %276 = vst [vmem:[#allocation2 + $0x70] sm:$0x8] %v275
        %v277 = vld [vmem:[#allocation2 + $0x80] sm:$0x8]
        %v278 = vsel %vm252, 0, %v277
        %279 = vst [vmem:[#allocation2 + $0x80] sm:$0x8] %v278
        %v280 = vld [vmem:[#allocation2 + $0x90] sm:$0x8]
        %v281 = vsel %vm252, 0, %v280
        %282 = vst [vmem:[#allocation2 + $0x90] sm:$0x8] %v281
        %v283 = vld [vmem:[#allocation2 + $0xa0] sm:$0x8]
        %v284 = vsel %vm252, 0, %v283
        %285 = vst [vmem:[#allocation2 + $0xa0] sm:$0x8] %v284
        %v286 = vld [vmem:[#allocation2 + $0xb0] sm:$0x8]
        %v287 = vsel %vm252, 0, %v286
        %288 = vst [vmem:[#allocation2 + $0xb0] sm:$0x8] %v287
        %v289 = vld [vmem:[#allocation2 + $0xc0] sm:$0x8]
        %v290 = vsel %vm252, 0, %v289
        %291 = vst [vmem:[#allocation2 + $0xc0] sm:$0x8] %v290
        %v292 = vld [vmem:[#allocation2 + $0xd0] sm:$0x8]
        %v293 = vsel %vm252, 0, %v292
        %294 = vst [vmem:[#allocation2 + $0xd0] sm:$0x8] %v293
        %v295 = vld [vmem:[#allocation2 + $0xe0] sm:$0x8]
        %v296 = vsel %vm252, 0, %v295
        %297 = vst [vmem:[#allocation2 + $0xe0] sm:$0x8] %v296
        %v298 = vld [vmem:[#allocation2 + $0xf0] sm:$0x8]
        %v299 = vsel %vm252, 0, %v298
        %300 = vst [vmem:[#allocation2 + $0xf0] sm:$0x8] %v299
        %v301 = vld [vmem:[#allocation2 + $0x100] sm:$0x8]
        %v302 = vsel %vm252, 0, %v301
        %303 = vst [vmem:[#allocation2 + $0x100] sm:$0x8] %v302
        %v304 = vld [vmem:[#allocation2 + $0x110] sm:$0x8]
        %v305 = vsel %vm252, 0, %v304
        %306 = vst [vmem:[#allocation2 + $0x110] sm:$0x8] %v305
        %vm307 = vcmask 1040384
        %vm308 = vsmask.f32 256
        %vm309 = vmand %vm307, %vm308
        %v310 = vld [vmem:[#allocation2 + $0xc] sm:$0x1]
        %v311 = vsel %vm309, 0, %v310
        %312 = vst [vmem:[#allocation2 + $0xc] sm:$0x1] %v311
        %v313 = vld [vmem:[#allocation2 + $0x1c] sm:$0x1]
        %v314 = vsel %vm309, 0, %v313
        %315 = vst [vmem:[#allocation2 + $0x1c] sm:$0x1] %v314
        %v316 = vld [vmem:[#allocation2 + $0x2c] sm:$0x1]
        %v317 = vsel %vm309, 0, %v316
        %318 = vst [vmem:[#allocation2 + $0x2c] sm:$0x1] %v317
        %v319 = vld [vmem:[#allocation2 + $0x3c] sm:$0x1]
        %v320 = vsel %vm309, 0, %v319
        %321 = vst [vmem:[#allocation2 + $0x3c] sm:$0x1] %v320
        %v322 = vld [vmem:[#allocation2 + $0x4c] sm:$0x1]
        %v323 = vsel %vm309, 0, %v322
        %324 = vst [vmem:[#allocation2 + $0x4c] sm:$0x1] %v323
        %v325 = vld [vmem:[#allocation2 + $0x5c] sm:$0x1]
        %v326 = vsel %vm309, 0, %v325
        %327 = vst [vmem:[#allocation2 + $0x5c] sm:$0x1] %v326
        %v328 = vld [vmem:[#allocation2 + $0x6c] sm:$0x1]
        %v329 = vsel %vm309, 0, %v328
        %330 = vst [vmem:[#allocation2 + $0x6c] sm:$0x1] %v329
        %v331 = vld [vmem:[#allocation2 + $0x7c] sm:$0x1]
        %v332 = vsel %vm309, 0, %v331
        %333 = vst [vmem:[#allocation2 + $0x7c] sm:$0x1] %v332
        %v334 = vld [vmem:[#allocation2 + $0x8c] sm:$0x1]
        %v335 = vsel %vm309, 0, %v334
        %336 = vst [vmem:[#allocation2 + $0x8c] sm:$0x1] %v335
        %v337 = vld [vmem:[#allocation2 + $0x9c] sm:$0x1]
        %v338 = vsel %vm309, 0, %v337
        %339 = vst [vmem:[#allocation2 + $0x9c] sm:$0x1] %v338
        %v340 = vld [vmem:[#allocation2 + $0xac] sm:$0x1]
        %v341 = vsel %vm309, 0, %v340
        %342 = vst [vmem:[#allocation2 + $0xac] sm:$0x1] %v341
        %v343 = vld [vmem:[#allocation2 + $0xbc] sm:$0x1]
        %v344 = vsel %vm309, 0, %v343
        %345 = vst [vmem:[#allocation2 + $0xbc] sm:$0x1] %v344
        %v346 = vld [vmem:[#allocation2 + $0xcc] sm:$0x1]
        %v347 = vsel %vm309, 0, %v346
        %348 = vst [vmem:[#allocation2 + $0xcc] sm:$0x1] %v347
        %v349 = vld [vmem:[#allocation2 + $0xdc] sm:$0x1]
        %v350 = vsel %vm309, 0, %v349
        %351 = vst [vmem:[#allocation2 + $0xdc] sm:$0x1] %v350
        %v352 = vld [vmem:[#allocation2 + $0xec] sm:$0x1]
        %v353 = vsel %vm309, 0, %v352
        %354 = vst [vmem:[#allocation2 + $0xec] sm:$0x1] %v353
        %v355 = vld [vmem:[#allocation2 + $0xfc] sm:$0x1]
        %v356 = vsel %vm309, 0, %v355
        %357 = vst [vmem:[#allocation2 + $0xfc] sm:$0x1] %v356
        %v358 = vld [vmem:[#allocation2 + $0x10c] sm:$0x1]
        %v359 = vsel %vm309, 0, %v358
        %360 = vst [vmem:[#allocation2 + $0x10c] sm:$0x1] %v359
        %v361 = vld [vmem:[#allocation2 + $0x11c] sm:$0x1]
        %v362 = vsel %vm309, 0, %v361
        %363 = vst [vmem:[#allocation2 + $0x11c] sm:$0x1] %v362
        %364 = vst [vmem:[#allocation3] sm:$0xf] 0
        %365 = vst [vmem:[#allocation3 + $0x4] sm:$0xf] 0
        %366 = vst [vmem:[#allocation3 + $0x8] sm:$0xf] 0
        %367 = vst [vmem:[#allocation3 + $0xc] sm:$0xf] 0
        %s368 = scalar_lea.vmem [#allocation3], 272
        %369 = vst [vmem:[%s368] sm:$0xf] 0
        %370 = vst [vmem:[%s368 + $0x4] sm:$0xf] 0
        %371 = vst [vmem:[%s368 + $0x8] sm:$0xf] 0
        %372 = vst [vmem:[%s368 + $0xc] sm:$0xf] 0
        %v373 = vld [vmem:[#allocation3] sm:$0x8]
        %v374 = vsel %vm252, 0, %v373
        %375 = vst [vmem:[#allocation3] sm:$0x8] %v374
        %v376 = vld [vmem:[#allocation3 + $0x10] sm:$0x8]
        %v377 = vsel %vm252, 0, %v376
        %378 = vst [vmem:[#allocation3 + $0x10] sm:$0x8] %v377
        %v379 = vld [vmem:[#allocation3 + $0x20] sm:$0x8]
        %v380 = vsel %vm252, 0, %v379
        %381 = vst [vmem:[#allocation3 + $0x20] sm:$0x8] %v380
        %v382 = vld [vmem:[#allocation3 + $0x30] sm:$0x8]
        %v383 = vsel %vm252, 0, %v382
        %384 = vst [vmem:[#allocation3 + $0x30] sm:$0x8] %v383
        %v385 = vld [vmem:[#allocation3 + $0x40] sm:$0x8]
        %v386 = vsel %vm252, 0, %v385
        %387 = vst [vmem:[#allocation3 + $0x40] sm:$0x8] %v386
        %v388 = vld [vmem:[#allocation3 + $0x50] sm:$0x8]
        %v389 = vsel %vm252, 0, %v388
        %390 = vst [vmem:[#allocation3 + $0x50] sm:$0x8] %v389
        %v391 = vld [vmem:[#allocation3 + $0x60] sm:$0x8]
        %v392 = vsel %vm252, 0, %v391
        %393 = vst [vmem:[#allocation3 + $0x60] sm:$0x8] %v392
        %v394 = vld [vmem:[#allocation3 + $0x70] sm:$0x8]
        %v395 = vsel %vm252, 0, %v394
        %396 = vst [vmem:[#allocation3 + $0x70] sm:$0x8] %v395
        %v397 = vld [vmem:[#allocation3 + $0x80] sm:$0x8]
        %v398 = vsel %vm252, 0, %v397
        %399 = vst [vmem:[#allocation3 + $0x80] sm:$0x8] %v398
        %v400 = vld [vmem:[#allocation3 + $0x90] sm:$0x8]
        %v401 = vsel %vm252, 0, %v400
        %402 = vst [vmem:[#allocation3 + $0x90] sm:$0x8] %v401
        %v403 = vld [vmem:[#allocation3 + $0xa0] sm:$0x8]
        %v404 = vsel %vm252, 0, %v403
        %405 = vst [vmem:[#allocation3 + $0xa0] sm:$0x8] %v404
        %v406 = vld [vmem:[#allocation3 + $0xb0] sm:$0x8]
        %v407 = vsel %vm252, 0, %v406
        %408 = vst [vmem:[#allocation3 + $0xb0] sm:$0x8] %v407
        %v409 = vld [vmem:[#allocation3 + $0xc0] sm:$0x8]
        %v410 = vsel %vm252, 0, %v409
        %411 = vst [vmem:[#allocation3 + $0xc0] sm:$0x8] %v410
        %v412 = vld [vmem:[#allocation3 + $0xd0] sm:$0x8]
        %v413 = vsel %vm252, 0, %v412
        %414 = vst [vmem:[#allocation3 + $0xd0] sm:$0x8] %v413
        %v415 = vld [vmem:[#allocation3 + $0xe0] sm:$0x8]
        %v416 = vsel %vm252, 0, %v415
        %417 = vst [vmem:[#allocation3 + $0xe0] sm:$0x8] %v416
        %v418 = vld [vmem:[#allocation3 + $0xf0] sm:$0x8]
        %v419 = vsel %vm252, 0, %v418
        %420 = vst [vmem:[#allocation3 + $0xf0] sm:$0x8] %v419
        %v421 = vld [vmem:[#allocation3 + $0x100] sm:$0x8]
        %v422 = vsel %vm252, 0, %v421
        %423 = vst [vmem:[#allocation3 + $0x100] sm:$0x8] %v422
        %v424 = vld [vmem:[#allocation3 + $0x110] sm:$0x8]
        %v425 = vsel %vm252, 0, %v424
        %426 = vst [vmem:[#allocation3 + $0x110] sm:$0x8] %v425
        %v427 = vld [vmem:[#allocation3 + $0xc] sm:$0x1]
        %v428 = vsel %vm309, 0, %v427
        %429 = vst [vmem:[#allocation3 + $0xc] sm:$0x1] %v428
        %v430 = vld [vmem:[#allocation3 + $0x1c] sm:$0x1]
        %v431 = vsel %vm309, 0, %v430
        %432 = vst [vmem:[#allocation3 + $0x1c] sm:$0x1] %v431
        %v433 = vld [vmem:[#allocation3 + $0x2c] sm:$0x1]
        %v434 = vsel %vm309, 0, %v433
        %435 = vst [vmem:[#allocation3 + $0x2c] sm:$0x1] %v434
        %v436 = vld [vmem:[#allocation3 + $0x3c] sm:$0x1]
        %v437 = vsel %vm309, 0, %v436
        %438 = vst [vmem:[#allocation3 + $0x3c] sm:$0x1] %v437
        %v439 = vld [vmem:[#allocation3 + $0x4c] sm:$0x1]
        %v440 = vsel %vm309, 0, %v439
        %441 = vst [vmem:[#allocation3 + $0x4c] sm:$0x1] %v440
        %v442 = vld [vmem:[#allocation3 + $0x5c] sm:$0x1]
        %v443 = vsel %vm309, 0, %v442
        %444 = vst [vmem:[#allocation3 + $0x5c] sm:$0x1] %v443
        %v445 = vld [vmem:[#allocation3 + $0x6c] sm:$0x1]
        %v446 = vsel %vm309, 0, %v445
        %447 = vst [vmem:[#allocation3 + $0x6c] sm:$0x1] %v446
        %v448 = vld [vmem:[#allocation3 + $0x7c] sm:$0x1]
        %v449 = vsel %vm309, 0, %v448
        %450 = vst [vmem:[#allocation3 + $0x7c] sm:$0x1] %v449
        %v451 = vld [vmem:[#allocation3 + $0x8c] sm:$0x1]
        %v452 = vsel %vm309, 0, %v451
        %453 = vst [vmem:[#allocation3 + $0x8c] sm:$0x1] %v452
        %v454 = vld [vmem:[#allocation3 + $0x9c] sm:$0x1]
        %v455 = vsel %vm309, 0, %v454
        %456 = vst [vmem:[#allocation3 + $0x9c] sm:$0x1] %v455
        %v457 = vld [vmem:[#allocation3 + $0xac] sm:$0x1]
        %v458 = vsel %vm309, 0, %v457
        %459 = vst [vmem:[#allocation3 + $0xac] sm:$0x1] %v458
        %v460 = vld [vmem:[#allocation3 + $0xbc] sm:$0x1]
        %v461 = vsel %vm309, 0, %v460
        %462 = vst [vmem:[#allocation3 + $0xbc] sm:$0x1] %v461
        %v463 = vld [vmem:[#allocation3 + $0xcc] sm:$0x1]
        %v464 = vsel %vm309, 0, %v463
        %465 = vst [vmem:[#allocation3 + $0xcc] sm:$0x1] %v464
        %v466 = vld [vmem:[#allocation3 + $0xdc] sm:$0x1]
        %v467 = vsel %vm309, 0, %v466
        %468 = vst [vmem:[#allocation3 + $0xdc] sm:$0x1] %v467
        %v469 = vld [vmem:[#allocation3 + $0xec] sm:$0x1]
        %v470 = vsel %vm309, 0, %v469
        %471 = vst [vmem:[#allocation3 + $0xec] sm:$0x1] %v470
        %v472 = vld [vmem:[#allocation3 + $0xfc] sm:$0x1]
        %v473 = vsel %vm309, 0, %v472
        %474 = vst [vmem:[#allocation3 + $0xfc] sm:$0x1] %v473
        %v475 = vld [vmem:[#allocation3 + $0x10c] sm:$0x1]
        %v476 = vsel %vm309, 0, %v475
        %477 = vst [vmem:[#allocation3 + $0x10c] sm:$0x1] %v476
        %v478 = vld [vmem:[#allocation3 + $0x11c] sm:$0x1]
        %v479 = vsel %vm309, 0, %v478
        %480 = vst [vmem:[#allocation3 + $0x11c] sm:$0x1] %v479
        %v481 = vld [vmem:[%s234] sm:$0xf]
        %v482 = vld [vmem:[%s234 + $0x4] sm:$0xf]
        %v483 = vld [vmem:[%s234 + $0x8] sm:$0xf]
        %v484 = vld [vmem:[%s234 + $0xc] sm:$0xf]
        %v485 = vld [vmem:[%s234 + $0x10] sm:$0xf]
        %v486 = vld [vmem:[%s234 + $0x14] sm:$0xf]
        %v487 = vld [vmem:[%s234 + $0x18] sm:$0xf]
        %v488 = vld [vmem:[%s234 + $0x1c] sm:$0xf]
        %v489 = vld [vmem:[%s234 + $0x20] sm:$0xf]
        %v490 = vld [vmem:[%s234 + $0x24] sm:$0xf]
        %v491 = vld [vmem:[%s234 + $0x28] sm:$0xf]
        %v492 = vld [vmem:[%s234 + $0x2c] sm:$0xf]
        %v493 = vld [vmem:[%s234 + $0x30] sm:$0xf]
        %v494 = vld [vmem:[%s234 + $0x34] sm:$0xf]
        %v495 = vld [vmem:[%s234 + $0x38] sm:$0xf]
        %v496 = vld [vmem:[%s234 + $0x3c] sm:$0xf]
        %v497 = vld [vmem:[%s234 + $0x40] sm:$0xf]
        %v498 = vld [vmem:[%s234 + $0x44] sm:$0xf]
        %v499 = vld [vmem:[%s234 + $0x48] sm:$0xf]
        %v500 = vld [vmem:[%s234 + $0x4c] sm:$0xf]
        %v501 = vld [vmem:[%s234 + $0x50] sm:$0xf]
        %v502 = vld [vmem:[%s234 + $0x54] sm:$0xf]
        %v503 = vld [vmem:[%s234 + $0x58] sm:$0xf]
        %v504 = vld [vmem:[%s234 + $0x5c] sm:$0xf]
        %v505 = vld [vmem:[%s234 + $0x60] sm:$0xf]
        %v506 = vld [vmem:[%s234 + $0x64] sm:$0xf]
        %v507 = vld [vmem:[%s234 + $0x68] sm:$0xf]
        %v508 = vld [vmem:[%s234 + $0x6c] sm:$0xf]
        %v509 = vld [vmem:[%s234 + $0x70] sm:$0xf]
        %v510 = vld [vmem:[%s234 + $0x74] sm:$0xf]
        %v511 = vld [vmem:[%s234 + $0x78] sm:$0xf]
        %v512 = vld [vmem:[%s234 + $0x7c] sm:$0xf]
        %s513 = scalar_lea.vmem [#allocation2], 16
        %514 = vst [vmem:[%s513 + $0x4] sm:$0xf] %v481
        %515 = vst [vmem:[%s513 + $0x8] sm:$0xf] %v482
        %516 = vst [vmem:[%s513 + $0x14] sm:$0xf] %v483
        %517 = vst [vmem:[%s513 + $0x18] sm:$0xf] %v484
        %518 = vst [vmem:[%s513 + $0x24] sm:$0xf] %v485
        %519 = vst [vmem:[%s513 + $0x28] sm:$0xf] %v486
        %520 = vst [vmem:[%s513 + $0x34] sm:$0xf] %v487
        %521 = vst [vmem:[%s513 + $0x38] sm:$0xf] %v488
        %522 = vst [vmem:[%s513 + $0x44] sm:$0xf] %v489
        %523 = vst [vmem:[%s513 + $0x48] sm:$0xf] %v490
        %524 = vst [vmem:[%s513 + $0x54] sm:$0xf] %v491
        %525 = vst [vmem:[%s513 + $0x58] sm:$0xf] %v492
        %526 = vst [vmem:[%s513 + $0x64] sm:$0xf] %v493
        %527 = vst [vmem:[%s513 + $0x68] sm:$0xf] %v494
        %528 = vst [vmem:[%s513 + $0x74] sm:$0xf] %v495
        %529 = vst [vmem:[%s513 + $0x78] sm:$0xf] %v496
        %530 = vst [vmem:[%s513 + $0x84] sm:$0xf] %v497
        %531 = vst [vmem:[%s513 + $0x88] sm:$0xf] %v498
        %532 = vst [vmem:[%s513 + $0x94] sm:$0xf] %v499
        %533 = vst [vmem:[%s513 + $0x98] sm:$0xf] %v500
        %534 = vst [vmem:[%s513 + $0xa4] sm:$0xf] %v501
        %535 = vst [vmem:[%s513 + $0xa8] sm:$0xf] %v502
        %536 = vst [vmem:[%s513 + $0xb4] sm:$0xf] %v503
        %537 = vst [vmem:[%s513 + $0xb8] sm:$0xf] %v504
        %538 = vst [vmem:[%s513 + $0xc4] sm:$0xf] %v505
        %539 = vst [vmem:[%s513 + $0xc8] sm:$0xf] %v506
        %540 = vst [vmem:[%s513 + $0xd4] sm:$0xf] %v507
        %541 = vst [vmem:[%s513 + $0xd8] sm:$0xf] %v508
        %542 = vst [vmem:[%s513 + $0xe4] sm:$0xf] %v509
        %543 = vst [vmem:[%s513 + $0xe8] sm:$0xf] %v510
        %544 = vst [vmem:[%s513 + $0xf4] sm:$0xf] %v511
        %545 = vst [vmem:[%s513 + $0xf8] sm:$0xf] %v512
        %v546 = vld [vmem:[#allocation2] sm:$0x8]
        %v547 = vld [vmem:[#allocation2 + $0x4] sm:$0xf]
        %v548 = vld [vmem:[#allocation2 + $0x8] sm:$0xf]
        %v549 = vld [vmem:[#allocation2 + $0x10] sm:$0x8]
        %v550 = vld [vmem:[#allocation2 + $0x14] sm:$0xf]
        %v551 = vld [vmem:[#allocation2 + $0x18] sm:$0xf]
        %v552 = vld [vmem:[#allocation2 + $0x20] sm:$0x8]
        %v553 = vld [vmem:[#allocation2 + $0x24] sm:$0xf]
        %v554 = vld [vmem:[#allocation2 + $0x28] sm:$0xf]
        %v555 = vld [vmem:[#allocation2 + $0x30] sm:$0x8]
        %v556 = vld [vmem:[#allocation2 + $0x34] sm:$0xf]
        %v557 = vld [vmem:[#allocation2 + $0x38] sm:$0xf]
        %v558 = vld [vmem:[#allocation2 + $0x40] sm:$0x8]
        %v559 = vld [vmem:[#allocation2 + $0x44] sm:$0xf]
        %v560 = vld [vmem:[#allocation2 + $0x48] sm:$0xf]
        %v561 = vld [vmem:[#allocation2 + $0x50] sm:$0x8]
        %v562 = vld [vmem:[#allocation2 + $0x54] sm:$0xf]
        %v563 = vld [vmem:[#allocation2 + $0x58] sm:$0xf]
        %v564 = vld [vmem:[#allocation2 + $0x60] sm:$0x8]
        %v565 = vld [vmem:[#allocation2 + $0x64] sm:$0xf]
        %v566 = vld [vmem:[#allocation2 + $0x68] sm:$0xf]
        %v567 = vld [vmem:[#allocation2 + $0x70] sm:$0x8]
        %v568 = vld [vmem:[#allocation2 + $0x74] sm:$0xf]
        %v569 = vld [vmem:[#allocation2 + $0x78] sm:$0xf]
        %v570 = vld [vmem:[#allocation2 + $0x80] sm:$0x8]
        %v571 = vld [vmem:[#allocation2 + $0x84] sm:$0xf]
        %v572 = vld [vmem:[#allocation2 + $0x88] sm:$0xf]
        %v573 = vld [vmem:[#allocation2 + $0x90] sm:$0x8]
        %v574 = vld [vmem:[#allocation2 + $0x94] sm:$0xf]
        %v575 = vld [vmem:[#allocation2 + $0x98] sm:$0xf]
        %v576 = vld [vmem:[#allocation2 + $0xa0] sm:$0x8]
        %v577 = vld [vmem:[#allocation2 + $0xa4] sm:$0xf]
        %v578 = vld [vmem:[#allocation2 + $0xa8] sm:$0xf]
        %v579 = vld [vmem:[#allocation2 + $0xb0] sm:$0x8]
        %v580 = vld [vmem:[#allocation2 + $0xb4] sm:$0xf]
        %v581 = vld [vmem:[#allocation2 + $0xb8] sm:$0xf]
        %v582 = vld [vmem:[#allocation2 + $0xc0] sm:$0x8]
        %v583 = vld [vmem:[#allocation2 + $0xc4] sm:$0xf]
        %v584 = vld [vmem:[#allocation2 + $0xc8] sm:$0xf]
        %v585 = vld [vmem:[#allocation2 + $0xd0] sm:$0x8]
        %v586 = vld [vmem:[#allocation2 + $0xd4] sm:$0xf]
        %v587 = vld [vmem:[#allocation2 + $0xd8] sm:$0xf]
        %v588 = vld [vmem:[#allocation2 + $0xe0] sm:$0x8]
        %v589 = vld [vmem:[#allocation2 + $0xe4] sm:$0xf]
        %v590 = vld [vmem:[#allocation2 + $0xe8] sm:$0xf]
        %v591 = vld [vmem:[#allocation2 + $0xf0] sm:$0x8]
        %v592 = vld [vmem:[#allocation2 + $0xf4] sm:$0xf]
        %v593 = vld [vmem:[#allocation2 + $0xf8] sm:$0xf]
        %v594 = vld [vmem:[#allocation2 + $0xc] sm:$0x1]
        %v595 = vld [vmem:[#allocation2 + $0x1c] sm:$0x1]
        %v596 = vld [vmem:[#allocation2 + $0x2c] sm:$0x1]
        %v597 = vld [vmem:[#allocation2 + $0x3c] sm:$0x1]
        %v598 = vld [vmem:[#allocation2 + $0x4c] sm:$0x1]
        %v599 = vld [vmem:[#allocation2 + $0x5c] sm:$0x1]
        %v600 = vld [vmem:[#allocation2 + $0x6c] sm:$0x1]
        %v601 = vld [vmem:[#allocation2 + $0x7c] sm:$0x1]
        %v602 = vld [vmem:[#allocation2 + $0x8c] sm:$0x1]
        %v603 = vld [vmem:[#allocation2 + $0x9c] sm:$0x1]
        %v604 = vld [vmem:[#allocation2 + $0xac] sm:$0x1]
        %v605 = vld [vmem:[#allocation2 + $0xbc] sm:$0x1]
        %v606 = vld [vmem:[#allocation2 + $0xcc] sm:$0x1]
        %v607 = vld [vmem:[#allocation2 + $0xdc] sm:$0x1]
        %v608 = vld [vmem:[#allocation2 + $0xec] sm:$0x1]
        %v609 = vld [vmem:[#allocation2 + $0xfc] sm:$0x1]
        %v658 = vunpack.c.l.b16 %v546
        %v659 = vunpack.c.l.b16 %v547
        %v660 = vunpack.c.l.b16 %v548
        %v661 = vunpack.c.l.b16 %v549
        %v662 = vunpack.c.l.b16 %v550
        %v663 = vunpack.c.l.b16 %v551
        %v664 = vunpack.c.l.b16 %v552
        %v665 = vunpack.c.l.b16 %v553
        %v666 = vunpack.c.l.b16 %v554
        %v667 = vunpack.c.l.b16 %v555
        %v668 = vunpack.c.l.b16 %v556
        %v669 = vunpack.c.l.b16 %v557
        %v670 = vunpack.c.l.b16 %v558
        %v671 = vunpack.c.l.b16 %v559
        %v672 = vunpack.c.l.b16 %v560
        %v673 = vunpack.c.l.b16 %v561
        %v674 = vunpack.c.l.b16 %v562
        %v675 = vunpack.c.l.b16 %v563
        %v676 = vunpack.c.l.b16 %v564
        %v677 = vunpack.c.l.b16 %v565
        %v678 = vunpack.c.l.b16 %v566
        %v679 = vunpack.c.l.b16 %v567
        %v680 = vunpack.c.l.b16 %v568
        %v681 = vunpack.c.l.b16 %v569
        %v682 = vunpack.c.l.b16 %v570
        %v683 = vunpack.c.l.b16 %v571
        %v684 = vunpack.c.l.b16 %v572
        %v685 = vunpack.c.l.b16 %v573
        %v686 = vunpack.c.l.b16 %v574
        %v687 = vunpack.c.l.b16 %v575
        %v688 = vunpack.c.l.b16 %v576
        %v689 = vunpack.c.l.b16 %v577
        %v690 = vunpack.c.l.b16 %v578
        %v691 = vunpack.c.l.b16 %v579
        %v692 = vunpack.c.l.b16 %v580
        %v693 = vunpack.c.l.b16 %v581
        %v694 = vunpack.c.l.b16 %v582
        %v695 = vunpack.c.l.b16 %v583
        %v696 = vunpack.c.l.b16 %v584
        %v697 = vunpack.c.l.b16 %v585
        %v698 = vunpack.c.l.b16 %v586
        %v699 = vunpack.c.l.b16 %v587
        %v700 = vunpack.c.l.b16 %v588
        %v701 = vunpack.c.l.b16 %v589
        %v702 = vunpack.c.l.b16 %v590
        %v703 = vunpack.c.l.b16 %v591
        %v704 = vunpack.c.l.b16 %v592
        %v705 = vunpack.c.l.b16 %v593
        %v706 = vpack.c.b16 %v659, %v658
        %v707 = vpack.c.b16 %v660, %v660
        %v708 = vpack.c.b16 %v662, %v661
        %v709 = vpack.c.b16 %v663, %v663
        %v710 = vpack.c.b16 %v665, %v664
        %v711 = vpack.c.b16 %v666, %v666
        %v712 = vpack.c.b16 %v668, %v667
        %v713 = vpack.c.b16 %v669, %v669
        %v714 = vpack.c.b16 %v671, %v670
        %v715 = vpack.c.b16 %v672, %v672
        %v716 = vpack.c.b16 %v674, %v673
        %v717 = vpack.c.b16 %v675, %v675
        %v718 = vpack.c.b16 %v677, %v676
        %v719 = vpack.c.b16 %v678, %v678
        %v720 = vpack.c.b16 %v680, %v679
        %v721 = vpack.c.b16 %v681, %v681
        %v722 = vpack.c.b16 %v683, %v682
        %v723 = vpack.c.b16 %v684, %v684
        %v724 = vpack.c.b16 %v686, %v685
        %v725 = vpack.c.b16 %v687, %v687
        %v726 = vpack.c.b16 %v689, %v688
        %v727 = vpack.c.b16 %v690, %v690
        %v728 = vpack.c.b16 %v692, %v691
        %v729 = vpack.c.b16 %v693, %v693
        %v730 = vpack.c.b16 %v695, %v694
        %v731 = vpack.c.b16 %v696, %v696
        %v732 = vpack.c.b16 %v698, %v697
        %v733 = vpack.c.b16 %v699, %v699
        %v734 = vpack.c.b16 %v701, %v700
        %v735 = vpack.c.b16 %v702, %v702
        %v736 = vpack.c.b16 %v704, %v703
        %v737 = vpack.c.b16 %v705, %v705
        %v738 = vpack.c.b16 %v660, %v659
        %v739 = vpack.c.b16 %v663, %v662
        %v740 = vpack.c.b16 %v666, %v665
        %v741 = vpack.c.b16 %v669, %v668
        %v742 = vpack.c.b16 %v672, %v671
        %v743 = vpack.c.b16 %v675, %v674
        %v744 = vpack.c.b16 %v678, %v677
        %v745 = vpack.c.b16 %v681, %v680
        %v746 = vpack.c.b16 %v684, %v683
        %v747 = vpack.c.b16 %v687, %v686
        %v748 = vpack.c.b16 %v690, %v689
        %v749 = vpack.c.b16 %v693, %v692
        %v750 = vpack.c.b16 %v696, %v695
        %v751 = vpack.c.b16 %v699, %v698
        %v752 = vpack.c.b16 %v702, %v701
        %v753 = vpack.c.b16 %v705, %v704
        %v755 = vshrl.u32 %v738, 16
        %v757 = vrot.slane %v755, 4
        %v758 = vshll.u32 %v738, 16
        %v760 = vrot.slane %v758, 5
        %v761 = vor.u32 %v757, %v760
        %v763 = vshrl.u32 %v739, 16
        %v765 = vrot.slane %v763, 4
        %v766 = vshll.u32 %v739, 16
        %v768 = vrot.slane %v766, 5
        %v769 = vor.u32 %v765, %v768
        %v771 = vshrl.u32 %v740, 16
        %v773 = vrot.slane %v771, 4
        %v774 = vshll.u32 %v740, 16
        %v776 = vrot.slane %v774, 5
        %v777 = vor.u32 %v773, %v776
        %v779 = vshrl.u32 %v741, 16
        %v781 = vrot.slane %v779, 4
        %v782 = vshll.u32 %v741, 16
        %v784 = vrot.slane %v782, 5
        %v785 = vor.u32 %v781, %v784
        %v787 = vshrl.u32 %v742, 16
        %v789 = vrot.slane %v787, 4
        %v790 = vshll.u32 %v742, 16
        %v792 = vrot.slane %v790, 5
        %v793 = vor.u32 %v789, %v792
        %v795 = vshrl.u32 %v743, 16
        %v797 = vrot.slane %v795, 4
        %v798 = vshll.u32 %v743, 16
        %v800 = vrot.slane %v798, 5
        %v801 = vor.u32 %v797, %v800
        %v803 = vshrl.u32 %v744, 16
        %v805 = vrot.slane %v803, 4
        %v806 = vshll.u32 %v744, 16
        %v808 = vrot.slane %v806, 5
        %v809 = vor.u32 %v805, %v808
        %v811 = vshrl.u32 %v745, 16
        %v813 = vrot.slane %v811, 4
        %v814 = vshll.u32 %v745, 16
        %v816 = vrot.slane %v814, 5
        %v817 = vor.u32 %v813, %v816
        %v819 = vshrl.u32 %v746, 16
        %v821 = vrot.slane %v819, 4
        %v822 = vshll.u32 %v746, 16
        %v824 = vrot.slane %v822, 5
        %v825 = vor.u32 %v821, %v824
        %v827 = vshrl.u32 %v747, 16
        %v829 = vrot.slane %v827, 4
        %v830 = vshll.u32 %v747, 16
        %v832 = vrot.slane %v830, 5
        %v833 = vor.u32 %v829, %v832
        %v835 = vshrl.u32 %v748, 16
        %v837 = vrot.slane %v835, 4
        %v838 = vshll.u32 %v748, 16
        %v840 = vrot.slane %v838, 5
        %v841 = vor.u32 %v837, %v840
        %v843 = vshrl.u32 %v749, 16
        %v845 = vrot.slane %v843, 4
        %v846 = vshll.u32 %v749, 16
        %v848 = vrot.slane %v846, 5
        %v849 = vor.u32 %v845, %v848
        %v851 = vshrl.u32 %v750, 16
        %v853 = vrot.slane %v851, 4
        %v854 = vshll.u32 %v750, 16
        %v856 = vrot.slane %v854, 5
        %v857 = vor.u32 %v853, %v856
        %v859 = vshrl.u32 %v751, 16
        %v861 = vrot.slane %v859, 4
        %v862 = vshll.u32 %v751, 16
        %v864 = vrot.slane %v862, 5
        %v865 = vor.u32 %v861, %v864
        %v867 = vshrl.u32 %v752, 16
        %v869 = vrot.slane %v867, 4
        %v870 = vshll.u32 %v752, 16
        %v872 = vrot.slane %v870, 5
        %v873 = vor.u32 %v869, %v872
        %v875 = vshrl.u32 %v753, 16
        %v877 = vrot.slane %v875, 4
        %v878 = vshll.u32 %v753, 16
        %v880 = vrot.slane %v878, 5
        %v881 = vor.u32 %v877, %v880
        %v898 = vunpack.c.l.b16 %v594
        %v899 = vunpack.c.l.b16 %v595
        %v900 = vunpack.c.l.b16 %v596
        %v901 = vunpack.c.l.b16 %v597
        %v902 = vunpack.c.l.b16 %v598
        %v903 = vunpack.c.l.b16 %v599
        %v904 = vunpack.c.l.b16 %v600
        %v905 = vunpack.c.l.b16 %v601
        %v906 = vunpack.c.l.b16 %v602
        %v907 = vunpack.c.l.b16 %v603
        %v908 = vunpack.c.l.b16 %v604
        %v909 = vunpack.c.l.b16 %v605
        %v910 = vunpack.c.l.b16 %v606
        %v911 = vunpack.c.l.b16 %v607
        %v912 = vunpack.c.l.b16 %v608
        %v913 = vunpack.c.l.b16 %v609
        %v914 = vpack.c.b16 %v898, %v898
        %v915 = vpack.c.b16 %v899, %v899
        %v916 = vpack.c.b16 %v900, %v900
        %v917 = vpack.c.b16 %v901, %v901
        %v918 = vpack.c.b16 %v902, %v902
        %v919 = vpack.c.b16 %v903, %v903
        %v920 = vpack.c.b16 %v904, %v904
        %v921 = vpack.c.b16 %v905, %v905
        %v922 = vpack.c.b16 %v906, %v906
        %v923 = vpack.c.b16 %v907, %v907
        %v924 = vpack.c.b16 %v908, %v908
        %v925 = vpack.c.b16 %v909, %v909
        %v926 = vpack.c.b16 %v910, %v910
        %v927 = vpack.c.b16 %v911, %v911
        %v928 = vpack.c.b16 %v912, %v912
        %v929 = vpack.c.b16 %v913, %v913
        %vm930 = vcmask 1042432
        %v931 = vrot.slane %v738, 5
        %v932 = vrot.slane %v914, 5
        %v933 = vsel %vm930, %v931, %v932
        %v934 = vrot.slane %v739, 5
        %v935 = vrot.slane %v915, 5
        %v936 = vsel %vm930, %v934, %v935
        %v937 = vrot.slane %v740, 5
        %v938 = vrot.slane %v916, 5
        %v939 = vsel %vm930, %v937, %v938
        %v940 = vrot.slane %v741, 5
        %v941 = vrot.slane %v917, 5
        %v942 = vsel %vm930, %v940, %v941
        %v943 = vrot.slane %v742, 5
        %v944 = vrot.slane %v918, 5
        %v945 = vsel %vm930, %v943, %v944
        %v946 = vrot.slane %v743, 5
        %v947 = vrot.slane %v919, 5
        %v948 = vsel %vm930, %v946, %v947
        %v949 = vrot.slane %v744, 5
        %v950 = vrot.slane %v920, 5
        %v951 = vsel %vm930, %v949, %v950
        %v952 = vrot.slane %v745, 5
        %v953 = vrot.slane %v921, 5
        %v954 = vsel %vm930, %v952, %v953
        %v955 = vrot.slane %v746, 5
        %v956 = vrot.slane %v922, 5
        %v957 = vsel %vm930, %v955, %v956
        %v958 = vrot.slane %v747, 5
        %v959 = vrot.slane %v923, 5
        %v960 = vsel %vm930, %v958, %v959
        %v961 = vrot.slane %v748, 5
        %v962 = vrot.slane %v924, 5
        %v963 = vsel %vm930, %v961, %v962
        %v964 = vrot.slane %v749, 5
        %v965 = vrot.slane %v925, 5
        %v966 = vsel %vm930, %v964, %v965
        %v967 = vrot.slane %v750, 5
        %v968 = vrot.slane %v926, 5
        %v969 = vsel %vm930, %v967, %v968
        %v970 = vrot.slane %v751, 5
        %v971 = vrot.slane %v927, 5
        %v972 = vsel %vm930, %v970, %v971
        %v973 = vrot.slane %v752, 5
        %v974 = vrot.slane %v928, 5
        %v975 = vsel %vm930, %v973, %v974
        %v976 = vrot.slane %v753, 5
        %v977 = vrot.slane %v929, 5
        %v978 = vsel %vm930, %v976, %v977
        %vm979 = vsmask.f32 4352
        %v981 = vshrl.u32 %v706, 16
        %v983 = vrot.slane %v981, 3
        %v984 = vshll.u32 %v706, 16
        %v986 = vrot.slane %v984, 4
        %v987 = vor.u32 %v983, %v986
        %v989 = vshrl.u32 %v707, 16
        %v991 = vrot.slane %v989, 3
        %v992 = vshll.u32 %v707, 16
        %v994 = vrot.slane %v992, 4
        %v995 = vor.u32 %v991, %v994
        %v996 = vsel %vm979, %v987, %v995
        %v998 = vshrl.u32 %v761, 16
        %v1000 = vrot.slane %v998, 3
        %v1001 = vshll.u32 %v761, 16
        %v1003 = vrot.slane %v1001, 4
        %v1004 = vor.u32 %v1000, %v1003
        %v1005 = vsel %vm979, %v1004, %v1004
        %v1007 = vshrl.u32 %v931, 16
        %v1009 = vrot.slane %v1007, 3
        %v1010 = vshll.u32 %v931, 16
        %v1012 = vrot.slane %v1010, 4
        %v1013 = vor.u32 %v1009, %v1012
        %v1015 = vshrl.u32 %v933, 16
        %v1017 = vrot.slane %v1015, 3
        %v1018 = vshll.u32 %v933, 16
        %v1020 = vrot.slane %v1018, 4
        %v1021 = vor.u32 %v1017, %v1020
        %v1022 = vsel %vm979, %v1013, %v1021
        %v1024 = vshrl.u32 %v708, 16
        %v1026 = vrot.slane %v1024, 3
        %v1027 = vshll.u32 %v708, 16
        %v1029 = vrot.slane %v1027, 4
        %v1030 = vor.u32 %v1026, %v1029
        %v1032 = vshrl.u32 %v709, 16
        %v1034 = vrot.slane %v1032, 3
        %v1035 = vshll.u32 %v709, 16
        %v1037 = vrot.slane %v1035, 4
        %v1038 = vor.u32 %v1034, %v1037
        %v1039 = vsel %vm979, %v1030, %v1038
        %v1041 = vshrl.u32 %v769, 16
        %v1043 = vrot.slane %v1041, 3
        %v1044 = vshll.u32 %v769, 16
        %v1046 = vrot.slane %v1044, 4
        %v1047 = vor.u32 %v1043, %v1046
        %v1048 = vsel %vm979, %v1047, %v1047
        %v1050 = vshrl.u32 %v934, 16
        %v1052 = vrot.slane %v1050, 3
        %v1053 = vshll.u32 %v934, 16
        %v1055 = vrot.slane %v1053, 4
        %v1056 = vor.u32 %v1052, %v1055
        %v1058 = vshrl.u32 %v936, 16
        %v1060 = vrot.slane %v1058, 3
        %v1061 = vshll.u32 %v936, 16
        %v1063 = vrot.slane %v1061, 4
        %v1064 = vor.u32 %v1060, %v1063
        %v1065 = vsel %vm979, %v1056, %v1064
        %v1067 = vshrl.u32 %v710, 16
        %v1069 = vrot.slane %v1067, 3
        %v1070 = vshll.u32 %v710, 16
        %v1072 = vrot.slane %v1070, 4
        %v1073 = vor.u32 %v1069, %v1072
        %v1075 = vshrl.u32 %v711, 16
        %v1077 = vrot.slane %v1075, 3
        %v1078 = vshll.u32 %v711, 16
        %v1080 = vrot.slane %v1078, 4
        %v1081 = vor.u32 %v1077, %v1080
        %v1082 = vsel %vm979, %v1073, %v1081
        %v1084 = vshrl.u32 %v777, 16
        %v1086 = vrot.slane %v1084, 3
        %v1087 = vshll.u32 %v777, 16
        %v1089 = vrot.slane %v1087, 4
        %v1090 = vor.u32 %v1086, %v1089
        %v1091 = vsel %vm979, %v1090, %v1090
        %v1093 = vshrl.u32 %v937, 16
        %v1095 = vrot.slane %v1093, 3
        %v1096 = vshll.u32 %v937, 16
        %v1098 = vrot.slane %v1096, 4
        %v1099 = vor.u32 %v1095, %v1098
        %v1101 = vshrl.u32 %v939, 16
        %v1103 = vrot.slane %v1101, 3
        %v1104 = vshll.u32 %v939, 16
        %v1106 = vrot.slane %v1104, 4
        %v1107 = vor.u32 %v1103, %v1106
        %v1108 = vsel %vm979, %v1099, %v1107
        %v1110 = vshrl.u32 %v712, 16
        %v1112 = vrot.slane %v1110, 3
        %v1113 = vshll.u32 %v712, 16
        %v1115 = vrot.slane %v1113, 4
        %v1116 = vor.u32 %v1112, %v1115
        %v1118 = vshrl.u32 %v713, 16
        %v1120 = vrot.slane %v1118, 3
        %v1121 = vshll.u32 %v713, 16
        %v1123 = vrot.slane %v1121, 4
        %v1124 = vor.u32 %v1120, %v1123
        %v1125 = vsel %vm979, %v1116, %v1124
        %v1127 = vshrl.u32 %v785, 16
        %v1129 = vrot.slane %v1127, 3
        %v1130 = vshll.u32 %v785, 16
        %v1132 = vrot.slane %v1130, 4
        %v1133 = vor.u32 %v1129, %v1132
        %v1134 = vsel %vm979, %v1133, %v1133
        %v1136 = vshrl.u32 %v940, 16
        %v1138 = vrot.slane %v1136, 3
        %v1139 = vshll.u32 %v940, 16
        %v1141 = vrot.slane %v1139, 4
        %v1142 = vor.u32 %v1138, %v1141
        %v1144 = vshrl.u32 %v942, 16
        %v1146 = vrot.slane %v1144, 3
        %v1147 = vshll.u32 %v942, 16
        %v1149 = vrot.slane %v1147, 4
        %v1150 = vor.u32 %v1146, %v1149
        %v1151 = vsel %vm979, %v1142, %v1150
        %v1153 = vshrl.u32 %v714, 16
        %v1155 = vrot.slane %v1153, 3
        %v1156 = vshll.u32 %v714, 16
        %v1158 = vrot.slane %v1156, 4
        %v1159 = vor.u32 %v1155, %v1158
        %v1161 = vshrl.u32 %v715, 16
        %v1163 = vrot.slane %v1161, 3
        %v1164 = vshll.u32 %v715, 16
        %v1166 = vrot.slane %v1164, 4
        %v1167 = vor.u32 %v1163, %v1166
        %v1168 = vsel %vm979, %v1159, %v1167
        %v1170 = vshrl.u32 %v793, 16
        %v1172 = vrot.slane %v1170, 3
        %v1173 = vshll.u32 %v793, 16
        %v1175 = vrot.slane %v1173, 4
        %v1176 = vor.u32 %v1172, %v1175
        %v1177 = vsel %vm979, %v1176, %v1176
        %v1179 = vshrl.u32 %v943, 16
        %v1181 = vrot.slane %v1179, 3
        %v1182 = vshll.u32 %v943, 16
        %v1184 = vrot.slane %v1182, 4
        %v1185 = vor.u32 %v1181, %v1184
        %v1187 = vshrl.u32 %v945, 16
        %v1189 = vrot.slane %v1187, 3
        %v1190 = vshll.u32 %v945, 16
        %v1192 = vrot.slane %v1190, 4
        %v1193 = vor.u32 %v1189, %v1192
        %v1194 = vsel %vm979, %v1185, %v1193
        %v1196 = vshrl.u32 %v716, 16
        %v1198 = vrot.slane %v1196, 3
        %v1199 = vshll.u32 %v716, 16
        %v1201 = vrot.slane %v1199, 4
        %v1202 = vor.u32 %v1198, %v1201
        %v1204 = vshrl.u32 %v717, 16
        %v1206 = vrot.slane %v1204, 3
        %v1207 = vshll.u32 %v717, 16
        %v1209 = vrot.slane %v1207, 4
        %v1210 = vor.u32 %v1206, %v1209
        %v1211 = vsel %vm979, %v1202, %v1210
        %v1213 = vshrl.u32 %v801, 16
        %v1215 = vrot.slane %v1213, 3
        %v1216 = vshll.u32 %v801, 16
        %v1218 = vrot.slane %v1216, 4
        %v1219 = vor.u32 %v1215, %v1218
        %v1220 = vsel %vm979, %v1219, %v1219
        %v1222 = vshrl.u32 %v946, 16
        %v1224 = vrot.slane %v1222, 3
        %v1225 = vshll.u32 %v946, 16
        %v1227 = vrot.slane %v1225, 4
        %v1228 = vor.u32 %v1224, %v1227
        %v1230 = vshrl.u32 %v948, 16
        %v1232 = vrot.slane %v1230, 3
        %v1233 = vshll.u32 %v948, 16
        %v1235 = vrot.slane %v1233, 4
        %v1236 = vor.u32 %v1232, %v1235
        %v1237 = vsel %vm979, %v1228, %v1236
        %v1239 = vshrl.u32 %v718, 16
        %v1241 = vrot.slane %v1239, 3
        %v1242 = vshll.u32 %v718, 16
        %v1244 = vrot.slane %v1242, 4
        %v1245 = vor.u32 %v1241, %v1244
        %v1247 = vshrl.u32 %v719, 16
        %v1249 = vrot.slane %v1247, 3
        %v1250 = vshll.u32 %v719, 16
        %v1252 = vrot.slane %v1250, 4
        %v1253 = vor.u32 %v1249, %v1252
        %v1254 = vsel %vm979, %v1245, %v1253
        %v1256 = vshrl.u32 %v809, 16
        %v1258 = vrot.slane %v1256, 3
        %v1259 = vshll.u32 %v809, 16
        %v1261 = vrot.slane %v1259, 4
        %v1262 = vor.u32 %v1258, %v1261
        %v1263 = vsel %vm979, %v1262, %v1262
        %v1265 = vshrl.u32 %v949, 16
        %v1267 = vrot.slane %v1265, 3
        %v1268 = vshll.u32 %v949, 16
        %v1270 = vrot.slane %v1268, 4
        %v1271 = vor.u32 %v1267, %v1270
        %v1273 = vshrl.u32 %v951, 16
        %v1275 = vrot.slane %v1273, 3
        %v1276 = vshll.u32 %v951, 16
        %v1278 = vrot.slane %v1276, 4
        %v1279 = vor.u32 %v1275, %v1278
        %v1280 = vsel %vm979, %v1271, %v1279
        %v1282 = vshrl.u32 %v720, 16
        %v1284 = vrot.slane %v1282, 3
        %v1285 = vshll.u32 %v720, 16
        %v1287 = vrot.slane %v1285, 4
        %v1288 = vor.u32 %v1284, %v1287
        %v1290 = vshrl.u32 %v721, 16
        %v1292 = vrot.slane %v1290, 3
        %v1293 = vshll.u32 %v721, 16
        %v1295 = vrot.slane %v1293, 4
        %v1296 = vor.u32 %v1292, %v1295
        %v1297 = vsel %vm979, %v1288, %v1296
        %v1299 = vshrl.u32 %v817, 16
        %v1301 = vrot.slane %v1299, 3
        %v1302 = vshll.u32 %v817, 16
        %v1304 = vrot.slane %v1302, 4
        %v1305 = vor.u32 %v1301, %v1304
        %v1306 = vsel %vm979, %v1305, %v1305
        %v1308 = vshrl.u32 %v952, 16
        %v1310 = vrot.slane %v1308, 3
        %v1311 = vshll.u32 %v952, 16
        %v1313 = vrot.slane %v1311, 4
        %v1314 = vor.u32 %v1310, %v1313
        %v1316 = vshrl.u32 %v954, 16
        %v1318 = vrot.slane %v1316, 3
        %v1319 = vshll.u32 %v954, 16
        %v1321 = vrot.slane %v1319, 4
        %v1322 = vor.u32 %v1318, %v1321
        %v1323 = vsel %vm979, %v1314, %v1322
        %v1325 = vshrl.u32 %v722, 16
        %v1327 = vrot.slane %v1325, 3
        %v1328 = vshll.u32 %v722, 16
        %v1330 = vrot.slane %v1328, 4
        %v1331 = vor.u32 %v1327, %v1330
        %v1333 = vshrl.u32 %v723, 16
        %v1335 = vrot.slane %v1333, 3
        %v1336 = vshll.u32 %v723, 16
        %v1338 = vrot.slane %v1336, 4
        %v1339 = vor.u32 %v1335, %v1338
        %v1340 = vsel %vm979, %v1331, %v1339
        %v1342 = vshrl.u32 %v825, 16
        %v1344 = vrot.slane %v1342, 3
        %v1345 = vshll.u32 %v825, 16
        %v1347 = vrot.slane %v1345, 4
        %v1348 = vor.u32 %v1344, %v1347
        %v1349 = vsel %vm979, %v1348, %v1348
        %v1351 = vshrl.u32 %v955, 16
        %v1353 = vrot.slane %v1351, 3
        %v1354 = vshll.u32 %v955, 16
        %v1356 = vrot.slane %v1354, 4
        %v1357 = vor.u32 %v1353, %v1356
        %v1359 = vshrl.u32 %v957, 16
        %v1361 = vrot.slane %v1359, 3
        %v1362 = vshll.u32 %v957, 16
        %v1364 = vrot.slane %v1362, 4
        %v1365 = vor.u32 %v1361, %v1364
        %v1366 = vsel %vm979, %v1357, %v1365
        %v1368 = vshrl.u32 %v724, 16
        %v1370 = vrot.slane %v1368, 3
        %v1371 = vshll.u32 %v724, 16
        %v1373 = vrot.slane %v1371, 4
        %v1374 = vor.u32 %v1370, %v1373
        %v1376 = vshrl.u32 %v725, 16
        %v1378 = vrot.slane %v1376, 3
        %v1379 = vshll.u32 %v725, 16
        %v1381 = vrot.slane %v1379, 4
        %v1382 = vor.u32 %v1378, %v1381
        %v1383 = vsel %vm979, %v1374, %v1382
        %v1385 = vshrl.u32 %v833, 16
        %v1387 = vrot.slane %v1385, 3
        %v1388 = vshll.u32 %v833, 16
        %v1390 = vrot.slane %v1388, 4
        %v1391 = vor.u32 %v1387, %v1390
        %v1392 = vsel %vm979, %v1391, %v1391
        %v1394 = vshrl.u32 %v958, 16
        %v1396 = vrot.slane %v1394, 3
        %v1397 = vshll.u32 %v958, 16
        %v1399 = vrot.slane %v1397, 4
        %v1400 = vor.u32 %v1396, %v1399
        %v1402 = vshrl.u32 %v960, 16
        %v1404 = vrot.slane %v1402, 3
        %v1405 = vshll.u32 %v960, 16
        %v1407 = vrot.slane %v1405, 4
        %v1408 = vor.u32 %v1404, %v1407
        %v1409 = vsel %vm979, %v1400, %v1408
        %v1411 = vshrl.u32 %v726, 16
        %v1413 = vrot.slane %v1411, 3
        %v1414 = vshll.u32 %v726, 16
        %v1416 = vrot.slane %v1414, 4
        %v1417 = vor.u32 %v1413, %v1416
        %v1419 = vshrl.u32 %v727, 16
        %v1421 = vrot.slane %v1419, 3
        %v1422 = vshll.u32 %v727, 16
        %v1424 = vrot.slane %v1422, 4
        %v1425 = vor.u32 %v1421, %v1424
        %v1426 = vsel %vm979, %v1417, %v1425
        %v1428 = vshrl.u32 %v841, 16
        %v1430 = vrot.slane %v1428, 3
        %v1431 = vshll.u32 %v841, 16
        %v1433 = vrot.slane %v1431, 4
        %v1434 = vor.u32 %v1430, %v1433
        %v1435 = vsel %vm979, %v1434, %v1434
        %v1437 = vshrl.u32 %v961, 16
        %v1439 = vrot.slane %v1437, 3
        %v1440 = vshll.u32 %v961, 16
        %v1442 = vrot.slane %v1440, 4
        %v1443 = vor.u32 %v1439, %v1442
        %v1445 = vshrl.u32 %v963, 16
        %v1447 = vrot.slane %v1445, 3
        %v1448 = vshll.u32 %v963, 16
        %v1450 = vrot.slane %v1448, 4
        %v1451 = vor.u32 %v1447, %v1450
        %v1452 = vsel %vm979, %v1443, %v1451
        %v1454 = vshrl.u32 %v728, 16
        %v1456 = vrot.slane %v1454, 3
        %v1457 = vshll.u32 %v728, 16
        %v1459 = vrot.slane %v1457, 4
        %v1460 = vor.u32 %v1456, %v1459
        %v1462 = vshrl.u32 %v729, 16
        %v1464 = vrot.slane %v1462, 3
        %v1465 = vshll.u32 %v729, 16
        %v1467 = vrot.slane %v1465, 4
        %v1468 = vor.u32 %v1464, %v1467
        %v1469 = vsel %vm979, %v1460, %v1468
        %v1471 = vshrl.u32 %v849, 16
        %v1473 = vrot.slane %v1471, 3
        %v1474 = vshll.u32 %v849, 16
        %v1476 = vrot.slane %v1474, 4
        %v1477 = vor.u32 %v1473, %v1476
        %v1478 = vsel %vm979, %v1477, %v1477
        %v1480 = vshrl.u32 %v964, 16
        %v1482 = vrot.slane %v1480, 3
        %v1483 = vshll.u32 %v964, 16
        %v1485 = vrot.slane %v1483, 4
        %v1486 = vor.u32 %v1482, %v1485
        %v1488 = vshrl.u32 %v966, 16
        %v1490 = vrot.slane %v1488, 3
        %v1491 = vshll.u32 %v966, 16
        %v1493 = vrot.slane %v1491, 4
        %v1494 = vor.u32 %v1490, %v1493
        %v1495 = vsel %vm979, %v1486, %v1494
        %v1497 = vshrl.u32 %v730, 16
        %v1499 = vrot.slane %v1497, 3
        %v1500 = vshll.u32 %v730, 16
        %v1502 = vrot.slane %v1500, 4
        %v1503 = vor.u32 %v1499, %v1502
        %v1505 = vshrl.u32 %v731, 16
        %v1507 = vrot.slane %v1505, 3
        %v1508 = vshll.u32 %v731, 16
        %v1510 = vrot.slane %v1508, 4
        %v1511 = vor.u32 %v1507, %v1510
        %v1512 = vsel %vm979, %v1503, %v1511
        %v1514 = vshrl.u32 %v857, 16
        %v1516 = vrot.slane %v1514, 3
        %v1517 = vshll.u32 %v857, 16
        %v1519 = vrot.slane %v1517, 4
        %v1520 = vor.u32 %v1516, %v1519
        %v1521 = vsel %vm979, %v1520, %v1520
        %v1523 = vshrl.u32 %v967, 16
        %v1525 = vrot.slane %v1523, 3
        %v1526 = vshll.u32 %v967, 16
        %v1528 = vrot.slane %v1526, 4
        %v1529 = vor.u32 %v1525, %v1528
        %v1531 = vshrl.u32 %v969, 16
        %v1533 = vrot.slane %v1531, 3
        %v1534 = vshll.u32 %v969, 16
        %v1536 = vrot.slane %v1534, 4
        %v1537 = vor.u32 %v1533, %v1536
        %v1538 = vsel %vm979, %v1529, %v1537
        %v1540 = vshrl.u32 %v732, 16
        %v1542 = vrot.slane %v1540, 3
        %v1543 = vshll.u32 %v732, 16
        %v1545 = vrot.slane %v1543, 4
        %v1546 = vor.u32 %v1542, %v1545
        %v1548 = vshrl.u32 %v733, 16
        %v1550 = vrot.slane %v1548, 3
        %v1551 = vshll.u32 %v733, 16
        %v1553 = vrot.slane %v1551, 4
        %v1554 = vor.u32 %v1550, %v1553
        %v1555 = vsel %vm979, %v1546, %v1554
        %v1557 = vshrl.u32 %v865, 16
        %v1559 = vrot.slane %v1557, 3
        %v1560 = vshll.u32 %v865, 16
        %v1562 = vrot.slane %v1560, 4
        %v1563 = vor.u32 %v1559, %v1562
        %v1564 = vsel %vm979, %v1563, %v1563
        %v1566 = vshrl.u32 %v970, 16
        %v1568 = vrot.slane %v1566, 3
        %v1569 = vshll.u32 %v970, 16
        %v1571 = vrot.slane %v1569, 4
        %v1572 = vor.u32 %v1568, %v1571
        %v1574 = vshrl.u32 %v972, 16
        %v1576 = vrot.slane %v1574, 3
        %v1577 = vshll.u32 %v972, 16
        %v1579 = vrot.slane %v1577, 4
        %v1580 = vor.u32 %v1576, %v1579
        %v1581 = vsel %vm979, %v1572, %v1580
        %v1583 = vshrl.u32 %v734, 16
        %v1585 = vrot.slane %v1583, 3
        %v1586 = vshll.u32 %v734, 16
        %v1588 = vrot.slane %v1586, 4
        %v1589 = vor.u32 %v1585, %v1588
        %v1591 = vshrl.u32 %v735, 16
        %v1593 = vrot.slane %v1591, 3
        %v1594 = vshll.u32 %v735, 16
        %v1596 = vrot.slane %v1594, 4
        %v1597 = vor.u32 %v1593, %v1596
        %v1598 = vsel %vm979, %v1589, %v1597
        %v1600 = vshrl.u32 %v873, 16
        %v1602 = vrot.slane %v1600, 3
        %v1603 = vshll.u32 %v873, 16
        %v1605 = vrot.slane %v1603, 4
        %v1606 = vor.u32 %v1602, %v1605
        %v1607 = vsel %vm979, %v1606, %v1606
        %v1609 = vshrl.u32 %v973, 16
        %v1611 = vrot.slane %v1609, 3
        %v1612 = vshll.u32 %v973, 16
        %v1614 = vrot.slane %v1612, 4
        %v1615 = vor.u32 %v1611, %v1614
        %v1617 = vshrl.u32 %v975, 16
        %v1619 = vrot.slane %v1617, 3
        %v1620 = vshll.u32 %v975, 16
        %v1622 = vrot.slane %v1620, 4
        %v1623 = vor.u32 %v1619, %v1622
        %v1624 = vsel %vm979, %v1615, %v1623
        %v1626 = vshrl.u32 %v736, 16
        %v1628 = vrot.slane %v1626, 3
        %v1629 = vshll.u32 %v736, 16
        %v1631 = vrot.slane %v1629, 4
        %v1632 = vor.u32 %v1628, %v1631
        %v1634 = vshrl.u32 %v737, 16
        %v1636 = vrot.slane %v1634, 3
        %v1637 = vshll.u32 %v737, 16
        %v1639 = vrot.slane %v1637, 4
        %v1640 = vor.u32 %v1636, %v1639
        %v1641 = vsel %vm979, %v1632, %v1640
        %v1643 = vshrl.u32 %v881, 16
        %v1645 = vrot.slane %v1643, 3
        %v1646 = vshll.u32 %v881, 16
        %v1648 = vrot.slane %v1646, 4
        %v1649 = vor.u32 %v1645, %v1648
        %v1650 = vsel %vm979, %v1649, %v1649
        %v1652 = vshrl.u32 %v976, 16
        %v1654 = vrot.slane %v1652, 3
        %v1655 = vshll.u32 %v976, 16
        %v1657 = vrot.slane %v1655, 4
        %v1658 = vor.u32 %v1654, %v1657
        %v1660 = vshrl.u32 %v978, 16
        %v1662 = vrot.slane %v1660, 3
        %v1663 = vshll.u32 %v978, 16
        %v1665 = vrot.slane %v1663, 4
        %v1666 = vor.u32 %v1662, %v1665
        %v1667 = vsel %vm979, %v1658, %v1666
        %v1716 = vld [vmem:[%s1] sm:$0xf]
        %v1717 = vld [vmem:[%s1 + $0x4] sm:$0xf]
        %v1718 = vld [vmem:[%s1 + $0x8] sm:$0xf]
        %v1719 = vld [vmem:[%s1 + $0xc] sm:$0xf]
        %v1720 = vld [vmem:[%s1 + $0x10] sm:$0xf]
        %v1721 = vld [vmem:[%s1 + $0x14] sm:$0xf]
        %v1722 = vld [vmem:[%s1 + $0x18] sm:$0xf]
        %v1723 = vld [vmem:[%s1 + $0x1c] sm:$0xf]
        %v1724 = vld [vmem:[%s1 + $0x20] sm:$0xf]
        %v1725 = vld [vmem:[%s1 + $0x24] sm:$0xf]
        %v1726 = vld [vmem:[%s1 + $0x28] sm:$0xf]
        %v1727 = vld [vmem:[%s1 + $0x2c] sm:$0xf]
        %v1728 = vld [vmem:[%s1 + $0x30] sm:$0xf]
        %v1729 = vld [vmem:[%s1 + $0x34] sm:$0xf]
        %v1730 = vld [vmem:[%s1 + $0x38] sm:$0xf]
        %v1731 = vld [vmem:[%s1 + $0x3c] sm:$0xf]
        %v1732 = vld [vmem:[%s1 + $0x40] sm:$0xf]
        %v1733 = vld [vmem:[%s1 + $0x44] sm:$0xf]
        %v1734 = vld [vmem:[%s1 + $0x48] sm:$0xf]
        %v1735 = vld [vmem:[%s1 + $0x4c] sm:$0xf]
        %v1736 = vld [vmem:[%s1 + $0x50] sm:$0xf]
        %v1737 = vld [vmem:[%s1 + $0x54] sm:$0xf]
        %v1738 = vld [vmem:[%s1 + $0x58] sm:$0xf]
        %v1739 = vld [vmem:[%s1 + $0x5c] sm:$0xf]
        %v1740 = vld [vmem:[%s1 + $0x60] sm:$0xf]
        %v1741 = vld [vmem:[%s1 + $0x64] sm:$0xf]
        %v1742 = vld [vmem:[%s1 + $0x68] sm:$0xf]
        %v1743 = vld [vmem:[%s1 + $0x6c] sm:$0xf]
        %v1744 = vld [vmem:[%s1 + $0x70] sm:$0xf]
        %v1745 = vld [vmem:[%s1 + $0x74] sm:$0xf]
        %v1746 = vld [vmem:[%s1 + $0x78] sm:$0xf]
        %v1747 = vld [vmem:[%s1 + $0x7c] sm:$0xf]
        %v1748 = vld [vmem:[%s1 + $0x80] sm:$0xf]
        %v1749 = vld [vmem:[%s1 + $0x84] sm:$0xf]
        %v1750 = vld [vmem:[%s1 + $0x88] sm:$0xf]
        %v1751 = vld [vmem:[%s1 + $0x8c] sm:$0xf]
        %v1752 = vld [vmem:[%s1 + $0x90] sm:$0xf]
        %v1753 = vld [vmem:[%s1 + $0x94] sm:$0xf]
        %v1754 = vld [vmem:[%s1 + $0x98] sm:$0xf]
        %v1755 = vld [vmem:[%s1 + $0x9c] sm:$0xf]
        %v1756 = vld [vmem:[%s1 + $0xa0] sm:$0xf]
        %v1757 = vld [vmem:[%s1 + $0xa4] sm:$0xf]
        %v1758 = vld [vmem:[%s1 + $0xa8] sm:$0xf]
        %v1759 = vld [vmem:[%s1 + $0xac] sm:$0xf]
        %v1760 = vld [vmem:[%s1 + $0xb0] sm:$0xf]
        %v1761 = vld [vmem:[%s1 + $0xb4] sm:$0xf]
        %v1762 = vld [vmem:[%s1 + $0xb8] sm:$0xf]
        %v1763 = vld [vmem:[%s1 + $0xbc] sm:$0xf]
        %v1764 = vld [vmem:[%s513] sm:$0x8]
        %v1765 = vld [vmem:[%s513 + $0x4] sm:$0xf]
        %v1766 = vld [vmem:[%s513 + $0x8] sm:$0xf]
        %v1767 = vld [vmem:[%s513 + $0x10] sm:$0x8]
        %v1768 = vld [vmem:[%s513 + $0x14] sm:$0xf]
        %v1769 = vld [vmem:[%s513 + $0x18] sm:$0xf]
        %v1770 = vld [vmem:[%s513 + $0x20] sm:$0x8]
        %v1771 = vld [vmem:[%s513 + $0x24] sm:$0xf]
        %v1772 = vld [vmem:[%s513 + $0x28] sm:$0xf]
        %v1773 = vld [vmem:[%s513 + $0x30] sm:$0x8]
        %v1774 = vld [vmem:[%s513 + $0x34] sm:$0xf]
        %v1775 = vld [vmem:[%s513 + $0x38] sm:$0xf]
        %v1776 = vld [vmem:[%s513 + $0x40] sm:$0x8]
        %v1777 = vld [vmem:[%s513 + $0x44] sm:$0xf]
        %v1778 = vld [vmem:[%s513 + $0x48] sm:$0xf]
        %v1779 = vld [vmem:[%s513 + $0x50] sm:$0x8]
        %v1780 = vld [vmem:[%s513 + $0x54] sm:$0xf]
        %v1781 = vld [vmem:[%s513 + $0x58] sm:$0xf]
        %v1782 = vld [vmem:[%s513 + $0x60] sm:$0x8]
        %v1783 = vld [vmem:[%s513 + $0x64] sm:$0xf]
        %v1784 = vld [vmem:[%s513 + $0x68] sm:$0xf]
        %v1785 = vld [vmem:[%s513 + $0x70] sm:$0x8]
        %v1786 = vld [vmem:[%s513 + $0x74] sm:$0xf]
        %v1787 = vld [vmem:[%s513 + $0x78] sm:$0xf]
        %v1788 = vld [vmem:[%s513 + $0x80] sm:$0x8]
        %v1789 = vld [vmem:[%s513 + $0x84] sm:$0xf]
        %v1790 = vld [vmem:[%s513 + $0x88] sm:$0xf]
        %v1791 = vld [vmem:[%s513 + $0x90] sm:$0x8]
        %v1792 = vld [vmem:[%s513 + $0x94] sm:$0xf]
        %v1793 = vld [vmem:[%s513 + $0x98] sm:$0xf]
        %v1794 = vld [vmem:[%s513 + $0xa0] sm:$0x8]
        %v1795 = vld [vmem:[%s513 + $0xa4] sm:$0xf]
        %v1796 = vld [vmem:[%s513 + $0xa8] sm:$0xf]
        %v1797 = vld [vmem:[%s513 + $0xb0] sm:$0x8]
        %v1798 = vld [vmem:[%s513 + $0xb4] sm:$0xf]
        %v1799 = vld [vmem:[%s513 + $0xb8] sm:$0xf]
        %v1800 = vld [vmem:[%s513 + $0xc0] sm:$0x8]
        %v1801 = vld [vmem:[%s513 + $0xc4] sm:$0xf]
        %v1802 = vld [vmem:[%s513 + $0xc8] sm:$0xf]
        %v1803 = vld [vmem:[%s513 + $0xd0] sm:$0x8]
        %v1804 = vld [vmem:[%s513 + $0xd4] sm:$0xf]
        %v1805 = vld [vmem:[%s513 + $0xd8] sm:$0xf]
        %v1806 = vld [vmem:[%s513 + $0xe0] sm:$0x8]
        %v1807 = vld [vmem:[%s513 + $0xe4] sm:$0xf]
        %v1808 = vld [vmem:[%s513 + $0xe8] sm:$0xf]
        %v1809 = vld [vmem:[%s513 + $0xf0] sm:$0x8]
        %v1810 = vld [vmem:[%s513 + $0xf4] sm:$0xf]
        %v1811 = vld [vmem:[%s513 + $0xf8] sm:$0xf]
        %v1812 = vld [vmem:[%s513 + $0xc] sm:$0x1]
        %v1813 = vld [vmem:[%s513 + $0x1c] sm:$0x1]
        %v1814 = vld [vmem:[%s513 + $0x2c] sm:$0x1]
        %v1815 = vld [vmem:[%s513 + $0x3c] sm:$0x1]
        %v1816 = vld [vmem:[%s513 + $0x4c] sm:$0x1]
        %v1817 = vld [vmem:[%s513 + $0x5c] sm:$0x1]
        %v1818 = vld [vmem:[%s513 + $0x6c] sm:$0x1]
        %v1819 = vld [vmem:[%s513 + $0x7c] sm:$0x1]
        %v1820 = vld [vmem:[%s513 + $0x8c] sm:$0x1]
        %v1821 = vld [vmem:[%s513 + $0x9c] sm:$0x1]
        %v1822 = vld [vmem:[%s513 + $0xac] sm:$0x1]
        %v1823 = vld [vmem:[%s513 + $0xbc] sm:$0x1]
        %v1824 = vld [vmem:[%s513 + $0xcc] sm:$0x1]
        %v1825 = vld [vmem:[%s513 + $0xdc] sm:$0x1]
        %v1826 = vld [vmem:[%s513 + $0xec] sm:$0x1]
        %v1827 = vld [vmem:[%s513 + $0xfc] sm:$0x1]
        %v1876 = vunpack.c.l.b16 %v1764
        %v1877 = vunpack.c.l.b16 %v1765
        %v1878 = vunpack.c.l.b16 %v1766
        %v1879 = vunpack.c.l.b16 %v1767
        %v1880 = vunpack.c.l.b16 %v1768
        %v1881 = vunpack.c.l.b16 %v1769
        %v1882 = vunpack.c.l.b16 %v1770
        %v1883 = vunpack.c.l.b16 %v1771
        %v1884 = vunpack.c.l.b16 %v1772
        %v1885 = vunpack.c.l.b16 %v1773
        %v1886 = vunpack.c.l.b16 %v1774
        %v1887 = vunpack.c.l.b16 %v1775
        %v1888 = vunpack.c.l.b16 %v1776
        %v1889 = vunpack.c.l.b16 %v1777
        %v1890 = vunpack.c.l.b16 %v1778
        %v1891 = vunpack.c.l.b16 %v1779
        %v1892 = vunpack.c.l.b16 %v1780
        %v1893 = vunpack.c.l.b16 %v1781
        %v1894 = vunpack.c.l.b16 %v1782
        %v1895 = vunpack.c.l.b16 %v1783
        %v1896 = vunpack.c.l.b16 %v1784
        %v1897 = vunpack.c.l.b16 %v1785
        %v1898 = vunpack.c.l.b16 %v1786
        %v1899 = vunpack.c.l.b16 %v1787
        %v1900 = vunpack.c.l.b16 %v1788
        %v1901 = vunpack.c.l.b16 %v1789
        %v1902 = vunpack.c.l.b16 %v1790
        %v1903 = vunpack.c.l.b16 %v1791
        %v1904 = vunpack.c.l.b16 %v1792
        %v1905 = vunpack.c.l.b16 %v1793
        %v1906 = vunpack.c.l.b16 %v1794
        %v1907 = vunpack.c.l.b16 %v1795
        %v1908 = vunpack.c.l.b16 %v1796
        %v1909 = vunpack.c.l.b16 %v1797
        %v1910 = vunpack.c.l.b16 %v1798
        %v1911 = vunpack.c.l.b16 %v1799
        %v1912 = vunpack.c.l.b16 %v1800
        %v1913 = vunpack.c.l.b16 %v1801
        %v1914 = vunpack.c.l.b16 %v1802
        %v1915 = vunpack.c.l.b16 %v1803
        %v1916 = vunpack.c.l.b16 %v1804
        %v1917 = vunpack.c.l.b16 %v1805
        %v1918 = vunpack.c.l.b16 %v1806
        %v1919 = vunpack.c.l.b16 %v1807
        %v1920 = vunpack.c.l.b16 %v1808
        %v1921 = vunpack.c.l.b16 %v1809
        %v1922 = vunpack.c.l.b16 %v1810
        %v1923 = vunpack.c.l.b16 %v1811
        %v1924 = vpack.c.b16 %v1877, %v1876
        %v1925 = vpack.c.b16 %v1878, %v1878
        %v1926 = vpack.c.b16 %v1880, %v1879
        %v1927 = vpack.c.b16 %v1881, %v1881
        %v1928 = vpack.c.b16 %v1883, %v1882
        %v1929 = vpack.c.b16 %v1884, %v1884
        %v1930 = vpack.c.b16 %v1886, %v1885
        %v1931 = vpack.c.b16 %v1887, %v1887
        %v1932 = vpack.c.b16 %v1889, %v1888
        %v1933 = vpack.c.b16 %v1890, %v1890
        %v1934 = vpack.c.b16 %v1892, %v1891
        %v1935 = vpack.c.b16 %v1893, %v1893
        %v1936 = vpack.c.b16 %v1895, %v1894
        %v1937 = vpack.c.b16 %v1896, %v1896
        %v1938 = vpack.c.b16 %v1898, %v1897
        %v1939 = vpack.c.b16 %v1899, %v1899
        %v1940 = vpack.c.b16 %v1901, %v1900
        %v1941 = vpack.c.b16 %v1902, %v1902
        %v1942 = vpack.c.b16 %v1904, %v1903
        %v1943 = vpack.c.b16 %v1905, %v1905
        %v1944 = vpack.c.b16 %v1907, %v1906
        %v1945 = vpack.c.b16 %v1908, %v1908
        %v1946 = vpack.c.b16 %v1910, %v1909
        %v1947 = vpack.c.b16 %v1911, %v1911
        %v1948 = vpack.c.b16 %v1913, %v1912
        %v1949 = vpack.c.b16 %v1914, %v1914
        %v1950 = vpack.c.b16 %v1916, %v1915
        %v1951 = vpack.c.b16 %v1917, %v1917
        %v1952 = vpack.c.b16 %v1919, %v1918
        %v1953 = vpack.c.b16 %v1920, %v1920
        %v1954 = vpack.c.b16 %v1922, %v1921
        %v1955 = vpack.c.b16 %v1923, %v1923
        %v1956 = vpack.c.b16 %v1878, %v1877
        %v1957 = vpack.c.b16 %v1881, %v1880
        %v1958 = vpack.c.b16 %v1884, %v1883
        %v1959 = vpack.c.b16 %v1887, %v1886
        %v1960 = vpack.c.b16 %v1890, %v1889
        %v1961 = vpack.c.b16 %v1893, %v1892
        %v1962 = vpack.c.b16 %v1896, %v1895
        %v1963 = vpack.c.b16 %v1899, %v1898
        %v1964 = vpack.c.b16 %v1902, %v1901
        %v1965 = vpack.c.b16 %v1905, %v1904
        %v1966 = vpack.c.b16 %v1908, %v1907
        %v1967 = vpack.c.b16 %v1911, %v1910
        %v1968 = vpack.c.b16 %v1914, %v1913
        %v1969 = vpack.c.b16 %v1917, %v1916
        %v1970 = vpack.c.b16 %v1920, %v1919
        %v1971 = vpack.c.b16 %v1923, %v1922
        %v1973 = vshrl.u32 %v1956, 16
        %v1975 = vrot.slane %v1973, 4
        %v1976 = vshll.u32 %v1956, 16
        %v1978 = vrot.slane %v1976, 5
        %v1979 = vor.u32 %v1975, %v1978
        %v1981 = vshrl.u32 %v1957, 16
        %v1983 = vrot.slane %v1981, 4
        %v1984 = vshll.u32 %v1957, 16
        %v1986 = vrot.slane %v1984, 5
        %v1987 = vor.u32 %v1983, %v1986
        %v1989 = vshrl.u32 %v1958, 16
        %v1991 = vrot.slane %v1989, 4
        %v1992 = vshll.u32 %v1958, 16
        %v1994 = vrot.slane %v1992, 5
        %v1995 = vor.u32 %v1991, %v1994
        %v1997 = vshrl.u32 %v1959, 16
        %v1999 = vrot.slane %v1997, 4
        %v2000 = vshll.u32 %v1959, 16
        %v2002 = vrot.slane %v2000, 5
        %v2003 = vor.u32 %v1999, %v2002
        %v2005 = vshrl.u32 %v1960, 16
        %v2007 = vrot.slane %v2005, 4
        %v2008 = vshll.u32 %v1960, 16
        %v2010 = vrot.slane %v2008, 5
        %v2011 = vor.u32 %v2007, %v2010
        %v2013 = vshrl.u32 %v1961, 16
        %v2015 = vrot.slane %v2013, 4
        %v2016 = vshll.u32 %v1961, 16
        %v2018 = vrot.slane %v2016, 5
        %v2019 = vor.u32 %v2015, %v2018
        %v2021 = vshrl.u32 %v1962, 16
        %v2023 = vrot.slane %v2021, 4
        %v2024 = vshll.u32 %v1962, 16
        %v2026 = vrot.slane %v2024, 5
        %v2027 = vor.u32 %v2023, %v2026
        %v2029 = vshrl.u32 %v1963, 16
        %v2031 = vrot.slane %v2029, 4
        %v2032 = vshll.u32 %v1963, 16
        %v2034 = vrot.slane %v2032, 5
        %v2035 = vor.u32 %v2031, %v2034
        %v2037 = vshrl.u32 %v1964, 16
        %v2039 = vrot.slane %v2037, 4
        %v2040 = vshll.u32 %v1964, 16
        %v2042 = vrot.slane %v2040, 5
        %v2043 = vor.u32 %v2039, %v2042
        %v2045 = vshrl.u32 %v1965, 16
        %v2047 = vrot.slane %v2045, 4
        %v2048 = vshll.u32 %v1965, 16
        %v2050 = vrot.slane %v2048, 5
        %v2051 = vor.u32 %v2047, %v2050
        %v2053 = vshrl.u32 %v1966, 16
        %v2055 = vrot.slane %v2053, 4
        %v2056 = vshll.u32 %v1966, 16
        %v2058 = vrot.slane %v2056, 5
        %v2059 = vor.u32 %v2055, %v2058
        %v2061 = vshrl.u32 %v1967, 16
        %v2063 = vrot.slane %v2061, 4
        %v2064 = vshll.u32 %v1967, 16
        %v2066 = vrot.slane %v2064, 5
        %v2067 = vor.u32 %v2063, %v2066
        %v2069 = vshrl.u32 %v1968, 16
        %v2071 = vrot.slane %v2069, 4
        %v2072 = vshll.u32 %v1968, 16
        %v2074 = vrot.slane %v2072, 5
        %v2075 = vor.u32 %v2071, %v2074
        %v2077 = vshrl.u32 %v1969, 16
        %v2079 = vrot.slane %v2077, 4
        %v2080 = vshll.u32 %v1969, 16
        %v2082 = vrot.slane %v2080, 5
        %v2083 = vor.u32 %v2079, %v2082
        %v2085 = vshrl.u32 %v1970, 16
        %v2087 = vrot.slane %v2085, 4
        %v2088 = vshll.u32 %v1970, 16
        %v2090 = vrot.slane %v2088, 5
        %v2091 = vor.u32 %v2087, %v2090
        %v2093 = vshrl.u32 %v1971, 16
        %v2095 = vrot.slane %v2093, 4
        %v2096 = vshll.u32 %v1971, 16
        %v2098 = vrot.slane %v2096, 5
        %v2099 = vor.u32 %v2095, %v2098
        %v2116 = vunpack.c.l.b16 %v1812
        %v2117 = vunpack.c.l.b16 %v1813
        %v2118 = vunpack.c.l.b16 %v1814
        %v2119 = vunpack.c.l.b16 %v1815
        %v2120 = vunpack.c.l.b16 %v1816
        %v2121 = vunpack.c.l.b16 %v1817
        %v2122 = vunpack.c.l.b16 %v1818
        %v2123 = vunpack.c.l.b16 %v1819
        %v2124 = vunpack.c.l.b16 %v1820
        %v2125 = vunpack.c.l.b16 %v1821
        %v2126 = vunpack.c.l.b16 %v1822
        %v2127 = vunpack.c.l.b16 %v1823
        %v2128 = vunpack.c.l.b16 %v1824
        %v2129 = vunpack.c.l.b16 %v1825
        %v2130 = vunpack.c.l.b16 %v1826
        %v2131 = vunpack.c.l.b16 %v1827
        %v2132 = vpack.c.b16 %v2116, %v2116
        %v2133 = vpack.c.b16 %v2117, %v2117
        %v2134 = vpack.c.b16 %v2118, %v2118
        %v2135 = vpack.c.b16 %v2119, %v2119
        %v2136 = vpack.c.b16 %v2120, %v2120
        %v2137 = vpack.c.b16 %v2121, %v2121
        %v2138 = vpack.c.b16 %v2122, %v2122
        %v2139 = vpack.c.b16 %v2123, %v2123
        %v2140 = vpack.c.b16 %v2124, %v2124
        %v2141 = vpack.c.b16 %v2125, %v2125
        %v2142 = vpack.c.b16 %v2126, %v2126
        %v2143 = vpack.c.b16 %v2127, %v2127
        %v2144 = vpack.c.b16 %v2128, %v2128
        %v2145 = vpack.c.b16 %v2129, %v2129
        %v2146 = vpack.c.b16 %v2130, %v2130
        %v2147 = vpack.c.b16 %v2131, %v2131
        %v2148 = vrot.slane %v1956, 5
        %v2149 = vrot.slane %v2132, 5
        %v2150 = vsel %vm930, %v2148, %v2149
        %v2151 = vrot.slane %v1957, 5
        %v2152 = vrot.slane %v2133, 5
        %v2153 = vsel %vm930, %v2151, %v2152
        %v2154 = vrot.slane %v1958, 5
        %v2155 = vrot.slane %v2134, 5
        %v2156 = vsel %vm930, %v2154, %v2155
        %v2157 = vrot.slane %v1959, 5
        %v2158 = vrot.slane %v2135, 5
        %v2159 = vsel %vm930, %v2157, %v2158
        %v2160 = vrot.slane %v1960, 5
        %v2161 = vrot.slane %v2136, 5
        %v2162 = vsel %vm930, %v2160, %v2161
        %v2163 = vrot.slane %v1961, 5
        %v2164 = vrot.slane %v2137, 5
        %v2165 = vsel %vm930, %v2163, %v2164
        %v2166 = vrot.slane %v1962, 5
        %v2167 = vrot.slane %v2138, 5
        %v2168 = vsel %vm930, %v2166, %v2167
        %v2169 = vrot.slane %v1963, 5
        %v2170 = vrot.slane %v2139, 5
        %v2171 = vsel %vm930, %v2169, %v2170
        %v2172 = vrot.slane %v1964, 5
        %v2173 = vrot.slane %v2140, 5
        %v2174 = vsel %vm930, %v2172, %v2173
        %v2175 = vrot.slane %v1965, 5
        %v2176 = vrot.slane %v2141, 5
        %v2177 = vsel %vm930, %v2175, %v2176
        %v2178 = vrot.slane %v1966, 5
        %v2179 = vrot.slane %v2142, 5
        %v2180 = vsel %vm930, %v2178, %v2179
        %v2181 = vrot.slane %v1967, 5
        %v2182 = vrot.slane %v2143, 5
        %v2183 = vsel %vm930, %v2181, %v2182
        %v2184 = vrot.slane %v1968, 5
        %v2185 = vrot.slane %v2144, 5
        %v2186 = vsel %vm930, %v2184, %v2185
        %v2187 = vrot.slane %v1969, 5
        %v2188 = vrot.slane %v2145, 5
        %v2189 = vsel %vm930, %v2187, %v2188
        %v2190 = vrot.slane %v1970, 5
        %v2191 = vrot.slane %v2146, 5
        %v2192 = vsel %vm930, %v2190, %v2191
        %v2193 = vrot.slane %v1971, 5
        %v2194 = vrot.slane %v2147, 5
        %v2195 = vsel %vm930, %v2193, %v2194
        %v2197 = vshrl.u32 %v1924, 16
        %v2199 = vrot.slane %v2197, 3
        %v2200 = vshll.u32 %v1924, 16
        %v2202 = vrot.slane %v2200, 4
        %v2203 = vor.u32 %v2199, %v2202
        %v2205 = vshrl.u32 %v1925, 16
        %v2207 = vrot.slane %v2205, 3
        %v2208 = vshll.u32 %v1925, 16
        %v2210 = vrot.slane %v2208, 4
        %v2211 = vor.u32 %v2207, %v2210
        %v2212 = vsel %vm979, %v2203, %v2211
        %v2214 = vshrl.u32 %v1979, 16
        %v2216 = vrot.slane %v2214, 3
        %v2217 = vshll.u32 %v1979, 16
        %v2219 = vrot.slane %v2217, 4
        %v2220 = vor.u32 %v2216, %v2219
        %v2221 = vsel %vm979, %v2220, %v2220
        %v2223 = vshrl.u32 %v2148, 16
        %v2225 = vrot.slane %v2223, 3
        %v2226 = vshll.u32 %v2148, 16
        %v2228 = vrot.slane %v2226, 4
        %v2229 = vor.u32 %v2225, %v2228
        %v2231 = vshrl.u32 %v2150, 16
        %v2233 = vrot.slane %v2231, 3
        %v2234 = vshll.u32 %v2150, 16
        %v2236 = vrot.slane %v2234, 4
        %v2237 = vor.u32 %v2233, %v2236
        %v2238 = vsel %vm979, %v2229, %v2237
        %v2240 = vshrl.u32 %v1926, 16
        %v2242 = vrot.slane %v2240, 3
        %v2243 = vshll.u32 %v1926, 16
        %v2245 = vrot.slane %v2243, 4
        %v2246 = vor.u32 %v2242, %v2245
        %v2248 = vshrl.u32 %v1927, 16
        %v2250 = vrot.slane %v2248, 3
        %v2251 = vshll.u32 %v1927, 16
        %v2253 = vrot.slane %v2251, 4
        %v2254 = vor.u32 %v2250, %v2253
        %v2255 = vsel %vm979, %v2246, %v2254
        %v2257 = vshrl.u32 %v1987, 16
        %v2259 = vrot.slane %v2257, 3
        %v2260 = vshll.u32 %v1987, 16
        %v2262 = vrot.slane %v2260, 4
        %v2263 = vor.u32 %v2259, %v2262
        %v2264 = vsel %vm979, %v2263, %v2263
        %v2266 = vshrl.u32 %v2151, 16
        %v2268 = vrot.slane %v2266, 3
        %v2269 = vshll.u32 %v2151, 16
        %v2271 = vrot.slane %v2269, 4
        %v2272 = vor.u32 %v2268, %v2271
        %v2274 = vshrl.u32 %v2153, 16
        %v2276 = vrot.slane %v2274, 3
        %v2277 = vshll.u32 %v2153, 16
        %v2279 = vrot.slane %v2277, 4
        %v2280 = vor.u32 %v2276, %v2279
        %v2281 = vsel %vm979, %v2272, %v2280
        %v2283 = vshrl.u32 %v1928, 16
        %v2285 = vrot.slane %v2283, 3
        %v2286 = vshll.u32 %v1928, 16
        %v2288 = vrot.slane %v2286, 4
        %v2289 = vor.u32 %v2285, %v2288
        %v2291 = vshrl.u32 %v1929, 16
        %v2293 = vrot.slane %v2291, 3
        %v2294 = vshll.u32 %v1929, 16
        %v2296 = vrot.slane %v2294, 4
        %v2297 = vor.u32 %v2293, %v2296
        %v2298 = vsel %vm979, %v2289, %v2297
        %v2300 = vshrl.u32 %v1995, 16
        %v2302 = vrot.slane %v2300, 3
        %v2303 = vshll.u32 %v1995, 16
        %v2305 = vrot.slane %v2303, 4
        %v2306 = vor.u32 %v2302, %v2305
        %v2307 = vsel %vm979, %v2306, %v2306
        %v2309 = vshrl.u32 %v2154, 16
        %v2311 = vrot.slane %v2309, 3
        %v2312 = vshll.u32 %v2154, 16
        %v2314 = vrot.slane %v2312, 4
        %v2315 = vor.u32 %v2311, %v2314
        %v2317 = vshrl.u32 %v2156, 16
        %v2319 = vrot.slane %v2317, 3
        %v2320 = vshll.u32 %v2156, 16
        %v2322 = vrot.slane %v2320, 4
        %v2323 = vor.u32 %v2319, %v2322
        %v2324 = vsel %vm979, %v2315, %v2323
        %v2326 = vshrl.u32 %v1930, 16
        %v2328 = vrot.slane %v2326, 3
        %v2329 = vshll.u32 %v1930, 16
        %v2331 = vrot.slane %v2329, 4
        %v2332 = vor.u32 %v2328, %v2331
        %v2334 = vshrl.u32 %v1931, 16
        %v2336 = vrot.slane %v2334, 3
        %v2337 = vshll.u32 %v1931, 16
        %v2339 = vrot.slane %v2337, 4
        %v2340 = vor.u32 %v2336, %v2339
        %v2341 = vsel %vm979, %v2332, %v2340
        %v2343 = vshrl.u32 %v2003, 16
        %v2345 = vrot.slane %v2343, 3
        %v2346 = vshll.u32 %v2003, 16
        %v2348 = vrot.slane %v2346, 4
        %v2349 = vor.u32 %v2345, %v2348
        %v2350 = vsel %vm979, %v2349, %v2349
        %v2352 = vshrl.u32 %v2157, 16
        %v2354 = vrot.slane %v2352, 3
        %v2355 = vshll.u32 %v2157, 16
        %v2357 = vrot.slane %v2355, 4
        %v2358 = vor.u32 %v2354, %v2357
        %v2360 = vshrl.u32 %v2159, 16
        %v2362 = vrot.slane %v2360, 3
        %v2363 = vshll.u32 %v2159, 16
        %v2365 = vrot.slane %v2363, 4
        %v2366 = vor.u32 %v2362, %v2365
        %v2367 = vsel %vm979, %v2358, %v2366
        %v2369 = vshrl.u32 %v1932, 16
        %v2371 = vrot.slane %v2369, 3
        %v2372 = vshll.u32 %v1932, 16
        %v2374 = vrot.slane %v2372, 4
        %v2375 = vor.u32 %v2371, %v2374
        %v2377 = vshrl.u32 %v1933, 16
        %v2379 = vrot.slane %v2377, 3
        %v2380 = vshll.u32 %v1933, 16
        %v2382 = vrot.slane %v2380, 4
        %v2383 = vor.u32 %v2379, %v2382
        %v2384 = vsel %vm979, %v2375, %v2383
        %v2386 = vshrl.u32 %v2011, 16
        %v2388 = vrot.slane %v2386, 3
        %v2389 = vshll.u32 %v2011, 16
        %v2391 = vrot.slane %v2389, 4
        %v2392 = vor.u32 %v2388, %v2391
        %v2393 = vsel %vm979, %v2392, %v2392
        %v2395 = vshrl.u32 %v2160, 16
        %v2397 = vrot.slane %v2395, 3
        %v2398 = vshll.u32 %v2160, 16
        %v2400 = vrot.slane %v2398, 4
        %v2401 = vor.u32 %v2397, %v2400
        %v2403 = vshrl.u32 %v2162, 16
        %v2405 = vrot.slane %v2403, 3
        %v2406 = vshll.u32 %v2162, 16
        %v2408 = vrot.slane %v2406, 4
        %v2409 = vor.u32 %v2405, %v2408
        %v2410 = vsel %vm979, %v2401, %v2409
        %v2412 = vshrl.u32 %v1934, 16
        %v2414 = vrot.slane %v2412, 3
        %v2415 = vshll.u32 %v1934, 16
        %v2417 = vrot.slane %v2415, 4
        %v2418 = vor.u32 %v2414, %v2417
        %v2420 = vshrl.u32 %v1935, 16
        %v2422 = vrot.slane %v2420, 3
        %v2423 = vshll.u32 %v1935, 16
        %v2425 = vrot.slane %v2423, 4
        %v2426 = vor.u32 %v2422, %v2425
        %v2427 = vsel %vm979, %v2418, %v2426
        %v2429 = vshrl.u32 %v2019, 16
        %v2431 = vrot.slane %v2429, 3
        %v2432 = vshll.u32 %v2019, 16
        %v2434 = vrot.slane %v2432, 4
        %v2435 = vor.u32 %v2431, %v2434
        %v2436 = vsel %vm979, %v2435, %v2435
        %v2438 = vshrl.u32 %v2163, 16
        %v2440 = vrot.slane %v2438, 3
        %v2441 = vshll.u32 %v2163, 16
        %v2443 = vrot.slane %v2441, 4
        %v2444 = vor.u32 %v2440, %v2443
        %v2446 = vshrl.u32 %v2165, 16
        %v2448 = vrot.slane %v2446, 3
        %v2449 = vshll.u32 %v2165, 16
        %v2451 = vrot.slane %v2449, 4
        %v2452 = vor.u32 %v2448, %v2451
        %v2453 = vsel %vm979, %v2444, %v2452
        %v2455 = vshrl.u32 %v1936, 16
        %v2457 = vrot.slane %v2455, 3
        %v2458 = vshll.u32 %v1936, 16
        %v2460 = vrot.slane %v2458, 4
        %v2461 = vor.u32 %v2457, %v2460
        %v2463 = vshrl.u32 %v1937, 16
        %v2465 = vrot.slane %v2463, 3
        %v2466 = vshll.u32 %v1937, 16
        %v2468 = vrot.slane %v2466, 4
        %v2469 = vor.u32 %v2465, %v2468
        %v2470 = vsel %vm979, %v2461, %v2469
        %v2472 = vshrl.u32 %v2027, 16
        %v2474 = vrot.slane %v2472, 3
        %v2475 = vshll.u32 %v2027, 16
        %v2477 = vrot.slane %v2475, 4
        %v2478 = vor.u32 %v2474, %v2477
        %v2479 = vsel %vm979, %v2478, %v2478
        %v2481 = vshrl.u32 %v2166, 16
        %v2483 = vrot.slane %v2481, 3
        %v2484 = vshll.u32 %v2166, 16
        %v2486 = vrot.slane %v2484, 4
        %v2487 = vor.u32 %v2483, %v2486
        %v2489 = vshrl.u32 %v2168, 16
        %v2491 = vrot.slane %v2489, 3
        %v2492 = vshll.u32 %v2168, 16
        %v2494 = vrot.slane %v2492, 4
        %v2495 = vor.u32 %v2491, %v2494
        %v2496 = vsel %vm979, %v2487, %v2495
        %v2498 = vshrl.u32 %v1938, 16
        %v2500 = vrot.slane %v2498, 3
        %v2501 = vshll.u32 %v1938, 16
        %v2503 = vrot.slane %v2501, 4
        %v2504 = vor.u32 %v2500, %v2503
        %v2506 = vshrl.u32 %v1939, 16
        %v2508 = vrot.slane %v2506, 3
        %v2509 = vshll.u32 %v1939, 16
        %v2511 = vrot.slane %v2509, 4
        %v2512 = vor.u32 %v2508, %v2511
        %v2513 = vsel %vm979, %v2504, %v2512
        %v2515 = vshrl.u32 %v2035, 16
        %v2517 = vrot.slane %v2515, 3
        %v2518 = vshll.u32 %v2035, 16
        %v2520 = vrot.slane %v2518, 4
        %v2521 = vor.u32 %v2517, %v2520
        %v2522 = vsel %vm979, %v2521, %v2521
        %v2524 = vshrl.u32 %v2169, 16
        %v2526 = vrot.slane %v2524, 3
        %v2527 = vshll.u32 %v2169, 16
        %v2529 = vrot.slane %v2527, 4
        %v2530 = vor.u32 %v2526, %v2529
        %v2532 = vshrl.u32 %v2171, 16
        %v2534 = vrot.slane %v2532, 3
        %v2535 = vshll.u32 %v2171, 16
        %v2537 = vrot.slane %v2535, 4
        %v2538 = vor.u32 %v2534, %v2537
        %v2539 = vsel %vm979, %v2530, %v2538
        %v2541 = vshrl.u32 %v1940, 16
        %v2543 = vrot.slane %v2541, 3
        %v2544 = vshll.u32 %v1940, 16
        %v2546 = vrot.slane %v2544, 4
        %v2547 = vor.u32 %v2543, %v2546
        %v2549 = vshrl.u32 %v1941, 16
        %v2551 = vrot.slane %v2549, 3
        %v2552 = vshll.u32 %v1941, 16
        %v2554 = vrot.slane %v2552, 4
        %v2555 = vor.u32 %v2551, %v2554
        %v2556 = vsel %vm979, %v2547, %v2555
        %v2558 = vshrl.u32 %v2043, 16
        %v2560 = vrot.slane %v2558, 3
        %v2561 = vshll.u32 %v2043, 16
        %v2563 = vrot.slane %v2561, 4
        %v2564 = vor.u32 %v2560, %v2563
        %v2565 = vsel %vm979, %v2564, %v2564
        %v2567 = vshrl.u32 %v2172, 16
        %v2569 = vrot.slane %v2567, 3
        %v2570 = vshll.u32 %v2172, 16
        %v2572 = vrot.slane %v2570, 4
        %v2573 = vor.u32 %v2569, %v2572
        %v2575 = vshrl.u32 %v2174, 16
        %v2577 = vrot.slane %v2575, 3
        %v2578 = vshll.u32 %v2174, 16
        %v2580 = vrot.slane %v2578, 4
        %v2581 = vor.u32 %v2577, %v2580
        %v2582 = vsel %vm979, %v2573, %v2581
        %v2584 = vshrl.u32 %v1942, 16
        %v2586 = vrot.slane %v2584, 3
        %v2587 = vshll.u32 %v1942, 16
        %v2589 = vrot.slane %v2587, 4
        %v2590 = vor.u32 %v2586, %v2589
        %v2592 = vshrl.u32 %v1943, 16
        %v2594 = vrot.slane %v2592, 3
        %v2595 = vshll.u32 %v1943, 16
        %v2597 = vrot.slane %v2595, 4
        %v2598 = vor.u32 %v2594, %v2597
        %v2599 = vsel %vm979, %v2590, %v2598
        %v2601 = vshrl.u32 %v2051, 16
        %v2603 = vrot.slane %v2601, 3
        %v2604 = vshll.u32 %v2051, 16
        %v2606 = vrot.slane %v2604, 4
        %v2607 = vor.u32 %v2603, %v2606
        %v2608 = vsel %vm979, %v2607, %v2607
        %v2610 = vshrl.u32 %v2175, 16
        %v2612 = vrot.slane %v2610, 3
        %v2613 = vshll.u32 %v2175, 16
        %v2615 = vrot.slane %v2613, 4
        %v2616 = vor.u32 %v2612, %v2615
        %v2618 = vshrl.u32 %v2177, 16
        %v2620 = vrot.slane %v2618, 3
        %v2621 = vshll.u32 %v2177, 16
        %v2623 = vrot.slane %v2621, 4
        %v2624 = vor.u32 %v2620, %v2623
        %v2625 = vsel %vm979, %v2616, %v2624
        %v2627 = vshrl.u32 %v1944, 16
        %v2629 = vrot.slane %v2627, 3
        %v2630 = vshll.u32 %v1944, 16
        %v2632 = vrot.slane %v2630, 4
        %v2633 = vor.u32 %v2629, %v2632
        %v2635 = vshrl.u32 %v1945, 16
        %v2637 = vrot.slane %v2635, 3
        %v2638 = vshll.u32 %v1945, 16
        %v2640 = vrot.slane %v2638, 4
        %v2641 = vor.u32 %v2637, %v2640
        %v2642 = vsel %vm979, %v2633, %v2641
        %v2644 = vshrl.u32 %v2059, 16
        %v2646 = vrot.slane %v2644, 3
        %v2647 = vshll.u32 %v2059, 16
        %v2649 = vrot.slane %v2647, 4
        %v2650 = vor.u32 %v2646, %v2649
        %v2651 = vsel %vm979, %v2650, %v2650
        %v2653 = vshrl.u32 %v2178, 16
        %v2655 = vrot.slane %v2653, 3
        %v2656 = vshll.u32 %v2178, 16
        %v2658 = vrot.slane %v2656, 4
        %v2659 = vor.u32 %v2655, %v2658
        %v2661 = vshrl.u32 %v2180, 16
        %v2663 = vrot.slane %v2661, 3
        %v2664 = vshll.u32 %v2180, 16
        %v2666 = vrot.slane %v2664, 4
        %v2667 = vor.u32 %v2663, %v2666
        %v2668 = vsel %vm979, %v2659, %v2667
        %v2670 = vshrl.u32 %v1946, 16
        %v2672 = vrot.slane %v2670, 3
        %v2673 = vshll.u32 %v1946, 16
        %v2675 = vrot.slane %v2673, 4
        %v2676 = vor.u32 %v2672, %v2675
        %v2678 = vshrl.u32 %v1947, 16
        %v2680 = vrot.slane %v2678, 3
        %v2681 = vshll.u32 %v1947, 16
        %v2683 = vrot.slane %v2681, 4
        %v2684 = vor.u32 %v2680, %v2683
        %v2685 = vsel %vm979, %v2676, %v2684
        %v2687 = vshrl.u32 %v2067, 16
        %v2689 = vrot.slane %v2687, 3
        %v2690 = vshll.u32 %v2067, 16
        %v2692 = vrot.slane %v2690, 4
        %v2693 = vor.u32 %v2689, %v2692
        %v2694 = vsel %vm979, %v2693, %v2693
        %v2696 = vshrl.u32 %v2181, 16
        %v2698 = vrot.slane %v2696, 3
        %v2699 = vshll.u32 %v2181, 16
        %v2701 = vrot.slane %v2699, 4
        %v2702 = vor.u32 %v2698, %v2701
        %v2704 = vshrl.u32 %v2183, 16
        %v2706 = vrot.slane %v2704, 3
        %v2707 = vshll.u32 %v2183, 16
        %v2709 = vrot.slane %v2707, 4
        %v2710 = vor.u32 %v2706, %v2709
        %v2711 = vsel %vm979, %v2702, %v2710
        %v2713 = vshrl.u32 %v1948, 16
        %v2715 = vrot.slane %v2713, 3
        %v2716 = vshll.u32 %v1948, 16
        %v2718 = vrot.slane %v2716, 4
        %v2719 = vor.u32 %v2715, %v2718
        %v2721 = vshrl.u32 %v1949, 16
        %v2723 = vrot.slane %v2721, 3
        %v2724 = vshll.u32 %v1949, 16
        %v2726 = vrot.slane %v2724, 4
        %v2727 = vor.u32 %v2723, %v2726
        %v2728 = vsel %vm979, %v2719, %v2727
        %v2730 = vshrl.u32 %v2075, 16
        %v2732 = vrot.slane %v2730, 3
        %v2733 = vshll.u32 %v2075, 16
        %v2735 = vrot.slane %v2733, 4
        %v2736 = vor.u32 %v2732, %v2735
        %v2737 = vsel %vm979, %v2736, %v2736
        %v2739 = vshrl.u32 %v2184, 16
        %v2741 = vrot.slane %v2739, 3
        %v2742 = vshll.u32 %v2184, 16
        %v2744 = vrot.slane %v2742, 4
        %v2745 = vor.u32 %v2741, %v2744
        %v2747 = vshrl.u32 %v2186, 16
        %v2749 = vrot.slane %v2747, 3
        %v2750 = vshll.u32 %v2186, 16
        %v2752 = vrot.slane %v2750, 4
        %v2753 = vor.u32 %v2749, %v2752
        %v2754 = vsel %vm979, %v2745, %v2753
        %v2756 = vshrl.u32 %v1950, 16
        %v2758 = vrot.slane %v2756, 3
        %v2759 = vshll.u32 %v1950, 16
        %v2761 = vrot.slane %v2759, 4
        %v2762 = vor.u32 %v2758, %v2761
        %v2764 = vshrl.u32 %v1951, 16
        %v2766 = vrot.slane %v2764, 3
        %v2767 = vshll.u32 %v1951, 16
        %v2769 = vrot.slane %v2767, 4
        %v2770 = vor.u32 %v2766, %v2769
        %v2771 = vsel %vm979, %v2762, %v2770
        %v2773 = vshrl.u32 %v2083, 16
        %v2775 = vrot.slane %v2773, 3
        %v2776 = vshll.u32 %v2083, 16
        %v2778 = vrot.slane %v2776, 4
        %v2779 = vor.u32 %v2775, %v2778
        %v2780 = vsel %vm979, %v2779, %v2779
        %v2782 = vshrl.u32 %v2187, 16
        %v2784 = vrot.slane %v2782, 3
        %v2785 = vshll.u32 %v2187, 16
        %v2787 = vrot.slane %v2785, 4
        %v2788 = vor.u32 %v2784, %v2787
        %v2790 = vshrl.u32 %v2189, 16
        %v2792 = vrot.slane %v2790, 3
        %v2793 = vshll.u32 %v2189, 16
        %v2795 = vrot.slane %v2793, 4
        %v2796 = vor.u32 %v2792, %v2795
        %v2797 = vsel %vm979, %v2788, %v2796
        %v2799 = vshrl.u32 %v1952, 16
        %v2801 = vrot.slane %v2799, 3
        %v2802 = vshll.u32 %v1952, 16
        %v2804 = vrot.slane %v2802, 4
        %v2805 = vor.u32 %v2801, %v2804
        %v2807 = vshrl.u32 %v1953, 16
        %v2809 = vrot.slane %v2807, 3
        %v2810 = vshll.u32 %v1953, 16
        %v2812 = vrot.slane %v2810, 4
        %v2813 = vor.u32 %v2809, %v2812
        %v2814 = vsel %vm979, %v2805, %v2813
        %v2816 = vshrl.u32 %v2091, 16
        %v2818 = vrot.slane %v2816, 3
        %v2819 = vshll.u32 %v2091, 16
        %v2821 = vrot.slane %v2819, 4
        %v2822 = vor.u32 %v2818, %v2821
        %v2823 = vsel %vm979, %v2822, %v2822
        %v2825 = vshrl.u32 %v2190, 16
        %v2827 = vrot.slane %v2825, 3
        %v2828 = vshll.u32 %v2190, 16
        %v2830 = vrot.slane %v2828, 4
        %v2831 = vor.u32 %v2827, %v2830
        %v2833 = vshrl.u32 %v2192, 16
        %v2835 = vrot.slane %v2833, 3
        %v2836 = vshll.u32 %v2192, 16
        %v2838 = vrot.slane %v2836, 4
        %v2839 = vor.u32 %v2835, %v2838
        %v2840 = vsel %vm979, %v2831, %v2839
        %v2842 = vshrl.u32 %v1954, 16
        %v2844 = vrot.slane %v2842, 3
        %v2845 = vshll.u32 %v1954, 16
        %v2847 = vrot.slane %v2845, 4
        %v2848 = vor.u32 %v2844, %v2847
        %v2850 = vshrl.u32 %v1955, 16
        %v2852 = vrot.slane %v2850, 3
        %v2853 = vshll.u32 %v1955, 16
        %v2855 = vrot.slane %v2853, 4
        %v2856 = vor.u32 %v2852, %v2855
        %v2857 = vsel %vm979, %v2848, %v2856
        %v2859 = vshrl.u32 %v2099, 16
        %v2861 = vrot.slane %v2859, 3
        %v2862 = vshll.u32 %v2099, 16
        %v2864 = vrot.slane %v2862, 4
        %v2865 = vor.u32 %v2861, %v2864
        %v2866 = vsel %vm979, %v2865, %v2865
        %v2868 = vshrl.u32 %v2193, 16
        %v2870 = vrot.slane %v2868, 3
        %v2871 = vshll.u32 %v2193, 16
        %v2873 = vrot.slane %v2871, 4
        %v2874 = vor.u32 %v2870, %v2873
        %v2876 = vshrl.u32 %v2195, 16
        %v2878 = vrot.slane %v2876, 3
        %v2879 = vshll.u32 %v2195, 16
        %v2881 = vrot.slane %v2879, 4
        %v2882 = vor.u32 %v2878, %v2881
        %v2883 = vsel %vm979, %v2874, %v2882
        %v2932 = vld [vmem:[%s1 + $0xc0] sm:$0xf]
        %v2933 = vld [vmem:[%s1 + $0xc4] sm:$0xf]
        %v2934 = vld [vmem:[%s1 + $0xc8] sm:$0xf]
        %v2935 = vld [vmem:[%s1 + $0xcc] sm:$0xf]
        %v2936 = vld [vmem:[%s1 + $0xd0] sm:$0xf]
        %v2937 = vld [vmem:[%s1 + $0xd4] sm:$0xf]
        %v2938 = vld [vmem:[%s1 + $0xd8] sm:$0xf]
        %v2939 = vld [vmem:[%s1 + $0xdc] sm:$0xf]
        %v2940 = vld [vmem:[%s1 + $0xe0] sm:$0xf]
        %v2941 = vld [vmem:[%s1 + $0xe4] sm:$0xf]
        %v2942 = vld [vmem:[%s1 + $0xe8] sm:$0xf]
        %v2943 = vld [vmem:[%s1 + $0xec] sm:$0xf]
        %v2944 = vld [vmem:[%s1 + $0xf0] sm:$0xf]
        %v2945 = vld [vmem:[%s1 + $0xf4] sm:$0xf]
        %v2946 = vld [vmem:[%s1 + $0xf8] sm:$0xf]
        %v2947 = vld [vmem:[%s1 + $0xfc] sm:$0xf]
        %v2948 = vld [vmem:[%s1 + $0x100] sm:$0xf]
        %v2949 = vld [vmem:[%s1 + $0x104] sm:$0xf]
        %v2950 = vld [vmem:[%s1 + $0x108] sm:$0xf]
        %v2951 = vld [vmem:[%s1 + $0x10c] sm:$0xf]
        %v2952 = vld [vmem:[%s1 + $0x110] sm:$0xf]
        %v2953 = vld [vmem:[%s1 + $0x114] sm:$0xf]
        %v2954 = vld [vmem:[%s1 + $0x118] sm:$0xf]
        %v2955 = vld [vmem:[%s1 + $0x11c] sm:$0xf]
        %v2956 = vld [vmem:[%s1 + $0x120] sm:$0xf]
        %v2957 = vld [vmem:[%s1 + $0x124] sm:$0xf]
        %v2958 = vld [vmem:[%s1 + $0x128] sm:$0xf]
        %v2959 = vld [vmem:[%s1 + $0x12c] sm:$0xf]
        %v2960 = vld [vmem:[%s1 + $0x130] sm:$0xf]
        %v2961 = vld [vmem:[%s1 + $0x134] sm:$0xf]
        %v2962 = vld [vmem:[%s1 + $0x138] sm:$0xf]
        %v2963 = vld [vmem:[%s1 + $0x13c] sm:$0xf]
        %v2964 = vld [vmem:[%s1 + $0x140] sm:$0xf]
        %v2965 = vld [vmem:[%s1 + $0x144] sm:$0xf]
        %v2966 = vld [vmem:[%s1 + $0x148] sm:$0xf]
        %v2967 = vld [vmem:[%s1 + $0x14c] sm:$0xf]
        %v2968 = vld [vmem:[%s1 + $0x150] sm:$0xf]
        %v2969 = vld [vmem:[%s1 + $0x154] sm:$0xf]
        %v2970 = vld [vmem:[%s1 + $0x158] sm:$0xf]
        %v2971 = vld [vmem:[%s1 + $0x15c] sm:$0xf]
        %v2972 = vld [vmem:[%s1 + $0x160] sm:$0xf]
        %v2973 = vld [vmem:[%s1 + $0x164] sm:$0xf]
        %v2974 = vld [vmem:[%s1 + $0x168] sm:$0xf]
        %v2975 = vld [vmem:[%s1 + $0x16c] sm:$0xf]
        %v2976 = vld [vmem:[%s1 + $0x170] sm:$0xf]
        %v2977 = vld [vmem:[%s1 + $0x174] sm:$0xf]
        %v2978 = vld [vmem:[%s1 + $0x178] sm:$0xf]
        %v2979 = vld [vmem:[%s1 + $0x17c] sm:$0xf]
        %v3028 = vunpack.c.l.b16 %v2932
        %v3029 = vunpack.c.l.b16 %v2933
        %v3030 = vunpack.c.l.b16 %v2934
        %v3031 = vunpack.c.l.b16 %v2935
        %v3032 = vunpack.c.l.b16 %v2936
        %v3033 = vunpack.c.l.b16 %v2937
        %v3034 = vunpack.c.l.b16 %v2938
        %v3035 = vunpack.c.l.b16 %v2939
        %v3036 = vunpack.c.l.b16 %v2940
        %v3037 = vunpack.c.l.b16 %v2941
        %v3038 = vunpack.c.l.b16 %v2942
        %v3039 = vunpack.c.l.b16 %v2943
        %v3040 = vunpack.c.l.b16 %v2944
        %v3041 = vunpack.c.l.b16 %v2945
        %v3042 = vunpack.c.l.b16 %v2946
        %v3043 = vunpack.c.l.b16 %v2947
        %v3044 = vunpack.c.l.b16 %v2948
        %v3045 = vunpack.c.l.b16 %v2949
        %v3046 = vunpack.c.l.b16 %v2950
        %v3047 = vunpack.c.l.b16 %v2951
        %v3048 = vunpack.c.l.b16 %v2952
        %v3049 = vunpack.c.l.b16 %v2953
        %v3050 = vunpack.c.l.b16 %v2954
        %v3051 = vunpack.c.l.b16 %v2955
        %v3052 = vunpack.c.l.b16 %v2956
        %v3053 = vunpack.c.l.b16 %v2957
        %v3054 = vunpack.c.l.b16 %v2958
        %v3055 = vunpack.c.l.b16 %v2959
        %v3056 = vunpack.c.l.b16 %v2960
        %v3057 = vunpack.c.l.b16 %v2961
        %v3058 = vunpack.c.l.b16 %v2962
        %v3059 = vunpack.c.l.b16 %v2963
        %v3060 = vunpack.c.l.b16 %v2964
        %v3061 = vunpack.c.l.b16 %v2965
        %v3062 = vunpack.c.l.b16 %v2966
        %v3063 = vunpack.c.l.b16 %v2967
        %v3064 = vunpack.c.l.b16 %v2968
        %v3065 = vunpack.c.l.b16 %v2969
        %v3066 = vunpack.c.l.b16 %v2970
        %v3067 = vunpack.c.l.b16 %v2971
        %v3068 = vunpack.c.l.b16 %v2972
        %v3069 = vunpack.c.l.b16 %v2973
        %v3070 = vunpack.c.l.b16 %v2974
        %v3071 = vunpack.c.l.b16 %v2975
        %v3072 = vunpack.c.l.b16 %v2976
        %v3073 = vunpack.c.l.b16 %v2977
        %v3074 = vunpack.c.l.b16 %v2978
        %v3075 = vunpack.c.l.b16 %v2979
        %v3076 = vpack.c.b16 %v3029, %v3028
        %v3077 = vpack.c.b16 %v3031, %v3030
        %v3078 = vpack.c.b16 %v3033, %v3032
        %v3079 = vpack.c.b16 %v3035, %v3034
        %v3080 = vpack.c.b16 %v3037, %v3036
        %v3081 = vpack.c.b16 %v3039, %v3038
        %v3082 = vpack.c.b16 %v3041, %v3040
        %v3083 = vpack.c.b16 %v3043, %v3042
        %v3084 = vpack.c.b16 %v3045, %v3044
        %v3085 = vpack.c.b16 %v3047, %v3046
        %v3086 = vpack.c.b16 %v3049, %v3048
        %v3087 = vpack.c.b16 %v3051, %v3050
        %v3088 = vpack.c.b16 %v3053, %v3052
        %v3089 = vpack.c.b16 %v3055, %v3054
        %v3090 = vpack.c.b16 %v3057, %v3056
        %v3091 = vpack.c.b16 %v3059, %v3058
        %v3092 = vpack.c.b16 %v3061, %v3060
        %v3093 = vpack.c.b16 %v3063, %v3062
        %v3094 = vpack.c.b16 %v3065, %v3064
        %v3095 = vpack.c.b16 %v3067, %v3066
        %v3096 = vpack.c.b16 %v3069, %v3068
        %v3097 = vpack.c.b16 %v3071, %v3070
        %v3098 = vpack.c.b16 %v3073, %v3072
        %v3099 = vpack.c.b16 %v3075, %v3074
        %3124 = vmatprep.subr.bf16.mxu0 0
        %3125 = vmatpush1.bf16.msra.mxu0 %v3083
        %3126 = vmatprep.subr.bf16.mxu0 0
        %3127 = vmatpush1.bf16.msra.mxu0 %v3082
        %3128 = vmatprep.subr.bf16.mxu0 0
        %3129 = vmatpush1.bf16.msra.mxu0 %v3081
        %3130 = vmatprep.subr.bf16.mxu0 0
        %3131 = vmatpush1.bf16.msra.mxu0 %v3080
        %3132 = vmatprep.subr.bf16.mxu0 0
        %3133 = vmatpush1.bf16.msra.mxu0 %v3079
        %3134 = vmatprep.subr.bf16.mxu0 0
        %3135 = vmatpush1.bf16.msra.mxu0 %v3078
        %3136 = vmatprep.subr.bf16.mxu0 0
        %3137 = vmatpush1.bf16.msra.mxu0 %v3077
        %3138 = vmatprep.subr.bf16.mxu0 0
        %3139 = vmatpush1.bf16.msra.mxu0 %v3076
        %3140 = vmatprep.subr.bf16.mxu0 0
        %3141 = vmatpush2.bf16.msra.mxu0 %v3091
        %3142 = vmatprep.subr.bf16.mxu0 0
        %3143 = vmatpush2.bf16.msra.mxu0 %v3090
        %3144 = vmatprep.subr.bf16.mxu0 0
        %3145 = vmatpush2.bf16.msra.mxu0 %v3089
        %3146 = vmatprep.subr.bf16.mxu0 0
        %3147 = vmatpush2.bf16.msra.mxu0 %v3088
        %3148 = vmatprep.subr.bf16.mxu0 0
        %3149 = vmatpush2.bf16.msra.mxu0 %v3087
        %3150 = vmatprep.subr.bf16.mxu0 0
        %3151 = vmatpush2.bf16.msra.mxu0 %v3086
        %3152 = vmatprep.subr.bf16.mxu0 0
        %3153 = vmatpush2.bf16.msra.mxu0 %v3085
        %3154 = vmatprep.subr.bf16.mxu0 0
        %3155 = vmatpush2.bf16.msra.mxu0 %v3084
        %3156 = vmatprep.mubr.bf16.mxu0 %v2221
        %3157 = vmatmul.mubr.bf16.gmra.mxu0 %v2212
        %v3158 = vpop.f32.mrf.mxu0
        %v3159 = vadd.f32 0.0, %v3158
        %v3160 = vpop.f32.mrf.mxu0
        %v3161 = vpop.f32.mrf.mxu0
        %v3162 = vadd.f32 0.0, %v3161
        %v3163 = vpop.f32.mrf.mxu0
        %3164 = vmatprep.mubr.bf16.mxu0 %v2264
        %3165 = vmatmul.mubr.bf16.gmra.mxu0 %v2255
        %v3166 = vpop.f32.mrf.mxu0
        %v3167 = vadd.f32 0.0, %v3166
        %v3168 = vpop.f32.mrf.mxu0
        %v3169 = vpop.f32.mrf.mxu0
        %v3170 = vadd.f32 0.0, %v3169
        %v3171 = vpop.f32.mrf.mxu0
        %3172 = vmatprep.mubr.bf16.mxu0 %v2307
        %3173 = vmatmul.mubr.bf16.gmra.mxu0 %v2298
        %v3174 = vpop.f32.mrf.mxu0
        %v3175 = vadd.f32 0.0, %v3174
        %v3176 = vpop.f32.mrf.mxu0
        %v3177 = vpop.f32.mrf.mxu0
        %v3178 = vadd.f32 0.0, %v3177
        %v3179 = vpop.f32.mrf.mxu0
        %3180 = vmatprep.mubr.bf16.mxu0 %v2350
        %3181 = vmatmul.mubr.bf16.gmra.mxu0 %v2341
        %v3182 = vpop.f32.mrf.mxu0
        %v3183 = vadd.f32 0.0, %v3182
        %v3184 = vpop.f32.mrf.mxu0
        %v3185 = vpop.f32.mrf.mxu0
        %v3186 = vadd.f32 0.0, %v3185
        %v3187 = vpop.f32.mrf.mxu0
        %3188 = vmatprep.mubr.bf16.mxu0 %v2393
        %3189 = vmatmul.mubr.bf16.gmra.mxu0 %v2384
        %v3190 = vpop.f32.mrf.mxu0
        %v3191 = vadd.f32 0.0, %v3190
        %v3192 = vpop.f32.mrf.mxu0
        %v3193 = vpop.f32.mrf.mxu0
        %v3194 = vadd.f32 0.0, %v3193
        %v3195 = vpop.f32.mrf.mxu0
        %3196 = vmatprep.mubr.bf16.mxu0 %v2436
        %3197 = vmatmul.mubr.bf16.gmra.mxu0 %v2427
        %v3198 = vpop.f32.mrf.mxu0
        %v3199 = vadd.f32 0.0, %v3198
        %v3200 = vpop.f32.mrf.mxu0
        %v3201 = vpop.f32.mrf.mxu0
        %v3202 = vadd.f32 0.0, %v3201
        %v3203 = vpop.f32.mrf.mxu0
        %3204 = vmatprep.mubr.bf16.mxu0 %v2479
        %3205 = vmatmul.mubr.bf16.gmra.mxu0 %v2470
        %v3206 = vpop.f32.mrf.mxu0
        %v3207 = vadd.f32 0.0, %v3206
        %v3208 = vpop.f32.mrf.mxu0
        %v3209 = vpop.f32.mrf.mxu0
        %v3210 = vadd.f32 0.0, %v3209
        %v3211 = vpop.f32.mrf.mxu0
        %3212 = vmatprep.mubr.bf16.mxu0 %v2522
        %3213 = vmatmul.mubr.bf16.gmra.mxu0 %v2513
        %v3214 = vpop.f32.mrf.mxu0
        %v3215 = vadd.f32 0.0, %v3214
        %v3216 = vpop.f32.mrf.mxu0
        %v3217 = vpop.f32.mrf.mxu0
        %v3218 = vadd.f32 0.0, %v3217
        %v3219 = vpop.f32.mrf.mxu0
        %3220 = vmatprep.mubr.bf16.mxu0 %v2565
        %3221 = vmatmul.mubr.bf16.gmra.mxu0 %v2556
        %v3222 = vpop.f32.mrf.mxu0
        %v3223 = vadd.f32 0.0, %v3222
        %v3224 = vpop.f32.mrf.mxu0
        %v3225 = vpop.f32.mrf.mxu0
        %v3226 = vadd.f32 0.0, %v3225
        %v3227 = vpop.f32.mrf.mxu0
        %3228 = vmatprep.mubr.bf16.mxu0 %v2608
        %3229 = vmatmul.mubr.bf16.gmra.mxu0 %v2599
        %v3230 = vpop.f32.mrf.mxu0
        %v3231 = vadd.f32 0.0, %v3230
        %v3232 = vpop.f32.mrf.mxu0
        %v3233 = vpop.f32.mrf.mxu0
        %v3234 = vadd.f32 0.0, %v3233
        %v3235 = vpop.f32.mrf.mxu0
        %3236 = vmatprep.mubr.bf16.mxu0 %v2651
        %3237 = vmatmul.mubr.bf16.gmra.mxu0 %v2642
        %v3238 = vpop.f32.mrf.mxu0
        %v3239 = vadd.f32 0.0, %v3238
        %v3240 = vpop.f32.mrf.mxu0
        %v3241 = vpop.f32.mrf.mxu0
        %v3242 = vadd.f32 0.0, %v3241
        %v3243 = vpop.f32.mrf.mxu0
        %3244 = vmatprep.mubr.bf16.mxu0 %v2694
        %3245 = vmatmul.mubr.bf16.gmra.mxu0 %v2685
        %v3246 = vpop.f32.mrf.mxu0
        %v3247 = vadd.f32 0.0, %v3246
        %v3248 = vpop.f32.mrf.mxu0
        %v3249 = vpop.f32.mrf.mxu0
        %v3250 = vadd.f32 0.0, %v3249
        %v3251 = vpop.f32.mrf.mxu0
        %3252 = vmatprep.mubr.bf16.mxu0 %v2737
        %3253 = vmatmul.mubr.bf16.gmra.mxu0 %v2728
        %v3254 = vpop.f32.mrf.mxu0
        %v3255 = vadd.f32 0.0, %v3254
        %v3256 = vpop.f32.mrf.mxu0
        %v3257 = vpop.f32.mrf.mxu0
        %v3258 = vadd.f32 0.0, %v3257
        %v3259 = vpop.f32.mrf.mxu0
        %3260 = vmatprep.mubr.bf16.mxu0 %v2780
        %3261 = vmatmul.mubr.bf16.gmra.mxu0 %v2771
        %v3262 = vpop.f32.mrf.mxu0
        %v3263 = vadd.f32 0.0, %v3262
        %v3264 = vpop.f32.mrf.mxu0
        %v3265 = vpop.f32.mrf.mxu0
        %v3266 = vadd.f32 0.0, %v3265
        %v3267 = vpop.f32.mrf.mxu0
        %3268 = vmatprep.mubr.bf16.mxu0 %v2823
        %3269 = vmatmul.mubr.bf16.gmra.mxu0 %v2814
        %v3270 = vpop.f32.mrf.mxu0
        %v3271 = vadd.f32 0.0, %v3270
        %v3272 = vpop.f32.mrf.mxu0
        %v3273 = vpop.f32.mrf.mxu0
        %v3274 = vadd.f32 0.0, %v3273
        %v3275 = vpop.f32.mrf.mxu0
        %3276 = vmatprep.mubr.bf16.mxu0 %v2866
        %3277 = vmatmul.mubr.bf16.gmra.mxu0 %v2857
        %v3278 = vpop.f32.mrf.mxu0
        %v3279 = vadd.f32 0.0, %v3278
        %v3280 = vpop.f32.mrf.mxu0
        %v3281 = vpop.f32.mrf.mxu0
        %v3282 = vadd.f32 0.0, %v3281
        %v3283 = vpop.f32.mrf.mxu0
        %3284 = vdwg.mxu0
        %3285 = vmatprep.subr.bf16.mxu0 0
        %3286 = vmatpush1.bf16.msra.mxu0 %v3099
        %3287 = vmatprep.subr.bf16.mxu0 0
        %3288 = vmatpush1.bf16.msra.mxu0 %v3098
        %3289 = vmatprep.subr.bf16.mxu0 0
        %3290 = vmatpush1.bf16.msra.mxu0 %v3097
        %3291 = vmatprep.subr.bf16.mxu0 0
        %3292 = vmatpush1.bf16.msra.mxu0 %v3096
        %3293 = vmatprep.subr.bf16.mxu0 0
        %3294 = vmatpush1.bf16.msra.mxu0 %v3095
        %3295 = vmatprep.subr.bf16.mxu0 0
        %3296 = vmatpush1.bf16.msra.mxu0 %v3094
        %3297 = vmatprep.subr.bf16.mxu0 0
        %3298 = vmatpush1.bf16.msra.mxu0 %v3093
        %3299 = vmatprep.subr.bf16.mxu0 0
        %3300 = vmatpush1.bf16.msra.mxu0 %v3092
        %3301 = vmatprep.subr.bf16.mxu0 0
        %3302 = vmatpush2.bf16.msra.mxu0 0
        %3303 = vmatprep.subr.bf16.mxu0 0
        %3304 = vmatpush2.bf16.msra.mxu0 0
        %3305 = vmatprep.subr.bf16.mxu0 0
        %3306 = vmatpush2.bf16.msra.mxu0 0
        %3307 = vmatprep.subr.bf16.mxu0 0
        %3308 = vmatpush2.bf16.msra.mxu0 0
        %3309 = vmatprep.subr.bf16.mxu0 0
        %3310 = vmatpush2.bf16.msra.mxu0 0
        %3311 = vmatprep.subr.bf16.mxu0 0
        %3312 = vmatpush2.bf16.msra.mxu0 0
        %3313 = vmatprep.subr.bf16.mxu0 0
        %3314 = vmatpush2.bf16.msra.mxu0 0
        %3315 = vmatprep.subr.bf16.mxu0 0
        %3316 = vmatpush2.bf16.msra.mxu0 0
        %3317 = vmatprep.mubr.bf16.mxu0 0
        %3318 = vmatmul.mubr.bf16.gmra.mxu0 %v2238
        %v3319 = vpop.f32.mrf.mxu0
        %v3320 = vadd.f32 %v3159, %v3319
        %v3321 = vpop.f32.mrf.mxu0
        %v3322 = vpop.f32.mrf.mxu0
        %v3323 = vadd.f32 %v3162, %v3322
        %v3324 = vpop.f32.mrf.mxu0
        %3325 = vmatprep.mubr.bf16.mxu0 0
        %3326 = vmatmul.mubr.bf16.gmra.mxu0 %v2281
        %v3327 = vpop.f32.mrf.mxu0
        %v3328 = vadd.f32 %v3167, %v3327
        %v3329 = vpop.f32.mrf.mxu0
        %v3330 = vpop.f32.mrf.mxu0
        %v3331 = vadd.f32 %v3170, %v3330
        %v3332 = vpop.f32.mrf.mxu0
        %3333 = vmatprep.mubr.bf16.mxu0 0
        %3334 = vmatmul.mubr.bf16.gmra.mxu0 %v2324
        %v3335 = vpop.f32.mrf.mxu0
        %v3336 = vadd.f32 %v3175, %v3335
        %v3337 = vpop.f32.mrf.mxu0
        %v3338 = vpop.f32.mrf.mxu0
        %v3339 = vadd.f32 %v3178, %v3338
        %v3340 = vpop.f32.mrf.mxu0
        %3341 = vmatprep.mubr.bf16.mxu0 0
        %3342 = vmatmul.mubr.bf16.gmra.mxu0 %v2367
        %v3343 = vpop.f32.mrf.mxu0
        %v3344 = vadd.f32 %v3183, %v3343
        %v3345 = vpop.f32.mrf.mxu0
        %v3346 = vpop.f32.mrf.mxu0
        %v3347 = vadd.f32 %v3186, %v3346
        %v3348 = vpop.f32.mrf.mxu0
        %3349 = vmatprep.mubr.bf16.mxu0 0
        %3350 = vmatmul.mubr.bf16.gmra.mxu0 %v2410
        %v3351 = vpop.f32.mrf.mxu0
        %v3352 = vadd.f32 %v3191, %v3351
        %v3353 = vpop.f32.mrf.mxu0
        %v3354 = vpop.f32.mrf.mxu0
        %v3355 = vadd.f32 %v3194, %v3354
        %v3356 = vpop.f32.mrf.mxu0
        %3357 = vmatprep.mubr.bf16.mxu0 0
        %3358 = vmatmul.mubr.bf16.gmra.mxu0 %v2453
        %v3359 = vpop.f32.mrf.mxu0
        %v3360 = vadd.f32 %v3199, %v3359
        %v3361 = vpop.f32.mrf.mxu0
        %v3362 = vpop.f32.mrf.mxu0
        %v3363 = vadd.f32 %v3202, %v3362
        %v3364 = vpop.f32.mrf.mxu0
        %3365 = vmatprep.mubr.bf16.mxu0 0
        %3366 = vmatmul.mubr.bf16.gmra.mxu0 %v2496
        %v3367 = vpop.f32.mrf.mxu0
        %v3368 = vadd.f32 %v3207, %v3367
        %v3369 = vpop.f32.mrf.mxu0
        %v3370 = vpop.f32.mrf.mxu0
        %v3371 = vadd.f32 %v3210, %v3370
        %v3372 = vpop.f32.mrf.mxu0
        %3373 = vmatprep.mubr.bf16.mxu0 0
        %3374 = vmatmul.mubr.bf16.gmra.mxu0 %v2539
        %v3375 = vpop.f32.mrf.mxu0
        %v3376 = vadd.f32 %v3215, %v3375
        %v3377 = vpop.f32.mrf.mxu0
        %v3378 = vpop.f32.mrf.mxu0
        %v3379 = vadd.f32 %v3218, %v3378
        %v3380 = vpop.f32.mrf.mxu0
        %3381 = vmatprep.mubr.bf16.mxu0 0
        %3382 = vmatmul.mubr.bf16.gmra.mxu0 %v2582
        %v3383 = vpop.f32.mrf.mxu0
        %v3384 = vadd.f32 %v3223, %v3383
        %v3385 = vpop.f32.mrf.mxu0
        %v3386 = vpop.f32.mrf.mxu0
        %v3387 = vadd.f32 %v3226, %v3386
        %v3388 = vpop.f32.mrf.mxu0
        %3389 = vmatprep.mubr.bf16.mxu0 0
        %3390 = vmatmul.mubr.bf16.gmra.mxu0 %v2625
        %v3391 = vpop.f32.mrf.mxu0
        %v3392 = vadd.f32 %v3231, %v3391
        %v3393 = vpop.f32.mrf.mxu0
        %v3394 = vpop.f32.mrf.mxu0
        %v3395 = vadd.f32 %v3234, %v3394
        %v3396 = vpop.f32.mrf.mxu0
        %3397 = vmatprep.mubr.bf16.mxu0 0
        %3398 = vmatmul.mubr.bf16.gmra.mxu0 %v2668
        %v3399 = vpop.f32.mrf.mxu0
        %v3400 = vadd.f32 %v3239, %v3399
        %v3401 = vpop.f32.mrf.mxu0
        %v3402 = vpop.f32.mrf.mxu0
        %v3403 = vadd.f32 %v3242, %v3402
        %v3404 = vpop.f32.mrf.mxu0
        %3405 = vmatprep.mubr.bf16.mxu0 0
        %3406 = vmatmul.mubr.bf16.gmra.mxu0 %v2711
        %v3407 = vpop.f32.mrf.mxu0
        %v3408 = vadd.f32 %v3247, %v3407
        %v3409 = vpop.f32.mrf.mxu0
        %v3410 = vpop.f32.mrf.mxu0
        %v3411 = vadd.f32 %v3250, %v3410
        %v3412 = vpop.f32.mrf.mxu0
        %3413 = vmatprep.mubr.bf16.mxu0 0
        %3414 = vmatmul.mubr.bf16.gmra.mxu0 %v2754
        %v3415 = vpop.f32.mrf.mxu0
        %v3416 = vadd.f32 %v3255, %v3415
        %v3417 = vpop.f32.mrf.mxu0
        %v3418 = vpop.f32.mrf.mxu0
        %v3419 = vadd.f32 %v3258, %v3418
        %v3420 = vpop.f32.mrf.mxu0
        %3421 = vmatprep.mubr.bf16.mxu0 0
        %3422 = vmatmul.mubr.bf16.gmra.mxu0 %v2797
        %v3423 = vpop.f32.mrf.mxu0
        %v3424 = vadd.f32 %v3263, %v3423
        %v3425 = vpop.f32.mrf.mxu0
        %v3426 = vpop.f32.mrf.mxu0
        %v3427 = vadd.f32 %v3266, %v3426
        %v3428 = vpop.f32.mrf.mxu0
        %3429 = vmatprep.mubr.bf16.mxu0 0
        %3430 = vmatmul.mubr.bf16.gmra.mxu0 %v2840
        %v3431 = vpop.f32.mrf.mxu0
        %v3432 = vadd.f32 %v3271, %v3431
        %v3433 = vpop.f32.mrf.mxu0
        %v3434 = vpop.f32.mrf.mxu0
        %v3435 = vadd.f32 %v3274, %v3434
        %v3436 = vpop.f32.mrf.mxu0
        %3437 = vmatprep.mubr.bf16.mxu0 0
        %3438 = vmatmul.mubr.bf16.gmra.mxu0 %v2883
        %v3439 = vpop.f32.mrf.mxu0
        %v3440 = vadd.f32 %v3279, %v3439
        %v3441 = vpop.f32.mrf.mxu0
        %v3442 = vpop.f32.mrf.mxu0
        %v3443 = vadd.f32 %v3282, %v3442
        %v3444 = vpop.f32.mrf.mxu0
        %3445 = vdwg.mxu0
        %v3494 = vunpack.c.l.b16 %v1716
        %v3495 = vunpack.c.l.b16 %v1717
        %v3496 = vunpack.c.l.b16 %v1718
        %v3497 = vunpack.c.l.b16 %v1719
        %v3498 = vunpack.c.l.b16 %v1720
        %v3499 = vunpack.c.l.b16 %v1721
        %v3500 = vunpack.c.l.b16 %v1722
        %v3501 = vunpack.c.l.b16 %v1723
        %v3502 = vunpack.c.l.b16 %v1724
        %v3503 = vunpack.c.l.b16 %v1725
        %v3504 = vunpack.c.l.b16 %v1726
        %v3505 = vunpack.c.l.b16 %v1727
        %v3506 = vunpack.c.l.b16 %v1728
        %v3507 = vunpack.c.l.b16 %v1729
        %v3508 = vunpack.c.l.b16 %v1730
        %v3509 = vunpack.c.l.b16 %v1731
        %v3510 = vunpack.c.l.b16 %v1732
        %v3511 = vunpack.c.l.b16 %v1733
        %v3512 = vunpack.c.l.b16 %v1734
        %v3513 = vunpack.c.l.b16 %v1735
        %v3514 = vunpack.c.l.b16 %v1736
        %v3515 = vunpack.c.l.b16 %v1737
        %v3516 = vunpack.c.l.b16 %v1738
        %v3517 = vunpack.c.l.b16 %v1739
        %v3518 = vunpack.c.l.b16 %v1740
        %v3519 = vunpack.c.l.b16 %v1741
        %v3520 = vunpack.c.l.b16 %v1742
        %v3521 = vunpack.c.l.b16 %v1743
        %v3522 = vunpack.c.l.b16 %v1744
        %v3523 = vunpack.c.l.b16 %v1745
        %v3524 = vunpack.c.l.b16 %v1746
        %v3525 = vunpack.c.l.b16 %v1747
        %v3526 = vunpack.c.l.b16 %v1748
        %v3527 = vunpack.c.l.b16 %v1749
        %v3528 = vunpack.c.l.b16 %v1750
        %v3529 = vunpack.c.l.b16 %v1751
        %v3530 = vunpack.c.l.b16 %v1752
        %v3531 = vunpack.c.l.b16 %v1753
        %v3532 = vunpack.c.l.b16 %v1754
        %v3533 = vunpack.c.l.b16 %v1755
        %v3534 = vunpack.c.l.b16 %v1756
        %v3535 = vunpack.c.l.b16 %v1757
        %v3536 = vunpack.c.l.b16 %v1758
        %v3537 = vunpack.c.l.b16 %v1759
        %v3538 = vunpack.c.l.b16 %v1760
        %v3539 = vunpack.c.l.b16 %v1761
        %v3540 = vunpack.c.l.b16 %v1762
        %v3541 = vunpack.c.l.b16 %v1763
        %v3542 = vpack.c.b16 %v3495, %v3494
        %v3543 = vpack.c.b16 %v3497, %v3496
        %v3544 = vpack.c.b16 %v3499, %v3498
        %v3545 = vpack.c.b16 %v3501, %v3500
        %v3546 = vpack.c.b16 %v3503, %v3502
        %v3547 = vpack.c.b16 %v3505, %v3504
        %v3548 = vpack.c.b16 %v3507, %v3506
        %v3549 = vpack.c.b16 %v3509, %v3508
        %v3550 = vpack.c.b16 %v3511, %v3510
        %v3551 = vpack.c.b16 %v3513, %v3512
        %v3552 = vpack.c.b16 %v3515, %v3514
        %v3553 = vpack.c.b16 %v3517, %v3516
        %v3554 = vpack.c.b16 %v3519, %v3518
        %v3555 = vpack.c.b16 %v3521, %v3520
        %v3556 = vpack.c.b16 %v3523, %v3522
        %v3557 = vpack.c.b16 %v3525, %v3524
        %v3558 = vpack.c.b16 %v3527, %v3526
        %v3559 = vpack.c.b16 %v3529, %v3528
        %v3560 = vpack.c.b16 %v3531, %v3530
        %v3561 = vpack.c.b16 %v3533, %v3532
        %v3562 = vpack.c.b16 %v3535, %v3534
        %v3563 = vpack.c.b16 %v3537, %v3536
        %v3564 = vpack.c.b16 %v3539, %v3538
        %v3565 = vpack.c.b16 %v3541, %v3540
        %3590 = vmatprep.subr.bf16.mxu0 0
        %3591 = vmatpush1.bf16.msra.mxu0 %v3549
        %3592 = vmatprep.subr.bf16.mxu0 0
        %3593 = vmatpush1.bf16.msra.mxu0 %v3548
        %3594 = vmatprep.subr.bf16.mxu0 0
        %3595 = vmatpush1.bf16.msra.mxu0 %v3547
        %3596 = vmatprep.subr.bf16.mxu0 0
        %3597 = vmatpush1.bf16.msra.mxu0 %v3546
        %3598 = vmatprep.subr.bf16.mxu0 0
        %3599 = vmatpush1.bf16.msra.mxu0 %v3545
        %3600 = vmatprep.subr.bf16.mxu0 0
        %3601 = vmatpush1.bf16.msra.mxu0 %v3544
        %3602 = vmatprep.subr.bf16.mxu0 0
        %3603 = vmatpush1.bf16.msra.mxu0 %v3543
        %3604 = vmatprep.subr.bf16.mxu0 0
        %3605 = vmatpush1.bf16.msra.mxu0 %v3542
        %3606 = vmatprep.subr.bf16.mxu0 0
        %3607 = vmatpush2.bf16.msra.mxu0 %v3557
        %3608 = vmatprep.subr.bf16.mxu0 0
        %3609 = vmatpush2.bf16.msra.mxu0 %v3556
        %3610 = vmatprep.subr.bf16.mxu0 0
        %3611 = vmatpush2.bf16.msra.mxu0 %v3555
        %3612 = vmatprep.subr.bf16.mxu0 0
        %3613 = vmatpush2.bf16.msra.mxu0 %v3554
        %3614 = vmatprep.subr.bf16.mxu0 0
        %3615 = vmatpush2.bf16.msra.mxu0 %v3553
        %3616 = vmatprep.subr.bf16.mxu0 0
        %3617 = vmatpush2.bf16.msra.mxu0 %v3552
        %3618 = vmatprep.subr.bf16.mxu0 0
        %3619 = vmatpush2.bf16.msra.mxu0 %v3551
        %3620 = vmatprep.subr.bf16.mxu0 0
        %3621 = vmatpush2.bf16.msra.mxu0 %v3550
        %3622 = vmatprep.mubr.bf16.mxu0 %v1005
        %3623 = vmatmul.mubr.bf16.gmra.mxu0 %v996
        %v3624 = vpop.f32.mrf.mxu0
        %v3625 = vadd.f32 %v3320, %v3624
        %v3626 = vpop.f32.mrf.mxu0
        %v3627 = vpop.f32.mrf.mxu0
        %v3628 = vadd.f32 %v3323, %v3627
        %v3629 = vpop.f32.mrf.mxu0
        %3630 = vmatprep.mubr.bf16.mxu0 %v1048
        %3631 = vmatmul.mubr.bf16.gmra.mxu0 %v1039
        %v3632 = vpop.f32.mrf.mxu0
        %v3633 = vadd.f32 %v3328, %v3632
        %v3634 = vpop.f32.mrf.mxu0
        %v3635 = vpop.f32.mrf.mxu0
        %v3636 = vadd.f32 %v3331, %v3635
        %v3637 = vpop.f32.mrf.mxu0
        %3638 = vmatprep.mubr.bf16.mxu0 %v1091
        %3639 = vmatmul.mubr.bf16.gmra.mxu0 %v1082
        %v3640 = vpop.f32.mrf.mxu0
        %v3641 = vadd.f32 %v3336, %v3640
        %v3642 = vpop.f32.mrf.mxu0
        %v3643 = vpop.f32.mrf.mxu0
        %v3644 = vadd.f32 %v3339, %v3643
        %v3645 = vpop.f32.mrf.mxu0
        %3646 = vmatprep.mubr.bf16.mxu0 %v1134
        %3647 = vmatmul.mubr.bf16.gmra.mxu0 %v1125
        %v3648 = vpop.f32.mrf.mxu0
        %v3649 = vadd.f32 %v3344, %v3648
        %v3650 = vpop.f32.mrf.mxu0
        %v3651 = vpop.f32.mrf.mxu0
        %v3652 = vadd.f32 %v3347, %v3651
        %v3653 = vpop.f32.mrf.mxu0
        %3654 = vmatprep.mubr.bf16.mxu0 %v1177
        %3655 = vmatmul.mubr.bf16.gmra.mxu0 %v1168
        %v3656 = vpop.f32.mrf.mxu0
        %v3657 = vadd.f32 %v3352, %v3656
        %v3658 = vpop.f32.mrf.mxu0
        %v3659 = vpop.f32.mrf.mxu0
        %v3660 = vadd.f32 %v3355, %v3659
        %v3661 = vpop.f32.mrf.mxu0
        %3662 = vmatprep.mubr.bf16.mxu0 %v1220
        %3663 = vmatmul.mubr.bf16.gmra.mxu0 %v1211
        %v3664 = vpop.f32.mrf.mxu0
        %v3665 = vadd.f32 %v3360, %v3664
        %v3666 = vpop.f32.mrf.mxu0
        %v3667 = vpop.f32.mrf.mxu0
        %v3668 = vadd.f32 %v3363, %v3667
        %v3669 = vpop.f32.mrf.mxu0
        %3670 = vmatprep.mubr.bf16.mxu0 %v1263
        %3671 = vmatmul.mubr.bf16.gmra.mxu0 %v1254
        %v3672 = vpop.f32.mrf.mxu0
        %v3673 = vadd.f32 %v3368, %v3672
        %v3674 = vpop.f32.mrf.mxu0
        %v3675 = vpop.f32.mrf.mxu0
        %v3676 = vadd.f32 %v3371, %v3675
        %v3677 = vpop.f32.mrf.mxu0
        %3678 = vmatprep.mubr.bf16.mxu0 %v1306
        %3679 = vmatmul.mubr.bf16.gmra.mxu0 %v1297
        %v3680 = vpop.f32.mrf.mxu0
        %v3681 = vadd.f32 %v3376, %v3680
        %v3682 = vpop.f32.mrf.mxu0
        %v3683 = vpop.f32.mrf.mxu0
        %v3684 = vadd.f32 %v3379, %v3683
        %v3685 = vpop.f32.mrf.mxu0
        %3686 = vmatprep.mubr.bf16.mxu0 %v1349
        %3687 = vmatmul.mubr.bf16.gmra.mxu0 %v1340
        %v3688 = vpop.f32.mrf.mxu0
        %v3689 = vadd.f32 %v3384, %v3688
        %v3690 = vpop.f32.mrf.mxu0
        %v3691 = vpop.f32.mrf.mxu0
        %v3692 = vadd.f32 %v3387, %v3691
        %v3693 = vpop.f32.mrf.mxu0
        %3694 = vmatprep.mubr.bf16.mxu0 %v1392
        %3695 = vmatmul.mubr.bf16.gmra.mxu0 %v1383
        %v3696 = vpop.f32.mrf.mxu0
        %v3697 = vadd.f32 %v3392, %v3696
        %v3698 = vpop.f32.mrf.mxu0
        %v3699 = vpop.f32.mrf.mxu0
        %v3700 = vadd.f32 %v3395, %v3699
        %v3701 = vpop.f32.mrf.mxu0
        %3702 = vmatprep.mubr.bf16.mxu0 %v1435
        %3703 = vmatmul.mubr.bf16.gmra.mxu0 %v1426
        %v3704 = vpop.f32.mrf.mxu0
        %v3705 = vadd.f32 %v3400, %v3704
        %v3706 = vpop.f32.mrf.mxu0
        %v3707 = vpop.f32.mrf.mxu0
        %v3708 = vadd.f32 %v3403, %v3707
        %v3709 = vpop.f32.mrf.mxu0
        %3710 = vmatprep.mubr.bf16.mxu0 %v1478
        %3711 = vmatmul.mubr.bf16.gmra.mxu0 %v1469
        %v3712 = vpop.f32.mrf.mxu0
        %v3713 = vadd.f32 %v3408, %v3712
        %v3714 = vpop.f32.mrf.mxu0
        %v3715 = vpop.f32.mrf.mxu0
        %v3716 = vadd.f32 %v3411, %v3715
        %v3717 = vpop.f32.mrf.mxu0
        %3718 = vmatprep.mubr.bf16.mxu0 %v1521
        %3719 = vmatmul.mubr.bf16.gmra.mxu0 %v1512
        %v3720 = vpop.f32.mrf.mxu0
        %v3721 = vadd.f32 %v3416, %v3720
        %v3722 = vpop.f32.mrf.mxu0
        %v3723 = vpop.f32.mrf.mxu0
        %v3724 = vadd.f32 %v3419, %v3723
        %v3725 = vpop.f32.mrf.mxu0
        %3726 = vmatprep.mubr.bf16.mxu0 %v1564
        %3727 = vmatmul.mubr.bf16.gmra.mxu0 %v1555
        %v3728 = vpop.f32.mrf.mxu0
        %v3729 = vadd.f32 %v3424, %v3728
        %v3730 = vpop.f32.mrf.mxu0
        %v3731 = vpop.f32.mrf.mxu0
        %v3732 = vadd.f32 %v3427, %v3731
        %v3733 = vpop.f32.mrf.mxu0
        %3734 = vmatprep.mubr.bf16.mxu0 %v1607
        %3735 = vmatmul.mubr.bf16.gmra.mxu0 %v1598
        %v3736 = vpop.f32.mrf.mxu0
        %v3737 = vadd.f32 %v3432, %v3736
        %v3738 = vpop.f32.mrf.mxu0
        %v3739 = vpop.f32.mrf.mxu0
        %v3740 = vadd.f32 %v3435, %v3739
        %v3741 = vpop.f32.mrf.mxu0
        %3742 = vmatprep.mubr.bf16.mxu0 %v1650
        %3743 = vmatmul.mubr.bf16.gmra.mxu0 %v1641
        %v3744 = vpop.f32.mrf.mxu0
        %v3745 = vadd.f32 %v3440, %v3744
        %v3746 = vpop.f32.mrf.mxu0
        %v3747 = vpop.f32.mrf.mxu0
        %v3748 = vadd.f32 %v3443, %v3747
        %v3749 = vpop.f32.mrf.mxu0
        %3750 = vdwg.mxu0
        %3751 = vmatprep.subr.bf16.mxu0 0
        %3752 = vmatpush1.bf16.msra.mxu0 %v3565
        %3753 = vmatprep.subr.bf16.mxu0 0
        %3754 = vmatpush1.bf16.msra.mxu0 %v3564
        %3755 = vmatprep.subr.bf16.mxu0 0
        %3756 = vmatpush1.bf16.msra.mxu0 %v3563
        %3757 = vmatprep.subr.bf16.mxu0 0
        %3758 = vmatpush1.bf16.msra.mxu0 %v3562
        %3759 = vmatprep.subr.bf16.mxu0 0
        %3760 = vmatpush1.bf16.msra.mxu0 %v3561
        %3761 = vmatprep.subr.bf16.mxu0 0
        %3762 = vmatpush1.bf16.msra.mxu0 %v3560
        %3763 = vmatprep.subr.bf16.mxu0 0
        %3764 = vmatpush1.bf16.msra.mxu0 %v3559
        %3765 = vmatprep.subr.bf16.mxu0 0
        %3766 = vmatpush1.bf16.msra.mxu0 %v3558
        %3767 = vmatprep.subr.bf16.mxu0 0
        %3768 = vmatpush2.bf16.msra.mxu0 0
        %3769 = vmatprep.subr.bf16.mxu0 0
        %3770 = vmatpush2.bf16.msra.mxu0 0
        %3771 = vmatprep.subr.bf16.mxu0 0
        %3772 = vmatpush2.bf16.msra.mxu0 0
        %3773 = vmatprep.subr.bf16.mxu0 0
        %3774 = vmatpush2.bf16.msra.mxu0 0
        %3775 = vmatprep.subr.bf16.mxu0 0
        %3776 = vmatpush2.bf16.msra.mxu0 0
        %3777 = vmatprep.subr.bf16.mxu0 0
        %3778 = vmatpush2.bf16.msra.mxu0 0
        %3779 = vmatprep.subr.bf16.mxu0 0
        %3780 = vmatpush2.bf16.msra.mxu0 0
        %3781 = vmatprep.subr.bf16.mxu0 0
        %3782 = vmatpush2.bf16.msra.mxu0 0
        %3783 = vmatprep.mubr.bf16.mxu0 0
        %3784 = vmatmul.mubr.bf16.gmra.mxu0 %v1022
        %v3785 = vpop.f32.mrf.mxu0
        %v3786 = vadd.f32 %v3625, %v3785
        %v3787 = vpop.f32.mrf.mxu0
        %v3788 = vpop.f32.mrf.mxu0
        %v3789 = vadd.f32 %v3628, %v3788
        %v3790 = vpop.f32.mrf.mxu0
        %3791 = vmatprep.mubr.bf16.mxu0 0
        %3792 = vmatmul.mubr.bf16.gmra.mxu0 %v1065
        %v3793 = vpop.f32.mrf.mxu0
        %v3794 = vadd.f32 %v3633, %v3793
        %v3795 = vpop.f32.mrf.mxu0
        %v3796 = vpop.f32.mrf.mxu0
        %v3797 = vadd.f32 %v3636, %v3796
        %v3798 = vpop.f32.mrf.mxu0
        %3799 = vmatprep.mubr.bf16.mxu0 0
        %3800 = vmatmul.mubr.bf16.gmra.mxu0 %v1108
        %v3801 = vpop.f32.mrf.mxu0
        %v3802 = vadd.f32 %v3641, %v3801
        %v3803 = vpop.f32.mrf.mxu0
        %v3804 = vpop.f32.mrf.mxu0
        %v3805 = vadd.f32 %v3644, %v3804
        %v3806 = vpop.f32.mrf.mxu0
        %3807 = vmatprep.mubr.bf16.mxu0 0
        %3808 = vmatmul.mubr.bf16.gmra.mxu0 %v1151
        %v3809 = vpop.f32.mrf.mxu0
        %v3810 = vadd.f32 %v3649, %v3809
        %v3811 = vpop.f32.mrf.mxu0
        %v3812 = vpop.f32.mrf.mxu0
        %v3813 = vadd.f32 %v3652, %v3812
        %v3814 = vpop.f32.mrf.mxu0
        %3815 = vmatprep.mubr.bf16.mxu0 0
        %3816 = vmatmul.mubr.bf16.gmra.mxu0 %v1194
        %v3817 = vpop.f32.mrf.mxu0
        %v3818 = vadd.f32 %v3657, %v3817
        %v3819 = vpop.f32.mrf.mxu0
        %v3820 = vpop.f32.mrf.mxu0
        %v3821 = vadd.f32 %v3660, %v3820
        %v3822 = vpop.f32.mrf.mxu0
        %3823 = vmatprep.mubr.bf16.mxu0 0
        %3824 = vmatmul.mubr.bf16.gmra.mxu0 %v1237
        %v3825 = vpop.f32.mrf.mxu0
        %v3826 = vadd.f32 %v3665, %v3825
        %v3827 = vpop.f32.mrf.mxu0
        %v3828 = vpop.f32.mrf.mxu0
        %v3829 = vadd.f32 %v3668, %v3828
        %v3830 = vpop.f32.mrf.mxu0
        %3831 = vmatprep.mubr.bf16.mxu0 0
        %3832 = vmatmul.mubr.bf16.gmra.mxu0 %v1280
        %v3833 = vpop.f32.mrf.mxu0
        %v3834 = vadd.f32 %v3673, %v3833
        %v3835 = vpop.f32.mrf.mxu0
        %v3836 = vpop.f32.mrf.mxu0
        %v3837 = vadd.f32 %v3676, %v3836
        %v3838 = vpop.f32.mrf.mxu0
        %3839 = vmatprep.mubr.bf16.mxu0 0
        %3840 = vmatmul.mubr.bf16.gmra.mxu0 %v1323
        %v3841 = vpop.f32.mrf.mxu0
        %v3842 = vadd.f32 %v3681, %v3841
        %v3843 = vpop.f32.mrf.mxu0
        %v3844 = vpop.f32.mrf.mxu0
        %v3845 = vadd.f32 %v3684, %v3844
        %v3846 = vpop.f32.mrf.mxu0
        %3847 = vmatprep.mubr.bf16.mxu0 0
        %3848 = vmatmul.mubr.bf16.gmra.mxu0 %v1366
        %v3849 = vpop.f32.mrf.mxu0
        %v3850 = vadd.f32 %v3689, %v3849
        %v3851 = vpop.f32.mrf.mxu0
        %v3852 = vpop.f32.mrf.mxu0
        %v3853 = vadd.f32 %v3692, %v3852
        %v3854 = vpop.f32.mrf.mxu0
        %3855 = vmatprep.mubr.bf16.mxu0 0
        %3856 = vmatmul.mubr.bf16.gmra.mxu0 %v1409
        %v3857 = vpop.f32.mrf.mxu0
        %v3858 = vadd.f32 %v3697, %v3857
        %v3859 = vpop.f32.mrf.mxu0
        %v3860 = vpop.f32.mrf.mxu0
        %v3861 = vadd.f32 %v3700, %v3860
        %v3862 = vpop.f32.mrf.mxu0
        %3863 = vmatprep.mubr.bf16.mxu0 0
        %3864 = vmatmul.mubr.bf16.gmra.mxu0 %v1452
        %v3865 = vpop.f32.mrf.mxu0
        %v3866 = vadd.f32 %v3705, %v3865
        %v3867 = vpop.f32.mrf.mxu0
        %v3868 = vpop.f32.mrf.mxu0
        %v3869 = vadd.f32 %v3708, %v3868
        %v3870 = vpop.f32.mrf.mxu0
        %3871 = vmatprep.mubr.bf16.mxu0 0
        %3872 = vmatmul.mubr.bf16.gmra.mxu0 %v1495
        %v3873 = vpop.f32.mrf.mxu0
        %v3874 = vadd.f32 %v3713, %v3873
        %v3875 = vpop.f32.mrf.mxu0
        %v3876 = vpop.f32.mrf.mxu0
        %v3877 = vadd.f32 %v3716, %v3876
        %v3878 = vpop.f32.mrf.mxu0
        %3879 = vmatprep.mubr.bf16.mxu0 0
        %3880 = vmatmul.mubr.bf16.gmra.mxu0 %v1538
        %v3881 = vpop.f32.mrf.mxu0
        %v3882 = vadd.f32 %v3721, %v3881
        %v3883 = vpop.f32.mrf.mxu0
        %v3884 = vpop.f32.mrf.mxu0
        %v3885 = vadd.f32 %v3724, %v3884
        %v3886 = vpop.f32.mrf.mxu0
        %3887 = vmatprep.mubr.bf16.mxu0 0
        %3888 = vmatmul.mubr.bf16.gmra.mxu0 %v1581
        %v3889 = vpop.f32.mrf.mxu0
        %v3890 = vadd.f32 %v3729, %v3889
        %v3891 = vpop.f32.mrf.mxu0
        %v3892 = vpop.f32.mrf.mxu0
        %v3893 = vadd.f32 %v3732, %v3892
        %v3894 = vpop.f32.mrf.mxu0
        %3895 = vmatprep.mubr.bf16.mxu0 0
        %3896 = vmatmul.mubr.bf16.gmra.mxu0 %v1624
        %v3897 = vpop.f32.mrf.mxu0
        %v3898 = vadd.f32 %v3737, %v3897
        %v3899 = vpop.f32.mrf.mxu0
        %v3900 = vpop.f32.mrf.mxu0
        %v3901 = vadd.f32 %v3740, %v3900
        %v3902 = vpop.f32.mrf.mxu0
        %3903 = vmatprep.mubr.bf16.mxu0 0
        %3904 = vmatmul.mubr.bf16.gmra.mxu0 %v1667
        %v3905 = vpop.f32.mrf.mxu0
        %v3906 = vadd.f32 %v3745, %v3905
        %v3907 = vpop.f32.mrf.mxu0
        %v3908 = vpop.f32.mrf.mxu0
        %v3909 = vadd.f32 %v3748, %v3908
        %v3910 = vpop.f32.mrf.mxu0
        %3911 = vdwg.mxu0
        %s3912 = scalar_lea.vmem [#allocation2], 32
        %v3913 = vld [vmem:[%s3912] sm:$0x8]
        %v3914 = vld [vmem:[%s3912 + $0x4] sm:$0xf]
        %v3915 = vld [vmem:[%s3912 + $0x8] sm:$0xf]
        %v3916 = vld [vmem:[%s3912 + $0x10] sm:$0x8]
        %v3917 = vld [vmem:[%s3912 + $0x14] sm:$0xf]
        %v3918 = vld [vmem:[%s3912 + $0x18] sm:$0xf]
        %v3919 = vld [vmem:[%s3912 + $0x20] sm:$0x8]
        %v3920 = vld [vmem:[%s3912 + $0x24] sm:$0xf]
        %v3921 = vld [vmem:[%s3912 + $0x28] sm:$0xf]
        %v3922 = vld [vmem:[%s3912 + $0x30] sm:$0x8]
        %v3923 = vld [vmem:[%s3912 + $0x34] sm:$0xf]
        %v3924 = vld [vmem:[%s3912 + $0x38] sm:$0xf]
        %v3925 = vld [vmem:[%s3912 + $0x40] sm:$0x8]
        %v3926 = vld [vmem:[%s3912 + $0x44] sm:$0xf]
        %v3927 = vld [vmem:[%s3912 + $0x48] sm:$0xf]
        %v3928 = vld [vmem:[%s3912 + $0x50] sm:$0x8]
        %v3929 = vld [vmem:[%s3912 + $0x54] sm:$0xf]
        %v3930 = vld [vmem:[%s3912 + $0x58] sm:$0xf]
        %v3931 = vld [vmem:[%s3912 + $0x60] sm:$0x8]
        %v3932 = vld [vmem:[%s3912 + $0x64] sm:$0xf]
        %v3933 = vld [vmem:[%s3912 + $0x68] sm:$0xf]
        %v3934 = vld [vmem:[%s3912 + $0x70] sm:$0x8]
        %v3935 = vld [vmem:[%s3912 + $0x74] sm:$0xf]
        %v3936 = vld [vmem:[%s3912 + $0x78] sm:$0xf]
        %v3937 = vld [vmem:[%s3912 + $0x80] sm:$0x8]
        %v3938 = vld [vmem:[%s3912 + $0x84] sm:$0xf]
        %v3939 = vld [vmem:[%s3912 + $0x88] sm:$0xf]
        %v3940 = vld [vmem:[%s3912 + $0x90] sm:$0x8]
        %v3941 = vld [vmem:[%s3912 + $0x94] sm:$0xf]
        %v3942 = vld [vmem:[%s3912 + $0x98] sm:$0xf]
        %v3943 = vld [vmem:[%s3912 + $0xa0] sm:$0x8]
        %v3944 = vld [vmem:[%s3912 + $0xa4] sm:$0xf]
        %v3945 = vld [vmem:[%s3912 + $0xa8] sm:$0xf]
        %v3946 = vld [vmem:[%s3912 + $0xb0] sm:$0x8]
        %v3947 = vld [vmem:[%s3912 + $0xb4] sm:$0xf]
        %v3948 = vld [vmem:[%s3912 + $0xb8] sm:$0xf]
        %v3949 = vld [vmem:[%s3912 + $0xc0] sm:$0x8]
        %v3950 = vld [vmem:[%s3912 + $0xc4] sm:$0xf]
        %v3951 = vld [vmem:[%s3912 + $0xc8] sm:$0xf]
        %v3952 = vld [vmem:[%s3912 + $0xd0] sm:$0x8]
        %v3953 = vld [vmem:[%s3912 + $0xd4] sm:$0xf]
        %v3954 = vld [vmem:[%s3912 + $0xd8] sm:$0xf]
        %v3955 = vld [vmem:[%s3912 + $0xe0] sm:$0x8]
        %v3956 = vld [vmem:[%s3912 + $0xe4] sm:$0xf]
        %v3957 = vld [vmem:[%s3912 + $0xe8] sm:$0xf]
        %v3958 = vld [vmem:[%s3912 + $0xf0] sm:$0x8]
        %v3959 = vld [vmem:[%s3912 + $0xf4] sm:$0xf]
        %v3960 = vld [vmem:[%s3912 + $0xf8] sm:$0xf]
        %v3961 = vld [vmem:[%s3912 + $0xc] sm:$0x1]
        %v3962 = vld [vmem:[%s3912 + $0x1c] sm:$0x1]
        %v3963 = vld [vmem:[%s3912 + $0x2c] sm:$0x1]
        %v3964 = vld [vmem:[%s3912 + $0x3c] sm:$0x1]
        %v3965 = vld [vmem:[%s3912 + $0x4c] sm:$0x1]
        %v3966 = vld [vmem:[%s3912 + $0x5c] sm:$0x1]
        %v3967 = vld [vmem:[%s3912 + $0x6c] sm:$0x1]
        %v3968 = vld [vmem:[%s3912 + $0x7c] sm:$0x1]
        %v3969 = vld [vmem:[%s3912 + $0x8c] sm:$0x1]
        %v3970 = vld [vmem:[%s3912 + $0x9c] sm:$0x1]
        %v3971 = vld [vmem:[%s3912 + $0xac] sm:$0x1]
        %v3972 = vld [vmem:[%s3912 + $0xbc] sm:$0x1]
        %v3973 = vld [vmem:[%s3912 + $0xcc] sm:$0x1]
        %v3974 = vld [vmem:[%s3912 + $0xdc] sm:$0x1]
        %v3975 = vld [vmem:[%s3912 + $0xec] sm:$0x1]
        %v3976 = vld [vmem:[%s3912 + $0xfc] sm:$0x1]
        %v4025 = vunpack.c.l.b16 %v3913
        %v4026 = vunpack.c.l.b16 %v3914
        %v4027 = vunpack.c.l.b16 %v3915
        %v4028 = vunpack.c.l.b16 %v3916
        %v4029 = vunpack.c.l.b16 %v3917
        %v4030 = vunpack.c.l.b16 %v3918
        %v4031 = vunpack.c.l.b16 %v3919
        %v4032 = vunpack.c.l.b16 %v3920
        %v4033 = vunpack.c.l.b16 %v3921
        %v4034 = vunpack.c.l.b16 %v3922
        %v4035 = vunpack.c.l.b16 %v3923
        %v4036 = vunpack.c.l.b16 %v3924
        %v4037 = vunpack.c.l.b16 %v3925
        %v4038 = vunpack.c.l.b16 %v3926
        %v4039 = vunpack.c.l.b16 %v3927
        %v4040 = vunpack.c.l.b16 %v3928
        %v4041 = vunpack.c.l.b16 %v3929
        %v4042 = vunpack.c.l.b16 %v3930
        %v4043 = vunpack.c.l.b16 %v3931
        %v4044 = vunpack.c.l.b16 %v3932
        %v4045 = vunpack.c.l.b16 %v3933
        %v4046 = vunpack.c.l.b16 %v3934
        %v4047 = vunpack.c.l.b16 %v3935
        %v4048 = vunpack.c.l.b16 %v3936
        %v4049 = vunpack.c.l.b16 %v3937
        %v4050 = vunpack.c.l.b16 %v3938
        %v4051 = vunpack.c.l.b16 %v3939
        %v4052 = vunpack.c.l.b16 %v3940
        %v4053 = vunpack.c.l.b16 %v3941
        %v4054 = vunpack.c.l.b16 %v3942
        %v4055 = vunpack.c.l.b16 %v3943
        %v4056 = vunpack.c.l.b16 %v3944
        %v4057 = vunpack.c.l.b16 %v3945
        %v4058 = vunpack.c.l.b16 %v3946
        %v4059 = vunpack.c.l.b16 %v3947
        %v4060 = vunpack.c.l.b16 %v3948
        %v4061 = vunpack.c.l.b16 %v3949
        %v4062 = vunpack.c.l.b16 %v3950
        %v4063 = vunpack.c.l.b16 %v3951
        %v4064 = vunpack.c.l.b16 %v3952
        %v4065 = vunpack.c.l.b16 %v3953
        %v4066 = vunpack.c.l.b16 %v3954
        %v4067 = vunpack.c.l.b16 %v3955
        %v4068 = vunpack.c.l.b16 %v3956
        %v4069 = vunpack.c.l.b16 %v3957
        %v4070 = vunpack.c.l.b16 %v3958
        %v4071 = vunpack.c.l.b16 %v3959
        %v4072 = vunpack.c.l.b16 %v3960
        %v4073 = vpack.c.b16 %v4026, %v4025
        %v4074 = vpack.c.b16 %v4027, %v4027
        %v4075 = vpack.c.b16 %v4029, %v4028
        %v4076 = vpack.c.b16 %v4030, %v4030
        %v4077 = vpack.c.b16 %v4032, %v4031
        %v4078 = vpack.c.b16 %v4033, %v4033
        %v4079 = vpack.c.b16 %v4035, %v4034
        %v4080 = vpack.c.b16 %v4036, %v4036
        %v4081 = vpack.c.b16 %v4038, %v4037
        %v4082 = vpack.c.b16 %v4039, %v4039
        %v4083 = vpack.c.b16 %v4041, %v4040
        %v4084 = vpack.c.b16 %v4042, %v4042
        %v4085 = vpack.c.b16 %v4044, %v4043
        %v4086 = vpack.c.b16 %v4045, %v4045
        %v4087 = vpack.c.b16 %v4047, %v4046
        %v4088 = vpack.c.b16 %v4048, %v4048
        %v4089 = vpack.c.b16 %v4050, %v4049
        %v4090 = vpack.c.b16 %v4051, %v4051
        %v4091 = vpack.c.b16 %v4053, %v4052
        %v4092 = vpack.c.b16 %v4054, %v4054
        %v4093 = vpack.c.b16 %v4056, %v4055
        %v4094 = vpack.c.b16 %v4057, %v4057
        %v4095 = vpack.c.b16 %v4059, %v4058
        %v4096 = vpack.c.b16 %v4060, %v4060
        %v4097 = vpack.c.b16 %v4062, %v4061
        %v4098 = vpack.c.b16 %v4063, %v4063
        %v4099 = vpack.c.b16 %v4065, %v4064
        %v4100 = vpack.c.b16 %v4066, %v4066
        %v4101 = vpack.c.b16 %v4068, %v4067
        %v4102 = vpack.c.b16 %v4069, %v4069
        %v4103 = vpack.c.b16 %v4071, %v4070
        %v4104 = vpack.c.b16 %v4072, %v4072
        %v4105 = vpack.c.b16 %v4027, %v4026
        %v4106 = vpack.c.b16 %v4030, %v4029
        %v4107 = vpack.c.b16 %v4033, %v4032
        %v4108 = vpack.c.b16 %v4036, %v4035
        %v4109 = vpack.c.b16 %v4039, %v4038
        %v4110 = vpack.c.b16 %v4042, %v4041
        %v4111 = vpack.c.b16 %v4045, %v4044
        %v4112 = vpack.c.b16 %v4048, %v4047
        %v4113 = vpack.c.b16 %v4051, %v4050
        %v4114 = vpack.c.b16 %v4054, %v4053
        %v4115 = vpack.c.b16 %v4057, %v4056
        %v4116 = vpack.c.b16 %v4060, %v4059
        %v4117 = vpack.c.b16 %v4063, %v4062
        %v4118 = vpack.c.b16 %v4066, %v4065
        %v4119 = vpack.c.b16 %v4069, %v4068
        %v4120 = vpack.c.b16 %v4072, %v4071
        %v4122 = vshrl.u32 %v4105, 16
        %v4124 = vrot.slane %v4122, 4
        %v4125 = vshll.u32 %v4105, 16
        %v4127 = vrot.slane %v4125, 5
        %v4128 = vor.u32 %v4124, %v4127
        %v4130 = vshrl.u32 %v4106, 16
        %v4132 = vrot.slane %v4130, 4
        %v4133 = vshll.u32 %v4106, 16
        %v4135 = vrot.slane %v4133, 5
        %v4136 = vor.u32 %v4132, %v4135
        %v4138 = vshrl.u32 %v4107, 16
        %v4140 = vrot.slane %v4138, 4
        %v4141 = vshll.u32 %v4107, 16
        %v4143 = vrot.slane %v4141, 5
        %v4144 = vor.u32 %v4140, %v4143
        %v4146 = vshrl.u32 %v4108, 16
        %v4148 = vrot.slane %v4146, 4
        %v4149 = vshll.u32 %v4108, 16
        %v4151 = vrot.slane %v4149, 5
        %v4152 = vor.u32 %v4148, %v4151
        %v4154 = vshrl.u32 %v4109, 16
        %v4156 = vrot.slane %v4154, 4
        %v4157 = vshll.u32 %v4109, 16
        %v4159 = vrot.slane %v4157, 5
        %v4160 = vor.u32 %v4156, %v4159
        %v4162 = vshrl.u32 %v4110, 16
        %v4164 = vrot.slane %v4162, 4
        %v4165 = vshll.u32 %v4110, 16
        %v4167 = vrot.slane %v4165, 5
        %v4168 = vor.u32 %v4164, %v4167
        %v4170 = vshrl.u32 %v4111, 16
        %v4172 = vrot.slane %v4170, 4
        %v4173 = vshll.u32 %v4111, 16
        %v4175 = vrot.slane %v4173, 5
        %v4176 = vor.u32 %v4172, %v4175
        %v4178 = vshrl.u32 %v4112, 16
        %v4180 = vrot.slane %v4178, 4
        %v4181 = vshll.u32 %v4112, 16
        %v4183 = vrot.slane %v4181, 5
        %v4184 = vor.u32 %v4180, %v4183
        %v4186 = vshrl.u32 %v4113, 16
        %v4188 = vrot.slane %v4186, 4
        %v4189 = vshll.u32 %v4113, 16
        %v4191 = vrot.slane %v4189, 5
        %v4192 = vor.u32 %v4188, %v4191
        %v4194 = vshrl.u32 %v4114, 16
        %v4196 = vrot.slane %v4194, 4
        %v4197 = vshll.u32 %v4114, 16
        %v4199 = vrot.slane %v4197, 5
        %v4200 = vor.u32 %v4196, %v4199
        %v4202 = vshrl.u32 %v4115, 16
        %v4204 = vrot.slane %v4202, 4
        %v4205 = vshll.u32 %v4115, 16
        %v4207 = vrot.slane %v4205, 5
        %v4208 = vor.u32 %v4204, %v4207
        %v4210 = vshrl.u32 %v4116, 16
        %v4212 = vrot.slane %v4210, 4
        %v4213 = vshll.u32 %v4116, 16
        %v4215 = vrot.slane %v4213, 5
        %v4216 = vor.u32 %v4212, %v4215
        %v4218 = vshrl.u32 %v4117, 16
        %v4220 = vrot.slane %v4218, 4
        %v4221 = vshll.u32 %v4117, 16
        %v4223 = vrot.slane %v4221, 5
        %v4224 = vor.u32 %v4220, %v4223
        %v4226 = vshrl.u32 %v4118, 16
        %v4228 = vrot.slane %v4226, 4
        %v4229 = vshll.u32 %v4118, 16
        %v4231 = vrot.slane %v4229, 5
        %v4232 = vor.u32 %v4228, %v4231
        %v4234 = vshrl.u32 %v4119, 16
        %v4236 = vrot.slane %v4234, 4
        %v4237 = vshll.u32 %v4119, 16
        %v4239 = vrot.slane %v4237, 5
        %v4240 = vor.u32 %v4236, %v4239
        %v4242 = vshrl.u32 %v4120, 16
        %v4244 = vrot.slane %v4242, 4
        %v4245 = vshll.u32 %v4120, 16
        %v4247 = vrot.slane %v4245, 5
        %v4248 = vor.u32 %v4244, %v4247
        %v4265 = vunpack.c.l.b16 %v3961
        %v4266 = vunpack.c.l.b16 %v3962
        %v4267 = vunpack.c.l.b16 %v3963
        %v4268 = vunpack.c.l.b16 %v3964
        %v4269 = vunpack.c.l.b16 %v3965
        %v4270 = vunpack.c.l.b16 %v3966
        %v4271 = vunpack.c.l.b16 %v3967
        %v4272 = vunpack.c.l.b16 %v3968
        %v4273 = vunpack.c.l.b16 %v3969
        %v4274 = vunpack.c.l.b16 %v3970
        %v4275 = vunpack.c.l.b16 %v3971
        %v4276 = vunpack.c.l.b16 %v3972
        %v4277 = vunpack.c.l.b16 %v3973
        %v4278 = vunpack.c.l.b16 %v3974
        %v4279 = vunpack.c.l.b16 %v3975
        %v4280 = vunpack.c.l.b16 %v3976
        %v4281 = vpack.c.b16 %v4265, %v4265
        %v4282 = vpack.c.b16 %v4266, %v4266
        %v4283 = vpack.c.b16 %v4267, %v4267
        %v4284 = vpack.c.b16 %v4268, %v4268
        %v4285 = vpack.c.b16 %v4269, %v4269
        %v4286 = vpack.c.b16 %v4270, %v4270
        %v4287 = vpack.c.b16 %v4271, %v4271
        %v4288 = vpack.c.b16 %v4272, %v4272
        %v4289 = vpack.c.b16 %v4273, %v4273
        %v4290 = vpack.c.b16 %v4274, %v4274
        %v4291 = vpack.c.b16 %v4275, %v4275
        %v4292 = vpack.c.b16 %v4276, %v4276
        %v4293 = vpack.c.b16 %v4277, %v4277
        %v4294 = vpack.c.b16 %v4278, %v4278
        %v4295 = vpack.c.b16 %v4279, %v4279
        %v4296 = vpack.c.b16 %v4280, %v4280
        %v4297 = vrot.slane %v4105, 5
        %v4298 = vrot.slane %v4281, 5
        %v4299 = vsel %vm930, %v4297, %v4298
        %v4300 = vrot.slane %v4106, 5
        %v4301 = vrot.slane %v4282, 5
        %v4302 = vsel %vm930, %v4300, %v4301
        %v4303 = vrot.slane %v4107, 5
        %v4304 = vrot.slane %v4283, 5
        %v4305 = vsel %vm930, %v4303, %v4304
        %v4306 = vrot.slane %v4108, 5
        %v4307 = vrot.slane %v4284, 5
        %v4308 = vsel %vm930, %v4306, %v4307
        %v4309 = vrot.slane %v4109, 5
        %v4310 = vrot.slane %v4285, 5
        %v4311 = vsel %vm930, %v4309, %v4310
        %v4312 = vrot.slane %v4110, 5
        %v4313 = vrot.slane %v4286, 5
        %v4314 = vsel %vm930, %v4312, %v4313
        %v4315 = vrot.slane %v4111, 5
        %v4316 = vrot.slane %v4287, 5
        %v4317 = vsel %vm930, %v4315, %v4316
        %v4318 = vrot.slane %v4112, 5
        %v4319 = vrot.slane %v4288, 5
        %v4320 = vsel %vm930, %v4318, %v4319
        %v4321 = vrot.slane %v4113, 5
        %v4322 = vrot.slane %v4289, 5
        %v4323 = vsel %vm930, %v4321, %v4322
        %v4324 = vrot.slane %v4114, 5
        %v4325 = vrot.slane %v4290, 5
        %v4326 = vsel %vm930, %v4324, %v4325
        %v4327 = vrot.slane %v4115, 5
        %v4328 = vrot.slane %v4291, 5
        %v4329 = vsel %vm930, %v4327, %v4328
        %v4330 = vrot.slane %v4116, 5
        %v4331 = vrot.slane %v4292, 5
        %v4332 = vsel %vm930, %v4330, %v4331
        %v4333 = vrot.slane %v4117, 5
        %v4334 = vrot.slane %v4293, 5
        %v4335 = vsel %vm930, %v4333, %v4334
        %v4336 = vrot.slane %v4118, 5
        %v4337 = vrot.slane %v4294, 5
        %v4338 = vsel %vm930, %v4336, %v4337
        %v4339 = vrot.slane %v4119, 5
        %v4340 = vrot.slane %v4295, 5
        %v4341 = vsel %vm930, %v4339, %v4340
        %v4342 = vrot.slane %v4120, 5
        %v4343 = vrot.slane %v4296, 5
        %v4344 = vsel %vm930, %v4342, %v4343
        %v4346 = vshrl.u32 %v4073, 16
        %v4348 = vrot.slane %v4346, 3
        %v4349 = vshll.u32 %v4073, 16
        %v4351 = vrot.slane %v4349, 4
        %v4352 = vor.u32 %v4348, %v4351
        %v4354 = vshrl.u32 %v4074, 16
        %v4356 = vrot.slane %v4354, 3
        %v4357 = vshll.u32 %v4074, 16
        %v4359 = vrot.slane %v4357, 4
        %v4360 = vor.u32 %v4356, %v4359
        %v4361 = vsel %vm979, %v4352, %v4360
        %v4363 = vshrl.u32 %v4128, 16
        %v4365 = vrot.slane %v4363, 3
        %v4366 = vshll.u32 %v4128, 16
        %v4368 = vrot.slane %v4366, 4
        %v4369 = vor.u32 %v4365, %v4368
        %v4370 = vsel %vm979, %v4369, %v4369
        %v4372 = vshrl.u32 %v4297, 16
        %v4374 = vrot.slane %v4372, 3
        %v4375 = vshll.u32 %v4297, 16
        %v4377 = vrot.slane %v4375, 4
        %v4378 = vor.u32 %v4374, %v4377
        %v4380 = vshrl.u32 %v4299, 16
        %v4382 = vrot.slane %v4380, 3
        %v4383 = vshll.u32 %v4299, 16
        %v4385 = vrot.slane %v4383, 4
        %v4386 = vor.u32 %v4382, %v4385
        %v4387 = vsel %vm979, %v4378, %v4386
        %v4389 = vshrl.u32 %v4075, 16
        %v4391 = vrot.slane %v4389, 3
        %v4392 = vshll.u32 %v4075, 16
        %v4394 = vrot.slane %v4392, 4
        %v4395 = vor.u32 %v4391, %v4394
        %v4397 = vshrl.u32 %v4076, 16
        %v4399 = vrot.slane %v4397, 3
        %v4400 = vshll.u32 %v4076, 16
        %v4402 = vrot.slane %v4400, 4
        %v4403 = vor.u32 %v4399, %v4402
        %v4404 = vsel %vm979, %v4395, %v4403
        %v4406 = vshrl.u32 %v4136, 16
        %v4408 = vrot.slane %v4406, 3
        %v4409 = vshll.u32 %v4136, 16
        %v4411 = vrot.slane %v4409, 4
        %v4412 = vor.u32 %v4408, %v4411
        %v4413 = vsel %vm979, %v4412, %v4412
        %v4415 = vshrl.u32 %v4300, 16
        %v4417 = vrot.slane %v4415, 3
        %v4418 = vshll.u32 %v4300, 16
        %v4420 = vrot.slane %v4418, 4
        %v4421 = vor.u32 %v4417, %v4420
        %v4423 = vshrl.u32 %v4302, 16
        %v4425 = vrot.slane %v4423, 3
        %v4426 = vshll.u32 %v4302, 16
        %v4428 = vrot.slane %v4426, 4
        %v4429 = vor.u32 %v4425, %v4428
        %v4430 = vsel %vm979, %v4421, %v4429
        %v4432 = vshrl.u32 %v4077, 16
        %v4434 = vrot.slane %v4432, 3
        %v4435 = vshll.u32 %v4077, 16
        %v4437 = vrot.slane %v4435, 4
        %v4438 = vor.u32 %v4434, %v4437
        %v4440 = vshrl.u32 %v4078, 16
        %v4442 = vrot.slane %v4440, 3
        %v4443 = vshll.u32 %v4078, 16
        %v4445 = vrot.slane %v4443, 4
        %v4446 = vor.u32 %v4442, %v4445
        %v4447 = vsel %vm979, %v4438, %v4446
        %v4449 = vshrl.u32 %v4144, 16
        %v4451 = vrot.slane %v4449, 3
        %v4452 = vshll.u32 %v4144, 16
        %v4454 = vrot.slane %v4452, 4
        %v4455 = vor.u32 %v4451, %v4454
        %v4456 = vsel %vm979, %v4455, %v4455
        %v4458 = vshrl.u32 %v4303, 16
        %v4460 = vrot.slane %v4458, 3
        %v4461 = vshll.u32 %v4303, 16
        %v4463 = vrot.slane %v4461, 4
        %v4464 = vor.u32 %v4460, %v4463
        %v4466 = vshrl.u32 %v4305, 16
        %v4468 = vrot.slane %v4466, 3
        %v4469 = vshll.u32 %v4305, 16
        %v4471 = vrot.slane %v4469, 4
        %v4472 = vor.u32 %v4468, %v4471
        %v4473 = vsel %vm979, %v4464, %v4472
        %v4475 = vshrl.u32 %v4079, 16
        %v4477 = vrot.slane %v4475, 3
        %v4478 = vshll.u32 %v4079, 16
        %v4480 = vrot.slane %v4478, 4
        %v4481 = vor.u32 %v4477, %v4480
        %v4483 = vshrl.u32 %v4080, 16
        %v4485 = vrot.slane %v4483, 3
        %v4486 = vshll.u32 %v4080, 16
        %v4488 = vrot.slane %v4486, 4
        %v4489 = vor.u32 %v4485, %v4488
        %v4490 = vsel %vm979, %v4481, %v4489
        %v4492 = vshrl.u32 %v4152, 16
        %v4494 = vrot.slane %v4492, 3
        %v4495 = vshll.u32 %v4152, 16
        %v4497 = vrot.slane %v4495, 4
        %v4498 = vor.u32 %v4494, %v4497
        %v4499 = vsel %vm979, %v4498, %v4498
        %v4501 = vshrl.u32 %v4306, 16
        %v4503 = vrot.slane %v4501, 3
        %v4504 = vshll.u32 %v4306, 16
        %v4506 = vrot.slane %v4504, 4
        %v4507 = vor.u32 %v4503, %v4506
        %v4509 = vshrl.u32 %v4308, 16
        %v4511 = vrot.slane %v4509, 3
        %v4512 = vshll.u32 %v4308, 16
        %v4514 = vrot.slane %v4512, 4
        %v4515 = vor.u32 %v4511, %v4514
        %v4516 = vsel %vm979, %v4507, %v4515
        %v4518 = vshrl.u32 %v4081, 16
        %v4520 = vrot.slane %v4518, 3
        %v4521 = vshll.u32 %v4081, 16
        %v4523 = vrot.slane %v4521, 4
        %v4524 = vor.u32 %v4520, %v4523
        %v4526 = vshrl.u32 %v4082, 16
        %v4528 = vrot.slane %v4526, 3
        %v4529 = vshll.u32 %v4082, 16
        %v4531 = vrot.slane %v4529, 4
        %v4532 = vor.u32 %v4528, %v4531
        %v4533 = vsel %vm979, %v4524, %v4532
        %v4535 = vshrl.u32 %v4160, 16
        %v4537 = vrot.slane %v4535, 3
        %v4538 = vshll.u32 %v4160, 16
        %v4540 = vrot.slane %v4538, 4
        %v4541 = vor.u32 %v4537, %v4540
        %v4542 = vsel %vm979, %v4541, %v4541
        %v4544 = vshrl.u32 %v4309, 16
        %v4546 = vrot.slane %v4544, 3
        %v4547 = vshll.u32 %v4309, 16
        %v4549 = vrot.slane %v4547, 4
        %v4550 = vor.u32 %v4546, %v4549
        %v4552 = vshrl.u32 %v4311, 16
        %v4554 = vrot.slane %v4552, 3
        %v4555 = vshll.u32 %v4311, 16
        %v4557 = vrot.slane %v4555, 4
        %v4558 = vor.u32 %v4554, %v4557
        %v4559 = vsel %vm979, %v4550, %v4558
        %v4561 = vshrl.u32 %v4083, 16
        %v4563 = vrot.slane %v4561, 3
        %v4564 = vshll.u32 %v4083, 16
        %v4566 = vrot.slane %v4564, 4
        %v4567 = vor.u32 %v4563, %v4566
        %v4569 = vshrl.u32 %v4084, 16
        %v4571 = vrot.slane %v4569, 3
        %v4572 = vshll.u32 %v4084, 16
        %v4574 = vrot.slane %v4572, 4
        %v4575 = vor.u32 %v4571, %v4574
        %v4576 = vsel %vm979, %v4567, %v4575
        %v4578 = vshrl.u32 %v4168, 16
        %v4580 = vrot.slane %v4578, 3
        %v4581 = vshll.u32 %v4168, 16
        %v4583 = vrot.slane %v4581, 4
        %v4584 = vor.u32 %v4580, %v4583
        %v4585 = vsel %vm979, %v4584, %v4584
        %v4587 = vshrl.u32 %v4312, 16
        %v4589 = vrot.slane %v4587, 3
        %v4590 = vshll.u32 %v4312, 16
        %v4592 = vrot.slane %v4590, 4
        %v4593 = vor.u32 %v4589, %v4592
        %v4595 = vshrl.u32 %v4314, 16
        %v4597 = vrot.slane %v4595, 3
        %v4598 = vshll.u32 %v4314, 16
        %v4600 = vrot.slane %v4598, 4
        %v4601 = vor.u32 %v4597, %v4600
        %v4602 = vsel %vm979, %v4593, %v4601
        %v4604 = vshrl.u32 %v4085, 16
        %v4606 = vrot.slane %v4604, 3
        %v4607 = vshll.u32 %v4085, 16
        %v4609 = vrot.slane %v4607, 4
        %v4610 = vor.u32 %v4606, %v4609
        %v4612 = vshrl.u32 %v4086, 16
        %v4614 = vrot.slane %v4612, 3
        %v4615 = vshll.u32 %v4086, 16
        %v4617 = vrot.slane %v4615, 4
        %v4618 = vor.u32 %v4614, %v4617
        %v4619 = vsel %vm979, %v4610, %v4618
        %v4621 = vshrl.u32 %v4176, 16
        %v4623 = vrot.slane %v4621, 3
        %v4624 = vshll.u32 %v4176, 16
        %v4626 = vrot.slane %v4624, 4
        %v4627 = vor.u32 %v4623, %v4626
        %v4628 = vsel %vm979, %v4627, %v4627
        %v4630 = vshrl.u32 %v4315, 16
        %v4632 = vrot.slane %v4630, 3
        %v4633 = vshll.u32 %v4315, 16
        %v4635 = vrot.slane %v4633, 4
        %v4636 = vor.u32 %v4632, %v4635
        %v4638 = vshrl.u32 %v4317, 16
        %v4640 = vrot.slane %v4638, 3
        %v4641 = vshll.u32 %v4317, 16
        %v4643 = vrot.slane %v4641, 4
        %v4644 = vor.u32 %v4640, %v4643
        %v4645 = vsel %vm979, %v4636, %v4644
        %v4647 = vshrl.u32 %v4087, 16
        %v4649 = vrot.slane %v4647, 3
        %v4650 = vshll.u32 %v4087, 16
        %v4652 = vrot.slane %v4650, 4
        %v4653 = vor.u32 %v4649, %v4652
        %v4655 = vshrl.u32 %v4088, 16
        %v4657 = vrot.slane %v4655, 3
        %v4658 = vshll.u32 %v4088, 16
        %v4660 = vrot.slane %v4658, 4
        %v4661 = vor.u32 %v4657, %v4660
        %v4662 = vsel %vm979, %v4653, %v4661
        %v4664 = vshrl.u32 %v4184, 16
        %v4666 = vrot.slane %v4664, 3
        %v4667 = vshll.u32 %v4184, 16
        %v4669 = vrot.slane %v4667, 4
        %v4670 = vor.u32 %v4666, %v4669
        %v4671 = vsel %vm979, %v4670, %v4670
        %v4673 = vshrl.u32 %v4318, 16
        %v4675 = vrot.slane %v4673, 3
        %v4676 = vshll.u32 %v4318, 16
        %v4678 = vrot.slane %v4676, 4
        %v4679 = vor.u32 %v4675, %v4678
        %v4681 = vshrl.u32 %v4320, 16
        %v4683 = vrot.slane %v4681, 3
        %v4684 = vshll.u32 %v4320, 16
        %v4686 = vrot.slane %v4684, 4
        %v4687 = vor.u32 %v4683, %v4686
        %v4688 = vsel %vm979, %v4679, %v4687
        %v4690 = vshrl.u32 %v4089, 16
        %v4692 = vrot.slane %v4690, 3
        %v4693 = vshll.u32 %v4089, 16
        %v4695 = vrot.slane %v4693, 4
        %v4696 = vor.u32 %v4692, %v4695
        %v4698 = vshrl.u32 %v4090, 16
        %v4700 = vrot.slane %v4698, 3
        %v4701 = vshll.u32 %v4090, 16
        %v4703 = vrot.slane %v4701, 4
        %v4704 = vor.u32 %v4700, %v4703
        %v4705 = vsel %vm979, %v4696, %v4704
        %v4707 = vshrl.u32 %v4192, 16
        %v4709 = vrot.slane %v4707, 3
        %v4710 = vshll.u32 %v4192, 16
        %v4712 = vrot.slane %v4710, 4
        %v4713 = vor.u32 %v4709, %v4712
        %v4714 = vsel %vm979, %v4713, %v4713
        %v4716 = vshrl.u32 %v4321, 16
        %v4718 = vrot.slane %v4716, 3
        %v4719 = vshll.u32 %v4321, 16
        %v4721 = vrot.slane %v4719, 4
        %v4722 = vor.u32 %v4718, %v4721
        %v4724 = vshrl.u32 %v4323, 16
        %v4726 = vrot.slane %v4724, 3
        %v4727 = vshll.u32 %v4323, 16
        %v4729 = vrot.slane %v4727, 4
        %v4730 = vor.u32 %v4726, %v4729
        %v4731 = vsel %vm979, %v4722, %v4730
        %v4733 = vshrl.u32 %v4091, 16
        %v4735 = vrot.slane %v4733, 3
        %v4736 = vshll.u32 %v4091, 16
        %v4738 = vrot.slane %v4736, 4
        %v4739 = vor.u32 %v4735, %v4738
        %v4741 = vshrl.u32 %v4092, 16
        %v4743 = vrot.slane %v4741, 3
        %v4744 = vshll.u32 %v4092, 16
        %v4746 = vrot.slane %v4744, 4
        %v4747 = vor.u32 %v4743, %v4746
        %v4748 = vsel %vm979, %v4739, %v4747
        %v4750 = vshrl.u32 %v4200, 16
        %v4752 = vrot.slane %v4750, 3
        %v4753 = vshll.u32 %v4200, 16
        %v4755 = vrot.slane %v4753, 4
        %v4756 = vor.u32 %v4752, %v4755
        %v4757 = vsel %vm979, %v4756, %v4756
        %v4759 = vshrl.u32 %v4324, 16
        %v4761 = vrot.slane %v4759, 3
        %v4762 = vshll.u32 %v4324, 16
        %v4764 = vrot.slane %v4762, 4
        %v4765 = vor.u32 %v4761, %v4764
        %v4767 = vshrl.u32 %v4326, 16
        %v4769 = vrot.slane %v4767, 3
        %v4770 = vshll.u32 %v4326, 16
        %v4772 = vrot.slane %v4770, 4
        %v4773 = vor.u32 %v4769, %v4772
        %v4774 = vsel %vm979, %v4765, %v4773
        %v4776 = vshrl.u32 %v4093, 16
        %v4778 = vrot.slane %v4776, 3
        %v4779 = vshll.u32 %v4093, 16
        %v4781 = vrot.slane %v4779, 4
        %v4782 = vor.u32 %v4778, %v4781
        %v4784 = vshrl.u32 %v4094, 16
        %v4786 = vrot.slane %v4784, 3
        %v4787 = vshll.u32 %v4094, 16
        %v4789 = vrot.slane %v4787, 4
        %v4790 = vor.u32 %v4786, %v4789
        %v4791 = vsel %vm979, %v4782, %v4790
        %v4793 = vshrl.u32 %v4208, 16
        %v4795 = vrot.slane %v4793, 3
        %v4796 = vshll.u32 %v4208, 16
        %v4798 = vrot.slane %v4796, 4
        %v4799 = vor.u32 %v4795, %v4798
        %v4800 = vsel %vm979, %v4799, %v4799
        %v4802 = vshrl.u32 %v4327, 16
        %v4804 = vrot.slane %v4802, 3
        %v4805 = vshll.u32 %v4327, 16
        %v4807 = vrot.slane %v4805, 4
        %v4808 = vor.u32 %v4804, %v4807
        %v4810 = vshrl.u32 %v4329, 16
        %v4812 = vrot.slane %v4810, 3
        %v4813 = vshll.u32 %v4329, 16
        %v4815 = vrot.slane %v4813, 4
        %v4816 = vor.u32 %v4812, %v4815
        %v4817 = vsel %vm979, %v4808, %v4816
        %v4819 = vshrl.u32 %v4095, 16
        %v4821 = vrot.slane %v4819, 3
        %v4822 = vshll.u32 %v4095, 16
        %v4824 = vrot.slane %v4822, 4
        %v4825 = vor.u32 %v4821, %v4824
        %v4827 = vshrl.u32 %v4096, 16
        %v4829 = vrot.slane %v4827, 3
        %v4830 = vshll.u32 %v4096, 16
        %v4832 = vrot.slane %v4830, 4
        %v4833 = vor.u32 %v4829, %v4832
        %v4834 = vsel %vm979, %v4825, %v4833
        %v4836 = vshrl.u32 %v4216, 16
        %v4838 = vrot.slane %v4836, 3
        %v4839 = vshll.u32 %v4216, 16
        %v4841 = vrot.slane %v4839, 4
        %v4842 = vor.u32 %v4838, %v4841
        %v4843 = vsel %vm979, %v4842, %v4842
        %v4845 = vshrl.u32 %v4330, 16
        %v4847 = vrot.slane %v4845, 3
        %v4848 = vshll.u32 %v4330, 16
        %v4850 = vrot.slane %v4848, 4
        %v4851 = vor.u32 %v4847, %v4850
        %v4853 = vshrl.u32 %v4332, 16
        %v4855 = vrot.slane %v4853, 3
        %v4856 = vshll.u32 %v4332, 16
        %v4858 = vrot.slane %v4856, 4
        %v4859 = vor.u32 %v4855, %v4858
        %v4860 = vsel %vm979, %v4851, %v4859
        %v4862 = vshrl.u32 %v4097, 16
        %v4864 = vrot.slane %v4862, 3
        %v4865 = vshll.u32 %v4097, 16
        %v4867 = vrot.slane %v4865, 4
        %v4868 = vor.u32 %v4864, %v4867
        %v4870 = vshrl.u32 %v4098, 16
        %v4872 = vrot.slane %v4870, 3
        %v4873 = vshll.u32 %v4098, 16
        %v4875 = vrot.slane %v4873, 4
        %v4876 = vor.u32 %v4872, %v4875
        %v4877 = vsel %vm979, %v4868, %v4876
        %v4879 = vshrl.u32 %v4224, 16
        %v4881 = vrot.slane %v4879, 3
        %v4882 = vshll.u32 %v4224, 16
        %v4884 = vrot.slane %v4882, 4
        %v4885 = vor.u32 %v4881, %v4884
        %v4886 = vsel %vm979, %v4885, %v4885
        %v4888 = vshrl.u32 %v4333, 16
        %v4890 = vrot.slane %v4888, 3
        %v4891 = vshll.u32 %v4333, 16
        %v4893 = vrot.slane %v4891, 4
        %v4894 = vor.u32 %v4890, %v4893
        %v4896 = vshrl.u32 %v4335, 16
        %v4898 = vrot.slane %v4896, 3
        %v4899 = vshll.u32 %v4335, 16
        %v4901 = vrot.slane %v4899, 4
        %v4902 = vor.u32 %v4898, %v4901
        %v4903 = vsel %vm979, %v4894, %v4902
        %v4905 = vshrl.u32 %v4099, 16
        %v4907 = vrot.slane %v4905, 3
        %v4908 = vshll.u32 %v4099, 16
        %v4910 = vrot.slane %v4908, 4
        %v4911 = vor.u32 %v4907, %v4910
        %v4913 = vshrl.u32 %v4100, 16
        %v4915 = vrot.slane %v4913, 3
        %v4916 = vshll.u32 %v4100, 16
        %v4918 = vrot.slane %v4916, 4
        %v4919 = vor.u32 %v4915, %v4918
        %v4920 = vsel %vm979, %v4911, %v4919
        %v4922 = vshrl.u32 %v4232, 16
        %v4924 = vrot.slane %v4922, 3
        %v4925 = vshll.u32 %v4232, 16
        %v4927 = vrot.slane %v4925, 4
        %v4928 = vor.u32 %v4924, %v4927
        %v4929 = vsel %vm979, %v4928, %v4928
        %v4931 = vshrl.u32 %v4336, 16
        %v4933 = vrot.slane %v4931, 3
        %v4934 = vshll.u32 %v4336, 16
        %v4936 = vrot.slane %v4934, 4
        %v4937 = vor.u32 %v4933, %v4936
        %v4939 = vshrl.u32 %v4338, 16
        %v4941 = vrot.slane %v4939, 3
        %v4942 = vshll.u32 %v4338, 16
        %v4944 = vrot.slane %v4942, 4
        %v4945 = vor.u32 %v4941, %v4944
        %v4946 = vsel %vm979, %v4937, %v4945
        %v4948 = vshrl.u32 %v4101, 16
        %v4950 = vrot.slane %v4948, 3
        %v4951 = vshll.u32 %v4101, 16
        %v4953 = vrot.slane %v4951, 4
        %v4954 = vor.u32 %v4950, %v4953
        %v4956 = vshrl.u32 %v4102, 16
        %v4958 = vrot.slane %v4956, 3
        %v4959 = vshll.u32 %v4102, 16
        %v4961 = vrot.slane %v4959, 4
        %v4962 = vor.u32 %v4958, %v4961
        %v4963 = vsel %vm979, %v4954, %v4962
        %v4965 = vshrl.u32 %v4240, 16
        %v4967 = vrot.slane %v4965, 3
        %v4968 = vshll.u32 %v4240, 16
        %v4970 = vrot.slane %v4968, 4
        %v4971 = vor.u32 %v4967, %v4970
        %v4972 = vsel %vm979, %v4971, %v4971
        %v4974 = vshrl.u32 %v4339, 16
        %v4976 = vrot.slane %v4974, 3
        %v4977 = vshll.u32 %v4339, 16
        %v4979 = vrot.slane %v4977, 4
        %v4980 = vor.u32 %v4976, %v4979
        %v4982 = vshrl.u32 %v4341, 16
        %v4984 = vrot.slane %v4982, 3
        %v4985 = vshll.u32 %v4341, 16
        %v4987 = vrot.slane %v4985, 4
        %v4988 = vor.u32 %v4984, %v4987
        %v4989 = vsel %vm979, %v4980, %v4988
        %v4991 = vshrl.u32 %v4103, 16
        %v4993 = vrot.slane %v4991, 3
        %v4994 = vshll.u32 %v4103, 16
        %v4996 = vrot.slane %v4994, 4
        %v4997 = vor.u32 %v4993, %v4996
        %v4999 = vshrl.u32 %v4104, 16
        %v5001 = vrot.slane %v4999, 3
        %v5002 = vshll.u32 %v4104, 16
        %v5004 = vrot.slane %v5002, 4
        %v5005 = vor.u32 %v5001, %v5004
        %v5006 = vsel %vm979, %v4997, %v5005
        %v5008 = vshrl.u32 %v4248, 16
        %v5010 = vrot.slane %v5008, 3
        %v5011 = vshll.u32 %v4248, 16
        %v5013 = vrot.slane %v5011, 4
        %v5014 = vor.u32 %v5010, %v5013
        %v5015 = vsel %vm979, %v5014, %v5014
        %v5017 = vshrl.u32 %v4342, 16
        %v5019 = vrot.slane %v5017, 3
        %v5020 = vshll.u32 %v4342, 16
        %v5022 = vrot.slane %v5020, 4
        %v5023 = vor.u32 %v5019, %v5022
        %v5025 = vshrl.u32 %v4344, 16
        %v5027 = vrot.slane %v5025, 3
        %v5028 = vshll.u32 %v4344, 16
        %v5030 = vrot.slane %v5028, 4
        %v5031 = vor.u32 %v5027, %v5030
        %v5032 = vsel %vm979, %v5023, %v5031
        %v5081 = vld [vmem:[%s1 + $0x180] sm:$0xf]
        %v5082 = vld [vmem:[%s1 + $0x184] sm:$0xf]
        %v5083 = vld [vmem:[%s1 + $0x188] sm:$0xf]
        %v5084 = vld [vmem:[%s1 + $0x18c] sm:$0xf]
        %v5085 = vld [vmem:[%s1 + $0x190] sm:$0xf]
        %v5086 = vld [vmem:[%s1 + $0x194] sm:$0xf]
        %v5087 = vld [vmem:[%s1 + $0x198] sm:$0xf]
        %v5088 = vld [vmem:[%s1 + $0x19c] sm:$0xf]
        %v5089 = vld [vmem:[%s1 + $0x1a0] sm:$0xf]
        %v5090 = vld [vmem:[%s1 + $0x1a4] sm:$0xf]
        %v5091 = vld [vmem:[%s1 + $0x1a8] sm:$0xf]
        %v5092 = vld [vmem:[%s1 + $0x1ac] sm:$0xf]
        %v5093 = vld [vmem:[%s1 + $0x1b0] sm:$0xf]
        %v5094 = vld [vmem:[%s1 + $0x1b4] sm:$0xf]
        %v5095 = vld [vmem:[%s1 + $0x1b8] sm:$0xf]
        %v5096 = vld [vmem:[%s1 + $0x1bc] sm:$0xf]
        %v5097 = vld [vmem:[%s1 + $0x1c0] sm:$0xf]
        %v5098 = vld [vmem:[%s1 + $0x1c4] sm:$0xf]
        %v5099 = vld [vmem:[%s1 + $0x1c8] sm:$0xf]
        %v5100 = vld [vmem:[%s1 + $0x1cc] sm:$0xf]
        %v5101 = vld [vmem:[%s1 + $0x1d0] sm:$0xf]
        %v5102 = vld [vmem:[%s1 + $0x1d4] sm:$0xf]
        %v5103 = vld [vmem:[%s1 + $0x1d8] sm:$0xf]
        %v5104 = vld [vmem:[%s1 + $0x1dc] sm:$0xf]
        %v5105 = vld [vmem:[%s1 + $0x1e0] sm:$0xf]
        %v5106 = vld [vmem:[%s1 + $0x1e4] sm:$0xf]
        %v5107 = vld [vmem:[%s1 + $0x1e8] sm:$0xf]
        %v5108 = vld [vmem:[%s1 + $0x1ec] sm:$0xf]
        %v5109 = vld [vmem:[%s1 + $0x1f0] sm:$0xf]
        %v5110 = vld [vmem:[%s1 + $0x1f4] sm:$0xf]
        %v5111 = vld [vmem:[%s1 + $0x1f8] sm:$0xf]
        %v5112 = vld [vmem:[%s1 + $0x1fc] sm:$0xf]
        %v5113 = vld [vmem:[%s1 + $0x200] sm:$0xf]
        %v5114 = vld [vmem:[%s1 + $0x204] sm:$0xf]
        %v5115 = vld [vmem:[%s1 + $0x208] sm:$0xf]
        %v5116 = vld [vmem:[%s1 + $0x20c] sm:$0xf]
        %v5117 = vld [vmem:[%s1 + $0x210] sm:$0xf]
        %v5118 = vld [vmem:[%s1 + $0x214] sm:$0xf]
        %v5119 = vld [vmem:[%s1 + $0x218] sm:$0xf]
        %v5120 = vld [vmem:[%s1 + $0x21c] sm:$0xf]
        %v5121 = vld [vmem:[%s1 + $0x220] sm:$0xf]
        %v5122 = vld [vmem:[%s1 + $0x224] sm:$0xf]
        %v5123 = vld [vmem:[%s1 + $0x228] sm:$0xf]
        %v5124 = vld [vmem:[%s1 + $0x22c] sm:$0xf]
        %v5125 = vld [vmem:[%s1 + $0x230] sm:$0xf]
        %v5126 = vld [vmem:[%s1 + $0x234] sm:$0xf]
        %v5127 = vld [vmem:[%s1 + $0x238] sm:$0xf]
        %v5128 = vld [vmem:[%s1 + $0x23c] sm:$0xf]
        %v5177 = vunpack.c.l.b16 %v5081
        %v5178 = vunpack.c.l.b16 %v5082
        %v5179 = vunpack.c.l.b16 %v5083
        %v5180 = vunpack.c.l.b16 %v5084
        %v5181 = vunpack.c.l.b16 %v5085
        %v5182 = vunpack.c.l.b16 %v5086
        %v5183 = vunpack.c.l.b16 %v5087
        %v5184 = vunpack.c.l.b16 %v5088
        %v5185 = vunpack.c.l.b16 %v5089
        %v5186 = vunpack.c.l.b16 %v5090
        %v5187 = vunpack.c.l.b16 %v5091
        %v5188 = vunpack.c.l.b16 %v5092
        %v5189 = vunpack.c.l.b16 %v5093
        %v5190 = vunpack.c.l.b16 %v5094
        %v5191 = vunpack.c.l.b16 %v5095
        %v5192 = vunpack.c.l.b16 %v5096
        %v5193 = vunpack.c.l.b16 %v5097
        %v5194 = vunpack.c.l.b16 %v5098
        %v5195 = vunpack.c.l.b16 %v5099
        %v5196 = vunpack.c.l.b16 %v5100
        %v5197 = vunpack.c.l.b16 %v5101
        %v5198 = vunpack.c.l.b16 %v5102
        %v5199 = vunpack.c.l.b16 %v5103
        %v5200 = vunpack.c.l.b16 %v5104
        %v5201 = vunpack.c.l.b16 %v5105
        %v5202 = vunpack.c.l.b16 %v5106
        %v5203 = vunpack.c.l.b16 %v5107
        %v5204 = vunpack.c.l.b16 %v5108
        %v5205 = vunpack.c.l.b16 %v5109
        %v5206 = vunpack.c.l.b16 %v5110
        %v5207 = vunpack.c.l.b16 %v5111
        %v5208 = vunpack.c.l.b16 %v5112
        %v5209 = vunpack.c.l.b16 %v5113
        %v5210 = vunpack.c.l.b16 %v5114
        %v5211 = vunpack.c.l.b16 %v5115
        %v5212 = vunpack.c.l.b16 %v5116
        %v5213 = vunpack.c.l.b16 %v5117
        %v5214 = vunpack.c.l.b16 %v5118
        %v5215 = vunpack.c.l.b16 %v5119
        %v5216 = vunpack.c.l.b16 %v5120
        %v5217 = vunpack.c.l.b16 %v5121
        %v5218 = vunpack.c.l.b16 %v5122
        %v5219 = vunpack.c.l.b16 %v5123
        %v5220 = vunpack.c.l.b16 %v5124
        %v5221 = vunpack.c.l.b16 %v5125
        %v5222 = vunpack.c.l.b16 %v5126
        %v5223 = vunpack.c.l.b16 %v5127
        %v5224 = vunpack.c.l.b16 %v5128
        %v5225 = vpack.c.b16 %v5178, %v5177
        %v5226 = vpack.c.b16 %v5180, %v5179
        %v5227 = vpack.c.b16 %v5182, %v5181
        %v5228 = vpack.c.b16 %v5184, %v5183
        %v5229 = vpack.c.b16 %v5186, %v5185
        %v5230 = vpack.c.b16 %v5188, %v5187
        %v5231 = vpack.c.b16 %v5190, %v5189
        %v5232 = vpack.c.b16 %v5192, %v5191
        %v5233 = vpack.c.b16 %v5194, %v5193
        %v5234 = vpack.c.b16 %v5196, %v5195
        %v5235 = vpack.c.b16 %v5198, %v5197
        %v5236 = vpack.c.b16 %v5200, %v5199
        %v5237 = vpack.c.b16 %v5202, %v5201
        %v5238 = vpack.c.b16 %v5204, %v5203
        %v5239 = vpack.c.b16 %v5206, %v5205
        %v5240 = vpack.c.b16 %v5208, %v5207
        %v5241 = vpack.c.b16 %v5210, %v5209
        %v5242 = vpack.c.b16 %v5212, %v5211
        %v5243 = vpack.c.b16 %v5214, %v5213
        %v5244 = vpack.c.b16 %v5216, %v5215
        %v5245 = vpack.c.b16 %v5218, %v5217
        %v5246 = vpack.c.b16 %v5220, %v5219
        %v5247 = vpack.c.b16 %v5222, %v5221
        %v5248 = vpack.c.b16 %v5224, %v5223
        %5273 = vmatprep.subr.bf16.mxu0 0
        %5274 = vmatpush1.bf16.msra.mxu0 %v5232
        %5275 = vmatprep.subr.bf16.mxu0 0
        %5276 = vmatpush1.bf16.msra.mxu0 %v5231
        %5277 = vmatprep.subr.bf16.mxu0 0
        %5278 = vmatpush1.bf16.msra.mxu0 %v5230
        %5279 = vmatprep.subr.bf16.mxu0 0
        %5280 = vmatpush1.bf16.msra.mxu0 %v5229
        %5281 = vmatprep.subr.bf16.mxu0 0
        %5282 = vmatpush1.bf16.msra.mxu0 %v5228
        %5283 = vmatprep.subr.bf16.mxu0 0
        %5284 = vmatpush1.bf16.msra.mxu0 %v5227
        %5285 = vmatprep.subr.bf16.mxu0 0
        %5286 = vmatpush1.bf16.msra.mxu0 %v5226
        %5287 = vmatprep.subr.bf16.mxu0 0
        %5288 = vmatpush1.bf16.msra.mxu0 %v5225
        %5289 = vmatprep.subr.bf16.mxu0 0
        %5290 = vmatpush2.bf16.msra.mxu0 %v5240
        %5291 = vmatprep.subr.bf16.mxu0 0
        %5292 = vmatpush2.bf16.msra.mxu0 %v5239
        %5293 = vmatprep.subr.bf16.mxu0 0
        %5294 = vmatpush2.bf16.msra.mxu0 %v5238
        %5295 = vmatprep.subr.bf16.mxu0 0
        %5296 = vmatpush2.bf16.msra.mxu0 %v5237
        %5297 = vmatprep.subr.bf16.mxu0 0
        %5298 = vmatpush2.bf16.msra.mxu0 %v5236
        %5299 = vmatprep.subr.bf16.mxu0 0
        %5300 = vmatpush2.bf16.msra.mxu0 %v5235
        %5301 = vmatprep.subr.bf16.mxu0 0
        %5302 = vmatpush2.bf16.msra.mxu0 %v5234
        %5303 = vmatprep.subr.bf16.mxu0 0
        %5304 = vmatpush2.bf16.msra.mxu0 %v5233
        %5305 = vmatprep.mubr.bf16.mxu0 %v4370
        %5306 = vmatmul.mubr.bf16.gmra.mxu0 %v4361
        %v5307 = vpop.f32.mrf.mxu0
        %v5308 = vadd.f32 0.0, %v5307
        %v5309 = vpop.f32.mrf.mxu0
        %v5310 = vpop.f32.mrf.mxu0
        %v5311 = vadd.f32 0.0, %v5310
        %v5312 = vpop.f32.mrf.mxu0
        %5313 = vmatprep.mubr.bf16.mxu0 %v4413
        %5314 = vmatmul.mubr.bf16.gmra.mxu0 %v4404
        %v5315 = vpop.f32.mrf.mxu0
        %v5316 = vadd.f32 0.0, %v5315
        %v5317 = vpop.f32.mrf.mxu0
        %v5318 = vpop.f32.mrf.mxu0
        %v5319 = vadd.f32 0.0, %v5318
        %v5320 = vpop.f32.mrf.mxu0
        %5321 = vmatprep.mubr.bf16.mxu0 %v4456
        %5322 = vmatmul.mubr.bf16.gmra.mxu0 %v4447
        %v5323 = vpop.f32.mrf.mxu0
        %v5324 = vadd.f32 0.0, %v5323
        %v5325 = vpop.f32.mrf.mxu0
        %v5326 = vpop.f32.mrf.mxu0
        %v5327 = vadd.f32 0.0, %v5326
        %v5328 = vpop.f32.mrf.mxu0
        %5329 = vmatprep.mubr.bf16.mxu0 %v4499
        %5330 = vmatmul.mubr.bf16.gmra.mxu0 %v4490
        %v5331 = vpop.f32.mrf.mxu0
        %v5332 = vadd.f32 0.0, %v5331
        %v5333 = vpop.f32.mrf.mxu0
        %v5334 = vpop.f32.mrf.mxu0
        %v5335 = vadd.f32 0.0, %v5334
        %v5336 = vpop.f32.mrf.mxu0
        %5337 = vmatprep.mubr.bf16.mxu0 %v4542
        %5338 = vmatmul.mubr.bf16.gmra.mxu0 %v4533
        %v5339 = vpop.f32.mrf.mxu0
        %v5340 = vadd.f32 0.0, %v5339
        %v5341 = vpop.f32.mrf.mxu0
        %v5342 = vpop.f32.mrf.mxu0
        %v5343 = vadd.f32 0.0, %v5342
        %v5344 = vpop.f32.mrf.mxu0
        %5345 = vmatprep.mubr.bf16.mxu0 %v4585
        %5346 = vmatmul.mubr.bf16.gmra.mxu0 %v4576
        %v5347 = vpop.f32.mrf.mxu0
        %v5348 = vadd.f32 0.0, %v5347
        %v5349 = vpop.f32.mrf.mxu0
        %v5350 = vpop.f32.mrf.mxu0
        %v5351 = vadd.f32 0.0, %v5350
        %v5352 = vpop.f32.mrf.mxu0
        %5353 = vmatprep.mubr.bf16.mxu0 %v4628
        %5354 = vmatmul.mubr.bf16.gmra.mxu0 %v4619
        %v5355 = vpop.f32.mrf.mxu0
        %v5356 = vadd.f32 0.0, %v5355
        %v5357 = vpop.f32.mrf.mxu0
        %v5358 = vpop.f32.mrf.mxu0
        %v5359 = vadd.f32 0.0, %v5358
        %v5360 = vpop.f32.mrf.mxu0
        %5361 = vmatprep.mubr.bf16.mxu0 %v4671
        %5362 = vmatmul.mubr.bf16.gmra.mxu0 %v4662
        %v5363 = vpop.f32.mrf.mxu0
        %v5364 = vadd.f32 0.0, %v5363
        %v5365 = vpop.f32.mrf.mxu0
        %v5366 = vpop.f32.mrf.mxu0
        %v5367 = vadd.f32 0.0, %v5366
        %v5368 = vpop.f32.mrf.mxu0
        %5369 = vmatprep.mubr.bf16.mxu0 %v4714
        %5370 = vmatmul.mubr.bf16.gmra.mxu0 %v4705
        %v5371 = vpop.f32.mrf.mxu0
        %v5372 = vadd.f32 0.0, %v5371
        %v5373 = vpop.f32.mrf.mxu0
        %v5374 = vpop.f32.mrf.mxu0
        %v5375 = vadd.f32 0.0, %v5374
        %v5376 = vpop.f32.mrf.mxu0
        %5377 = vmatprep.mubr.bf16.mxu0 %v4757
        %5378 = vmatmul.mubr.bf16.gmra.mxu0 %v4748
        %v5379 = vpop.f32.mrf.mxu0
        %v5380 = vadd.f32 0.0, %v5379
        %v5381 = vpop.f32.mrf.mxu0
        %v5382 = vpop.f32.mrf.mxu0
        %v5383 = vadd.f32 0.0, %v5382
        %v5384 = vpop.f32.mrf.mxu0
        %5385 = vmatprep.mubr.bf16.mxu0 %v4800
        %5386 = vmatmul.mubr.bf16.gmra.mxu0 %v4791
        %v5387 = vpop.f32.mrf.mxu0
        %v5388 = vadd.f32 0.0, %v5387
        %v5389 = vpop.f32.mrf.mxu0
        %v5390 = vpop.f32.mrf.mxu0
        %v5391 = vadd.f32 0.0, %v5390
        %v5392 = vpop.f32.mrf.mxu0
        %5393 = vmatprep.mubr.bf16.mxu0 %v4843
        %5394 = vmatmul.mubr.bf16.gmra.mxu0 %v4834
        %v5395 = vpop.f32.mrf.mxu0
        %v5396 = vadd.f32 0.0, %v5395
        %v5397 = vpop.f32.mrf.mxu0
        %v5398 = vpop.f32.mrf.mxu0
        %v5399 = vadd.f32 0.0, %v5398
        %v5400 = vpop.f32.mrf.mxu0
        %5401 = vmatprep.mubr.bf16.mxu0 %v4886
        %5402 = vmatmul.mubr.bf16.gmra.mxu0 %v4877
        %v5403 = vpop.f32.mrf.mxu0
        %v5404 = vadd.f32 0.0, %v5403
        %v5405 = vpop.f32.mrf.mxu0
        %v5406 = vpop.f32.mrf.mxu0
        %v5407 = vadd.f32 0.0, %v5406
        %v5408 = vpop.f32.mrf.mxu0
        %5409 = vmatprep.mubr.bf16.mxu0 %v4929
        %5410 = vmatmul.mubr.bf16.gmra.mxu0 %v4920
        %v5411 = vpop.f32.mrf.mxu0
        %v5412 = vadd.f32 0.0, %v5411
        %v5413 = vpop.f32.mrf.mxu0
        %v5414 = vpop.f32.mrf.mxu0
        %v5415 = vadd.f32 0.0, %v5414
        %v5416 = vpop.f32.mrf.mxu0
        %5417 = vmatprep.mubr.bf16.mxu0 %v4972
        %5418 = vmatmul.mubr.bf16.gmra.mxu0 %v4963
        %v5419 = vpop.f32.mrf.mxu0
        %v5420 = vadd.f32 0.0, %v5419
        %v5421 = vpop.f32.mrf.mxu0
        %v5422 = vpop.f32.mrf.mxu0
        %v5423 = vadd.f32 0.0, %v5422
        %v5424 = vpop.f32.mrf.mxu0
        %5425 = vmatprep.mubr.bf16.mxu0 %v5015
        %5426 = vmatmul.mubr.bf16.gmra.mxu0 %v5006
        %v5427 = vpop.f32.mrf.mxu0
        %v5428 = vadd.f32 0.0, %v5427
        %v5429 = vpop.f32.mrf.mxu0
        %v5430 = vpop.f32.mrf.mxu0
        %v5431 = vadd.f32 0.0, %v5430
        %v5432 = vpop.f32.mrf.mxu0
        %5433 = vdwg.mxu0
        %5434 = vmatprep.subr.bf16.mxu0 0
        %5435 = vmatpush1.bf16.msra.mxu0 %v5248
        %5436 = vmatprep.subr.bf16.mxu0 0
        %5437 = vmatpush1.bf16.msra.mxu0 %v5247
        %5438 = vmatprep.subr.bf16.mxu0 0
        %5439 = vmatpush1.bf16.msra.mxu0 %v5246
        %5440 = vmatprep.subr.bf16.mxu0 0
        %5441 = vmatpush1.bf16.msra.mxu0 %v5245
        %5442 = vmatprep.subr.bf16.mxu0 0
        %5443 = vmatpush1.bf16.msra.mxu0 %v5244
        %5444 = vmatprep.subr.bf16.mxu0 0
        %5445 = vmatpush1.bf16.msra.mxu0 %v5243
        %5446 = vmatprep.subr.bf16.mxu0 0
        %5447 = vmatpush1.bf16.msra.mxu0 %v5242
        %5448 = vmatprep.subr.bf16.mxu0 0
        %5449 = vmatpush1.bf16.msra.mxu0 %v5241
        %5450 = vmatprep.subr.bf16.mxu0 0
        %5451 = vmatpush2.bf16.msra.mxu0 0
        %5452 = vmatprep.subr.bf16.mxu0 0
        %5453 = vmatpush2.bf16.msra.mxu0 0
        %5454 = vmatprep.subr.bf16.mxu0 0
        %5455 = vmatpush2.bf16.msra.mxu0 0
        %5456 = vmatprep.subr.bf16.mxu0 0
        %5457 = vmatpush2.bf16.msra.mxu0 0
        %5458 = vmatprep.subr.bf16.mxu0 0
        %5459 = vmatpush2.bf16.msra.mxu0 0
        %5460 = vmatprep.subr.bf16.mxu0 0
        %5461 = vmatpush2.bf16.msra.mxu0 0
        %5462 = vmatprep.subr.bf16.mxu0 0
        %5463 = vmatpush2.bf16.msra.mxu0 0
        %5464 = vmatprep.subr.bf16.mxu0 0
        %5465 = vmatpush2.bf16.msra.mxu0 0
        %5466 = vmatprep.mubr.bf16.mxu0 0
        %5467 = vmatmul.mubr.bf16.gmra.mxu0 %v4387
        %v5468 = vpop.f32.mrf.mxu0
        %v5469 = vadd.f32 %v5308, %v5468
        %v5470 = vpop.f32.mrf.mxu0
        %v5471 = vpop.f32.mrf.mxu0
        %v5472 = vadd.f32 %v5311, %v5471
        %v5473 = vpop.f32.mrf.mxu0
        %5474 = vmatprep.mubr.bf16.mxu0 0
        %5475 = vmatmul.mubr.bf16.gmra.mxu0 %v4430
        %v5476 = vpop.f32.mrf.mxu0
        %v5477 = vadd.f32 %v5316, %v5476
        %v5478 = vpop.f32.mrf.mxu0
        %v5479 = vpop.f32.mrf.mxu0
        %v5480 = vadd.f32 %v5319, %v5479
        %v5481 = vpop.f32.mrf.mxu0
        %5482 = vmatprep.mubr.bf16.mxu0 0
        %5483 = vmatmul.mubr.bf16.gmra.mxu0 %v4473
        %v5484 = vpop.f32.mrf.mxu0
        %v5485 = vadd.f32 %v5324, %v5484
        %v5486 = vpop.f32.mrf.mxu0
        %v5487 = vpop.f32.mrf.mxu0
        %v5488 = vadd.f32 %v5327, %v5487
        %v5489 = vpop.f32.mrf.mxu0
        %5490 = vmatprep.mubr.bf16.mxu0 0
        %5491 = vmatmul.mubr.bf16.gmra.mxu0 %v4516
        %v5492 = vpop.f32.mrf.mxu0
        %v5493 = vadd.f32 %v5332, %v5492
        %v5494 = vpop.f32.mrf.mxu0
        %v5495 = vpop.f32.mrf.mxu0
        %v5496 = vadd.f32 %v5335, %v5495
        %v5497 = vpop.f32.mrf.mxu0
        %5498 = vmatprep.mubr.bf16.mxu0 0
        %5499 = vmatmul.mubr.bf16.gmra.mxu0 %v4559
        %v5500 = vpop.f32.mrf.mxu0
        %v5501 = vadd.f32 %v5340, %v5500
        %v5502 = vpop.f32.mrf.mxu0
        %v5503 = vpop.f32.mrf.mxu0
        %v5504 = vadd.f32 %v5343, %v5503
        %v5505 = vpop.f32.mrf.mxu0
        %5506 = vmatprep.mubr.bf16.mxu0 0
        %5507 = vmatmul.mubr.bf16.gmra.mxu0 %v4602
        %v5508 = vpop.f32.mrf.mxu0
        %v5509 = vadd.f32 %v5348, %v5508
        %v5510 = vpop.f32.mrf.mxu0
        %v5511 = vpop.f32.mrf.mxu0
        %v5512 = vadd.f32 %v5351, %v5511
        %v5513 = vpop.f32.mrf.mxu0
        %5514 = vmatprep.mubr.bf16.mxu0 0
        %5515 = vmatmul.mubr.bf16.gmra.mxu0 %v4645
        %v5516 = vpop.f32.mrf.mxu0
        %v5517 = vadd.f32 %v5356, %v5516
        %v5518 = vpop.f32.mrf.mxu0
        %v5519 = vpop.f32.mrf.mxu0
        %v5520 = vadd.f32 %v5359, %v5519
        %v5521 = vpop.f32.mrf.mxu0
        %5522 = vmatprep.mubr.bf16.mxu0 0
        %5523 = vmatmul.mubr.bf16.gmra.mxu0 %v4688
        %v5524 = vpop.f32.mrf.mxu0
        %v5525 = vadd.f32 %v5364, %v5524
        %v5526 = vpop.f32.mrf.mxu0
        %v5527 = vpop.f32.mrf.mxu0
        %v5528 = vadd.f32 %v5367, %v5527
        %v5529 = vpop.f32.mrf.mxu0
        %5530 = vmatprep.mubr.bf16.mxu0 0
        %5531 = vmatmul.mubr.bf16.gmra.mxu0 %v4731
        %v5532 = vpop.f32.mrf.mxu0
        %v5533 = vadd.f32 %v5372, %v5532
        %v5534 = vpop.f32.mrf.mxu0
        %v5535 = vpop.f32.mrf.mxu0
        %v5536 = vadd.f32 %v5375, %v5535
        %v5537 = vpop.f32.mrf.mxu0
        %5538 = vmatprep.mubr.bf16.mxu0 0
        %5539 = vmatmul.mubr.bf16.gmra.mxu0 %v4774
        %v5540 = vpop.f32.mrf.mxu0
        %v5541 = vadd.f32 %v5380, %v5540
        %v5542 = vpop.f32.mrf.mxu0
        %v5543 = vpop.f32.mrf.mxu0
        %v5544 = vadd.f32 %v5383, %v5543
        %v5545 = vpop.f32.mrf.mxu0
        %5546 = vmatprep.mubr.bf16.mxu0 0
        %5547 = vmatmul.mubr.bf16.gmra.mxu0 %v4817
        %v5548 = vpop.f32.mrf.mxu0
        %v5549 = vadd.f32 %v5388, %v5548
        %v5550 = vpop.f32.mrf.mxu0
        %v5551 = vpop.f32.mrf.mxu0
        %v5552 = vadd.f32 %v5391, %v5551
        %v5553 = vpop.f32.mrf.mxu0
        %5554 = vmatprep.mubr.bf16.mxu0 0
        %5555 = vmatmul.mubr.bf16.gmra.mxu0 %v4860
        %v5556 = vpop.f32.mrf.mxu0
        %v5557 = vadd.f32 %v5396, %v5556
        %v5558 = vpop.f32.mrf.mxu0
        %v5559 = vpop.f32.mrf.mxu0
        %v5560 = vadd.f32 %v5399, %v5559
        %v5561 = vpop.f32.mrf.mxu0
        %5562 = vmatprep.mubr.bf16.mxu0 0
        %5563 = vmatmul.mubr.bf16.gmra.mxu0 %v4903
        %v5564 = vpop.f32.mrf.mxu0
        %v5565 = vadd.f32 %v5404, %v5564
        %v5566 = vpop.f32.mrf.mxu0
        %v5567 = vpop.f32.mrf.mxu0
        %v5568 = vadd.f32 %v5407, %v5567
        %v5569 = vpop.f32.mrf.mxu0
        %5570 = vmatprep.mubr.bf16.mxu0 0
        %5571 = vmatmul.mubr.bf16.gmra.mxu0 %v4946
        %v5572 = vpop.f32.mrf.mxu0
        %v5573 = vadd.f32 %v5412, %v5572
        %v5574 = vpop.f32.mrf.mxu0
        %v5575 = vpop.f32.mrf.mxu0
        %v5576 = vadd.f32 %v5415, %v5575
        %v5577 = vpop.f32.mrf.mxu0
        %5578 = vmatprep.mubr.bf16.mxu0 0
        %5579 = vmatmul.mubr.bf16.gmra.mxu0 %v4989
        %v5580 = vpop.f32.mrf.mxu0
        %v5581 = vadd.f32 %v5420, %v5580
        %v5582 = vpop.f32.mrf.mxu0
        %v5583 = vpop.f32.mrf.mxu0
        %v5584 = vadd.f32 %v5423, %v5583
        %v5585 = vpop.f32.mrf.mxu0
        %5586 = vmatprep.mubr.bf16.mxu0 0
        %5587 = vmatmul.mubr.bf16.gmra.mxu0 %v5032
        %v5588 = vpop.f32.mrf.mxu0
        %v5589 = vadd.f32 %v5428, %v5588
        %v5590 = vpop.f32.mrf.mxu0
        %v5591 = vpop.f32.mrf.mxu0
        %v5592 = vadd.f32 %v5431, %v5591
        %v5593 = vpop.f32.mrf.mxu0
        %5594 = vdwg.mxu0
        %v5595 = vadd.f32 %v3786, %v5469
        %v5596 = vadd.f32 %v3789, %v5472
        %v5597 = vadd.f32 %v3794, %v5477
        %v5598 = vadd.f32 %v3797, %v5480
        %v5599 = vadd.f32 %v3802, %v5485
        %v5600 = vadd.f32 %v3805, %v5488
        %v5601 = vadd.f32 %v3810, %v5493
        %v5602 = vadd.f32 %v3813, %v5496
        %v5603 = vadd.f32 %v3818, %v5501
        %v5604 = vadd.f32 %v3821, %v5504
        %v5605 = vadd.f32 %v3826, %v5509
        %v5606 = vadd.f32 %v3829, %v5512
        %v5607 = vadd.f32 %v3834, %v5517
        %v5608 = vadd.f32 %v3837, %v5520
        %v5609 = vadd.f32 %v3842, %v5525
        %v5610 = vadd.f32 %v3845, %v5528
        %v5611 = vadd.f32 %v3850, %v5533
        %v5612 = vadd.f32 %v3853, %v5536
        %v5613 = vadd.f32 %v3858, %v5541
        %v5614 = vadd.f32 %v3861, %v5544
        %v5615 = vadd.f32 %v3866, %v5549
        %v5616 = vadd.f32 %v3869, %v5552
        %v5617 = vadd.f32 %v3874, %v5557
        %v5618 = vadd.f32 %v3877, %v5560
        %v5619 = vadd.f32 %v3882, %v5565
        %v5620 = vadd.f32 %v3885, %v5568
        %v5621 = vadd.f32 %v3890, %v5573
        %v5622 = vadd.f32 %v3893, %v5576
        %v5623 = vadd.f32 %v3898, %v5581
        %v5624 = vadd.f32 %v3901, %v5584
        %v5625 = vadd.f32 %v3906, %v5589
        %v5626 = vadd.f32 %v3909, %v5592
        %v5627 = vld [vmem:[%s2] sm:$0x1]
        %v5629 = vlaneseq
        %v5630 = vshrl.u32 %v5629, 7
        %v5631 = vsub.s32 0, %v5630
        %v5632 = vrot.slane %v5627, %v5631
        %v5634 = vadd.f32 %v5595, %v5632
        %v5635 = vadd.f32 %v5596, %v5632
        %v5636 = vadd.f32 %v5597, %v5632
        %v5637 = vadd.f32 %v5598, %v5632
        %v5638 = vadd.f32 %v5599, %v5632
        %v5639 = vadd.f32 %v5600, %v5632
        %v5640 = vadd.f32 %v5601, %v5632
        %v5641 = vadd.f32 %v5602, %v5632
        %v5642 = vadd.f32 %v5603, %v5632
        %v5643 = vadd.f32 %v5604, %v5632
        %v5644 = vadd.f32 %v5605, %v5632
        %v5645 = vadd.f32 %v5606, %v5632
        %v5646 = vadd.f32 %v5607, %v5632
        %v5647 = vadd.f32 %v5608, %v5632
        %v5648 = vadd.f32 %v5609, %v5632
        %v5649 = vadd.f32 %v5610, %v5632
        %v5650 = vadd.f32 %v5611, %v5632
        %v5651 = vadd.f32 %v5612, %v5632
        %v5652 = vadd.f32 %v5613, %v5632
        %v5653 = vadd.f32 %v5614, %v5632
        %v5654 = vadd.f32 %v5615, %v5632
        %v5655 = vadd.f32 %v5616, %v5632
        %v5656 = vadd.f32 %v5617, %v5632
        %v5657 = vadd.f32 %v5618, %v5632
        %v5658 = vadd.f32 %v5619, %v5632
        %v5659 = vadd.f32 %v5620, %v5632
        %v5660 = vadd.f32 %v5621, %v5632
        %v5661 = vadd.f32 %v5622, %v5632
        %v5662 = vadd.f32 %v5623, %v5632
        %v5663 = vadd.f32 %v5624, %v5632
        %v5664 = vadd.f32 %v5625, %v5632
        %v5665 = vadd.f32 %v5626, %v5632
        %v5666 = vmax.f32 %v5634, 0.0
        %v5667 = vmax.f32 %v5635, 0.0
        %v5668 = vmax.f32 %v5636, 0.0
        %v5669 = vmax.f32 %v5637, 0.0
        %v5670 = vmax.f32 %v5638, 0.0
        %v5671 = vmax.f32 %v5639, 0.0
        %v5672 = vmax.f32 %v5640, 0.0
        %v5673 = vmax.f32 %v5641, 0.0
        %v5674 = vmax.f32 %v5642, 0.0
        %v5675 = vmax.f32 %v5643, 0.0
        %v5676 = vmax.f32 %v5644, 0.0
        %v5677 = vmax.f32 %v5645, 0.0
        %v5678 = vmax.f32 %v5646, 0.0
        %v5679 = vmax.f32 %v5647, 0.0
        %v5680 = vmax.f32 %v5648, 0.0
        %v5681 = vmax.f32 %v5649, 0.0
        %v5682 = vmax.f32 %v5650, 0.0
        %v5683 = vmax.f32 %v5651, 0.0
        %v5684 = vmax.f32 %v5652, 0.0
        %v5685 = vmax.f32 %v5653, 0.0
        %v5686 = vmax.f32 %v5654, 0.0
        %v5687 = vmax.f32 %v5655, 0.0
        %v5688 = vmax.f32 %v5656, 0.0
        %v5689 = vmax.f32 %v5657, 0.0
        %v5690 = vmax.f32 %v5658, 0.0
        %v5691 = vmax.f32 %v5659, 0.0
        %v5692 = vmax.f32 %v5660, 0.0
        %v5693 = vmax.f32 %v5661, 0.0
        %v5694 = vmax.f32 %v5662, 0.0
        %v5695 = vmax.f32 %v5663, 0.0
        %v5696 = vmax.f32 %v5664, 0.0
        %v5697 = vmax.f32 %v5665, 0.0
        %v5698 = vpack.c.bf16 %v5667, %v5666
        %v5699 = vpack.c.bf16 %v5669, %v5668
        %v5700 = vpack.c.bf16 %v5671, %v5670
        %v5701 = vpack.c.bf16 %v5673, %v5672
        %v5702 = vpack.c.bf16 %v5675, %v5674
        %v5703 = vpack.c.bf16 %v5677, %v5676
        %v5704 = vpack.c.bf16 %v5679, %v5678
        %v5705 = vpack.c.bf16 %v5681, %v5680
        %v5706 = vpack.c.bf16 %v5683, %v5682
        %v5707 = vpack.c.bf16 %v5685, %v5684
        %v5708 = vpack.c.bf16 %v5687, %v5686
        %v5709 = vpack.c.bf16 %v5689, %v5688
        %v5710 = vpack.c.bf16 %v5691, %v5690
        %v5711 = vpack.c.bf16 %v5693, %v5692
        %v5712 = vpack.c.bf16 %v5695, %v5694
        %v5713 = vpack.c.bf16 %v5697, %v5696
        %v5730 = vunpack.c.l.b16 %v5698
        %v5731 = vunpack.c.h.b16 %v5698
        %v5732 = vunpack.c.l.b16 %v5699
        %v5733 = vunpack.c.h.b16 %v5699
        %v5734 = vunpack.c.l.b16 %v5700
        %v5735 = vunpack.c.h.b16 %v5700
        %v5736 = vunpack.c.l.b16 %v5701
        %v5737 = vunpack.c.h.b16 %v5701
        %v5738 = vunpack.c.l.b16 %v5702
        %v5739 = vunpack.c.h.b16 %v5702
        %v5740 = vunpack.c.l.b16 %v5703
        %v5741 = vunpack.c.h.b16 %v5703
        %v5742 = vunpack.c.l.b16 %v5704
        %v5743 = vunpack.c.h.b16 %v5704
        %v5744 = vunpack.c.l.b16 %v5705
        %v5745 = vunpack.c.h.b16 %v5705
        %v5746 = vunpack.c.l.b16 %v5706
        %v5747 = vunpack.c.h.b16 %v5706
        %v5748 = vunpack.c.l.b16 %v5707
        %v5749 = vunpack.c.h.b16 %v5707
        %v5750 = vunpack.c.l.b16 %v5708
        %v5751 = vunpack.c.h.b16 %v5708
        %v5752 = vunpack.c.l.b16 %v5709
        %v5753 = vunpack.c.h.b16 %v5709
        %v5754 = vunpack.c.l.b16 %v5710
        %v5755 = vunpack.c.h.b16 %v5710
        %v5756 = vunpack.c.l.b16 %v5711
        %v5757 = vunpack.c.h.b16 %v5711
        %v5758 = vunpack.c.l.b16 %v5712
        %v5759 = vunpack.c.h.b16 %v5712
        %v5760 = vunpack.c.l.b16 %v5713
        %v5761 = vunpack.c.h.b16 %v5713
        %v5762 = vpack.c.b16 %v5730, %v5730
        %v5763 = vpack.c.b16 %v5731, %v5731
        %v5764 = vpack.c.b16 %v5732, %v5732
        %v5765 = vpack.c.b16 %v5733, %v5733
        %v5766 = vpack.c.b16 %v5734, %v5734
        %v5767 = vpack.c.b16 %v5735, %v5735
        %v5768 = vpack.c.b16 %v5736, %v5736
        %v5769 = vpack.c.b16 %v5737, %v5737
        %v5770 = vpack.c.b16 %v5738, %v5738
        %v5771 = vpack.c.b16 %v5739, %v5739
        %v5772 = vpack.c.b16 %v5740, %v5740
        %v5773 = vpack.c.b16 %v5741, %v5741
        %v5774 = vpack.c.b16 %v5742, %v5742
        %v5775 = vpack.c.b16 %v5743, %v5743
        %v5776 = vpack.c.b16 %v5744, %v5744
        %v5777 = vpack.c.b16 %v5745, %v5745
        %v5778 = vpack.c.b16 %v5746, %v5746
        %v5779 = vpack.c.b16 %v5747, %v5747
        %v5780 = vpack.c.b16 %v5748, %v5748
        %v5781 = vpack.c.b16 %v5749, %v5749
        %v5782 = vpack.c.b16 %v5750, %v5750
        %v5783 = vpack.c.b16 %v5751, %v5751
        %v5784 = vpack.c.b16 %v5752, %v5752
        %v5785 = vpack.c.b16 %v5753, %v5753
        %v5786 = vpack.c.b16 %v5754, %v5754
        %v5787 = vpack.c.b16 %v5755, %v5755
        %v5788 = vpack.c.b16 %v5756, %v5756
        %v5789 = vpack.c.b16 %v5757, %v5757
        %v5790 = vpack.c.b16 %v5758, %v5758
        %v5791 = vpack.c.b16 %v5759, %v5759
        %v5792 = vpack.c.b16 %v5760, %v5760
        %v5793 = vpack.c.b16 %v5761, %v5761
        %s5826 = scalar_lea.vmem [#allocation3], 16
        %5827 = vst [vmem:[%s5826 + $0x4] sm:$0xf] %v5762
        %5828 = vst [vmem:[%s5826 + $0x8] sm:$0xf] %v5763
        %5829 = vst [vmem:[%s5826 + $0x14] sm:$0xf] %v5764
        %5830 = vst [vmem:[%s5826 + $0x18] sm:$0xf] %v5765
        %5831 = vst [vmem:[%s5826 + $0x24] sm:$0xf] %v5766
        %5832 = vst [vmem:[%s5826 + $0x28] sm:$0xf] %v5767
        %5833 = vst [vmem:[%s5826 + $0x34] sm:$0xf] %v5768
        %5834 = vst [vmem:[%s5826 + $0x38] sm:$0xf] %v5769
        %5835 = vst [vmem:[%s5826 + $0x44] sm:$0xf] %v5770
        %5836 = vst [vmem:[%s5826 + $0x48] sm:$0xf] %v5771
        %5837 = vst [vmem:[%s5826 + $0x54] sm:$0xf] %v5772
        %5838 = vst [vmem:[%s5826 + $0x58] sm:$0xf] %v5773
        %5839 = vst [vmem:[%s5826 + $0x64] sm:$0xf] %v5774
        %5840 = vst [vmem:[%s5826 + $0x68] sm:$0xf] %v5775
        %5841 = vst [vmem:[%s5826 + $0x74] sm:$0xf] %v5776
        %5842 = vst [vmem:[%s5826 + $0x78] sm:$0xf] %v5777
        %5843 = vst [vmem:[%s5826 + $0x84] sm:$0xf] %v5778
        %5844 = vst [vmem:[%s5826 + $0x88] sm:$0xf] %v5779
        %5845 = vst [vmem:[%s5826 + $0x94] sm:$0xf] %v5780
        %5846 = vst [vmem:[%s5826 + $0x98] sm:$0xf] %v5781
        %5847 = vst [vmem:[%s5826 + $0xa4] sm:$0xf] %v5782
        %5848 = vst [vmem:[%s5826 + $0xa8] sm:$0xf] %v5783
        %5849 = vst [vmem:[%s5826 + $0xb4] sm:$0xf] %v5784
        %5850 = vst [vmem:[%s5826 + $0xb8] sm:$0xf] %v5785
        %5851 = vst [vmem:[%s5826 + $0xc4] sm:$0xf] %v5786
        %5852 = vst [vmem:[%s5826 + $0xc8] sm:$0xf] %v5787
        %5853 = vst [vmem:[%s5826 + $0xd4] sm:$0xf] %v5788
        %5854 = vst [vmem:[%s5826 + $0xd8] sm:$0xf] %v5789
        %5855 = vst [vmem:[%s5826 + $0xe4] sm:$0xf] %v5790
        %5856 = vst [vmem:[%s5826 + $0xe8] sm:$0xf] %v5791
        %5857 = vst [vmem:[%s5826 + $0xf4] sm:$0xf] %v5792
        %5858 = vst [vmem:[%s5826 + $0xf8] sm:$0xf] %v5793
        %v5859 = vld [vmem:[#allocation3] sm:$0x8]
        %v5860 = vld [vmem:[#allocation3 + $0x4] sm:$0xf]
        %v5861 = vld [vmem:[#allocation3 + $0x8] sm:$0xf]
        %v5862 = vld [vmem:[#allocation3 + $0x10] sm:$0x8]
        %v5863 = vld [vmem:[#allocation3 + $0x14] sm:$0xf]
        %v5864 = vld [vmem:[#allocation3 + $0x18] sm:$0xf]
        %v5865 = vld [vmem:[#allocation3 + $0x20] sm:$0x8]
        %v5866 = vld [vmem:[#allocation3 + $0x24] sm:$0xf]
        %v5867 = vld [vmem:[#allocation3 + $0x28] sm:$0xf]
        %v5868 = vld [vmem:[#allocation3 + $0x30] sm:$0x8]
        %v5869 = vld [vmem:[#allocation3 + $0x34] sm:$0xf]
        %v5870 = vld [vmem:[#allocation3 + $0x38] sm:$0xf]
        %v5871 = vld [vmem:[#allocation3 + $0x40] sm:$0x8]
        %v5872 = vld [vmem:[#allocation3 + $0x44] sm:$0xf]
        %v5873 = vld [vmem:[#allocation3 + $0x48] sm:$0xf]
        %v5874 = vld [vmem:[#allocation3 + $0x50] sm:$0x8]
        %v5875 = vld [vmem:[#allocation3 + $0x54] sm:$0xf]
        %v5876 = vld [vmem:[#allocation3 + $0x58] sm:$0xf]
        %v5877 = vld [vmem:[#allocation3 + $0x60] sm:$0x8]
        %v5878 = vld [vmem:[#allocation3 + $0x64] sm:$0xf]
        %v5879 = vld [vmem:[#allocation3 + $0x68] sm:$0xf]
        %v5880 = vld [vmem:[#allocation3 + $0x70] sm:$0x8]
        %v5881 = vld [vmem:[#allocation3 + $0x74] sm:$0xf]
        %v5882 = vld [vmem:[#allocation3 + $0x78] sm:$0xf]
        %v5883 = vld [vmem:[#allocation3 + $0x80] sm:$0x8]
        %v5884 = vld [vmem:[#allocation3 + $0x84] sm:$0xf]
        %v5885 = vld [vmem:[#allocation3 + $0x88] sm:$0xf]
        %v5886 = vld [vmem:[#allocation3 + $0x90] sm:$0x8]
        %v5887 = vld [vmem:[#allocation3 + $0x94] sm:$0xf]
        %v5888 = vld [vmem:[#allocation3 + $0x98] sm:$0xf]
        %v5889 = vld [vmem:[#allocation3 + $0xa0] sm:$0x8]
        %v5890 = vld [vmem:[#allocation3 + $0xa4] sm:$0xf]
        %v5891 = vld [vmem:[#allocation3 + $0xa8] sm:$0xf]
        %v5892 = vld [vmem:[#allocation3 + $0xb0] sm:$0x8]
        %v5893 = vld [vmem:[#allocation3 + $0xb4] sm:$0xf]
        %v5894 = vld [vmem:[#allocation3 + $0xb8] sm:$0xf]
        %v5895 = vld [vmem:[#allocation3 + $0xc0] sm:$0x8]
        %v5896 = vld [vmem:[#allocation3 + $0xc4] sm:$0xf]
        %v5897 = vld [vmem:[#allocation3 + $0xc8] sm:$0xf]
        %v5898 = vld [vmem:[#allocation3 + $0xd0] sm:$0x8]
        %v5899 = vld [vmem:[#allocation3 + $0xd4] sm:$0xf]
        %v5900 = vld [vmem:[#allocation3 + $0xd8] sm:$0xf]
        %v5901 = vld [vmem:[#allocation3 + $0xe0] sm:$0x8]
        %v5902 = vld [vmem:[#allocation3 + $0xe4] sm:$0xf]
        %v5903 = vld [vmem:[#allocation3 + $0xe8] sm:$0xf]
        %v5904 = vld [vmem:[#allocation3 + $0xf0] sm:$0x8]
        %v5905 = vld [vmem:[#allocation3 + $0xf4] sm:$0xf]
        %v5906 = vld [vmem:[#allocation3 + $0xf8] sm:$0xf]
        %v5907 = vld [vmem:[#allocation3 + $0xc] sm:$0x1]
        %v5908 = vld [vmem:[#allocation3 + $0x1c] sm:$0x1]
        %v5909 = vld [vmem:[#allocation3 + $0x2c] sm:$0x1]
        %v5910 = vld [vmem:[#allocation3 + $0x3c] sm:$0x1]
        %v5911 = vld [vmem:[#allocation3 + $0x4c] sm:$0x1]
        %v5912 = vld [vmem:[#allocation3 + $0x5c] sm:$0x1]
        %v5913 = vld [vmem:[#allocation3 + $0x6c] sm:$0x1]
        %v5914 = vld [vmem:[#allocation3 + $0x7c] sm:$0x1]
        %v5915 = vld [vmem:[#allocation3 + $0x8c] sm:$0x1]
        %v5916 = vld [vmem:[#allocation3 + $0x9c] sm:$0x1]
        %v5917 = vld [vmem:[#allocation3 + $0xac] sm:$0x1]
        %v5918 = vld [vmem:[#allocation3 + $0xbc] sm:$0x1]
        %v5919 = vld [vmem:[#allocation3 + $0xcc] sm:$0x1]
        %v5920 = vld [vmem:[#allocation3 + $0xdc] sm:$0x1]
        %v5921 = vld [vmem:[#allocation3 + $0xec] sm:$0x1]
        %v5922 = vld [vmem:[#allocation3 + $0xfc] sm:$0x1]
        %v5971 = vunpack.c.l.b16 %v5859
        %v5972 = vunpack.c.l.b16 %v5860
        %v5973 = vunpack.c.l.b16 %v5861
        %v5974 = vunpack.c.l.b16 %v5862
        %v5975 = vunpack.c.l.b16 %v5863
        %v5976 = vunpack.c.l.b16 %v5864
        %v5977 = vunpack.c.l.b16 %v5865
        %v5978 = vunpack.c.l.b16 %v5866
        %v5979 = vunpack.c.l.b16 %v5867
        %v5980 = vunpack.c.l.b16 %v5868
        %v5981 = vunpack.c.l.b16 %v5869
        %v5982 = vunpack.c.l.b16 %v5870
        %v5983 = vunpack.c.l.b16 %v5871
        %v5984 = vunpack.c.l.b16 %v5872
        %v5985 = vunpack.c.l.b16 %v5873
        %v5986 = vunpack.c.l.b16 %v5874
        %v5987 = vunpack.c.l.b16 %v5875
        %v5988 = vunpack.c.l.b16 %v5876
        %v5989 = vunpack.c.l.b16 %v5877
        %v5990 = vunpack.c.l.b16 %v5878
        %v5991 = vunpack.c.l.b16 %v5879
        %v5992 = vunpack.c.l.b16 %v5880
        %v5993 = vunpack.c.l.b16 %v5881
        %v5994 = vunpack.c.l.b16 %v5882
        %v5995 = vunpack.c.l.b16 %v5883
        %v5996 = vunpack.c.l.b16 %v5884
        %v5997 = vunpack.c.l.b16 %v5885
        %v5998 = vunpack.c.l.b16 %v5886
        %v5999 = vunpack.c.l.b16 %v5887
        %v6000 = vunpack.c.l.b16 %v5888
        %v6001 = vunpack.c.l.b16 %v5889
        %v6002 = vunpack.c.l.b16 %v5890
        %v6003 = vunpack.c.l.b16 %v5891
        %v6004 = vunpack.c.l.b16 %v5892
        %v6005 = vunpack.c.l.b16 %v5893
        %v6006 = vunpack.c.l.b16 %v5894
        %v6007 = vunpack.c.l.b16 %v5895
        %v6008 = vunpack.c.l.b16 %v5896
        %v6009 = vunpack.c.l.b16 %v5897
        %v6010 = vunpack.c.l.b16 %v5898
        %v6011 = vunpack.c.l.b16 %v5899
        %v6012 = vunpack.c.l.b16 %v5900
        %v6013 = vunpack.c.l.b16 %v5901
        %v6014 = vunpack.c.l.b16 %v5902
        %v6015 = vunpack.c.l.b16 %v5903
        %v6016 = vunpack.c.l.b16 %v5904
        %v6017 = vunpack.c.l.b16 %v5905
        %v6018 = vunpack.c.l.b16 %v5906
        %v6019 = vpack.c.b16 %v5972, %v5971
        %v6020 = vpack.c.b16 %v5973, %v5973
        %v6021 = vpack.c.b16 %v5975, %v5974
        %v6022 = vpack.c.b16 %v5976, %v5976
        %v6023 = vpack.c.b16 %v5978, %v5977
        %v6024 = vpack.c.b16 %v5979, %v5979
        %v6025 = vpack.c.b16 %v5981, %v5980
        %v6026 = vpack.c.b16 %v5982, %v5982
        %v6027 = vpack.c.b16 %v5984, %v5983
        %v6028 = vpack.c.b16 %v5985, %v5985
        %v6029 = vpack.c.b16 %v5987, %v5986
        %v6030 = vpack.c.b16 %v5988, %v5988
        %v6031 = vpack.c.b16 %v5990, %v5989
        %v6032 = vpack.c.b16 %v5991, %v5991
        %v6033 = vpack.c.b16 %v5993, %v5992
        %v6034 = vpack.c.b16 %v5994, %v5994
        %v6035 = vpack.c.b16 %v5996, %v5995
        %v6036 = vpack.c.b16 %v5997, %v5997
        %v6037 = vpack.c.b16 %v5999, %v5998
        %v6038 = vpack.c.b16 %v6000, %v6000
        %v6039 = vpack.c.b16 %v6002, %v6001
        %v6040 = vpack.c.b16 %v6003, %v6003
        %v6041 = vpack.c.b16 %v6005, %v6004
        %v6042 = vpack.c.b16 %v6006, %v6006
        %v6043 = vpack.c.b16 %v6008, %v6007
        %v6044 = vpack.c.b16 %v6009, %v6009
        %v6045 = vpack.c.b16 %v6011, %v6010
        %v6046 = vpack.c.b16 %v6012, %v6012
        %v6047 = vpack.c.b16 %v6014, %v6013
        %v6048 = vpack.c.b16 %v6015, %v6015
        %v6049 = vpack.c.b16 %v6017, %v6016
        %v6050 = vpack.c.b16 %v6018, %v6018
        %v6051 = vpack.c.b16 %v5973, %v5972
        %v6052 = vpack.c.b16 %v5976, %v5975
        %v6053 = vpack.c.b16 %v5979, %v5978
        %v6054 = vpack.c.b16 %v5982, %v5981
        %v6055 = vpack.c.b16 %v5985, %v5984
        %v6056 = vpack.c.b16 %v5988, %v5987
        %v6057 = vpack.c.b16 %v5991, %v5990
        %v6058 = vpack.c.b16 %v5994, %v5993
        %v6059 = vpack.c.b16 %v5997, %v5996
        %v6060 = vpack.c.b16 %v6000, %v5999
        %v6061 = vpack.c.b16 %v6003, %v6002
        %v6062 = vpack.c.b16 %v6006, %v6005
        %v6063 = vpack.c.b16 %v6009, %v6008
        %v6064 = vpack.c.b16 %v6012, %v6011
        %v6065 = vpack.c.b16 %v6015, %v6014
        %v6066 = vpack.c.b16 %v6018, %v6017
        %v6068 = vshrl.u32 %v6051, 16
        %v6070 = vrot.slane %v6068, 4
        %v6071 = vshll.u32 %v6051, 16
        %v6073 = vrot.slane %v6071, 5
        %v6074 = vor.u32 %v6070, %v6073
        %v6076 = vshrl.u32 %v6052, 16
        %v6078 = vrot.slane %v6076, 4
        %v6079 = vshll.u32 %v6052, 16
        %v6081 = vrot.slane %v6079, 5
        %v6082 = vor.u32 %v6078, %v6081
        %v6084 = vshrl.u32 %v6053, 16
        %v6086 = vrot.slane %v6084, 4
        %v6087 = vshll.u32 %v6053, 16
        %v6089 = vrot.slane %v6087, 5
        %v6090 = vor.u32 %v6086, %v6089
        %v6092 = vshrl.u32 %v6054, 16
        %v6094 = vrot.slane %v6092, 4
        %v6095 = vshll.u32 %v6054, 16
        %v6097 = vrot.slane %v6095, 5
        %v6098 = vor.u32 %v6094, %v6097
        %v6100 = vshrl.u32 %v6055, 16
        %v6102 = vrot.slane %v6100, 4
        %v6103 = vshll.u32 %v6055, 16
        %v6105 = vrot.slane %v6103, 5
        %v6106 = vor.u32 %v6102, %v6105
        %v6108 = vshrl.u32 %v6056, 16
        %v6110 = vrot.slane %v6108, 4
        %v6111 = vshll.u32 %v6056, 16
        %v6113 = vrot.slane %v6111, 5
        %v6114 = vor.u32 %v6110, %v6113
        %v6116 = vshrl.u32 %v6057, 16
        %v6118 = vrot.slane %v6116, 4
        %v6119 = vshll.u32 %v6057, 16
        %v6121 = vrot.slane %v6119, 5
        %v6122 = vor.u32 %v6118, %v6121
        %v6124 = vshrl.u32 %v6058, 16
        %v6126 = vrot.slane %v6124, 4
        %v6127 = vshll.u32 %v6058, 16
        %v6129 = vrot.slane %v6127, 5
        %v6130 = vor.u32 %v6126, %v6129
        %v6132 = vshrl.u32 %v6059, 16
        %v6134 = vrot.slane %v6132, 4
        %v6135 = vshll.u32 %v6059, 16
        %v6137 = vrot.slane %v6135, 5
        %v6138 = vor.u32 %v6134, %v6137
        %v6140 = vshrl.u32 %v6060, 16
        %v6142 = vrot.slane %v6140, 4
        %v6143 = vshll.u32 %v6060, 16
        %v6145 = vrot.slane %v6143, 5
        %v6146 = vor.u32 %v6142, %v6145
        %v6148 = vshrl.u32 %v6061, 16
        %v6150 = vrot.slane %v6148, 4
        %v6151 = vshll.u32 %v6061, 16
        %v6153 = vrot.slane %v6151, 5
        %v6154 = vor.u32 %v6150, %v6153
        %v6156 = vshrl.u32 %v6062, 16
        %v6158 = vrot.slane %v6156, 4
        %v6159 = vshll.u32 %v6062, 16
        %v6161 = vrot.slane %v6159, 5
        %v6162 = vor.u32 %v6158, %v6161
        %v6164 = vshrl.u32 %v6063, 16
        %v6166 = vrot.slane %v6164, 4
        %v6167 = vshll.u32 %v6063, 16
        %v6169 = vrot.slane %v6167, 5
        %v6170 = vor.u32 %v6166, %v6169
        %v6172 = vshrl.u32 %v6064, 16
        %v6174 = vrot.slane %v6172, 4
        %v6175 = vshll.u32 %v6064, 16
        %v6177 = vrot.slane %v6175, 5
        %v6178 = vor.u32 %v6174, %v6177
        %v6180 = vshrl.u32 %v6065, 16
        %v6182 = vrot.slane %v6180, 4
        %v6183 = vshll.u32 %v6065, 16
        %v6185 = vrot.slane %v6183, 5
        %v6186 = vor.u32 %v6182, %v6185
        %v6188 = vshrl.u32 %v6066, 16
        %v6190 = vrot.slane %v6188, 4
        %v6191 = vshll.u32 %v6066, 16
        %v6193 = vrot.slane %v6191, 5
        %v6194 = vor.u32 %v6190, %v6193
        %v6211 = vunpack.c.l.b16 %v5907
        %v6212 = vunpack.c.l.b16 %v5908
        %v6213 = vunpack.c.l.b16 %v5909
        %v6214 = vunpack.c.l.b16 %v5910
        %v6215 = vunpack.c.l.b16 %v5911
        %v6216 = vunpack.c.l.b16 %v5912
        %v6217 = vunpack.c.l.b16 %v5913
        %v6218 = vunpack.c.l.b16 %v5914
        %v6219 = vunpack.c.l.b16 %v5915
        %v6220 = vunpack.c.l.b16 %v5916
        %v6221 = vunpack.c.l.b16 %v5917
        %v6222 = vunpack.c.l.b16 %v5918
        %v6223 = vunpack.c.l.b16 %v5919
        %v6224 = vunpack.c.l.b16 %v5920
        %v6225 = vunpack.c.l.b16 %v5921
        %v6226 = vunpack.c.l.b16 %v5922
        %v6227 = vpack.c.b16 %v6211, %v6211
        %v6228 = vpack.c.b16 %v6212, %v6212
        %v6229 = vpack.c.b16 %v6213, %v6213
        %v6230 = vpack.c.b16 %v6214, %v6214
        %v6231 = vpack.c.b16 %v6215, %v6215
        %v6232 = vpack.c.b16 %v6216, %v6216
        %v6233 = vpack.c.b16 %v6217, %v6217
        %v6234 = vpack.c.b16 %v6218, %v6218
        %v6235 = vpack.c.b16 %v6219, %v6219
        %v6236 = vpack.c.b16 %v6220, %v6220
        %v6237 = vpack.c.b16 %v6221, %v6221
        %v6238 = vpack.c.b16 %v6222, %v6222
        %v6239 = vpack.c.b16 %v6223, %v6223
        %v6240 = vpack.c.b16 %v6224, %v6224
        %v6241 = vpack.c.b16 %v6225, %v6225
        %v6242 = vpack.c.b16 %v6226, %v6226
        %v6243 = vrot.slane %v6051, 5
        %v6244 = vrot.slane %v6227, 5
        %v6245 = vsel %vm930, %v6243, %v6244
        %v6246 = vrot.slane %v6052, 5
        %v6247 = vrot.slane %v6228, 5
        %v6248 = vsel %vm930, %v6246, %v6247
        %v6249 = vrot.slane %v6053, 5
        %v6250 = vrot.slane %v6229, 5
        %v6251 = vsel %vm930, %v6249, %v6250
        %v6252 = vrot.slane %v6054, 5
        %v6253 = vrot.slane %v6230, 5
        %v6254 = vsel %vm930, %v6252, %v6253
        %v6255 = vrot.slane %v6055, 5
        %v6256 = vrot.slane %v6231, 5
        %v6257 = vsel %vm930, %v6255, %v6256
        %v6258 = vrot.slane %v6056, 5
        %v6259 = vrot.slane %v6232, 5
        %v6260 = vsel %vm930, %v6258, %v6259
        %v6261 = vrot.slane %v6057, 5
        %v6262 = vrot.slane %v6233, 5
        %v6263 = vsel %vm930, %v6261, %v6262
        %v6264 = vrot.slane %v6058, 5
        %v6265 = vrot.slane %v6234, 5
        %v6266 = vsel %vm930, %v6264, %v6265
        %v6267 = vrot.slane %v6059, 5
        %v6268 = vrot.slane %v6235, 5
        %v6269 = vsel %vm930, %v6267, %v6268
        %v6270 = vrot.slane %v6060, 5
        %v6271 = vrot.slane %v6236, 5
        %v6272 = vsel %vm930, %v6270, %v6271
        %v6273 = vrot.slane %v6061, 5
        %v6274 = vrot.slane %v6237, 5
        %v6275 = vsel %vm930, %v6273, %v6274
        %v6276 = vrot.slane %v6062, 5
        %v6277 = vrot.slane %v6238, 5
        %v6278 = vsel %vm930, %v6276, %v6277
        %v6279 = vrot.slane %v6063, 5
        %v6280 = vrot.slane %v6239, 5
        %v6281 = vsel %vm930, %v6279, %v6280
        %v6282 = vrot.slane %v6064, 5
        %v6283 = vrot.slane %v6240, 5
        %v6284 = vsel %vm930, %v6282, %v6283
        %v6285 = vrot.slane %v6065, 5
        %v6286 = vrot.slane %v6241, 5
        %v6287 = vsel %vm930, %v6285, %v6286
        %v6288 = vrot.slane %v6066, 5
        %v6289 = vrot.slane %v6242, 5
        %v6290 = vsel %vm930, %v6288, %v6289
        %v6292 = vshrl.u32 %v6019, 16
        %v6294 = vrot.slane %v6292, 3
        %v6295 = vshll.u32 %v6019, 16
        %v6297 = vrot.slane %v6295, 4
        %v6298 = vor.u32 %v6294, %v6297
        %v6300 = vshrl.u32 %v6020, 16
        %v6302 = vrot.slane %v6300, 3
        %v6303 = vshll.u32 %v6020, 16
        %v6305 = vrot.slane %v6303, 4
        %v6306 = vor.u32 %v6302, %v6305
        %v6307 = vsel %vm979, %v6298, %v6306
        %v6309 = vshrl.u32 %v6074, 16
        %v6311 = vrot.slane %v6309, 3
        %v6312 = vshll.u32 %v6074, 16
        %v6314 = vrot.slane %v6312, 4
        %v6315 = vor.u32 %v6311, %v6314
        %v6316 = vsel %vm979, %v6315, %v6315
        %v6318 = vshrl.u32 %v6243, 16
        %v6320 = vrot.slane %v6318, 3
        %v6321 = vshll.u32 %v6243, 16
        %v6323 = vrot.slane %v6321, 4
        %v6324 = vor.u32 %v6320, %v6323
        %v6326 = vshrl.u32 %v6245, 16
        %v6328 = vrot.slane %v6326, 3
        %v6329 = vshll.u32 %v6245, 16
        %v6331 = vrot.slane %v6329, 4
        %v6332 = vor.u32 %v6328, %v6331
        %v6333 = vsel %vm979, %v6324, %v6332
        %v6335 = vshrl.u32 %v6021, 16
        %v6337 = vrot.slane %v6335, 3
        %v6338 = vshll.u32 %v6021, 16
        %v6340 = vrot.slane %v6338, 4
        %v6341 = vor.u32 %v6337, %v6340
        %v6343 = vshrl.u32 %v6022, 16
        %v6345 = vrot.slane %v6343, 3
        %v6346 = vshll.u32 %v6022, 16
        %v6348 = vrot.slane %v6346, 4
        %v6349 = vor.u32 %v6345, %v6348
        %v6350 = vsel %vm979, %v6341, %v6349
        %v6352 = vshrl.u32 %v6082, 16
        %v6354 = vrot.slane %v6352, 3
        %v6355 = vshll.u32 %v6082, 16
        %v6357 = vrot.slane %v6355, 4
        %v6358 = vor.u32 %v6354, %v6357
        %v6359 = vsel %vm979, %v6358, %v6358
        %v6361 = vshrl.u32 %v6246, 16
        %v6363 = vrot.slane %v6361, 3
        %v6364 = vshll.u32 %v6246, 16
        %v6366 = vrot.slane %v6364, 4
        %v6367 = vor.u32 %v6363, %v6366
        %v6369 = vshrl.u32 %v6248, 16
        %v6371 = vrot.slane %v6369, 3
        %v6372 = vshll.u32 %v6248, 16
        %v6374 = vrot.slane %v6372, 4
        %v6375 = vor.u32 %v6371, %v6374
        %v6376 = vsel %vm979, %v6367, %v6375
        %v6378 = vshrl.u32 %v6023, 16
        %v6380 = vrot.slane %v6378, 3
        %v6381 = vshll.u32 %v6023, 16
        %v6383 = vrot.slane %v6381, 4
        %v6384 = vor.u32 %v6380, %v6383
        %v6386 = vshrl.u32 %v6024, 16
        %v6388 = vrot.slane %v6386, 3
        %v6389 = vshll.u32 %v6024, 16
        %v6391 = vrot.slane %v6389, 4
        %v6392 = vor.u32 %v6388, %v6391
        %v6393 = vsel %vm979, %v6384, %v6392
        %v6395 = vshrl.u32 %v6090, 16
        %v6397 = vrot.slane %v6395, 3
        %v6398 = vshll.u32 %v6090, 16
        %v6400 = vrot.slane %v6398, 4
        %v6401 = vor.u32 %v6397, %v6400
        %v6402 = vsel %vm979, %v6401, %v6401
        %v6404 = vshrl.u32 %v6249, 16
        %v6406 = vrot.slane %v6404, 3
        %v6407 = vshll.u32 %v6249, 16
        %v6409 = vrot.slane %v6407, 4
        %v6410 = vor.u32 %v6406, %v6409
        %v6412 = vshrl.u32 %v6251, 16
        %v6414 = vrot.slane %v6412, 3
        %v6415 = vshll.u32 %v6251, 16
        %v6417 = vrot.slane %v6415, 4
        %v6418 = vor.u32 %v6414, %v6417
        %v6419 = vsel %vm979, %v6410, %v6418
        %v6421 = vshrl.u32 %v6025, 16
        %v6423 = vrot.slane %v6421, 3
        %v6424 = vshll.u32 %v6025, 16
        %v6426 = vrot.slane %v6424, 4
        %v6427 = vor.u32 %v6423, %v6426
        %v6429 = vshrl.u32 %v6026, 16
        %v6431 = vrot.slane %v6429, 3
        %v6432 = vshll.u32 %v6026, 16
        %v6434 = vrot.slane %v6432, 4
        %v6435 = vor.u32 %v6431, %v6434
        %v6436 = vsel %vm979, %v6427, %v6435
        %v6438 = vshrl.u32 %v6098, 16
        %v6440 = vrot.slane %v6438, 3
        %v6441 = vshll.u32 %v6098, 16
        %v6443 = vrot.slane %v6441, 4
        %v6444 = vor.u32 %v6440, %v6443
        %v6445 = vsel %vm979, %v6444, %v6444
        %v6447 = vshrl.u32 %v6252, 16
        %v6449 = vrot.slane %v6447, 3
        %v6450 = vshll.u32 %v6252, 16
        %v6452 = vrot.slane %v6450, 4
        %v6453 = vor.u32 %v6449, %v6452
        %v6455 = vshrl.u32 %v6254, 16
        %v6457 = vrot.slane %v6455, 3
        %v6458 = vshll.u32 %v6254, 16
        %v6460 = vrot.slane %v6458, 4
        %v6461 = vor.u32 %v6457, %v6460
        %v6462 = vsel %vm979, %v6453, %v6461
        %v6464 = vshrl.u32 %v6027, 16
        %v6466 = vrot.slane %v6464, 3
        %v6467 = vshll.u32 %v6027, 16
        %v6469 = vrot.slane %v6467, 4
        %v6470 = vor.u32 %v6466, %v6469
        %v6472 = vshrl.u32 %v6028, 16
        %v6474 = vrot.slane %v6472, 3
        %v6475 = vshll.u32 %v6028, 16
        %v6477 = vrot.slane %v6475, 4
        %v6478 = vor.u32 %v6474, %v6477
        %v6479 = vsel %vm979, %v6470, %v6478
        %v6481 = vshrl.u32 %v6106, 16
        %v6483 = vrot.slane %v6481, 3
        %v6484 = vshll.u32 %v6106, 16
        %v6486 = vrot.slane %v6484, 4
        %v6487 = vor.u32 %v6483, %v6486
        %v6488 = vsel %vm979, %v6487, %v6487
        %v6490 = vshrl.u32 %v6255, 16
        %v6492 = vrot.slane %v6490, 3
        %v6493 = vshll.u32 %v6255, 16
        %v6495 = vrot.slane %v6493, 4
        %v6496 = vor.u32 %v6492, %v6495
        %v6498 = vshrl.u32 %v6257, 16
        %v6500 = vrot.slane %v6498, 3
        %v6501 = vshll.u32 %v6257, 16
        %v6503 = vrot.slane %v6501, 4
        %v6504 = vor.u32 %v6500, %v6503
        %v6505 = vsel %vm979, %v6496, %v6504
        %v6507 = vshrl.u32 %v6029, 16
        %v6509 = vrot.slane %v6507, 3
        %v6510 = vshll.u32 %v6029, 16
        %v6512 = vrot.slane %v6510, 4
        %v6513 = vor.u32 %v6509, %v6512
        %v6515 = vshrl.u32 %v6030, 16
        %v6517 = vrot.slane %v6515, 3
        %v6518 = vshll.u32 %v6030, 16
        %v6520 = vrot.slane %v6518, 4
        %v6521 = vor.u32 %v6517, %v6520
        %v6522 = vsel %vm979, %v6513, %v6521
        %v6524 = vshrl.u32 %v6114, 16
        %v6526 = vrot.slane %v6524, 3
        %v6527 = vshll.u32 %v6114, 16
        %v6529 = vrot.slane %v6527, 4
        %v6530 = vor.u32 %v6526, %v6529
        %v6531 = vsel %vm979, %v6530, %v6530
        %v6533 = vshrl.u32 %v6258, 16
        %v6535 = vrot.slane %v6533, 3
        %v6536 = vshll.u32 %v6258, 16
        %v6538 = vrot.slane %v6536, 4
        %v6539 = vor.u32 %v6535, %v6538
        %v6541 = vshrl.u32 %v6260, 16
        %v6543 = vrot.slane %v6541, 3
        %v6544 = vshll.u32 %v6260, 16
        %v6546 = vrot.slane %v6544, 4
        %v6547 = vor.u32 %v6543, %v6546
        %v6548 = vsel %vm979, %v6539, %v6547
        %v6550 = vshrl.u32 %v6031, 16
        %v6552 = vrot.slane %v6550, 3
        %v6553 = vshll.u32 %v6031, 16
        %v6555 = vrot.slane %v6553, 4
        %v6556 = vor.u32 %v6552, %v6555
        %v6558 = vshrl.u32 %v6032, 16
        %v6560 = vrot.slane %v6558, 3
        %v6561 = vshll.u32 %v6032, 16
        %v6563 = vrot.slane %v6561, 4
        %v6564 = vor.u32 %v6560, %v6563
        %v6565 = vsel %vm979, %v6556, %v6564
        %v6567 = vshrl.u32 %v6122, 16
        %v6569 = vrot.slane %v6567, 3
        %v6570 = vshll.u32 %v6122, 16
        %v6572 = vrot.slane %v6570, 4
        %v6573 = vor.u32 %v6569, %v6572
        %v6574 = vsel %vm979, %v6573, %v6573
        %v6576 = vshrl.u32 %v6261, 16
        %v6578 = vrot.slane %v6576, 3
        %v6579 = vshll.u32 %v6261, 16
        %v6581 = vrot.slane %v6579, 4
        %v6582 = vor.u32 %v6578, %v6581
        %v6584 = vshrl.u32 %v6263, 16
        %v6586 = vrot.slane %v6584, 3
        %v6587 = vshll.u32 %v6263, 16
        %v6589 = vrot.slane %v6587, 4
        %v6590 = vor.u32 %v6586, %v6589
        %v6591 = vsel %vm979, %v6582, %v6590
        %v6593 = vshrl.u32 %v6033, 16
        %v6595 = vrot.slane %v6593, 3
        %v6596 = vshll.u32 %v6033, 16
        %v6598 = vrot.slane %v6596, 4
        %v6599 = vor.u32 %v6595, %v6598
        %v6601 = vshrl.u32 %v6034, 16
        %v6603 = vrot.slane %v6601, 3
        %v6604 = vshll.u32 %v6034, 16
        %v6606 = vrot.slane %v6604, 4
        %v6607 = vor.u32 %v6603, %v6606
        %v6608 = vsel %vm979, %v6599, %v6607
        %v6610 = vshrl.u32 %v6130, 16
        %v6612 = vrot.slane %v6610, 3
        %v6613 = vshll.u32 %v6130, 16
        %v6615 = vrot.slane %v6613, 4
        %v6616 = vor.u32 %v6612, %v6615
        %v6617 = vsel %vm979, %v6616, %v6616
        %v6619 = vshrl.u32 %v6264, 16
        %v6621 = vrot.slane %v6619, 3
        %v6622 = vshll.u32 %v6264, 16
        %v6624 = vrot.slane %v6622, 4
        %v6625 = vor.u32 %v6621, %v6624
        %v6627 = vshrl.u32 %v6266, 16
        %v6629 = vrot.slane %v6627, 3
        %v6630 = vshll.u32 %v6266, 16
        %v6632 = vrot.slane %v6630, 4
        %v6633 = vor.u32 %v6629, %v6632
        %v6634 = vsel %vm979, %v6625, %v6633
        %v6636 = vshrl.u32 %v6035, 16
        %v6638 = vrot.slane %v6636, 3
        %v6639 = vshll.u32 %v6035, 16
        %v6641 = vrot.slane %v6639, 4
        %v6642 = vor.u32 %v6638, %v6641
        %v6644 = vshrl.u32 %v6036, 16
        %v6646 = vrot.slane %v6644, 3
        %v6647 = vshll.u32 %v6036, 16
        %v6649 = vrot.slane %v6647, 4
        %v6650 = vor.u32 %v6646, %v6649
        %v6651 = vsel %vm979, %v6642, %v6650
        %v6653 = vshrl.u32 %v6138, 16
        %v6655 = vrot.slane %v6653, 3
        %v6656 = vshll.u32 %v6138, 16
        %v6658 = vrot.slane %v6656, 4
        %v6659 = vor.u32 %v6655, %v6658
        %v6660 = vsel %vm979, %v6659, %v6659
        %v6662 = vshrl.u32 %v6267, 16
        %v6664 = vrot.slane %v6662, 3
        %v6665 = vshll.u32 %v6267, 16
        %v6667 = vrot.slane %v6665, 4
        %v6668 = vor.u32 %v6664, %v6667
        %v6670 = vshrl.u32 %v6269, 16
        %v6672 = vrot.slane %v6670, 3
        %v6673 = vshll.u32 %v6269, 16
        %v6675 = vrot.slane %v6673, 4
        %v6676 = vor.u32 %v6672, %v6675
        %v6677 = vsel %vm979, %v6668, %v6676
        %v6679 = vshrl.u32 %v6037, 16
        %v6681 = vrot.slane %v6679, 3
        %v6682 = vshll.u32 %v6037, 16
        %v6684 = vrot.slane %v6682, 4
        %v6685 = vor.u32 %v6681, %v6684
        %v6687 = vshrl.u32 %v6038, 16
        %v6689 = vrot.slane %v6687, 3
        %v6690 = vshll.u32 %v6038, 16
        %v6692 = vrot.slane %v6690, 4
        %v6693 = vor.u32 %v6689, %v6692
        %v6694 = vsel %vm979, %v6685, %v6693
        %v6696 = vshrl.u32 %v6146, 16
        %v6698 = vrot.slane %v6696, 3
        %v6699 = vshll.u32 %v6146, 16
        %v6701 = vrot.slane %v6699, 4
        %v6702 = vor.u32 %v6698, %v6701
        %v6703 = vsel %vm979, %v6702, %v6702
        %v6705 = vshrl.u32 %v6270, 16
        %v6707 = vrot.slane %v6705, 3
        %v6708 = vshll.u32 %v6270, 16
        %v6710 = vrot.slane %v6708, 4
        %v6711 = vor.u32 %v6707, %v6710
        %v6713 = vshrl.u32 %v6272, 16
        %v6715 = vrot.slane %v6713, 3
        %v6716 = vshll.u32 %v6272, 16
        %v6718 = vrot.slane %v6716, 4
        %v6719 = vor.u32 %v6715, %v6718
        %v6720 = vsel %vm979, %v6711, %v6719
        %v6722 = vshrl.u32 %v6039, 16
        %v6724 = vrot.slane %v6722, 3
        %v6725 = vshll.u32 %v6039, 16
        %v6727 = vrot.slane %v6725, 4
        %v6728 = vor.u32 %v6724, %v6727
        %v6730 = vshrl.u32 %v6040, 16
        %v6732 = vrot.slane %v6730, 3
        %v6733 = vshll.u32 %v6040, 16
        %v6735 = vrot.slane %v6733, 4
        %v6736 = vor.u32 %v6732, %v6735
        %v6737 = vsel %vm979, %v6728, %v6736
        %v6739 = vshrl.u32 %v6154, 16
        %v6741 = vrot.slane %v6739, 3
        %v6742 = vshll.u32 %v6154, 16
        %v6744 = vrot.slane %v6742, 4
        %v6745 = vor.u32 %v6741, %v6744
        %v6746 = vsel %vm979, %v6745, %v6745
        %v6748 = vshrl.u32 %v6273, 16
        %v6750 = vrot.slane %v6748, 3
        %v6751 = vshll.u32 %v6273, 16
        %v6753 = vrot.slane %v6751, 4
        %v6754 = vor.u32 %v6750, %v6753
        %v6756 = vshrl.u32 %v6275, 16
        %v6758 = vrot.slane %v6756, 3
        %v6759 = vshll.u32 %v6275, 16
        %v6761 = vrot.slane %v6759, 4
        %v6762 = vor.u32 %v6758, %v6761
        %v6763 = vsel %vm979, %v6754, %v6762
        %v6765 = vshrl.u32 %v6041, 16
        %v6767 = vrot.slane %v6765, 3
        %v6768 = vshll.u32 %v6041, 16
        %v6770 = vrot.slane %v6768, 4
        %v6771 = vor.u32 %v6767, %v6770
        %v6773 = vshrl.u32 %v6042, 16
        %v6775 = vrot.slane %v6773, 3
        %v6776 = vshll.u32 %v6042, 16
        %v6778 = vrot.slane %v6776, 4
        %v6779 = vor.u32 %v6775, %v6778
        %v6780 = vsel %vm979, %v6771, %v6779
        %v6782 = vshrl.u32 %v6162, 16
        %v6784 = vrot.slane %v6782, 3
        %v6785 = vshll.u32 %v6162, 16
        %v6787 = vrot.slane %v6785, 4
        %v6788 = vor.u32 %v6784, %v6787
        %v6789 = vsel %vm979, %v6788, %v6788
        %v6791 = vshrl.u32 %v6276, 16
        %v6793 = vrot.slane %v6791, 3
        %v6794 = vshll.u32 %v6276, 16
        %v6796 = vrot.slane %v6794, 4
        %v6797 = vor.u32 %v6793, %v6796
        %v6799 = vshrl.u32 %v6278, 16
        %v6801 = vrot.slane %v6799, 3
        %v6802 = vshll.u32 %v6278, 16
        %v6804 = vrot.slane %v6802, 4
        %v6805 = vor.u32 %v6801, %v6804
        %v6806 = vsel %vm979, %v6797, %v6805
        %v6808 = vshrl.u32 %v6043, 16
        %v6810 = vrot.slane %v6808, 3
        %v6811 = vshll.u32 %v6043, 16
        %v6813 = vrot.slane %v6811, 4
        %v6814 = vor.u32 %v6810, %v6813
        %v6816 = vshrl.u32 %v6044, 16
        %v6818 = vrot.slane %v6816, 3
        %v6819 = vshll.u32 %v6044, 16
        %v6821 = vrot.slane %v6819, 4
        %v6822 = vor.u32 %v6818, %v6821
        %v6823 = vsel %vm979, %v6814, %v6822
        %v6825 = vshrl.u32 %v6170, 16
        %v6827 = vrot.slane %v6825, 3
        %v6828 = vshll.u32 %v6170, 16
        %v6830 = vrot.slane %v6828, 4
        %v6831 = vor.u32 %v6827, %v6830
        %v6832 = vsel %vm979, %v6831, %v6831
        %v6834 = vshrl.u32 %v6279, 16
        %v6836 = vrot.slane %v6834, 3
        %v6837 = vshll.u32 %v6279, 16
        %v6839 = vrot.slane %v6837, 4
        %v6840 = vor.u32 %v6836, %v6839
        %v6842 = vshrl.u32 %v6281, 16
        %v6844 = vrot.slane %v6842, 3
        %v6845 = vshll.u32 %v6281, 16
        %v6847 = vrot.slane %v6845, 4
        %v6848 = vor.u32 %v6844, %v6847
        %v6849 = vsel %vm979, %v6840, %v6848
        %v6851 = vshrl.u32 %v6045, 16
        %v6853 = vrot.slane %v6851, 3
        %v6854 = vshll.u32 %v6045, 16
        %v6856 = vrot.slane %v6854, 4
        %v6857 = vor.u32 %v6853, %v6856
        %v6859 = vshrl.u32 %v6046, 16
        %v6861 = vrot.slane %v6859, 3
        %v6862 = vshll.u32 %v6046, 16
        %v6864 = vrot.slane %v6862, 4
        %v6865 = vor.u32 %v6861, %v6864
        %v6866 = vsel %vm979, %v6857, %v6865
        %v6868 = vshrl.u32 %v6178, 16
        %v6870 = vrot.slane %v6868, 3
        %v6871 = vshll.u32 %v6178, 16
        %v6873 = vrot.slane %v6871, 4
        %v6874 = vor.u32 %v6870, %v6873
        %v6875 = vsel %vm979, %v6874, %v6874
        %v6877 = vshrl.u32 %v6282, 16
        %v6879 = vrot.slane %v6877, 3
        %v6880 = vshll.u32 %v6282, 16
        %v6882 = vrot.slane %v6880, 4
        %v6883 = vor.u32 %v6879, %v6882
        %v6885 = vshrl.u32 %v6284, 16
        %v6887 = vrot.slane %v6885, 3
        %v6888 = vshll.u32 %v6284, 16
        %v6890 = vrot.slane %v6888, 4
        %v6891 = vor.u32 %v6887, %v6890
        %v6892 = vsel %vm979, %v6883, %v6891
        %v6894 = vshrl.u32 %v6047, 16
        %v6896 = vrot.slane %v6894, 3
        %v6897 = vshll.u32 %v6047, 16
        %v6899 = vrot.slane %v6897, 4
        %v6900 = vor.u32 %v6896, %v6899
        %v6902 = vshrl.u32 %v6048, 16
        %v6904 = vrot.slane %v6902, 3
        %v6905 = vshll.u32 %v6048, 16
        %v6907 = vrot.slane %v6905, 4
        %v6908 = vor.u32 %v6904, %v6907
        %v6909 = vsel %vm979, %v6900, %v6908
        %v6911 = vshrl.u32 %v6186, 16
        %v6913 = vrot.slane %v6911, 3
        %v6914 = vshll.u32 %v6186, 16
        %v6916 = vrot.slane %v6914, 4
        %v6917 = vor.u32 %v6913, %v6916
        %v6918 = vsel %vm979, %v6917, %v6917
        %v6920 = vshrl.u32 %v6285, 16
        %v6922 = vrot.slane %v6920, 3
        %v6923 = vshll.u32 %v6285, 16
        %v6925 = vrot.slane %v6923, 4
        %v6926 = vor.u32 %v6922, %v6925
        %v6928 = vshrl.u32 %v6287, 16
        %v6930 = vrot.slane %v6928, 3
        %v6931 = vshll.u32 %v6287, 16
        %v6933 = vrot.slane %v6931, 4
        %v6934 = vor.u32 %v6930, %v6933
        %v6935 = vsel %vm979, %v6926, %v6934
        %v6937 = vshrl.u32 %v6049, 16
        %v6939 = vrot.slane %v6937, 3
        %v6940 = vshll.u32 %v6049, 16
        %v6942 = vrot.slane %v6940, 4
        %v6943 = vor.u32 %v6939, %v6942
        %v6945 = vshrl.u32 %v6050, 16
        %v6947 = vrot.slane %v6945, 3
        %v6948 = vshll.u32 %v6050, 16
        %v6950 = vrot.slane %v6948, 4
        %v6951 = vor.u32 %v6947, %v6950
        %v6952 = vsel %vm979, %v6943, %v6951
        %v6954 = vshrl.u32 %v6194, 16
        %v6956 = vrot.slane %v6954, 3
        %v6957 = vshll.u32 %v6194, 16
        %v6959 = vrot.slane %v6957, 4
        %v6960 = vor.u32 %v6956, %v6959
        %v6961 = vsel %vm979, %v6960, %v6960
        %v6963 = vshrl.u32 %v6288, 16
        %v6965 = vrot.slane %v6963, 3
        %v6966 = vshll.u32 %v6288, 16
        %v6968 = vrot.slane %v6966, 4
        %v6969 = vor.u32 %v6965, %v6968
        %v6971 = vshrl.u32 %v6290, 16
        %v6973 = vrot.slane %v6971, 3
        %v6974 = vshll.u32 %v6290, 16
        %v6976 = vrot.slane %v6974, 4
        %v6977 = vor.u32 %v6973, %v6976
        %v6978 = vsel %vm979, %v6969, %v6977
        %v7027 = vld [vmem:[#allocation4] sm:$0xf]
        %v7028 = vld [vmem:[#allocation4 + $0x4] sm:$0xf]
        %v7029 = vld [vmem:[#allocation4 + $0x8] sm:$0xf]
        %v7030 = vld [vmem:[#allocation4 + $0xc] sm:$0xf]
        %v7031 = vld [vmem:[#allocation4 + $0x10] sm:$0xf]
        %v7032 = vld [vmem:[#allocation4 + $0x14] sm:$0xf]
        %v7033 = vld [vmem:[#allocation4 + $0x18] sm:$0xf]
        %v7034 = vld [vmem:[#allocation4 + $0x1c] sm:$0xf]
        %v7035 = vld [vmem:[#allocation4 + $0x20] sm:$0xf]
        %v7036 = vld [vmem:[#allocation4 + $0x24] sm:$0xf]
        %v7037 = vld [vmem:[#allocation4 + $0x28] sm:$0xf]
        %v7038 = vld [vmem:[#allocation4 + $0x2c] sm:$0xf]
        %v7039 = vld [vmem:[#allocation4 + $0x30] sm:$0xf]
        %v7040 = vld [vmem:[#allocation4 + $0x34] sm:$0xf]
        %v7041 = vld [vmem:[#allocation4 + $0x38] sm:$0xf]
        %v7042 = vld [vmem:[#allocation4 + $0x3c] sm:$0xf]
        %v7043 = vld [vmem:[#allocation4 + $0x40] sm:$0xf]
        %v7044 = vld [vmem:[#allocation4 + $0x44] sm:$0xf]
        %v7045 = vld [vmem:[#allocation4 + $0x48] sm:$0xf]
        %v7046 = vld [vmem:[#allocation4 + $0x4c] sm:$0xf]
        %v7047 = vld [vmem:[#allocation4 + $0x50] sm:$0xf]
        %v7048 = vld [vmem:[#allocation4 + $0x54] sm:$0xf]
        %v7049 = vld [vmem:[#allocation4 + $0x58] sm:$0xf]
        %v7050 = vld [vmem:[#allocation4 + $0x5c] sm:$0xf]
        %v7051 = vld [vmem:[#allocation4 + $0x60] sm:$0xf]
        %v7052 = vld [vmem:[#allocation4 + $0x64] sm:$0xf]
        %v7053 = vld [vmem:[#allocation4 + $0x68] sm:$0xf]
        %v7054 = vld [vmem:[#allocation4 + $0x6c] sm:$0xf]
        %v7055 = vld [vmem:[#allocation4 + $0x70] sm:$0xf]
        %v7056 = vld [vmem:[#allocation4 + $0x74] sm:$0xf]
        %v7057 = vld [vmem:[#allocation4 + $0x78] sm:$0xf]
        %v7058 = vld [vmem:[#allocation4 + $0x7c] sm:$0xf]
        %v7059 = vld [vmem:[#allocation4 + $0x80] sm:$0xf]
        %v7060 = vld [vmem:[#allocation4 + $0x84] sm:$0xf]
        %v7061 = vld [vmem:[#allocation4 + $0x88] sm:$0xf]
        %v7062 = vld [vmem:[#allocation4 + $0x8c] sm:$0xf]
        %v7063 = vld [vmem:[#allocation4 + $0x90] sm:$0xf]
        %v7064 = vld [vmem:[#allocation4 + $0x94] sm:$0xf]
        %v7065 = vld [vmem:[#allocation4 + $0x98] sm:$0xf]
        %v7066 = vld [vmem:[#allocation4 + $0x9c] sm:$0xf]
        %v7067 = vld [vmem:[#allocation4 + $0xa0] sm:$0xf]
        %v7068 = vld [vmem:[#allocation4 + $0xa4] sm:$0xf]
        %v7069 = vld [vmem:[#allocation4 + $0xa8] sm:$0xf]
        %v7070 = vld [vmem:[#allocation4 + $0xac] sm:$0xf]
        %v7071 = vld [vmem:[#allocation4 + $0xb0] sm:$0xf]
        %v7072 = vld [vmem:[#allocation4 + $0xb4] sm:$0xf]
        %v7073 = vld [vmem:[#allocation4 + $0xb8] sm:$0xf]
        %v7074 = vld [vmem:[#allocation4 + $0xbc] sm:$0xf]
        %v7075 = vld [vmem:[%s5826] sm:$0x8]
        %v7076 = vld [vmem:[%s5826 + $0x4] sm:$0xf]
        %v7077 = vld [vmem:[%s5826 + $0x8] sm:$0xf]
        %v7078 = vld [vmem:[%s5826 + $0x10] sm:$0x8]
        %v7079 = vld [vmem:[%s5826 + $0x14] sm:$0xf]
        %v7080 = vld [vmem:[%s5826 + $0x18] sm:$0xf]
        %v7081 = vld [vmem:[%s5826 + $0x20] sm:$0x8]
        %v7082 = vld [vmem:[%s5826 + $0x24] sm:$0xf]
        %v7083 = vld [vmem:[%s5826 + $0x28] sm:$0xf]
        %v7084 = vld [vmem:[%s5826 + $0x30] sm:$0x8]
        %v7085 = vld [vmem:[%s5826 + $0x34] sm:$0xf]
        %v7086 = vld [vmem:[%s5826 + $0x38] sm:$0xf]
        %v7087 = vld [vmem:[%s5826 + $0x40] sm:$0x8]
        %v7088 = vld [vmem:[%s5826 + $0x44] sm:$0xf]
        %v7089 = vld [vmem:[%s5826 + $0x48] sm:$0xf]
        %v7090 = vld [vmem:[%s5826 + $0x50] sm:$0x8]
        %v7091 = vld [vmem:[%s5826 + $0x54] sm:$0xf]
        %v7092 = vld [vmem:[%s5826 + $0x58] sm:$0xf]
        %v7093 = vld [vmem:[%s5826 + $0x60] sm:$0x8]
        %v7094 = vld [vmem:[%s5826 + $0x64] sm:$0xf]
        %v7095 = vld [vmem:[%s5826 + $0x68] sm:$0xf]
        %v7096 = vld [vmem:[%s5826 + $0x70] sm:$0x8]
        %v7097 = vld [vmem:[%s5826 + $0x74] sm:$0xf]
        %v7098 = vld [vmem:[%s5826 + $0x78] sm:$0xf]
        %v7099 = vld [vmem:[%s5826 + $0x80] sm:$0x8]
        %v7100 = vld [vmem:[%s5826 + $0x84] sm:$0xf]
        %v7101 = vld [vmem:[%s5826 + $0x88] sm:$0xf]
        %v7102 = vld [vmem:[%s5826 + $0x90] sm:$0x8]
        %v7103 = vld [vmem:[%s5826 + $0x94] sm:$0xf]
        %v7104 = vld [vmem:[%s5826 + $0x98] sm:$0xf]
        %v7105 = vld [vmem:[%s5826 + $0xa0] sm:$0x8]
        %v7106 = vld [vmem:[%s5826 + $0xa4] sm:$0xf]
        %v7107 = vld [vmem:[%s5826 + $0xa8] sm:$0xf]
        %v7108 = vld [vmem:[%s5826 + $0xb0] sm:$0x8]
        %v7109 = vld [vmem:[%s5826 + $0xb4] sm:$0xf]
        %v7110 = vld [vmem:[%s5826 + $0xb8] sm:$0xf]
        %v7111 = vld [vmem:[%s5826 + $0xc0] sm:$0x8]
        %v7112 = vld [vmem:[%s5826 + $0xc4] sm:$0xf]
        %v7113 = vld [vmem:[%s5826 + $0xc8] sm:$0xf]
        %v7114 = vld [vmem:[%s5826 + $0xd0] sm:$0x8]
        %v7115 = vld [vmem:[%s5826 + $0xd4] sm:$0xf]
        %v7116 = vld [vmem:[%s5826 + $0xd8] sm:$0xf]
        %v7117 = vld [vmem:[%s5826 + $0xe0] sm:$0x8]
        %v7118 = vld [vmem:[%s5826 + $0xe4] sm:$0xf]
        %v7119 = vld [vmem:[%s5826 + $0xe8] sm:$0xf]
        %v7120 = vld [vmem:[%s5826 + $0xf0] sm:$0x8]
        %v7121 = vld [vmem:[%s5826 + $0xf4] sm:$0xf]
        %v7122 = vld [vmem:[%s5826 + $0xf8] sm:$0xf]
        %v7123 = vld [vmem:[%s5826 + $0xc] sm:$0x1]
        %v7124 = vld [vmem:[%s5826 + $0x1c] sm:$0x1]
        %v7125 = vld [vmem:[%s5826 + $0x2c] sm:$0x1]
        %v7126 = vld [vmem:[%s5826 + $0x3c] sm:$0x1]
        %v7127 = vld [vmem:[%s5826 + $0x4c] sm:$0x1]
        %v7128 = vld [vmem:[%s5826 + $0x5c] sm:$0x1]
        %v7129 = vld [vmem:[%s5826 + $0x6c] sm:$0x1]
        %v7130 = vld [vmem:[%s5826 + $0x7c] sm:$0x1]
        %v7131 = vld [vmem:[%s5826 + $0x8c] sm:$0x1]
        %v7132 = vld [vmem:[%s5826 + $0x9c] sm:$0x1]
        %v7133 = vld [vmem:[%s5826 + $0xac] sm:$0x1]
        %v7134 = vld [vmem:[%s5826 + $0xbc] sm:$0x1]
        %v7135 = vld [vmem:[%s5826 + $0xcc] sm:$0x1]
        %v7136 = vld [vmem:[%s5826 + $0xdc] sm:$0x1]
        %v7137 = vld [vmem:[%s5826 + $0xec] sm:$0x1]
        %v7138 = vld [vmem:[%s5826 + $0xfc] sm:$0x1]
        %v7187 = vunpack.c.l.b16 %v7075
        %v7188 = vunpack.c.l.b16 %v7076
        %v7189 = vunpack.c.l.b16 %v7077
        %v7190 = vunpack.c.l.b16 %v7078
        %v7191 = vunpack.c.l.b16 %v7079
        %v7192 = vunpack.c.l.b16 %v7080
        %v7193 = vunpack.c.l.b16 %v7081
        %v7194 = vunpack.c.l.b16 %v7082
        %v7195 = vunpack.c.l.b16 %v7083
        %v7196 = vunpack.c.l.b16 %v7084
        %v7197 = vunpack.c.l.b16 %v7085
        %v7198 = vunpack.c.l.b16 %v7086
        %v7199 = vunpack.c.l.b16 %v7087
        %v7200 = vunpack.c.l.b16 %v7088
        %v7201 = vunpack.c.l.b16 %v7089
        %v7202 = vunpack.c.l.b16 %v7090
        %v7203 = vunpack.c.l.b16 %v7091
        %v7204 = vunpack.c.l.b16 %v7092
        %v7205 = vunpack.c.l.b16 %v7093
        %v7206 = vunpack.c.l.b16 %v7094
        %v7207 = vunpack.c.l.b16 %v7095
        %v7208 = vunpack.c.l.b16 %v7096
        %v7209 = vunpack.c.l.b16 %v7097
        %v7210 = vunpack.c.l.b16 %v7098
        %v7211 = vunpack.c.l.b16 %v7099
        %v7212 = vunpack.c.l.b16 %v7100
        %v7213 = vunpack.c.l.b16 %v7101
        %v7214 = vunpack.c.l.b16 %v7102
        %v7215 = vunpack.c.l.b16 %v7103
        %v7216 = vunpack.c.l.b16 %v7104
        %v7217 = vunpack.c.l.b16 %v7105
        %v7218 = vunpack.c.l.b16 %v7106
        %v7219 = vunpack.c.l.b16 %v7107
        %v7220 = vunpack.c.l.b16 %v7108
        %v7221 = vunpack.c.l.b16 %v7109
        %v7222 = vunpack.c.l.b16 %v7110
        %v7223 = vunpack.c.l.b16 %v7111
        %v7224 = vunpack.c.l.b16 %v7112
        %v7225 = vunpack.c.l.b16 %v7113
        %v7226 = vunpack.c.l.b16 %v7114
        %v7227 = vunpack.c.l.b16 %v7115
        %v7228 = vunpack.c.l.b16 %v7116
        %v7229 = vunpack.c.l.b16 %v7117
        %v7230 = vunpack.c.l.b16 %v7118
        %v7231 = vunpack.c.l.b16 %v7119
        %v7232 = vunpack.c.l.b16 %v7120
        %v7233 = vunpack.c.l.b16 %v7121
        %v7234 = vunpack.c.l.b16 %v7122
        %v7235 = vpack.c.b16 %v7188, %v7187
        %v7236 = vpack.c.b16 %v7189, %v7189
        %v7237 = vpack.c.b16 %v7191, %v7190
        %v7238 = vpack.c.b16 %v7192, %v7192
        %v7239 = vpack.c.b16 %v7194, %v7193
        %v7240 = vpack.c.b16 %v7195, %v7195
        %v7241 = vpack.c.b16 %v7197, %v7196
        %v7242 = vpack.c.b16 %v7198, %v7198
        %v7243 = vpack.c.b16 %v7200, %v7199
        %v7244 = vpack.c.b16 %v7201, %v7201
        %v7245 = vpack.c.b16 %v7203, %v7202
        %v7246 = vpack.c.b16 %v7204, %v7204
        %v7247 = vpack.c.b16 %v7206, %v7205
        %v7248 = vpack.c.b16 %v7207, %v7207
        %v7249 = vpack.c.b16 %v7209, %v7208
        %v7250 = vpack.c.b16 %v7210, %v7210
        %v7251 = vpack.c.b16 %v7212, %v7211
        %v7252 = vpack.c.b16 %v7213, %v7213
        %v7253 = vpack.c.b16 %v7215, %v7214
        %v7254 = vpack.c.b16 %v7216, %v7216
        %v7255 = vpack.c.b16 %v7218, %v7217
        %v7256 = vpack.c.b16 %v7219, %v7219
        %v7257 = vpack.c.b16 %v7221, %v7220
        %v7258 = vpack.c.b16 %v7222, %v7222
        %v7259 = vpack.c.b16 %v7224, %v7223
        %v7260 = vpack.c.b16 %v7225, %v7225
        %v7261 = vpack.c.b16 %v7227, %v7226
        %v7262 = vpack.c.b16 %v7228, %v7228
        %v7263 = vpack.c.b16 %v7230, %v7229
        %v7264 = vpack.c.b16 %v7231, %v7231
        %v7265 = vpack.c.b16 %v7233, %v7232
        %v7266 = vpack.c.b16 %v7234, %v7234
        %v7267 = vpack.c.b16 %v7189, %v7188
        %v7268 = vpack.c.b16 %v7192, %v7191
        %v7269 = vpack.c.b16 %v7195, %v7194
        %v7270 = vpack.c.b16 %v7198, %v7197
        %v7271 = vpack.c.b16 %v7201, %v7200
        %v7272 = vpack.c.b16 %v7204, %v7203
        %v7273 = vpack.c.b16 %v7207, %v7206
        %v7274 = vpack.c.b16 %v7210, %v7209
        %v7275 = vpack.c.b16 %v7213, %v7212
        %v7276 = vpack.c.b16 %v7216, %v7215
        %v7277 = vpack.c.b16 %v7219, %v7218
        %v7278 = vpack.c.b16 %v7222, %v7221
        %v7279 = vpack.c.b16 %v7225, %v7224
        %v7280 = vpack.c.b16 %v7228, %v7227
        %v7281 = vpack.c.b16 %v7231, %v7230
        %v7282 = vpack.c.b16 %v7234, %v7233
        %v7284 = vshrl.u32 %v7267, 16
        %v7286 = vrot.slane %v7284, 4
        %v7287 = vshll.u32 %v7267, 16
        %v7289 = vrot.slane %v7287, 5
        %v7290 = vor.u32 %v7286, %v7289
        %v7292 = vshrl.u32 %v7268, 16
        %v7294 = vrot.slane %v7292, 4
        %v7295 = vshll.u32 %v7268, 16
        %v7297 = vrot.slane %v7295, 5
        %v7298 = vor.u32 %v7294, %v7297
        %v7300 = vshrl.u32 %v7269, 16
        %v7302 = vrot.slane %v7300, 4
        %v7303 = vshll.u32 %v7269, 16
        %v7305 = vrot.slane %v7303, 5
        %v7306 = vor.u32 %v7302, %v7305
        %v7308 = vshrl.u32 %v7270, 16
        %v7310 = vrot.slane %v7308, 4
        %v7311 = vshll.u32 %v7270, 16
        %v7313 = vrot.slane %v7311, 5
        %v7314 = vor.u32 %v7310, %v7313
        %v7316 = vshrl.u32 %v7271, 16
        %v7318 = vrot.slane %v7316, 4
        %v7319 = vshll.u32 %v7271, 16
        %v7321 = vrot.slane %v7319, 5
        %v7322 = vor.u32 %v7318, %v7321
        %v7324 = vshrl.u32 %v7272, 16
        %v7326 = vrot.slane %v7324, 4
        %v7327 = vshll.u32 %v7272, 16
        %v7329 = vrot.slane %v7327, 5
        %v7330 = vor.u32 %v7326, %v7329
        %v7332 = vshrl.u32 %v7273, 16
        %v7334 = vrot.slane %v7332, 4
        %v7335 = vshll.u32 %v7273, 16
        %v7337 = vrot.slane %v7335, 5
        %v7338 = vor.u32 %v7334, %v7337
        %v7340 = vshrl.u32 %v7274, 16
        %v7342 = vrot.slane %v7340, 4
        %v7343 = vshll.u32 %v7274, 16
        %v7345 = vrot.slane %v7343, 5
        %v7346 = vor.u32 %v7342, %v7345
        %v7348 = vshrl.u32 %v7275, 16
        %v7350 = vrot.slane %v7348, 4
        %v7351 = vshll.u32 %v7275, 16
        %v7353 = vrot.slane %v7351, 5
        %v7354 = vor.u32 %v7350, %v7353
        %v7356 = vshrl.u32 %v7276, 16
        %v7358 = vrot.slane %v7356, 4
        %v7359 = vshll.u32 %v7276, 16
        %v7361 = vrot.slane %v7359, 5
        %v7362 = vor.u32 %v7358, %v7361
        %v7364 = vshrl.u32 %v7277, 16
        %v7366 = vrot.slane %v7364, 4
        %v7367 = vshll.u32 %v7277, 16
        %v7369 = vrot.slane %v7367, 5
        %v7370 = vor.u32 %v7366, %v7369
        %v7372 = vshrl.u32 %v7278, 16
        %v7374 = vrot.slane %v7372, 4
        %v7375 = vshll.u32 %v7278, 16
        %v7377 = vrot.slane %v7375, 5
        %v7378 = vor.u32 %v7374, %v7377
        %v7380 = vshrl.u32 %v7279, 16
        %v7382 = vrot.slane %v7380, 4
        %v7383 = vshll.u32 %v7279, 16
        %v7385 = vrot.slane %v7383, 5
        %v7386 = vor.u32 %v7382, %v7385
        %v7388 = vshrl.u32 %v7280, 16
        %v7390 = vrot.slane %v7388, 4
        %v7391 = vshll.u32 %v7280, 16
        %v7393 = vrot.slane %v7391, 5
        %v7394 = vor.u32 %v7390, %v7393
        %v7396 = vshrl.u32 %v7281, 16
        %v7398 = vrot.slane %v7396, 4
        %v7399 = vshll.u32 %v7281, 16
        %v7401 = vrot.slane %v7399, 5
        %v7402 = vor.u32 %v7398, %v7401
        %v7404 = vshrl.u32 %v7282, 16
        %v7406 = vrot.slane %v7404, 4
        %v7407 = vshll.u32 %v7282, 16
        %v7409 = vrot.slane %v7407, 5
        %v7410 = vor.u32 %v7406, %v7409
        %v7427 = vunpack.c.l.b16 %v7123
        %v7428 = vunpack.c.l.b16 %v7124
        %v7429 = vunpack.c.l.b16 %v7125
        %v7430 = vunpack.c.l.b16 %v7126
        %v7431 = vunpack.c.l.b16 %v7127
        %v7432 = vunpack.c.l.b16 %v7128
        %v7433 = vunpack.c.l.b16 %v7129
        %v7434 = vunpack.c.l.b16 %v7130
        %v7435 = vunpack.c.l.b16 %v7131
        %v7436 = vunpack.c.l.b16 %v7132
        %v7437 = vunpack.c.l.b16 %v7133
        %v7438 = vunpack.c.l.b16 %v7134
        %v7439 = vunpack.c.l.b16 %v7135
        %v7440 = vunpack.c.l.b16 %v7136
        %v7441 = vunpack.c.l.b16 %v7137
        %v7442 = vunpack.c.l.b16 %v7138
        %v7443 = vpack.c.b16 %v7427, %v7427
        %v7444 = vpack.c.b16 %v7428, %v7428
        %v7445 = vpack.c.b16 %v7429, %v7429
        %v7446 = vpack.c.b16 %v7430, %v7430
        %v7447 = vpack.c.b16 %v7431, %v7431
        %v7448 = vpack.c.b16 %v7432, %v7432
        %v7449 = vpack.c.b16 %v7433, %v7433
        %v7450 = vpack.c.b16 %v7434, %v7434
        %v7451 = vpack.c.b16 %v7435, %v7435
        %v7452 = vpack.c.b16 %v7436, %v7436
        %v7453 = vpack.c.b16 %v7437, %v7437
        %v7454 = vpack.c.b16 %v7438, %v7438
        %v7455 = vpack.c.b16 %v7439, %v7439
        %v7456 = vpack.c.b16 %v7440, %v7440
        %v7457 = vpack.c.b16 %v7441, %v7441
        %v7458 = vpack.c.b16 %v7442, %v7442
        %v7459 = vrot.slane %v7267, 5
        %v7460 = vrot.slane %v7443, 5
        %v7461 = vsel %vm930, %v7459, %v7460
        %v7462 = vrot.slane %v7268, 5
        %v7463 = vrot.slane %v7444, 5
        %v7464 = vsel %vm930, %v7462, %v7463
        %v7465 = vrot.slane %v7269, 5
        %v7466 = vrot.slane %v7445, 5
        %v7467 = vsel %vm930, %v7465, %v7466
        %v7468 = vrot.slane %v7270, 5
        %v7469 = vrot.slane %v7446, 5
        %v7470 = vsel %vm930, %v7468, %v7469
        %v7471 = vrot.slane %v7271, 5
        %v7472 = vrot.slane %v7447, 5
        %v7473 = vsel %vm930, %v7471, %v7472
        %v7474 = vrot.slane %v7272, 5
        %v7475 = vrot.slane %v7448, 5
        %v7476 = vsel %vm930, %v7474, %v7475
        %v7477 = vrot.slane %v7273, 5
        %v7478 = vrot.slane %v7449, 5
        %v7479 = vsel %vm930, %v7477, %v7478
        %v7480 = vrot.slane %v7274, 5
        %v7481 = vrot.slane %v7450, 5
        %v7482 = vsel %vm930, %v7480, %v7481
        %v7483 = vrot.slane %v7275, 5
        %v7484 = vrot.slane %v7451, 5
        %v7485 = vsel %vm930, %v7483, %v7484
        %v7486 = vrot.slane %v7276, 5
        %v7487 = vrot.slane %v7452, 5
        %v7488 = vsel %vm930, %v7486, %v7487
        %v7489 = vrot.slane %v7277, 5
        %v7490 = vrot.slane %v7453, 5
        %v7491 = vsel %vm930, %v7489, %v7490
        %v7492 = vrot.slane %v7278, 5
        %v7493 = vrot.slane %v7454, 5
        %v7494 = vsel %vm930, %v7492, %v7493
        %v7495 = vrot.slane %v7279, 5
        %v7496 = vrot.slane %v7455, 5
        %v7497 = vsel %vm930, %v7495, %v7496
        %v7498 = vrot.slane %v7280, 5
        %v7499 = vrot.slane %v7456, 5
        %v7500 = vsel %vm930, %v7498, %v7499
        %v7501 = vrot.slane %v7281, 5
        %v7502 = vrot.slane %v7457, 5
        %v7503 = vsel %vm930, %v7501, %v7502
        %v7504 = vrot.slane %v7282, 5
        %v7505 = vrot.slane %v7458, 5
        %v7506 = vsel %vm930, %v7504, %v7505
        %v7508 = vshrl.u32 %v7235, 16
        %v7510 = vrot.slane %v7508, 3
        %v7511 = vshll.u32 %v7235, 16
        %v7513 = vrot.slane %v7511, 4
        %v7514 = vor.u32 %v7510, %v7513
        %v7516 = vshrl.u32 %v7236, 16
        %v7518 = vrot.slane %v7516, 3
        %v7519 = vshll.u32 %v7236, 16
        %v7521 = vrot.slane %v7519, 4
        %v7522 = vor.u32 %v7518, %v7521
        %v7523 = vsel %vm979, %v7514, %v7522
        %v7525 = vshrl.u32 %v7290, 16
        %v7527 = vrot.slane %v7525, 3
        %v7528 = vshll.u32 %v7290, 16
        %v7530 = vrot.slane %v7528, 4
        %v7531 = vor.u32 %v7527, %v7530
        %v7532 = vsel %vm979, %v7531, %v7531
        %v7534 = vshrl.u32 %v7459, 16
        %v7536 = vrot.slane %v7534, 3
        %v7537 = vshll.u32 %v7459, 16
        %v7539 = vrot.slane %v7537, 4
        %v7540 = vor.u32 %v7536, %v7539
        %v7542 = vshrl.u32 %v7461, 16
        %v7544 = vrot.slane %v7542, 3
        %v7545 = vshll.u32 %v7461, 16
        %v7547 = vrot.slane %v7545, 4
        %v7548 = vor.u32 %v7544, %v7547
        %v7549 = vsel %vm979, %v7540, %v7548
        %v7551 = vshrl.u32 %v7237, 16
        %v7553 = vrot.slane %v7551, 3
        %v7554 = vshll.u32 %v7237, 16
        %v7556 = vrot.slane %v7554, 4
        %v7557 = vor.u32 %v7553, %v7556
        %v7559 = vshrl.u32 %v7238, 16
        %v7561 = vrot.slane %v7559, 3
        %v7562 = vshll.u32 %v7238, 16
        %v7564 = vrot.slane %v7562, 4
        %v7565 = vor.u32 %v7561, %v7564
        %v7566 = vsel %vm979, %v7557, %v7565
        %v7568 = vshrl.u32 %v7298, 16
        %v7570 = vrot.slane %v7568, 3
        %v7571 = vshll.u32 %v7298, 16
        %v7573 = vrot.slane %v7571, 4
        %v7574 = vor.u32 %v7570, %v7573
        %v7575 = vsel %vm979, %v7574, %v7574
        %v7577 = vshrl.u32 %v7462, 16
        %v7579 = vrot.slane %v7577, 3
        %v7580 = vshll.u32 %v7462, 16
        %v7582 = vrot.slane %v7580, 4
        %v7583 = vor.u32 %v7579, %v7582
        %v7585 = vshrl.u32 %v7464, 16
        %v7587 = vrot.slane %v7585, 3
        %v7588 = vshll.u32 %v7464, 16
        %v7590 = vrot.slane %v7588, 4
        %v7591 = vor.u32 %v7587, %v7590
        %v7592 = vsel %vm979, %v7583, %v7591
        %v7594 = vshrl.u32 %v7239, 16
        %v7596 = vrot.slane %v7594, 3
        %v7597 = vshll.u32 %v7239, 16
        %v7599 = vrot.slane %v7597, 4
        %v7600 = vor.u32 %v7596, %v7599
        %v7602 = vshrl.u32 %v7240, 16
        %v7604 = vrot.slane %v7602, 3
        %v7605 = vshll.u32 %v7240, 16
        %v7607 = vrot.slane %v7605, 4
        %v7608 = vor.u32 %v7604, %v7607
        %v7609 = vsel %vm979, %v7600, %v7608
        %v7611 = vshrl.u32 %v7306, 16
        %v7613 = vrot.slane %v7611, 3
        %v7614 = vshll.u32 %v7306, 16
        %v7616 = vrot.slane %v7614, 4
        %v7617 = vor.u32 %v7613, %v7616
        %v7618 = vsel %vm979, %v7617, %v7617
        %v7620 = vshrl.u32 %v7465, 16
        %v7622 = vrot.slane %v7620, 3
        %v7623 = vshll.u32 %v7465, 16
        %v7625 = vrot.slane %v7623, 4
        %v7626 = vor.u32 %v7622, %v7625
        %v7628 = vshrl.u32 %v7467, 16
        %v7630 = vrot.slane %v7628, 3
        %v7631 = vshll.u32 %v7467, 16
        %v7633 = vrot.slane %v7631, 4
        %v7634 = vor.u32 %v7630, %v7633
        %v7635 = vsel %vm979, %v7626, %v7634
        %v7637 = vshrl.u32 %v7241, 16
        %v7639 = vrot.slane %v7637, 3
        %v7640 = vshll.u32 %v7241, 16
        %v7642 = vrot.slane %v7640, 4
        %v7643 = vor.u32 %v7639, %v7642
        %v7645 = vshrl.u32 %v7242, 16
        %v7647 = vrot.slane %v7645, 3
        %v7648 = vshll.u32 %v7242, 16
        %v7650 = vrot.slane %v7648, 4
        %v7651 = vor.u32 %v7647, %v7650
        %v7652 = vsel %vm979, %v7643, %v7651
        %v7654 = vshrl.u32 %v7314, 16
        %v7656 = vrot.slane %v7654, 3
        %v7657 = vshll.u32 %v7314, 16
        %v7659 = vrot.slane %v7657, 4
        %v7660 = vor.u32 %v7656, %v7659
        %v7661 = vsel %vm979, %v7660, %v7660
        %v7663 = vshrl.u32 %v7468, 16
        %v7665 = vrot.slane %v7663, 3
        %v7666 = vshll.u32 %v7468, 16
        %v7668 = vrot.slane %v7666, 4
        %v7669 = vor.u32 %v7665, %v7668
        %v7671 = vshrl.u32 %v7470, 16
        %v7673 = vrot.slane %v7671, 3
        %v7674 = vshll.u32 %v7470, 16
        %v7676 = vrot.slane %v7674, 4
        %v7677 = vor.u32 %v7673, %v7676
        %v7678 = vsel %vm979, %v7669, %v7677
        %v7680 = vshrl.u32 %v7243, 16
        %v7682 = vrot.slane %v7680, 3
        %v7683 = vshll.u32 %v7243, 16
        %v7685 = vrot.slane %v7683, 4
        %v7686 = vor.u32 %v7682, %v7685
        %v7688 = vshrl.u32 %v7244, 16
        %v7690 = vrot.slane %v7688, 3
        %v7691 = vshll.u32 %v7244, 16
        %v7693 = vrot.slane %v7691, 4
        %v7694 = vor.u32 %v7690, %v7693
        %v7695 = vsel %vm979, %v7686, %v7694
        %v7697 = vshrl.u32 %v7322, 16
        %v7699 = vrot.slane %v7697, 3
        %v7700 = vshll.u32 %v7322, 16
        %v7702 = vrot.slane %v7700, 4
        %v7703 = vor.u32 %v7699, %v7702
        %v7704 = vsel %vm979, %v7703, %v7703
        %v7706 = vshrl.u32 %v7471, 16
        %v7708 = vrot.slane %v7706, 3
        %v7709 = vshll.u32 %v7471, 16
        %v7711 = vrot.slane %v7709, 4
        %v7712 = vor.u32 %v7708, %v7711
        %v7714 = vshrl.u32 %v7473, 16
        %v7716 = vrot.slane %v7714, 3
        %v7717 = vshll.u32 %v7473, 16
        %v7719 = vrot.slane %v7717, 4
        %v7720 = vor.u32 %v7716, %v7719
        %v7721 = vsel %vm979, %v7712, %v7720
        %v7723 = vshrl.u32 %v7245, 16
        %v7725 = vrot.slane %v7723, 3
        %v7726 = vshll.u32 %v7245, 16
        %v7728 = vrot.slane %v7726, 4
        %v7729 = vor.u32 %v7725, %v7728
        %v7731 = vshrl.u32 %v7246, 16
        %v7733 = vrot.slane %v7731, 3
        %v7734 = vshll.u32 %v7246, 16
        %v7736 = vrot.slane %v7734, 4
        %v7737 = vor.u32 %v7733, %v7736
        %v7738 = vsel %vm979, %v7729, %v7737
        %v7740 = vshrl.u32 %v7330, 16
        %v7742 = vrot.slane %v7740, 3
        %v7743 = vshll.u32 %v7330, 16
        %v7745 = vrot.slane %v7743, 4
        %v7746 = vor.u32 %v7742, %v7745
        %v7747 = vsel %vm979, %v7746, %v7746
        %v7749 = vshrl.u32 %v7474, 16
        %v7751 = vrot.slane %v7749, 3
        %v7752 = vshll.u32 %v7474, 16
        %v7754 = vrot.slane %v7752, 4
        %v7755 = vor.u32 %v7751, %v7754
        %v7757 = vshrl.u32 %v7476, 16
        %v7759 = vrot.slane %v7757, 3
        %v7760 = vshll.u32 %v7476, 16
        %v7762 = vrot.slane %v7760, 4
        %v7763 = vor.u32 %v7759, %v7762
        %v7764 = vsel %vm979, %v7755, %v7763
        %v7766 = vshrl.u32 %v7247, 16
        %v7768 = vrot.slane %v7766, 3
        %v7769 = vshll.u32 %v7247, 16
        %v7771 = vrot.slane %v7769, 4
        %v7772 = vor.u32 %v7768, %v7771
        %v7774 = vshrl.u32 %v7248, 16
        %v7776 = vrot.slane %v7774, 3
        %v7777 = vshll.u32 %v7248, 16
        %v7779 = vrot.slane %v7777, 4
        %v7780 = vor.u32 %v7776, %v7779
        %v7781 = vsel %vm979, %v7772, %v7780
        %v7783 = vshrl.u32 %v7338, 16
        %v7785 = vrot.slane %v7783, 3
        %v7786 = vshll.u32 %v7338, 16
        %v7788 = vrot.slane %v7786, 4
        %v7789 = vor.u32 %v7785, %v7788
        %v7790 = vsel %vm979, %v7789, %v7789
        %v7792 = vshrl.u32 %v7477, 16
        %v7794 = vrot.slane %v7792, 3
        %v7795 = vshll.u32 %v7477, 16
        %v7797 = vrot.slane %v7795, 4
        %v7798 = vor.u32 %v7794, %v7797
        %v7800 = vshrl.u32 %v7479, 16
        %v7802 = vrot.slane %v7800, 3
        %v7803 = vshll.u32 %v7479, 16
        %v7805 = vrot.slane %v7803, 4
        %v7806 = vor.u32 %v7802, %v7805
        %v7807 = vsel %vm979, %v7798, %v7806
        %v7809 = vshrl.u32 %v7249, 16
        %v7811 = vrot.slane %v7809, 3
        %v7812 = vshll.u32 %v7249, 16
        %v7814 = vrot.slane %v7812, 4
        %v7815 = vor.u32 %v7811, %v7814
        %v7817 = vshrl.u32 %v7250, 16
        %v7819 = vrot.slane %v7817, 3
        %v7820 = vshll.u32 %v7250, 16
        %v7822 = vrot.slane %v7820, 4
        %v7823 = vor.u32 %v7819, %v7822
        %v7824 = vsel %vm979, %v7815, %v7823
        %v7826 = vshrl.u32 %v7346, 16
        %v7828 = vrot.slane %v7826, 3
        %v7829 = vshll.u32 %v7346, 16
        %v7831 = vrot.slane %v7829, 4
        %v7832 = vor.u32 %v7828, %v7831
        %v7833 = vsel %vm979, %v7832, %v7832
        %v7835 = vshrl.u32 %v7480, 16
        %v7837 = vrot.slane %v7835, 3
        %v7838 = vshll.u32 %v7480, 16
        %v7840 = vrot.slane %v7838, 4
        %v7841 = vor.u32 %v7837, %v7840
        %v7843 = vshrl.u32 %v7482, 16
        %v7845 = vrot.slane %v7843, 3
        %v7846 = vshll.u32 %v7482, 16
        %v7848 = vrot.slane %v7846, 4
        %v7849 = vor.u32 %v7845, %v7848
        %v7850 = vsel %vm979, %v7841, %v7849
        %v7852 = vshrl.u32 %v7251, 16
        %v7854 = vrot.slane %v7852, 3
        %v7855 = vshll.u32 %v7251, 16
        %v7857 = vrot.slane %v7855, 4
        %v7858 = vor.u32 %v7854, %v7857
        %v7860 = vshrl.u32 %v7252, 16
        %v7862 = vrot.slane %v7860, 3
        %v7863 = vshll.u32 %v7252, 16
        %v7865 = vrot.slane %v7863, 4
        %v7866 = vor.u32 %v7862, %v7865
        %v7867 = vsel %vm979, %v7858, %v7866
        %v7869 = vshrl.u32 %v7354, 16
        %v7871 = vrot.slane %v7869, 3
        %v7872 = vshll.u32 %v7354, 16
        %v7874 = vrot.slane %v7872, 4
        %v7875 = vor.u32 %v7871, %v7874
        %v7876 = vsel %vm979, %v7875, %v7875
        %v7878 = vshrl.u32 %v7483, 16
        %v7880 = vrot.slane %v7878, 3
        %v7881 = vshll.u32 %v7483, 16
        %v7883 = vrot.slane %v7881, 4
        %v7884 = vor.u32 %v7880, %v7883
        %v7886 = vshrl.u32 %v7485, 16
        %v7888 = vrot.slane %v7886, 3
        %v7889 = vshll.u32 %v7485, 16
        %v7891 = vrot.slane %v7889, 4
        %v7892 = vor.u32 %v7888, %v7891
        %v7893 = vsel %vm979, %v7884, %v7892
        %v7895 = vshrl.u32 %v7253, 16
        %v7897 = vrot.slane %v7895, 3
        %v7898 = vshll.u32 %v7253, 16
        %v7900 = vrot.slane %v7898, 4
        %v7901 = vor.u32 %v7897, %v7900
        %v7903 = vshrl.u32 %v7254, 16
        %v7905 = vrot.slane %v7903, 3
        %v7906 = vshll.u32 %v7254, 16
        %v7908 = vrot.slane %v7906, 4
        %v7909 = vor.u32 %v7905, %v7908
        %v7910 = vsel %vm979, %v7901, %v7909
        %v7912 = vshrl.u32 %v7362, 16
        %v7914 = vrot.slane %v7912, 3
        %v7915 = vshll.u32 %v7362, 16
        %v7917 = vrot.slane %v7915, 4
        %v7918 = vor.u32 %v7914, %v7917
        %v7919 = vsel %vm979, %v7918, %v7918
        %v7921 = vshrl.u32 %v7486, 16
        %v7923 = vrot.slane %v7921, 3
        %v7924 = vshll.u32 %v7486, 16
        %v7926 = vrot.slane %v7924, 4
        %v7927 = vor.u32 %v7923, %v7926
        %v7929 = vshrl.u32 %v7488, 16
        %v7931 = vrot.slane %v7929, 3
        %v7932 = vshll.u32 %v7488, 16
        %v7934 = vrot.slane %v7932, 4
        %v7935 = vor.u32 %v7931, %v7934
        %v7936 = vsel %vm979, %v7927, %v7935
        %v7938 = vshrl.u32 %v7255, 16
        %v7940 = vrot.slane %v7938, 3
        %v7941 = vshll.u32 %v7255, 16
        %v7943 = vrot.slane %v7941, 4
        %v7944 = vor.u32 %v7940, %v7943
        %v7946 = vshrl.u32 %v7256, 16
        %v7948 = vrot.slane %v7946, 3
        %v7949 = vshll.u32 %v7256, 16
        %v7951 = vrot.slane %v7949, 4
        %v7952 = vor.u32 %v7948, %v7951
        %v7953 = vsel %vm979, %v7944, %v7952
        %v7955 = vshrl.u32 %v7370, 16
        %v7957 = vrot.slane %v7955, 3
        %v7958 = vshll.u32 %v7370, 16
        %v7960 = vrot.slane %v7958, 4
        %v7961 = vor.u32 %v7957, %v7960
        %v7962 = vsel %vm979, %v7961, %v7961
        %v7964 = vshrl.u32 %v7489, 16
        %v7966 = vrot.slane %v7964, 3
        %v7967 = vshll.u32 %v7489, 16
        %v7969 = vrot.slane %v7967, 4
        %v7970 = vor.u32 %v7966, %v7969
        %v7972 = vshrl.u32 %v7491, 16
        %v7974 = vrot.slane %v7972, 3
        %v7975 = vshll.u32 %v7491, 16
        %v7977 = vrot.slane %v7975, 4
        %v7978 = vor.u32 %v7974, %v7977
        %v7979 = vsel %vm979, %v7970, %v7978
        %v7981 = vshrl.u32 %v7257, 16
        %v7983 = vrot.slane %v7981, 3
        %v7984 = vshll.u32 %v7257, 16
        %v7986 = vrot.slane %v7984, 4
        %v7987 = vor.u32 %v7983, %v7986
        %v7989 = vshrl.u32 %v7258, 16
        %v7991 = vrot.slane %v7989, 3
        %v7992 = vshll.u32 %v7258, 16
        %v7994 = vrot.slane %v7992, 4
        %v7995 = vor.u32 %v7991, %v7994
        %v7996 = vsel %vm979, %v7987, %v7995
        %v7998 = vshrl.u32 %v7378, 16
        %v8000 = vrot.slane %v7998, 3
        %v8001 = vshll.u32 %v7378, 16
        %v8003 = vrot.slane %v8001, 4
        %v8004 = vor.u32 %v8000, %v8003
        %v8005 = vsel %vm979, %v8004, %v8004
        %v8007 = vshrl.u32 %v7492, 16
        %v8009 = vrot.slane %v8007, 3
        %v8010 = vshll.u32 %v7492, 16
        %v8012 = vrot.slane %v8010, 4
        %v8013 = vor.u32 %v8009, %v8012
        %v8015 = vshrl.u32 %v7494, 16
        %v8017 = vrot.slane %v8015, 3
        %v8018 = vshll.u32 %v7494, 16
        %v8020 = vrot.slane %v8018, 4
        %v8021 = vor.u32 %v8017, %v8020
        %v8022 = vsel %vm979, %v8013, %v8021
        %v8024 = vshrl.u32 %v7259, 16
        %v8026 = vrot.slane %v8024, 3
        %v8027 = vshll.u32 %v7259, 16
        %v8029 = vrot.slane %v8027, 4
        %v8030 = vor.u32 %v8026, %v8029
        %v8032 = vshrl.u32 %v7260, 16
        %v8034 = vrot.slane %v8032, 3
        %v8035 = vshll.u32 %v7260, 16
        %v8037 = vrot.slane %v8035, 4
        %v8038 = vor.u32 %v8034, %v8037
        %v8039 = vsel %vm979, %v8030, %v8038
        %v8041 = vshrl.u32 %v7386, 16
        %v8043 = vrot.slane %v8041, 3
        %v8044 = vshll.u32 %v7386, 16
        %v8046 = vrot.slane %v8044, 4
        %v8047 = vor.u32 %v8043, %v8046
        %v8048 = vsel %vm979, %v8047, %v8047
        %v8050 = vshrl.u32 %v7495, 16
        %v8052 = vrot.slane %v8050, 3
        %v8053 = vshll.u32 %v7495, 16
        %v8055 = vrot.slane %v8053, 4
        %v8056 = vor.u32 %v8052, %v8055
        %v8058 = vshrl.u32 %v7497, 16
        %v8060 = vrot.slane %v8058, 3
        %v8061 = vshll.u32 %v7497, 16
        %v8063 = vrot.slane %v8061, 4
        %v8064 = vor.u32 %v8060, %v8063
        %v8065 = vsel %vm979, %v8056, %v8064
        %v8067 = vshrl.u32 %v7261, 16
        %v8069 = vrot.slane %v8067, 3
        %v8070 = vshll.u32 %v7261, 16
        %v8072 = vrot.slane %v8070, 4
        %v8073 = vor.u32 %v8069, %v8072
        %v8075 = vshrl.u32 %v7262, 16
        %v8077 = vrot.slane %v8075, 3
        %v8078 = vshll.u32 %v7262, 16
        %v8080 = vrot.slane %v8078, 4
        %v8081 = vor.u32 %v8077, %v8080
        %v8082 = vsel %vm979, %v8073, %v8081
        %v8084 = vshrl.u32 %v7394, 16
        %v8086 = vrot.slane %v8084, 3
        %v8087 = vshll.u32 %v7394, 16
        %v8089 = vrot.slane %v8087, 4
        %v8090 = vor.u32 %v8086, %v8089
        %v8091 = vsel %vm979, %v8090, %v8090
        %v8093 = vshrl.u32 %v7498, 16
        %v8095 = vrot.slane %v8093, 3
        %v8096 = vshll.u32 %v7498, 16
        %v8098 = vrot.slane %v8096, 4
        %v8099 = vor.u32 %v8095, %v8098
        %v8101 = vshrl.u32 %v7500, 16
        %v8103 = vrot.slane %v8101, 3
        %v8104 = vshll.u32 %v7500, 16
        %v8106 = vrot.slane %v8104, 4
        %v8107 = vor.u32 %v8103, %v8106
        %v8108 = vsel %vm979, %v8099, %v8107
        %v8110 = vshrl.u32 %v7263, 16
        %v8112 = vrot.slane %v8110, 3
        %v8113 = vshll.u32 %v7263, 16
        %v8115 = vrot.slane %v8113, 4
        %v8116 = vor.u32 %v8112, %v8115
        %v8118 = vshrl.u32 %v7264, 16
        %v8120 = vrot.slane %v8118, 3
        %v8121 = vshll.u32 %v7264, 16
        %v8123 = vrot.slane %v8121, 4
        %v8124 = vor.u32 %v8120, %v8123
        %v8125 = vsel %vm979, %v8116, %v8124
        %v8127 = vshrl.u32 %v7402, 16
        %v8129 = vrot.slane %v8127, 3
        %v8130 = vshll.u32 %v7402, 16
        %v8132 = vrot.slane %v8130, 4
        %v8133 = vor.u32 %v8129, %v8132
        %v8134 = vsel %vm979, %v8133, %v8133
        %v8136 = vshrl.u32 %v7501, 16
        %v8138 = vrot.slane %v8136, 3
        %v8139 = vshll.u32 %v7501, 16
        %v8141 = vrot.slane %v8139, 4
        %v8142 = vor.u32 %v8138, %v8141
        %v8144 = vshrl.u32 %v7503, 16
        %v8146 = vrot.slane %v8144, 3
        %v8147 = vshll.u32 %v7503, 16
        %v8149 = vrot.slane %v8147, 4
        %v8150 = vor.u32 %v8146, %v8149
        %v8151 = vsel %vm979, %v8142, %v8150
        %v8153 = vshrl.u32 %v7265, 16
        %v8155 = vrot.slane %v8153, 3
        %v8156 = vshll.u32 %v7265, 16
        %v8158 = vrot.slane %v8156, 4
        %v8159 = vor.u32 %v8155, %v8158
        %v8161 = vshrl.u32 %v7266, 16
        %v8163 = vrot.slane %v8161, 3
        %v8164 = vshll.u32 %v7266, 16
        %v8166 = vrot.slane %v8164, 4
        %v8167 = vor.u32 %v8163, %v8166
        %v8168 = vsel %vm979, %v8159, %v8167
        %v8170 = vshrl.u32 %v7410, 16
        %v8172 = vrot.slane %v8170, 3
        %v8173 = vshll.u32 %v7410, 16
        %v8175 = vrot.slane %v8173, 4
        %v8176 = vor.u32 %v8172, %v8175
        %v8177 = vsel %vm979, %v8176, %v8176
        %v8179 = vshrl.u32 %v7504, 16
        %v8181 = vrot.slane %v8179, 3
        %v8182 = vshll.u32 %v7504, 16
        %v8184 = vrot.slane %v8182, 4
        %v8185 = vor.u32 %v8181, %v8184
        %v8187 = vshrl.u32 %v7506, 16
        %v8189 = vrot.slane %v8187, 3
        %v8190 = vshll.u32 %v7506, 16
        %v8192 = vrot.slane %v8190, 4
        %v8193 = vor.u32 %v8189, %v8192
        %v8194 = vsel %vm979, %v8185, %v8193
        %v8243 = vld [vmem:[#allocation4 + $0xc0] sm:$0xf]
        %v8244 = vld [vmem:[#allocation4 + $0xc4] sm:$0xf]
        %v8245 = vld [vmem:[#allocation4 + $0xc8] sm:$0xf]
        %v8246 = vld [vmem:[#allocation4 + $0xcc] sm:$0xf]
        %v8247 = vld [vmem:[#allocation4 + $0xd0] sm:$0xf]
        %v8248 = vld [vmem:[#allocation4 + $0xd4] sm:$0xf]
        %v8249 = vld [vmem:[#allocation4 + $0xd8] sm:$0xf]
        %v8250 = vld [vmem:[#allocation4 + $0xdc] sm:$0xf]
        %v8251 = vld [vmem:[#allocation4 + $0xe0] sm:$0xf]
        %v8252 = vld [vmem:[#allocation4 + $0xe4] sm:$0xf]
        %v8253 = vld [vmem:[#allocation4 + $0xe8] sm:$0xf]
        %v8254 = vld [vmem:[#allocation4 + $0xec] sm:$0xf]
        %v8255 = vld [vmem:[#allocation4 + $0xf0] sm:$0xf]
        %v8256 = vld [vmem:[#allocation4 + $0xf4] sm:$0xf]
        %v8257 = vld [vmem:[#allocation4 + $0xf8] sm:$0xf]
        %v8258 = vld [vmem:[#allocation4 + $0xfc] sm:$0xf]
        %v8259 = vld [vmem:[#allocation4 + $0x100] sm:$0xf]
        %v8260 = vld [vmem:[#allocation4 + $0x104] sm:$0xf]
        %v8261 = vld [vmem:[#allocation4 + $0x108] sm:$0xf]
        %v8262 = vld [vmem:[#allocation4 + $0x10c] sm:$0xf]
        %v8263 = vld [vmem:[#allocation4 + $0x110] sm:$0xf]
        %v8264 = vld [vmem:[#allocation4 + $0x114] sm:$0xf]
        %v8265 = vld [vmem:[#allocation4 + $0x118] sm:$0xf]
        %v8266 = vld [vmem:[#allocation4 + $0x11c] sm:$0xf]
        %v8267 = vld [vmem:[#allocation4 + $0x120] sm:$0xf]
        %v8268 = vld [vmem:[#allocation4 + $0x124] sm:$0xf]
        %v8269 = vld [vmem:[#allocation4 + $0x128] sm:$0xf]
        %v8270 = vld [vmem:[#allocation4 + $0x12c] sm:$0xf]
        %v8271 = vld [vmem:[#allocation4 + $0x130] sm:$0xf]
        %v8272 = vld [vmem:[#allocation4 + $0x134] sm:$0xf]
        %v8273 = vld [vmem:[#allocation4 + $0x138] sm:$0xf]
        %v8274 = vld [vmem:[#allocation4 + $0x13c] sm:$0xf]
        %v8275 = vld [vmem:[#allocation4 + $0x140] sm:$0xf]
        %v8276 = vld [vmem:[#allocation4 + $0x144] sm:$0xf]
        %v8277 = vld [vmem:[#allocation4 + $0x148] sm:$0xf]
        %v8278 = vld [vmem:[#allocation4 + $0x14c] sm:$0xf]
        %v8279 = vld [vmem:[#allocation4 + $0x150] sm:$0xf]
        %v8280 = vld [vmem:[#allocation4 + $0x154] sm:$0xf]
        %v8281 = vld [vmem:[#allocation4 + $0x158] sm:$0xf]
        %v8282 = vld [vmem:[#allocation4 + $0x15c] sm:$0xf]
        %v8283 = vld [vmem:[#allocation4 + $0x160] sm:$0xf]
        %v8284 = vld [vmem:[#allocation4 + $0x164] sm:$0xf]
        %v8285 = vld [vmem:[#allocation4 + $0x168] sm:$0xf]
        %v8286 = vld [vmem:[#allocation4 + $0x16c] sm:$0xf]
        %v8287 = vld [vmem:[#allocation4 + $0x170] sm:$0xf]
        %v8288 = vld [vmem:[#allocation4 + $0x174] sm:$0xf]
        %v8289 = vld [vmem:[#allocation4 + $0x178] sm:$0xf]
        %v8290 = vld [vmem:[#allocation4 + $0x17c] sm:$0xf]
        %v8339 = vunpack.c.l.b16 %v8243
        %v8340 = vunpack.c.l.b16 %v8244
        %v8341 = vunpack.c.l.b16 %v8245
        %v8342 = vunpack.c.l.b16 %v8246
        %v8343 = vunpack.c.l.b16 %v8247
        %v8344 = vunpack.c.l.b16 %v8248
        %v8345 = vunpack.c.l.b16 %v8249
        %v8346 = vunpack.c.l.b16 %v8250
        %v8347 = vunpack.c.l.b16 %v8251
        %v8348 = vunpack.c.l.b16 %v8252
        %v8349 = vunpack.c.l.b16 %v8253
        %v8350 = vunpack.c.l.b16 %v8254
        %v8351 = vunpack.c.l.b16 %v8255
        %v8352 = vunpack.c.l.b16 %v8256
        %v8353 = vunpack.c.l.b16 %v8257
        %v8354 = vunpack.c.l.b16 %v8258
        %v8355 = vunpack.c.l.b16 %v8259
        %v8356 = vunpack.c.l.b16 %v8260
        %v8357 = vunpack.c.l.b16 %v8261
        %v8358 = vunpack.c.l.b16 %v8262
        %v8359 = vunpack.c.l.b16 %v8263
        %v8360 = vunpack.c.l.b16 %v8264
        %v8361 = vunpack.c.l.b16 %v8265
        %v8362 = vunpack.c.l.b16 %v8266
        %v8363 = vunpack.c.l.b16 %v8267
        %v8364 = vunpack.c.l.b16 %v8268
        %v8365 = vunpack.c.l.b16 %v8269
        %v8366 = vunpack.c.l.b16 %v8270
        %v8367 = vunpack.c.l.b16 %v8271
        %v8368 = vunpack.c.l.b16 %v8272
        %v8369 = vunpack.c.l.b16 %v8273
        %v8370 = vunpack.c.l.b16 %v8274
        %v8371 = vunpack.c.l.b16 %v8275
        %v8372 = vunpack.c.l.b16 %v8276
        %v8373 = vunpack.c.l.b16 %v8277
        %v8374 = vunpack.c.l.b16 %v8278
        %v8375 = vunpack.c.l.b16 %v8279
        %v8376 = vunpack.c.l.b16 %v8280
        %v8377 = vunpack.c.l.b16 %v8281
        %v8378 = vunpack.c.l.b16 %v8282
        %v8379 = vunpack.c.l.b16 %v8283
        %v8380 = vunpack.c.l.b16 %v8284
        %v8381 = vunpack.c.l.b16 %v8285
        %v8382 = vunpack.c.l.b16 %v8286
        %v8383 = vunpack.c.l.b16 %v8287
        %v8384 = vunpack.c.l.b16 %v8288
        %v8385 = vunpack.c.l.b16 %v8289
        %v8386 = vunpack.c.l.b16 %v8290
        %v8387 = vpack.c.b16 %v8340, %v8339
        %v8388 = vpack.c.b16 %v8342, %v8341
        %v8389 = vpack.c.b16 %v8344, %v8343
        %v8390 = vpack.c.b16 %v8346, %v8345
        %v8391 = vpack.c.b16 %v8348, %v8347
        %v8392 = vpack.c.b16 %v8350, %v8349
        %v8393 = vpack.c.b16 %v8352, %v8351
        %v8394 = vpack.c.b16 %v8354, %v8353
        %v8395 = vpack.c.b16 %v8356, %v8355
        %v8396 = vpack.c.b16 %v8358, %v8357
        %v8397 = vpack.c.b16 %v8360, %v8359
        %v8398 = vpack.c.b16 %v8362, %v8361
        %v8399 = vpack.c.b16 %v8364, %v8363
        %v8400 = vpack.c.b16 %v8366, %v8365
        %v8401 = vpack.c.b16 %v8368, %v8367
        %v8402 = vpack.c.b16 %v8370, %v8369
        %v8403 = vpack.c.b16 %v8372, %v8371
        %v8404 = vpack.c.b16 %v8374, %v8373
        %v8405 = vpack.c.b16 %v8376, %v8375
        %v8406 = vpack.c.b16 %v8378, %v8377
        %v8407 = vpack.c.b16 %v8380, %v8379
        %v8408 = vpack.c.b16 %v8382, %v8381
        %v8409 = vpack.c.b16 %v8384, %v8383
        %v8410 = vpack.c.b16 %v8386, %v8385
        %8435 = vmatprep.subr.bf16.mxu0 0
        %8436 = vmatpush1.bf16.msra.mxu0 %v8394
        %8437 = vmatprep.subr.bf16.mxu0 0
        %8438 = vmatpush1.bf16.msra.mxu0 %v8393
        %8439 = vmatprep.subr.bf16.mxu0 0
        %8440 = vmatpush1.bf16.msra.mxu0 %v8392
        %8441 = vmatprep.subr.bf16.mxu0 0
        %8442 = vmatpush1.bf16.msra.mxu0 %v8391
        %8443 = vmatprep.subr.bf16.mxu0 0
        %8444 = vmatpush1.bf16.msra.mxu0 %v8390
        %8445 = vmatprep.subr.bf16.mxu0 0
        %8446 = vmatpush1.bf16.msra.mxu0 %v8389
        %8447 = vmatprep.subr.bf16.mxu0 0
        %8448 = vmatpush1.bf16.msra.mxu0 %v8388
        %8449 = vmatprep.subr.bf16.mxu0 0
        %8450 = vmatpush1.bf16.msra.mxu0 %v8387
        %8451 = vmatprep.subr.bf16.mxu0 0
        %8452 = vmatpush2.bf16.msra.mxu0 %v8402
        %8453 = vmatprep.subr.bf16.mxu0 0
        %8454 = vmatpush2.bf16.msra.mxu0 %v8401
        %8455 = vmatprep.subr.bf16.mxu0 0
        %8456 = vmatpush2.bf16.msra.mxu0 %v8400
        %8457 = vmatprep.subr.bf16.mxu0 0
        %8458 = vmatpush2.bf16.msra.mxu0 %v8399
        %8459 = vmatprep.subr.bf16.mxu0 0
        %8460 = vmatpush2.bf16.msra.mxu0 %v8398
        %8461 = vmatprep.subr.bf16.mxu0 0
        %8462 = vmatpush2.bf16.msra.mxu0 %v8397
        %8463 = vmatprep.subr.bf16.mxu0 0
        %8464 = vmatpush2.bf16.msra.mxu0 %v8396
        %8465 = vmatprep.subr.bf16.mxu0 0
        %8466 = vmatpush2.bf16.msra.mxu0 %v8395
        %8467 = vmatprep.mubr.bf16.mxu0 %v7532
        %8468 = vmatmul.mubr.bf16.gmra.mxu0 %v7523
        %v8469 = vpop.f32.mrf.mxu0
        %v8470 = vadd.f32 0.0, %v8469
        %v8471 = vpop.f32.mrf.mxu0
        %v8472 = vpop.f32.mrf.mxu0
        %v8473 = vadd.f32 0.0, %v8472
        %v8474 = vpop.f32.mrf.mxu0
        %8475 = vmatprep.mubr.bf16.mxu0 %v7575
        %8476 = vmatmul.mubr.bf16.gmra.mxu0 %v7566
        %v8477 = vpop.f32.mrf.mxu0
        %v8478 = vadd.f32 0.0, %v8477
        %v8479 = vpop.f32.mrf.mxu0
        %v8480 = vpop.f32.mrf.mxu0
        %v8481 = vadd.f32 0.0, %v8480
        %v8482 = vpop.f32.mrf.mxu0
        %8483 = vmatprep.mubr.bf16.mxu0 %v7618
        %8484 = vmatmul.mubr.bf16.gmra.mxu0 %v7609
        %v8485 = vpop.f32.mrf.mxu0
        %v8486 = vadd.f32 0.0, %v8485
        %v8487 = vpop.f32.mrf.mxu0
        %v8488 = vpop.f32.mrf.mxu0
        %v8489 = vadd.f32 0.0, %v8488
        %v8490 = vpop.f32.mrf.mxu0
        %8491 = vmatprep.mubr.bf16.mxu0 %v7661
        %8492 = vmatmul.mubr.bf16.gmra.mxu0 %v7652
        %v8493 = vpop.f32.mrf.mxu0
        %v8494 = vadd.f32 0.0, %v8493
        %v8495 = vpop.f32.mrf.mxu0
        %v8496 = vpop.f32.mrf.mxu0
        %v8497 = vadd.f32 0.0, %v8496
        %v8498 = vpop.f32.mrf.mxu0
        %8499 = vmatprep.mubr.bf16.mxu0 %v7704
        %8500 = vmatmul.mubr.bf16.gmra.mxu0 %v7695
        %v8501 = vpop.f32.mrf.mxu0
        %v8502 = vadd.f32 0.0, %v8501
        %v8503 = vpop.f32.mrf.mxu0
        %v8504 = vpop.f32.mrf.mxu0
        %v8505 = vadd.f32 0.0, %v8504
        %v8506 = vpop.f32.mrf.mxu0
        %8507 = vmatprep.mubr.bf16.mxu0 %v7747
        %8508 = vmatmul.mubr.bf16.gmra.mxu0 %v7738
        %v8509 = vpop.f32.mrf.mxu0
        %v8510 = vadd.f32 0.0, %v8509
        %v8511 = vpop.f32.mrf.mxu0
        %v8512 = vpop.f32.mrf.mxu0
        %v8513 = vadd.f32 0.0, %v8512
        %v8514 = vpop.f32.mrf.mxu0
        %8515 = vmatprep.mubr.bf16.mxu0 %v7790
        %8516 = vmatmul.mubr.bf16.gmra.mxu0 %v7781
        %v8517 = vpop.f32.mrf.mxu0
        %v8518 = vadd.f32 0.0, %v8517
        %v8519 = vpop.f32.mrf.mxu0
        %v8520 = vpop.f32.mrf.mxu0
        %v8521 = vadd.f32 0.0, %v8520
        %v8522 = vpop.f32.mrf.mxu0
        %8523 = vmatprep.mubr.bf16.mxu0 %v7833
        %8524 = vmatmul.mubr.bf16.gmra.mxu0 %v7824
        %v8525 = vpop.f32.mrf.mxu0
        %v8526 = vadd.f32 0.0, %v8525
        %v8527 = vpop.f32.mrf.mxu0
        %v8528 = vpop.f32.mrf.mxu0
        %v8529 = vadd.f32 0.0, %v8528
        %v8530 = vpop.f32.mrf.mxu0
        %8531 = vmatprep.mubr.bf16.mxu0 %v7876
        %8532 = vmatmul.mubr.bf16.gmra.mxu0 %v7867
        %v8533 = vpop.f32.mrf.mxu0
        %v8534 = vadd.f32 0.0, %v8533
        %v8535 = vpop.f32.mrf.mxu0
        %v8536 = vpop.f32.mrf.mxu0
        %v8537 = vadd.f32 0.0, %v8536
        %v8538 = vpop.f32.mrf.mxu0
        %8539 = vmatprep.mubr.bf16.mxu0 %v7919
        %8540 = vmatmul.mubr.bf16.gmra.mxu0 %v7910
        %v8541 = vpop.f32.mrf.mxu0
        %v8542 = vadd.f32 0.0, %v8541
        %v8543 = vpop.f32.mrf.mxu0
        %v8544 = vpop.f32.mrf.mxu0
        %v8545 = vadd.f32 0.0, %v8544
        %v8546 = vpop.f32.mrf.mxu0
        %8547 = vmatprep.mubr.bf16.mxu0 %v7962
        %8548 = vmatmul.mubr.bf16.gmra.mxu0 %v7953
        %v8549 = vpop.f32.mrf.mxu0
        %v8550 = vadd.f32 0.0, %v8549
        %v8551 = vpop.f32.mrf.mxu0
        %v8552 = vpop.f32.mrf.mxu0
        %v8553 = vadd.f32 0.0, %v8552
        %v8554 = vpop.f32.mrf.mxu0
        %8555 = vmatprep.mubr.bf16.mxu0 %v8005
        %8556 = vmatmul.mubr.bf16.gmra.mxu0 %v7996
        %v8557 = vpop.f32.mrf.mxu0
        %v8558 = vadd.f32 0.0, %v8557
        %v8559 = vpop.f32.mrf.mxu0
        %v8560 = vpop.f32.mrf.mxu0
        %v8561 = vadd.f32 0.0, %v8560
        %v8562 = vpop.f32.mrf.mxu0
        %8563 = vmatprep.mubr.bf16.mxu0 %v8048
        %8564 = vmatmul.mubr.bf16.gmra.mxu0 %v8039
        %v8565 = vpop.f32.mrf.mxu0
        %v8566 = vadd.f32 0.0, %v8565
        %v8567 = vpop.f32.mrf.mxu0
        %v8568 = vpop.f32.mrf.mxu0
        %v8569 = vadd.f32 0.0, %v8568
        %v8570 = vpop.f32.mrf.mxu0
        %8571 = vmatprep.mubr.bf16.mxu0 %v8091
        %8572 = vmatmul.mubr.bf16.gmra.mxu0 %v8082
        %v8573 = vpop.f32.mrf.mxu0
        %v8574 = vadd.f32 0.0, %v8573
        %v8575 = vpop.f32.mrf.mxu0
        %v8576 = vpop.f32.mrf.mxu0
        %v8577 = vadd.f32 0.0, %v8576
        %v8578 = vpop.f32.mrf.mxu0
        %8579 = vmatprep.mubr.bf16.mxu0 %v8134
        %8580 = vmatmul.mubr.bf16.gmra.mxu0 %v8125
        %v8581 = vpop.f32.mrf.mxu0
        %v8582 = vadd.f32 0.0, %v8581
        %v8583 = vpop.f32.mrf.mxu0
        %v8584 = vpop.f32.mrf.mxu0
        %v8585 = vadd.f32 0.0, %v8584
        %v8586 = vpop.f32.mrf.mxu0
        %8587 = vmatprep.mubr.bf16.mxu0 %v8177
        %8588 = vmatmul.mubr.bf16.gmra.mxu0 %v8168
        %v8589 = vpop.f32.mrf.mxu0
        %v8590 = vadd.f32 0.0, %v8589
        %v8591 = vpop.f32.mrf.mxu0
        %v8592 = vpop.f32.mrf.mxu0
        %v8593 = vadd.f32 0.0, %v8592
        %v8594 = vpop.f32.mrf.mxu0
        %8595 = vdwg.mxu0
        %8596 = vmatprep.subr.bf16.mxu0 0
        %8597 = vmatpush1.bf16.msra.mxu0 %v8410
        %8598 = vmatprep.subr.bf16.mxu0 0
        %8599 = vmatpush1.bf16.msra.mxu0 %v8409
        %8600 = vmatprep.subr.bf16.mxu0 0
        %8601 = vmatpush1.bf16.msra.mxu0 %v8408
        %8602 = vmatprep.subr.bf16.mxu0 0
        %8603 = vmatpush1.bf16.msra.mxu0 %v8407
        %8604 = vmatprep.subr.bf16.mxu0 0
        %8605 = vmatpush1.bf16.msra.mxu0 %v8406
        %8606 = vmatprep.subr.bf16.mxu0 0
        %8607 = vmatpush1.bf16.msra.mxu0 %v8405
        %8608 = vmatprep.subr.bf16.mxu0 0
        %8609 = vmatpush1.bf16.msra.mxu0 %v8404
        %8610 = vmatprep.subr.bf16.mxu0 0
        %8611 = vmatpush1.bf16.msra.mxu0 %v8403
        %8612 = vmatprep.subr.bf16.mxu0 0
        %8613 = vmatpush2.bf16.msra.mxu0 0
        %8614 = vmatprep.subr.bf16.mxu0 0
        %8615 = vmatpush2.bf16.msra.mxu0 0
        %8616 = vmatprep.subr.bf16.mxu0 0
        %8617 = vmatpush2.bf16.msra.mxu0 0
        %8618 = vmatprep.subr.bf16.mxu0 0
        %8619 = vmatpush2.bf16.msra.mxu0 0
        %8620 = vmatprep.subr.bf16.mxu0 0
        %8621 = vmatpush2.bf16.msra.mxu0 0
        %8622 = vmatprep.subr.bf16.mxu0 0
        %8623 = vmatpush2.bf16.msra.mxu0 0
        %8624 = vmatprep.subr.bf16.mxu0 0
        %8625 = vmatpush2.bf16.msra.mxu0 0
        %8626 = vmatprep.subr.bf16.mxu0 0
        %8627 = vmatpush2.bf16.msra.mxu0 0
        %8628 = vmatprep.mubr.bf16.mxu0 0
        %8629 = vmatmul.mubr.bf16.gmra.mxu0 %v7549
        %v8630 = vpop.f32.mrf.mxu0
        %v8631 = vadd.f32 %v8470, %v8630
        %v8632 = vpop.f32.mrf.mxu0
        %v8633 = vpop.f32.mrf.mxu0
        %v8634 = vadd.f32 %v8473, %v8633
        %v8635 = vpop.f32.mrf.mxu0
        %8636 = vmatprep.mubr.bf16.mxu0 0
        %8637 = vmatmul.mubr.bf16.gmra.mxu0 %v7592
        %v8638 = vpop.f32.mrf.mxu0
        %v8639 = vadd.f32 %v8478, %v8638
        %v8640 = vpop.f32.mrf.mxu0
        %v8641 = vpop.f32.mrf.mxu0
        %v8642 = vadd.f32 %v8481, %v8641
        %v8643 = vpop.f32.mrf.mxu0
        %8644 = vmatprep.mubr.bf16.mxu0 0
        %8645 = vmatmul.mubr.bf16.gmra.mxu0 %v7635
        %v8646 = vpop.f32.mrf.mxu0
        %v8647 = vadd.f32 %v8486, %v8646
        %v8648 = vpop.f32.mrf.mxu0
        %v8649 = vpop.f32.mrf.mxu0
        %v8650 = vadd.f32 %v8489, %v8649
        %v8651 = vpop.f32.mrf.mxu0
        %8652 = vmatprep.mubr.bf16.mxu0 0
        %8653 = vmatmul.mubr.bf16.gmra.mxu0 %v7678
        %v8654 = vpop.f32.mrf.mxu0
        %v8655 = vadd.f32 %v8494, %v8654
        %v8656 = vpop.f32.mrf.mxu0
        %v8657 = vpop.f32.mrf.mxu0
        %v8658 = vadd.f32 %v8497, %v8657
        %v8659 = vpop.f32.mrf.mxu0
        %8660 = vmatprep.mubr.bf16.mxu0 0
        %8661 = vmatmul.mubr.bf16.gmra.mxu0 %v7721
        %v8662 = vpop.f32.mrf.mxu0
        %v8663 = vadd.f32 %v8502, %v8662
        %v8664 = vpop.f32.mrf.mxu0
        %v8665 = vpop.f32.mrf.mxu0
        %v8666 = vadd.f32 %v8505, %v8665
        %v8667 = vpop.f32.mrf.mxu0
        %8668 = vmatprep.mubr.bf16.mxu0 0
        %8669 = vmatmul.mubr.bf16.gmra.mxu0 %v7764
        %v8670 = vpop.f32.mrf.mxu0
        %v8671 = vadd.f32 %v8510, %v8670
        %v8672 = vpop.f32.mrf.mxu0
        %v8673 = vpop.f32.mrf.mxu0
        %v8674 = vadd.f32 %v8513, %v8673
        %v8675 = vpop.f32.mrf.mxu0
        %8676 = vmatprep.mubr.bf16.mxu0 0
        %8677 = vmatmul.mubr.bf16.gmra.mxu0 %v7807
        %v8678 = vpop.f32.mrf.mxu0
        %v8679 = vadd.f32 %v8518, %v8678
        %v8680 = vpop.f32.mrf.mxu0
        %v8681 = vpop.f32.mrf.mxu0
        %v8682 = vadd.f32 %v8521, %v8681
        %v8683 = vpop.f32.mrf.mxu0
        %8684 = vmatprep.mubr.bf16.mxu0 0
        %8685 = vmatmul.mubr.bf16.gmra.mxu0 %v7850
        %v8686 = vpop.f32.mrf.mxu0
        %v8687 = vadd.f32 %v8526, %v8686
        %v8688 = vpop.f32.mrf.mxu0
        %v8689 = vpop.f32.mrf.mxu0
        %v8690 = vadd.f32 %v8529, %v8689
        %v8691 = vpop.f32.mrf.mxu0
        %8692 = vmatprep.mubr.bf16.mxu0 0
        %8693 = vmatmul.mubr.bf16.gmra.mxu0 %v7893
        %v8694 = vpop.f32.mrf.mxu0
        %v8695 = vadd.f32 %v8534, %v8694
        %v8696 = vpop.f32.mrf.mxu0
        %v8697 = vpop.f32.mrf.mxu0
        %v8698 = vadd.f32 %v8537, %v8697
        %v8699 = vpop.f32.mrf.mxu0
        %8700 = vmatprep.mubr.bf16.mxu0 0
        %8701 = vmatmul.mubr.bf16.gmra.mxu0 %v7936
        %v8702 = vpop.f32.mrf.mxu0
        %v8703 = vadd.f32 %v8542, %v8702
        %v8704 = vpop.f32.mrf.mxu0
        %v8705 = vpop.f32.mrf.mxu0
        %v8706 = vadd.f32 %v8545, %v8705
        %v8707 = vpop.f32.mrf.mxu0
        %8708 = vmatprep.mubr.bf16.mxu0 0
        %8709 = vmatmul.mubr.bf16.gmra.mxu0 %v7979
        %v8710 = vpop.f32.mrf.mxu0
        %v8711 = vadd.f32 %v8550, %v8710
        %v8712 = vpop.f32.mrf.mxu0
        %v8713 = vpop.f32.mrf.mxu0
        %v8714 = vadd.f32 %v8553, %v8713
        %v8715 = vpop.f32.mrf.mxu0
        %8716 = vmatprep.mubr.bf16.mxu0 0
        %8717 = vmatmul.mubr.bf16.gmra.mxu0 %v8022
        %v8718 = vpop.f32.mrf.mxu0
        %v8719 = vadd.f32 %v8558, %v8718
        %v8720 = vpop.f32.mrf.mxu0
        %v8721 = vpop.f32.mrf.mxu0
        %v8722 = vadd.f32 %v8561, %v8721
        %v8723 = vpop.f32.mrf.mxu0
        %8724 = vmatprep.mubr.bf16.mxu0 0
        %8725 = vmatmul.mubr.bf16.gmra.mxu0 %v8065
        %v8726 = vpop.f32.mrf.mxu0
        %v8727 = vadd.f32 %v8566, %v8726
        %v8728 = vpop.f32.mrf.mxu0
        %v8729 = vpop.f32.mrf.mxu0
        %v8730 = vadd.f32 %v8569, %v8729
        %v8731 = vpop.f32.mrf.mxu0
        %8732 = vmatprep.mubr.bf16.mxu0 0
        %8733 = vmatmul.mubr.bf16.gmra.mxu0 %v8108
        %v8734 = vpop.f32.mrf.mxu0
        %v8735 = vadd.f32 %v8574, %v8734
        %v8736 = vpop.f32.mrf.mxu0
        %v8737 = vpop.f32.mrf.mxu0
        %v8738 = vadd.f32 %v8577, %v8737
        %v8739 = vpop.f32.mrf.mxu0
        %8740 = vmatprep.mubr.bf16.mxu0 0
        %8741 = vmatmul.mubr.bf16.gmra.mxu0 %v8151
        %v8742 = vpop.f32.mrf.mxu0
        %v8743 = vadd.f32 %v8582, %v8742
        %v8744 = vpop.f32.mrf.mxu0
        %v8745 = vpop.f32.mrf.mxu0
        %v8746 = vadd.f32 %v8585, %v8745
        %v8747 = vpop.f32.mrf.mxu0
        %8748 = vmatprep.mubr.bf16.mxu0 0
        %8749 = vmatmul.mubr.bf16.gmra.mxu0 %v8194
        %v8750 = vpop.f32.mrf.mxu0
        %v8751 = vadd.f32 %v8590, %v8750
        %v8752 = vpop.f32.mrf.mxu0
        %v8753 = vpop.f32.mrf.mxu0
        %v8754 = vadd.f32 %v8593, %v8753
        %v8755 = vpop.f32.mrf.mxu0
        %8756 = vdwg.mxu0
        %v8805 = vunpack.c.l.b16 %v7027
        %v8806 = vunpack.c.l.b16 %v7028
        %v8807 = vunpack.c.l.b16 %v7029
        %v8808 = vunpack.c.l.b16 %v7030
        %v8809 = vunpack.c.l.b16 %v7031
        %v8810 = vunpack.c.l.b16 %v7032
        %v8811 = vunpack.c.l.b16 %v7033
        %v8812 = vunpack.c.l.b16 %v7034
        %v8813 = vunpack.c.l.b16 %v7035
        %v8814 = vunpack.c.l.b16 %v7036
        %v8815 = vunpack.c.l.b16 %v7037
        %v8816 = vunpack.c.l.b16 %v7038
        %v8817 = vunpack.c.l.b16 %v7039
        %v8818 = vunpack.c.l.b16 %v7040
        %v8819 = vunpack.c.l.b16 %v7041
        %v8820 = vunpack.c.l.b16 %v7042
        %v8821 = vunpack.c.l.b16 %v7043
        %v8822 = vunpack.c.l.b16 %v7044
        %v8823 = vunpack.c.l.b16 %v7045
        %v8824 = vunpack.c.l.b16 %v7046
        %v8825 = vunpack.c.l.b16 %v7047
        %v8826 = vunpack.c.l.b16 %v7048
        %v8827 = vunpack.c.l.b16 %v7049
        %v8828 = vunpack.c.l.b16 %v7050
        %v8829 = vunpack.c.l.b16 %v7051
        %v8830 = vunpack.c.l.b16 %v7052
        %v8831 = vunpack.c.l.b16 %v7053
        %v8832 = vunpack.c.l.b16 %v7054
        %v8833 = vunpack.c.l.b16 %v7055
        %v8834 = vunpack.c.l.b16 %v7056
        %v8835 = vunpack.c.l.b16 %v7057
        %v8836 = vunpack.c.l.b16 %v7058
        %v8837 = vunpack.c.l.b16 %v7059
        %v8838 = vunpack.c.l.b16 %v7060
        %v8839 = vunpack.c.l.b16 %v7061
        %v8840 = vunpack.c.l.b16 %v7062
        %v8841 = vunpack.c.l.b16 %v7063
        %v8842 = vunpack.c.l.b16 %v7064
        %v8843 = vunpack.c.l.b16 %v7065
        %v8844 = vunpack.c.l.b16 %v7066
        %v8845 = vunpack.c.l.b16 %v7067
        %v8846 = vunpack.c.l.b16 %v7068
        %v8847 = vunpack.c.l.b16 %v7069
        %v8848 = vunpack.c.l.b16 %v7070
        %v8849 = vunpack.c.l.b16 %v7071
        %v8850 = vunpack.c.l.b16 %v7072
        %v8851 = vunpack.c.l.b16 %v7073
        %v8852 = vunpack.c.l.b16 %v7074
        %v8853 = vpack.c.b16 %v8806, %v8805
        %v8854 = vpack.c.b16 %v8808, %v8807
        %v8855 = vpack.c.b16 %v8810, %v8809
        %v8856 = vpack.c.b16 %v8812, %v8811
        %v8857 = vpack.c.b16 %v8814, %v8813
        %v8858 = vpack.c.b16 %v8816, %v8815
        %v8859 = vpack.c.b16 %v8818, %v8817
        %v8860 = vpack.c.b16 %v8820, %v8819
        %v8861 = vpack.c.b16 %v8822, %v8821
        %v8862 = vpack.c.b16 %v8824, %v8823
        %v8863 = vpack.c.b16 %v8826, %v8825
        %v8864 = vpack.c.b16 %v8828, %v8827
        %v8865 = vpack.c.b16 %v8830, %v8829
        %v8866 = vpack.c.b16 %v8832, %v8831
        %v8867 = vpack.c.b16 %v8834, %v8833
        %v8868 = vpack.c.b16 %v8836, %v8835
        %v8869 = vpack.c.b16 %v8838, %v8837
        %v8870 = vpack.c.b16 %v8840, %v8839
        %v8871 = vpack.c.b16 %v8842, %v8841
        %v8872 = vpack.c.b16 %v8844, %v8843
        %v8873 = vpack.c.b16 %v8846, %v8845
        %v8874 = vpack.c.b16 %v8848, %v8847
        %v8875 = vpack.c.b16 %v8850, %v8849
        %v8876 = vpack.c.b16 %v8852, %v8851
        %8901 = vmatprep.subr.bf16.mxu0 0
        %8902 = vmatpush1.bf16.msra.mxu0 %v8860
        %8903 = vmatprep.subr.bf16.mxu0 0
        %8904 = vmatpush1.bf16.msra.mxu0 %v8859
        %8905 = vmatprep.subr.bf16.mxu0 0
        %8906 = vmatpush1.bf16.msra.mxu0 %v8858
        %8907 = vmatprep.subr.bf16.mxu0 0
        %8908 = vmatpush1.bf16.msra.mxu0 %v8857
        %8909 = vmatprep.subr.bf16.mxu0 0
        %8910 = vmatpush1.bf16.msra.mxu0 %v8856
        %8911 = vmatprep.subr.bf16.mxu0 0
        %8912 = vmatpush1.bf16.msra.mxu0 %v8855
        %8913 = vmatprep.subr.bf16.mxu0 0
        %8914 = vmatpush1.bf16.msra.mxu0 %v8854
        %8915 = vmatprep.subr.bf16.mxu0 0
        %8916 = vmatpush1.bf16.msra.mxu0 %v8853
        %8917 = vmatprep.subr.bf16.mxu0 0
        %8918 = vmatpush2.bf16.msra.mxu0 %v8868
        %8919 = vmatprep.subr.bf16.mxu0 0
        %8920 = vmatpush2.bf16.msra.mxu0 %v8867
        %8921 = vmatprep.subr.bf16.mxu0 0
        %8922 = vmatpush2.bf16.msra.mxu0 %v8866
        %8923 = vmatprep.subr.bf16.mxu0 0
        %8924 = vmatpush2.bf16.msra.mxu0 %v8865
        %8925 = vmatprep.subr.bf16.mxu0 0
        %8926 = vmatpush2.bf16.msra.mxu0 %v8864
        %8927 = vmatprep.subr.bf16.mxu0 0
        %8928 = vmatpush2.bf16.msra.mxu0 %v8863
        %8929 = vmatprep.subr.bf16.mxu0 0
        %8930 = vmatpush2.bf16.msra.mxu0 %v8862
        %8931 = vmatprep.subr.bf16.mxu0 0
        %8932 = vmatpush2.bf16.msra.mxu0 %v8861
        %8933 = vmatprep.mubr.bf16.mxu0 %v6316
        %8934 = vmatmul.mubr.bf16.gmra.mxu0 %v6307
        %v8935 = vpop.f32.mrf.mxu0
        %v8936 = vadd.f32 %v8631, %v8935
        %v8937 = vpop.f32.mrf.mxu0
        %v8938 = vpop.f32.mrf.mxu0
        %v8939 = vadd.f32 %v8634, %v8938
        %v8940 = vpop.f32.mrf.mxu0
        %8941 = vmatprep.mubr.bf16.mxu0 %v6359
        %8942 = vmatmul.mubr.bf16.gmra.mxu0 %v6350
        %v8943 = vpop.f32.mrf.mxu0
        %v8944 = vadd.f32 %v8639, %v8943
        %v8945 = vpop.f32.mrf.mxu0
        %v8946 = vpop.f32.mrf.mxu0
        %v8947 = vadd.f32 %v8642, %v8946
        %v8948 = vpop.f32.mrf.mxu0
        %8949 = vmatprep.mubr.bf16.mxu0 %v6402
        %8950 = vmatmul.mubr.bf16.gmra.mxu0 %v6393
        %v8951 = vpop.f32.mrf.mxu0
        %v8952 = vadd.f32 %v8647, %v8951
        %v8953 = vpop.f32.mrf.mxu0
        %v8954 = vpop.f32.mrf.mxu0
        %v8955 = vadd.f32 %v8650, %v8954
        %v8956 = vpop.f32.mrf.mxu0
        %8957 = vmatprep.mubr.bf16.mxu0 %v6445
        %8958 = vmatmul.mubr.bf16.gmra.mxu0 %v6436
        %v8959 = vpop.f32.mrf.mxu0
        %v8960 = vadd.f32 %v8655, %v8959
        %v8961 = vpop.f32.mrf.mxu0
        %v8962 = vpop.f32.mrf.mxu0
        %v8963 = vadd.f32 %v8658, %v8962
        %v8964 = vpop.f32.mrf.mxu0
        %8965 = vmatprep.mubr.bf16.mxu0 %v6488
        %8966 = vmatmul.mubr.bf16.gmra.mxu0 %v6479
        %v8967 = vpop.f32.mrf.mxu0
        %v8968 = vadd.f32 %v8663, %v8967
        %v8969 = vpop.f32.mrf.mxu0
        %v8970 = vpop.f32.mrf.mxu0
        %v8971 = vadd.f32 %v8666, %v8970
        %v8972 = vpop.f32.mrf.mxu0
        %8973 = vmatprep.mubr.bf16.mxu0 %v6531
        %8974 = vmatmul.mubr.bf16.gmra.mxu0 %v6522
        %v8975 = vpop.f32.mrf.mxu0
        %v8976 = vadd.f32 %v8671, %v8975
        %v8977 = vpop.f32.mrf.mxu0
        %v8978 = vpop.f32.mrf.mxu0
        %v8979 = vadd.f32 %v8674, %v8978
        %v8980 = vpop.f32.mrf.mxu0
        %8981 = vmatprep.mubr.bf16.mxu0 %v6574
        %8982 = vmatmul.mubr.bf16.gmra.mxu0 %v6565
        %v8983 = vpop.f32.mrf.mxu0
        %v8984 = vadd.f32 %v8679, %v8983
        %v8985 = vpop.f32.mrf.mxu0
        %v8986 = vpop.f32.mrf.mxu0
        %v8987 = vadd.f32 %v8682, %v8986
        %v8988 = vpop.f32.mrf.mxu0
        %8989 = vmatprep.mubr.bf16.mxu0 %v6617
        %8990 = vmatmul.mubr.bf16.gmra.mxu0 %v6608
        %v8991 = vpop.f32.mrf.mxu0
        %v8992 = vadd.f32 %v8687, %v8991
        %v8993 = vpop.f32.mrf.mxu0
        %v8994 = vpop.f32.mrf.mxu0
        %v8995 = vadd.f32 %v8690, %v8994
        %v8996 = vpop.f32.mrf.mxu0
        %8997 = vmatprep.mubr.bf16.mxu0 %v6660
        %8998 = vmatmul.mubr.bf16.gmra.mxu0 %v6651
        %v8999 = vpop.f32.mrf.mxu0
        %v9000 = vadd.f32 %v8695, %v8999
        %v9001 = vpop.f32.mrf.mxu0
        %v9002 = vpop.f32.mrf.mxu0
        %v9003 = vadd.f32 %v8698, %v9002
        %v9004 = vpop.f32.mrf.mxu0
        %9005 = vmatprep.mubr.bf16.mxu0 %v6703
        %9006 = vmatmul.mubr.bf16.gmra.mxu0 %v6694
        %v9007 = vpop.f32.mrf.mxu0
        %v9008 = vadd.f32 %v8703, %v9007
        %v9009 = vpop.f32.mrf.mxu0
        %v9010 = vpop.f32.mrf.mxu0
        %v9011 = vadd.f32 %v8706, %v9010
        %v9012 = vpop.f32.mrf.mxu0
        %9013 = vmatprep.mubr.bf16.mxu0 %v6746
        %9014 = vmatmul.mubr.bf16.gmra.mxu0 %v6737
        %v9015 = vpop.f32.mrf.mxu0
        %v9016 = vadd.f32 %v8711, %v9015
        %v9017 = vpop.f32.mrf.mxu0
        %v9018 = vpop.f32.mrf.mxu0
        %v9019 = vadd.f32 %v8714, %v9018
        %v9020 = vpop.f32.mrf.mxu0
        %9021 = vmatprep.mubr.bf16.mxu0 %v6789
        %9022 = vmatmul.mubr.bf16.gmra.mxu0 %v6780
        %v9023 = vpop.f32.mrf.mxu0
        %v9024 = vadd.f32 %v8719, %v9023
        %v9025 = vpop.f32.mrf.mxu0
        %v9026 = vpop.f32.mrf.mxu0
        %v9027 = vadd.f32 %v8722, %v9026
        %v9028 = vpop.f32.mrf.mxu0
        %9029 = vmatprep.mubr.bf16.mxu0 %v6832
        %9030 = vmatmul.mubr.bf16.gmra.mxu0 %v6823
        %v9031 = vpop.f32.mrf.mxu0
        %v9032 = vadd.f32 %v8727, %v9031
        %v9033 = vpop.f32.mrf.mxu0
        %v9034 = vpop.f32.mrf.mxu0
        %v9035 = vadd.f32 %v8730, %v9034
        %v9036 = vpop.f32.mrf.mxu0
        %9037 = vmatprep.mubr.bf16.mxu0 %v6875
        %9038 = vmatmul.mubr.bf16.gmra.mxu0 %v6866
        %v9039 = vpop.f32.mrf.mxu0
        %v9040 = vadd.f32 %v8735, %v9039
        %v9041 = vpop.f32.mrf.mxu0
        %v9042 = vpop.f32.mrf.mxu0
        %v9043 = vadd.f32 %v8738, %v9042
        %v9044 = vpop.f32.mrf.mxu0
        %9045 = vmatprep.mubr.bf16.mxu0 %v6918
        %9046 = vmatmul.mubr.bf16.gmra.mxu0 %v6909
        %v9047 = vpop.f32.mrf.mxu0
        %v9048 = vadd.f32 %v8743, %v9047
        %v9049 = vpop.f32.mrf.mxu0
        %v9050 = vpop.f32.mrf.mxu0
        %v9051 = vadd.f32 %v8746, %v9050
        %v9052 = vpop.f32.mrf.mxu0
        %9053 = vmatprep.mubr.bf16.mxu0 %v6961
        %9054 = vmatmul.mubr.bf16.gmra.mxu0 %v6952
        %v9055 = vpop.f32.mrf.mxu0
        %v9056 = vadd.f32 %v8751, %v9055
        %v9057 = vpop.f32.mrf.mxu0
        %v9058 = vpop.f32.mrf.mxu0
        %v9059 = vadd.f32 %v8754, %v9058
        %v9060 = vpop.f32.mrf.mxu0
        %9061 = vdwg.mxu0
        %9062 = vmatprep.subr.bf16.mxu0 0
        %9063 = vmatpush1.bf16.msra.mxu0 %v8876
        %9064 = vmatprep.subr.bf16.mxu0 0
        %9065 = vmatpush1.bf16.msra.mxu0 %v8875
        %9066 = vmatprep.subr.bf16.mxu0 0
        %9067 = vmatpush1.bf16.msra.mxu0 %v8874
        %9068 = vmatprep.subr.bf16.mxu0 0
        %9069 = vmatpush1.bf16.msra.mxu0 %v8873
        %9070 = vmatprep.subr.bf16.mxu0 0
        %9071 = vmatpush1.bf16.msra.mxu0 %v8872
        %9072 = vmatprep.subr.bf16.mxu0 0
        %9073 = vmatpush1.bf16.msra.mxu0 %v8871
        %9074 = vmatprep.subr.bf16.mxu0 0
        %9075 = vmatpush1.bf16.msra.mxu0 %v8870
        %9076 = vmatprep.subr.bf16.mxu0 0
        %9077 = vmatpush1.bf16.msra.mxu0 %v8869
        %9078 = vmatprep.subr.bf16.mxu0 0
        %9079 = vmatpush2.bf16.msra.mxu0 0
        %9080 = vmatprep.subr.bf16.mxu0 0
        %9081 = vmatpush2.bf16.msra.mxu0 0
        %9082 = vmatprep.subr.bf16.mxu0 0
        %9083 = vmatpush2.bf16.msra.mxu0 0
        %9084 = vmatprep.subr.bf16.mxu0 0
        %9085 = vmatpush2.bf16.msra.mxu0 0
        %9086 = vmatprep.subr.bf16.mxu0 0
        %9087 = vmatpush2.bf16.msra.mxu0 0
        %9088 = vmatprep.subr.bf16.mxu0 0
        %9089 = vmatpush2.bf16.msra.mxu0 0
        %9090 = vmatprep.subr.bf16.mxu0 0
        %9091 = vmatpush2.bf16.msra.mxu0 0
        %9092 = vmatprep.subr.bf16.mxu0 0
        %9093 = vmatpush2.bf16.msra.mxu0 0
        %9094 = vmatprep.mubr.bf16.mxu0 0
        %9095 = vmatmul.mubr.bf16.gmra.mxu0 %v6333
        %v9096 = vpop.f32.mrf.mxu0
        %v9097 = vadd.f32 %v8936, %v9096
        %v9098 = vpop.f32.mrf.mxu0
        %v9099 = vpop.f32.mrf.mxu0
        %v9100 = vadd.f32 %v8939, %v9099
        %v9101 = vpop.f32.mrf.mxu0
        %9102 = vmatprep.mubr.bf16.mxu0 0
        %9103 = vmatmul.mubr.bf16.gmra.mxu0 %v6376
        %v9104 = vpop.f32.mrf.mxu0
        %v9105 = vadd.f32 %v8944, %v9104
        %v9106 = vpop.f32.mrf.mxu0
        %v9107 = vpop.f32.mrf.mxu0
        %v9108 = vadd.f32 %v8947, %v9107
        %v9109 = vpop.f32.mrf.mxu0
        %9110 = vmatprep.mubr.bf16.mxu0 0
        %9111 = vmatmul.mubr.bf16.gmra.mxu0 %v6419
        %v9112 = vpop.f32.mrf.mxu0
        %v9113 = vadd.f32 %v8952, %v9112
        %v9114 = vpop.f32.mrf.mxu0
        %v9115 = vpop.f32.mrf.mxu0
        %v9116 = vadd.f32 %v8955, %v9115
        %v9117 = vpop.f32.mrf.mxu0
        %9118 = vmatprep.mubr.bf16.mxu0 0
        %9119 = vmatmul.mubr.bf16.gmra.mxu0 %v6462
        %v9120 = vpop.f32.mrf.mxu0
        %v9121 = vadd.f32 %v8960, %v9120
        %v9122 = vpop.f32.mrf.mxu0
        %v9123 = vpop.f32.mrf.mxu0
        %v9124 = vadd.f32 %v8963, %v9123
        %v9125 = vpop.f32.mrf.mxu0
        %9126 = vmatprep.mubr.bf16.mxu0 0
        %9127 = vmatmul.mubr.bf16.gmra.mxu0 %v6505
        %v9128 = vpop.f32.mrf.mxu0
        %v9129 = vadd.f32 %v8968, %v9128
        %v9130 = vpop.f32.mrf.mxu0
        %v9131 = vpop.f32.mrf.mxu0
        %v9132 = vadd.f32 %v8971, %v9131
        %v9133 = vpop.f32.mrf.mxu0
        %9134 = vmatprep.mubr.bf16.mxu0 0
        %9135 = vmatmul.mubr.bf16.gmra.mxu0 %v6548
        %v9136 = vpop.f32.mrf.mxu0
        %v9137 = vadd.f32 %v8976, %v9136
        %v9138 = vpop.f32.mrf.mxu0
        %v9139 = vpop.f32.mrf.mxu0
        %v9140 = vadd.f32 %v8979, %v9139
        %v9141 = vpop.f32.mrf.mxu0
        %9142 = vmatprep.mubr.bf16.mxu0 0
        %9143 = vmatmul.mubr.bf16.gmra.mxu0 %v6591
        %v9144 = vpop.f32.mrf.mxu0
        %v9145 = vadd.f32 %v8984, %v9144
        %v9146 = vpop.f32.mrf.mxu0
        %v9147 = vpop.f32.mrf.mxu0
        %v9148 = vadd.f32 %v8987, %v9147
        %v9149 = vpop.f32.mrf.mxu0
        %9150 = vmatprep.mubr.bf16.mxu0 0
        %9151 = vmatmul.mubr.bf16.gmra.mxu0 %v6634
        %v9152 = vpop.f32.mrf.mxu0
        %v9153 = vadd.f32 %v8992, %v9152
        %v9154 = vpop.f32.mrf.mxu0
        %v9155 = vpop.f32.mrf.mxu0
        %v9156 = vadd.f32 %v8995, %v9155
        %v9157 = vpop.f32.mrf.mxu0
        %9158 = vmatprep.mubr.bf16.mxu0 0
        %9159 = vmatmul.mubr.bf16.gmra.mxu0 %v6677
        %v9160 = vpop.f32.mrf.mxu0
        %v9161 = vadd.f32 %v9000, %v9160
        %v9162 = vpop.f32.mrf.mxu0
        %v9163 = vpop.f32.mrf.mxu0
        %v9164 = vadd.f32 %v9003, %v9163
        %v9165 = vpop.f32.mrf.mxu0
        %9166 = vmatprep.mubr.bf16.mxu0 0
        %9167 = vmatmul.mubr.bf16.gmra.mxu0 %v6720
        %v9168 = vpop.f32.mrf.mxu0
        %v9169 = vadd.f32 %v9008, %v9168
        %v9170 = vpop.f32.mrf.mxu0
        %v9171 = vpop.f32.mrf.mxu0
        %v9172 = vadd.f32 %v9011, %v9171
        %v9173 = vpop.f32.mrf.mxu0
        %9174 = vmatprep.mubr.bf16.mxu0 0
        %9175 = vmatmul.mubr.bf16.gmra.mxu0 %v6763
        %v9176 = vpop.f32.mrf.mxu0
        %v9177 = vadd.f32 %v9016, %v9176
        %v9178 = vpop.f32.mrf.mxu0
        %v9179 = vpop.f32.mrf.mxu0
        %v9180 = vadd.f32 %v9019, %v9179
        %v9181 = vpop.f32.mrf.mxu0
        %9182 = vmatprep.mubr.bf16.mxu0 0
        %9183 = vmatmul.mubr.bf16.gmra.mxu0 %v6806
        %v9184 = vpop.f32.mrf.mxu0
        %v9185 = vadd.f32 %v9024, %v9184
        %v9186 = vpop.f32.mrf.mxu0
        %v9187 = vpop.f32.mrf.mxu0
        %v9188 = vadd.f32 %v9027, %v9187
        %v9189 = vpop.f32.mrf.mxu0
        %9190 = vmatprep.mubr.bf16.mxu0 0
        %9191 = vmatmul.mubr.bf16.gmra.mxu0 %v6849
        %v9192 = vpop.f32.mrf.mxu0
        %v9193 = vadd.f32 %v9032, %v9192
        %v9194 = vpop.f32.mrf.mxu0
        %v9195 = vpop.f32.mrf.mxu0
        %v9196 = vadd.f32 %v9035, %v9195
        %v9197 = vpop.f32.mrf.mxu0
        %9198 = vmatprep.mubr.bf16.mxu0 0
        %9199 = vmatmul.mubr.bf16.gmra.mxu0 %v6892
        %v9200 = vpop.f32.mrf.mxu0
        %v9201 = vadd.f32 %v9040, %v9200
        %v9202 = vpop.f32.mrf.mxu0
        %v9203 = vpop.f32.mrf.mxu0
        %v9204 = vadd.f32 %v9043, %v9203
        %v9205 = vpop.f32.mrf.mxu0
        %9206 = vmatprep.mubr.bf16.mxu0 0
        %9207 = vmatmul.mubr.bf16.gmra.mxu0 %v6935
        %v9208 = vpop.f32.mrf.mxu0
        %v9209 = vadd.f32 %v9048, %v9208
        %v9210 = vpop.f32.mrf.mxu0
        %v9211 = vpop.f32.mrf.mxu0
        %v9212 = vadd.f32 %v9051, %v9211
        %v9213 = vpop.f32.mrf.mxu0
        %9214 = vmatprep.mubr.bf16.mxu0 0
        %9215 = vmatmul.mubr.bf16.gmra.mxu0 %v6978
        %v9216 = vpop.f32.mrf.mxu0
        %v9217 = vadd.f32 %v9056, %v9216
        %v9218 = vpop.f32.mrf.mxu0
        %v9219 = vpop.f32.mrf.mxu0
        %v9220 = vadd.f32 %v9059, %v9219
        %v9221 = vpop.f32.mrf.mxu0
        %9222 = vdwg.mxu0
        %s9223 = scalar_lea.vmem [#allocation3], 32
        %v9224 = vld [vmem:[%s9223] sm:$0x8]
        %v9225 = vld [vmem:[%s9223 + $0x4] sm:$0xf]
        %v9226 = vld [vmem:[%s9223 + $0x8] sm:$0xf]
        %v9227 = vld [vmem:[%s9223 + $0x10] sm:$0x8]
        %v9228 = vld [vmem:[%s9223 + $0x14] sm:$0xf]
        %v9229 = vld [vmem:[%s9223 + $0x18] sm:$0xf]
        %v9230 = vld [vmem:[%s9223 + $0x20] sm:$0x8]
        %v9231 = vld [vmem:[%s9223 + $0x24] sm:$0xf]
        %v9232 = vld [vmem:[%s9223 + $0x28] sm:$0xf]
        %v9233 = vld [vmem:[%s9223 + $0x30] sm:$0x8]
        %v9234 = vld [vmem:[%s9223 + $0x34] sm:$0xf]
        %v9235 = vld [vmem:[%s9223 + $0x38] sm:$0xf]
        %v9236 = vld [vmem:[%s9223 + $0x40] sm:$0x8]
        %v9237 = vld [vmem:[%s9223 + $0x44] sm:$0xf]
        %v9238 = vld [vmem:[%s9223 + $0x48] sm:$0xf]
        %v9239 = vld [vmem:[%s9223 + $0x50] sm:$0x8]
        %v9240 = vld [vmem:[%s9223 + $0x54] sm:$0xf]
        %v9241 = vld [vmem:[%s9223 + $0x58] sm:$0xf]
        %v9242 = vld [vmem:[%s9223 + $0x60] sm:$0x8]
        %v9243 = vld [vmem:[%s9223 + $0x64] sm:$0xf]
        %v9244 = vld [vmem:[%s9223 + $0x68] sm:$0xf]
        %v9245 = vld [vmem:[%s9223 + $0x70] sm:$0x8]
        %v9246 = vld [vmem:[%s9223 + $0x74] sm:$0xf]
        %v9247 = vld [vmem:[%s9223 + $0x78] sm:$0xf]
        %v9248 = vld [vmem:[%s9223 + $0x80] sm:$0x8]
        %v9249 = vld [vmem:[%s9223 + $0x84] sm:$0xf]
        %v9250 = vld [vmem:[%s9223 + $0x88] sm:$0xf]
        %v9251 = vld [vmem:[%s9223 + $0x90] sm:$0x8]
        %v9252 = vld [vmem:[%s9223 + $0x94] sm:$0xf]
        %v9253 = vld [vmem:[%s9223 + $0x98] sm:$0xf]
        %v9254 = vld [vmem:[%s9223 + $0xa0] sm:$0x8]
        %v9255 = vld [vmem:[%s9223 + $0xa4] sm:$0xf]
        %v9256 = vld [vmem:[%s9223 + $0xa8] sm:$0xf]
        %v9257 = vld [vmem:[%s9223 + $0xb0] sm:$0x8]
        %v9258 = vld [vmem:[%s9223 + $0xb4] sm:$0xf]
        %v9259 = vld [vmem:[%s9223 + $0xb8] sm:$0xf]
        %v9260 = vld [vmem:[%s9223 + $0xc0] sm:$0x8]
        %v9261 = vld [vmem:[%s9223 + $0xc4] sm:$0xf]
        %v9262 = vld [vmem:[%s9223 + $0xc8] sm:$0xf]
        %v9263 = vld [vmem:[%s9223 + $0xd0] sm:$0x8]
        %v9264 = vld [vmem:[%s9223 + $0xd4] sm:$0xf]
        %v9265 = vld [vmem:[%s9223 + $0xd8] sm:$0xf]
        %v9266 = vld [vmem:[%s9223 + $0xe0] sm:$0x8]
        %v9267 = vld [vmem:[%s9223 + $0xe4] sm:$0xf]
        %v9268 = vld [vmem:[%s9223 + $0xe8] sm:$0xf]
        %v9269 = vld [vmem:[%s9223 + $0xf0] sm:$0x8]
        %v9270 = vld [vmem:[%s9223 + $0xf4] sm:$0xf]
        %v9271 = vld [vmem:[%s9223 + $0xf8] sm:$0xf]
        %v9272 = vld [vmem:[%s9223 + $0xc] sm:$0x1]
        %v9273 = vld [vmem:[%s9223 + $0x1c] sm:$0x1]
        %v9274 = vld [vmem:[%s9223 + $0x2c] sm:$0x1]
        %v9275 = vld [vmem:[%s9223 + $0x3c] sm:$0x1]
        %v9276 = vld [vmem:[%s9223 + $0x4c] sm:$0x1]
        %v9277 = vld [vmem:[%s9223 + $0x5c] sm:$0x1]
        %v9278 = vld [vmem:[%s9223 + $0x6c] sm:$0x1]
        %v9279 = vld [vmem:[%s9223 + $0x7c] sm:$0x1]
        %v9280 = vld [vmem:[%s9223 + $0x8c] sm:$0x1]
        %v9281 = vld [vmem:[%s9223 + $0x9c] sm:$0x1]
        %v9282 = vld [vmem:[%s9223 + $0xac] sm:$0x1]
        %v9283 = vld [vmem:[%s9223 + $0xbc] sm:$0x1]
        %v9284 = vld [vmem:[%s9223 + $0xcc] sm:$0x1]
        %v9285 = vld [vmem:[%s9223 + $0xdc] sm:$0x1]
        %v9286 = vld [vmem:[%s9223 + $0xec] sm:$0x1]
        %v9287 = vld [vmem:[%s9223 + $0xfc] sm:$0x1]
        %v9336 = vunpack.c.l.b16 %v9224
        %v9337 = vunpack.c.l.b16 %v9225
        %v9338 = vunpack.c.l.b16 %v9226
        %v9339 = vunpack.c.l.b16 %v9227
        %v9340 = vunpack.c.l.b16 %v9228
        %v9341 = vunpack.c.l.b16 %v9229
        %v9342 = vunpack.c.l.b16 %v9230
        %v9343 = vunpack.c.l.b16 %v9231
        %v9344 = vunpack.c.l.b16 %v9232
        %v9345 = vunpack.c.l.b16 %v9233
        %v9346 = vunpack.c.l.b16 %v9234
        %v9347 = vunpack.c.l.b16 %v9235
        %v9348 = vunpack.c.l.b16 %v9236
        %v9349 = vunpack.c.l.b16 %v9237
        %v9350 = vunpack.c.l.b16 %v9238
        %v9351 = vunpack.c.l.b16 %v9239
        %v9352 = vunpack.c.l.b16 %v9240
        %v9353 = vunpack.c.l.b16 %v9241
        %v9354 = vunpack.c.l.b16 %v9242
        %v9355 = vunpack.c.l.b16 %v9243
        %v9356 = vunpack.c.l.b16 %v9244
        %v9357 = vunpack.c.l.b16 %v9245
        %v9358 = vunpack.c.l.b16 %v9246
        %v9359 = vunpack.c.l.b16 %v9247
        %v9360 = vunpack.c.l.b16 %v9248
        %v9361 = vunpack.c.l.b16 %v9249
        %v9362 = vunpack.c.l.b16 %v9250
        %v9363 = vunpack.c.l.b16 %v9251
        %v9364 = vunpack.c.l.b16 %v9252
        %v9365 = vunpack.c.l.b16 %v9253
        %v9366 = vunpack.c.l.b16 %v9254
        %v9367 = vunpack.c.l.b16 %v9255
        %v9368 = vunpack.c.l.b16 %v9256
        %v9369 = vunpack.c.l.b16 %v9257
        %v9370 = vunpack.c.l.b16 %v9258
        %v9371 = vunpack.c.l.b16 %v9259
        %v9372 = vunpack.c.l.b16 %v9260
        %v9373 = vunpack.c.l.b16 %v9261
        %v9374 = vunpack.c.l.b16 %v9262
        %v9375 = vunpack.c.l.b16 %v9263
        %v9376 = vunpack.c.l.b16 %v9264
        %v9377 = vunpack.c.l.b16 %v9265
        %v9378 = vunpack.c.l.b16 %v9266
        %v9379 = vunpack.c.l.b16 %v9267
        %v9380 = vunpack.c.l.b16 %v9268
        %v9381 = vunpack.c.l.b16 %v9269
        %v9382 = vunpack.c.l.b16 %v9270
        %v9383 = vunpack.c.l.b16 %v9271
        %v9384 = vpack.c.b16 %v9337, %v9336
        %v9385 = vpack.c.b16 %v9338, %v9338
        %v9386 = vpack.c.b16 %v9340, %v9339
        %v9387 = vpack.c.b16 %v9341, %v9341
        %v9388 = vpack.c.b16 %v9343, %v9342
        %v9389 = vpack.c.b16 %v9344, %v9344
        %v9390 = vpack.c.b16 %v9346, %v9345
        %v9391 = vpack.c.b16 %v9347, %v9347
        %v9392 = vpack.c.b16 %v9349, %v9348
        %v9393 = vpack.c.b16 %v9350, %v9350
        %v9394 = vpack.c.b16 %v9352, %v9351
        %v9395 = vpack.c.b16 %v9353, %v9353
        %v9396 = vpack.c.b16 %v9355, %v9354
        %v9397 = vpack.c.b16 %v9356, %v9356
        %v9398 = vpack.c.b16 %v9358, %v9357
        %v9399 = vpack.c.b16 %v9359, %v9359
        %v9400 = vpack.c.b16 %v9361, %v9360
        %v9401 = vpack.c.b16 %v9362, %v9362
        %v9402 = vpack.c.b16 %v9364, %v9363
        %v9403 = vpack.c.b16 %v9365, %v9365
        %v9404 = vpack.c.b16 %v9367, %v9366
        %v9405 = vpack.c.b16 %v9368, %v9368
        %v9406 = vpack.c.b16 %v9370, %v9369
        %v9407 = vpack.c.b16 %v9371, %v9371
        %v9408 = vpack.c.b16 %v9373, %v9372
        %v9409 = vpack.c.b16 %v9374, %v9374
        %v9410 = vpack.c.b16 %v9376, %v9375
        %v9411 = vpack.c.b16 %v9377, %v9377
        %v9412 = vpack.c.b16 %v9379, %v9378
        %v9413 = vpack.c.b16 %v9380, %v9380
        %v9414 = vpack.c.b16 %v9382, %v9381
        %v9415 = vpack.c.b16 %v9383, %v9383
        %v9416 = vpack.c.b16 %v9338, %v9337
        %v9417 = vpack.c.b16 %v9341, %v9340
        %v9418 = vpack.c.b16 %v9344, %v9343
        %v9419 = vpack.c.b16 %v9347, %v9346
        %v9420 = vpack.c.b16 %v9350, %v9349
        %v9421 = vpack.c.b16 %v9353, %v9352
        %v9422 = vpack.c.b16 %v9356, %v9355
        %v9423 = vpack.c.b16 %v9359, %v9358
        %v9424 = vpack.c.b16 %v9362, %v9361
        %v9425 = vpack.c.b16 %v9365, %v9364
        %v9426 = vpack.c.b16 %v9368, %v9367
        %v9427 = vpack.c.b16 %v9371, %v9370
        %v9428 = vpack.c.b16 %v9374, %v9373
        %v9429 = vpack.c.b16 %v9377, %v9376
        %v9430 = vpack.c.b16 %v9380, %v9379
        %v9431 = vpack.c.b16 %v9383, %v9382
        %v9433 = vshrl.u32 %v9416, 16
        %v9435 = vrot.slane %v9433, 4
        %v9436 = vshll.u32 %v9416, 16
        %v9438 = vrot.slane %v9436, 5
        %v9439 = vor.u32 %v9435, %v9438
        %v9441 = vshrl.u32 %v9417, 16
        %v9443 = vrot.slane %v9441, 4
        %v9444 = vshll.u32 %v9417, 16
        %v9446 = vrot.slane %v9444, 5
        %v9447 = vor.u32 %v9443, %v9446
        %v9449 = vshrl.u32 %v9418, 16
        %v9451 = vrot.slane %v9449, 4
        %v9452 = vshll.u32 %v9418, 16
        %v9454 = vrot.slane %v9452, 5
        %v9455 = vor.u32 %v9451, %v9454
        %v9457 = vshrl.u32 %v9419, 16
        %v9459 = vrot.slane %v9457, 4
        %v9460 = vshll.u32 %v9419, 16
        %v9462 = vrot.slane %v9460, 5
        %v9463 = vor.u32 %v9459, %v9462
        %v9465 = vshrl.u32 %v9420, 16
        %v9467 = vrot.slane %v9465, 4
        %v9468 = vshll.u32 %v9420, 16
        %v9470 = vrot.slane %v9468, 5
        %v9471 = vor.u32 %v9467, %v9470
        %v9473 = vshrl.u32 %v9421, 16
        %v9475 = vrot.slane %v9473, 4
        %v9476 = vshll.u32 %v9421, 16
        %v9478 = vrot.slane %v9476, 5
        %v9479 = vor.u32 %v9475, %v9478
        %v9481 = vshrl.u32 %v9422, 16
        %v9483 = vrot.slane %v9481, 4
        %v9484 = vshll.u32 %v9422, 16
        %v9486 = vrot.slane %v9484, 5
        %v9487 = vor.u32 %v9483, %v9486
        %v9489 = vshrl.u32 %v9423, 16
        %v9491 = vrot.slane %v9489, 4
        %v9492 = vshll.u32 %v9423, 16
        %v9494 = vrot.slane %v9492, 5
        %v9495 = vor.u32 %v9491, %v9494
        %v9497 = vshrl.u32 %v9424, 16
        %v9499 = vrot.slane %v9497, 4
        %v9500 = vshll.u32 %v9424, 16
        %v9502 = vrot.slane %v9500, 5
        %v9503 = vor.u32 %v9499, %v9502
        %v9505 = vshrl.u32 %v9425, 16
        %v9507 = vrot.slane %v9505, 4
        %v9508 = vshll.u32 %v9425, 16
        %v9510 = vrot.slane %v9508, 5
        %v9511 = vor.u32 %v9507, %v9510
        %v9513 = vshrl.u32 %v9426, 16
        %v9515 = vrot.slane %v9513, 4
        %v9516 = vshll.u32 %v9426, 16
        %v9518 = vrot.slane %v9516, 5
        %v9519 = vor.u32 %v9515, %v9518
        %v9521 = vshrl.u32 %v9427, 16
        %v9523 = vrot.slane %v9521, 4
        %v9524 = vshll.u32 %v9427, 16
        %v9526 = vrot.slane %v9524, 5
        %v9527 = vor.u32 %v9523, %v9526
        %v9529 = vshrl.u32 %v9428, 16
        %v9531 = vrot.slane %v9529, 4
        %v9532 = vshll.u32 %v9428, 16
        %v9534 = vrot.slane %v9532, 5
        %v9535 = vor.u32 %v9531, %v9534
        %v9537 = vshrl.u32 %v9429, 16
        %v9539 = vrot.slane %v9537, 4
        %v9540 = vshll.u32 %v9429, 16
        %v9542 = vrot.slane %v9540, 5
        %v9543 = vor.u32 %v9539, %v9542
        %v9545 = vshrl.u32 %v9430, 16
        %v9547 = vrot.slane %v9545, 4
        %v9548 = vshll.u32 %v9430, 16
        %v9550 = vrot.slane %v9548, 5
        %v9551 = vor.u32 %v9547, %v9550
        %v9553 = vshrl.u32 %v9431, 16
        %v9555 = vrot.slane %v9553, 4
        %v9556 = vshll.u32 %v9431, 16
        %v9558 = vrot.slane %v9556, 5
        %v9559 = vor.u32 %v9555, %v9558
        %v9576 = vunpack.c.l.b16 %v9272
        %v9577 = vunpack.c.l.b16 %v9273
        %v9578 = vunpack.c.l.b16 %v9274
        %v9579 = vunpack.c.l.b16 %v9275
        %v9580 = vunpack.c.l.b16 %v9276
        %v9581 = vunpack.c.l.b16 %v9277
        %v9582 = vunpack.c.l.b16 %v9278
        %v9583 = vunpack.c.l.b16 %v9279
        %v9584 = vunpack.c.l.b16 %v9280
        %v9585 = vunpack.c.l.b16 %v9281
        %v9586 = vunpack.c.l.b16 %v9282
        %v9587 = vunpack.c.l.b16 %v9283
        %v9588 = vunpack.c.l.b16 %v9284
        %v9589 = vunpack.c.l.b16 %v9285
        %v9590 = vunpack.c.l.b16 %v9286
        %v9591 = vunpack.c.l.b16 %v9287
        %v9592 = vpack.c.b16 %v9576, %v9576
        %v9593 = vpack.c.b16 %v9577, %v9577
        %v9594 = vpack.c.b16 %v9578, %v9578
        %v9595 = vpack.c.b16 %v9579, %v9579
        %v9596 = vpack.c.b16 %v9580, %v9580
        %v9597 = vpack.c.b16 %v9581, %v9581
        %v9598 = vpack.c.b16 %v9582, %v9582
        %v9599 = vpack.c.b16 %v9583, %v9583
        %v9600 = vpack.c.b16 %v9584, %v9584
        %v9601 = vpack.c.b16 %v9585, %v9585
        %v9602 = vpack.c.b16 %v9586, %v9586
        %v9603 = vpack.c.b16 %v9587, %v9587
        %v9604 = vpack.c.b16 %v9588, %v9588
        %v9605 = vpack.c.b16 %v9589, %v9589
        %v9606 = vpack.c.b16 %v9590, %v9590
        %v9607 = vpack.c.b16 %v9591, %v9591
        %v9608 = vrot.slane %v9416, 5
        %v9609 = vrot.slane %v9592, 5
        %v9610 = vsel %vm930, %v9608, %v9609
        %v9611 = vrot.slane %v9417, 5
        %v9612 = vrot.slane %v9593, 5
        %v9613 = vsel %vm930, %v9611, %v9612
        %v9614 = vrot.slane %v9418, 5
        %v9615 = vrot.slane %v9594, 5
        %v9616 = vsel %vm930, %v9614, %v9615
        %v9617 = vrot.slane %v9419, 5
        %v9618 = vrot.slane %v9595, 5
        %v9619 = vsel %vm930, %v9617, %v9618
        %v9620 = vrot.slane %v9420, 5
        %v9621 = vrot.slane %v9596, 5
        %v9622 = vsel %vm930, %v9620, %v9621
        %v9623 = vrot.slane %v9421, 5
        %v9624 = vrot.slane %v9597, 5
        %v9625 = vsel %vm930, %v9623, %v9624
        %v9626 = vrot.slane %v9422, 5
        %v9627 = vrot.slane %v9598, 5
        %v9628 = vsel %vm930, %v9626, %v9627
        %v9629 = vrot.slane %v9423, 5
        %v9630 = vrot.slane %v9599, 5
        %v9631 = vsel %vm930, %v9629, %v9630
        %v9632 = vrot.slane %v9424, 5
        %v9633 = vrot.slane %v9600, 5
        %v9634 = vsel %vm930, %v9632, %v9633
        %v9635 = vrot.slane %v9425, 5
        %v9636 = vrot.slane %v9601, 5
        %v9637 = vsel %vm930, %v9635, %v9636
        %v9638 = vrot.slane %v9426, 5
        %v9639 = vrot.slane %v9602, 5
        %v9640 = vsel %vm930, %v9638, %v9639
        %v9641 = vrot.slane %v9427, 5
        %v9642 = vrot.slane %v9603, 5
        %v9643 = vsel %vm930, %v9641, %v9642
        %v9644 = vrot.slane %v9428, 5
        %v9645 = vrot.slane %v9604, 5
        %v9646 = vsel %vm930, %v9644, %v9645
        %v9647 = vrot.slane %v9429, 5
        %v9648 = vrot.slane %v9605, 5
        %v9649 = vsel %vm930, %v9647, %v9648
        %v9650 = vrot.slane %v9430, 5
        %v9651 = vrot.slane %v9606, 5
        %v9652 = vsel %vm930, %v9650, %v9651
        %v9653 = vrot.slane %v9431, 5
        %v9654 = vrot.slane %v9607, 5
        %v9655 = vsel %vm930, %v9653, %v9654
        %v9657 = vshrl.u32 %v9384, 16
        %v9659 = vrot.slane %v9657, 3
        %v9660 = vshll.u32 %v9384, 16
        %v9662 = vrot.slane %v9660, 4
        %v9663 = vor.u32 %v9659, %v9662
        %v9665 = vshrl.u32 %v9385, 16
        %v9667 = vrot.slane %v9665, 3
        %v9668 = vshll.u32 %v9385, 16
        %v9670 = vrot.slane %v9668, 4
        %v9671 = vor.u32 %v9667, %v9670
        %v9672 = vsel %vm979, %v9663, %v9671
        %v9674 = vshrl.u32 %v9439, 16
        %v9676 = vrot.slane %v9674, 3
        %v9677 = vshll.u32 %v9439, 16
        %v9679 = vrot.slane %v9677, 4
        %v9680 = vor.u32 %v9676, %v9679
        %v9681 = vsel %vm979, %v9680, %v9680
        %v9683 = vshrl.u32 %v9608, 16
        %v9685 = vrot.slane %v9683, 3
        %v9686 = vshll.u32 %v9608, 16
        %v9688 = vrot.slane %v9686, 4
        %v9689 = vor.u32 %v9685, %v9688
        %v9691 = vshrl.u32 %v9610, 16
        %v9693 = vrot.slane %v9691, 3
        %v9694 = vshll.u32 %v9610, 16
        %v9696 = vrot.slane %v9694, 4
        %v9697 = vor.u32 %v9693, %v9696
        %v9698 = vsel %vm979, %v9689, %v9697
        %v9700 = vshrl.u32 %v9386, 16
        %v9702 = vrot.slane %v9700, 3
        %v9703 = vshll.u32 %v9386, 16
        %v9705 = vrot.slane %v9703, 4
        %v9706 = vor.u32 %v9702, %v9705
        %v9708 = vshrl.u32 %v9387, 16
        %v9710 = vrot.slane %v9708, 3
        %v9711 = vshll.u32 %v9387, 16
        %v9713 = vrot.slane %v9711, 4
        %v9714 = vor.u32 %v9710, %v9713
        %v9715 = vsel %vm979, %v9706, %v9714
        %v9717 = vshrl.u32 %v9447, 16
        %v9719 = vrot.slane %v9717, 3
        %v9720 = vshll.u32 %v9447, 16
        %v9722 = vrot.slane %v9720, 4
        %v9723 = vor.u32 %v9719, %v9722
        %v9724 = vsel %vm979, %v9723, %v9723
        %v9726 = vshrl.u32 %v9611, 16
        %v9728 = vrot.slane %v9726, 3
        %v9729 = vshll.u32 %v9611, 16
        %v9731 = vrot.slane %v9729, 4
        %v9732 = vor.u32 %v9728, %v9731
        %v9734 = vshrl.u32 %v9613, 16
        %v9736 = vrot.slane %v9734, 3
        %v9737 = vshll.u32 %v9613, 16
        %v9739 = vrot.slane %v9737, 4
        %v9740 = vor.u32 %v9736, %v9739
        %v9741 = vsel %vm979, %v9732, %v9740
        %v9743 = vshrl.u32 %v9388, 16
        %v9745 = vrot.slane %v9743, 3
        %v9746 = vshll.u32 %v9388, 16
        %v9748 = vrot.slane %v9746, 4
        %v9749 = vor.u32 %v9745, %v9748
        %v9751 = vshrl.u32 %v9389, 16
        %v9753 = vrot.slane %v9751, 3
        %v9754 = vshll.u32 %v9389, 16
        %v9756 = vrot.slane %v9754, 4
        %v9757 = vor.u32 %v9753, %v9756
        %v9758 = vsel %vm979, %v9749, %v9757
        %v9760 = vshrl.u32 %v9455, 16
        %v9762 = vrot.slane %v9760, 3
        %v9763 = vshll.u32 %v9455, 16
        %v9765 = vrot.slane %v9763, 4
        %v9766 = vor.u32 %v9762, %v9765
        %v9767 = vsel %vm979, %v9766, %v9766
        %v9769 = vshrl.u32 %v9614, 16
        %v9771 = vrot.slane %v9769, 3
        %v9772 = vshll.u32 %v9614, 16
        %v9774 = vrot.slane %v9772, 4
        %v9775 = vor.u32 %v9771, %v9774
        %v9777 = vshrl.u32 %v9616, 16
        %v9779 = vrot.slane %v9777, 3
        %v9780 = vshll.u32 %v9616, 16
        %v9782 = vrot.slane %v9780, 4
        %v9783 = vor.u32 %v9779, %v9782
        %v9784 = vsel %vm979, %v9775, %v9783
        %v9786 = vshrl.u32 %v9390, 16
        %v9788 = vrot.slane %v9786, 3
        %v9789 = vshll.u32 %v9390, 16
        %v9791 = vrot.slane %v9789, 4
        %v9792 = vor.u32 %v9788, %v9791
        %v9794 = vshrl.u32 %v9391, 16
        %v9796 = vrot.slane %v9794, 3
        %v9797 = vshll.u32 %v9391, 16
        %v9799 = vrot.slane %v9797, 4
        %v9800 = vor.u32 %v9796, %v9799
        %v9801 = vsel %vm979, %v9792, %v9800
        %v9803 = vshrl.u32 %v9463, 16
        %v9805 = vrot.slane %v9803, 3
        %v9806 = vshll.u32 %v9463, 16
        %v9808 = vrot.slane %v9806, 4
        %v9809 = vor.u32 %v9805, %v9808
        %v9810 = vsel %vm979, %v9809, %v9809
        %v9812 = vshrl.u32 %v9617, 16
        %v9814 = vrot.slane %v9812, 3
        %v9815 = vshll.u32 %v9617, 16
        %v9817 = vrot.slane %v9815, 4
        %v9818 = vor.u32 %v9814, %v9817
        %v9820 = vshrl.u32 %v9619, 16
        %v9822 = vrot.slane %v9820, 3
        %v9823 = vshll.u32 %v9619, 16
        %v9825 = vrot.slane %v9823, 4
        %v9826 = vor.u32 %v9822, %v9825
        %v9827 = vsel %vm979, %v9818, %v9826
        %v9829 = vshrl.u32 %v9392, 16
        %v9831 = vrot.slane %v9829, 3
        %v9832 = vshll.u32 %v9392, 16
        %v9834 = vrot.slane %v9832, 4
        %v9835 = vor.u32 %v9831, %v9834
        %v9837 = vshrl.u32 %v9393, 16
        %v9839 = vrot.slane %v9837, 3
        %v9840 = vshll.u32 %v9393, 16
        %v9842 = vrot.slane %v9840, 4
        %v9843 = vor.u32 %v9839, %v9842
        %v9844 = vsel %vm979, %v9835, %v9843
        %v9846 = vshrl.u32 %v9471, 16
        %v9848 = vrot.slane %v9846, 3
        %v9849 = vshll.u32 %v9471, 16
        %v9851 = vrot.slane %v9849, 4
        %v9852 = vor.u32 %v9848, %v9851
        %v9853 = vsel %vm979, %v9852, %v9852
        %v9855 = vshrl.u32 %v9620, 16
        %v9857 = vrot.slane %v9855, 3
        %v9858 = vshll.u32 %v9620, 16
        %v9860 = vrot.slane %v9858, 4
        %v9861 = vor.u32 %v9857, %v9860
        %v9863 = vshrl.u32 %v9622, 16
        %v9865 = vrot.slane %v9863, 3
        %v9866 = vshll.u32 %v9622, 16
        %v9868 = vrot.slane %v9866, 4
        %v9869 = vor.u32 %v9865, %v9868
        %v9870 = vsel %vm979, %v9861, %v9869
        %v9872 = vshrl.u32 %v9394, 16
        %v9874 = vrot.slane %v9872, 3
        %v9875 = vshll.u32 %v9394, 16
        %v9877 = vrot.slane %v9875, 4
        %v9878 = vor.u32 %v9874, %v9877
        %v9880 = vshrl.u32 %v9395, 16
        %v9882 = vrot.slane %v9880, 3
        %v9883 = vshll.u32 %v9395, 16
        %v9885 = vrot.slane %v9883, 4
        %v9886 = vor.u32 %v9882, %v9885
        %v9887 = vsel %vm979, %v9878, %v9886
        %v9889 = vshrl.u32 %v9479, 16
        %v9891 = vrot.slane %v9889, 3
        %v9892 = vshll.u32 %v9479, 16
        %v9894 = vrot.slane %v9892, 4
        %v9895 = vor.u32 %v9891, %v9894
        %v9896 = vsel %vm979, %v9895, %v9895
        %v9898 = vshrl.u32 %v9623, 16
        %v9900 = vrot.slane %v9898, 3
        %v9901 = vshll.u32 %v9623, 16
        %v9903 = vrot.slane %v9901, 4
        %v9904 = vor.u32 %v9900, %v9903
        %v9906 = vshrl.u32 %v9625, 16
        %v9908 = vrot.slane %v9906, 3
        %v9909 = vshll.u32 %v9625, 16
        %v9911 = vrot.slane %v9909, 4
        %v9912 = vor.u32 %v9908, %v9911
        %v9913 = vsel %vm979, %v9904, %v9912
        %v9915 = vshrl.u32 %v9396, 16
        %v9917 = vrot.slane %v9915, 3
        %v9918 = vshll.u32 %v9396, 16
        %v9920 = vrot.slane %v9918, 4
        %v9921 = vor.u32 %v9917, %v9920
        %v9923 = vshrl.u32 %v9397, 16
        %v9925 = vrot.slane %v9923, 3
        %v9926 = vshll.u32 %v9397, 16
        %v9928 = vrot.slane %v9926, 4
        %v9929 = vor.u32 %v9925, %v9928
        %v9930 = vsel %vm979, %v9921, %v9929
        %v9932 = vshrl.u32 %v9487, 16
        %v9934 = vrot.slane %v9932, 3
        %v9935 = vshll.u32 %v9487, 16
        %v9937 = vrot.slane %v9935, 4
        %v9938 = vor.u32 %v9934, %v9937
        %v9939 = vsel %vm979, %v9938, %v9938
        %v9941 = vshrl.u32 %v9626, 16
        %v9943 = vrot.slane %v9941, 3
        %v9944 = vshll.u32 %v9626, 16
        %v9946 = vrot.slane %v9944, 4
        %v9947 = vor.u32 %v9943, %v9946
        %v9949 = vshrl.u32 %v9628, 16
        %v9951 = vrot.slane %v9949, 3
        %v9952 = vshll.u32 %v9628, 16
        %v9954 = vrot.slane %v9952, 4
        %v9955 = vor.u32 %v9951, %v9954
        %v9956 = vsel %vm979, %v9947, %v9955
        %v9958 = vshrl.u32 %v9398, 16
        %v9960 = vrot.slane %v9958, 3
        %v9961 = vshll.u32 %v9398, 16
        %v9963 = vrot.slane %v9961, 4
        %v9964 = vor.u32 %v9960, %v9963
        %v9966 = vshrl.u32 %v9399, 16
        %v9968 = vrot.slane %v9966, 3
        %v9969 = vshll.u32 %v9399, 16
        %v9971 = vrot.slane %v9969, 4
        %v9972 = vor.u32 %v9968, %v9971
        %v9973 = vsel %vm979, %v9964, %v9972
        %v9975 = vshrl.u32 %v9495, 16
        %v9977 = vrot.slane %v9975, 3
        %v9978 = vshll.u32 %v9495, 16
        %v9980 = vrot.slane %v9978, 4
        %v9981 = vor.u32 %v9977, %v9980
        %v9982 = vsel %vm979, %v9981, %v9981
        %v9984 = vshrl.u32 %v9629, 16
        %v9986 = vrot.slane %v9984, 3
        %v9987 = vshll.u32 %v9629, 16
        %v9989 = vrot.slane %v9987, 4
        %v9990 = vor.u32 %v9986, %v9989
        %v9992 = vshrl.u32 %v9631, 16
        %v9994 = vrot.slane %v9992, 3
        %v9995 = vshll.u32 %v9631, 16
        %v9997 = vrot.slane %v9995, 4
        %v9998 = vor.u32 %v9994, %v9997
        %v9999 = vsel %vm979, %v9990, %v9998
        %v10001 = vshrl.u32 %v9400, 16
        %v10003 = vrot.slane %v10001, 3
        %v10004 = vshll.u32 %v9400, 16
        %v10006 = vrot.slane %v10004, 4
        %v10007 = vor.u32 %v10003, %v10006
        %v10009 = vshrl.u32 %v9401, 16
        %v10011 = vrot.slane %v10009, 3
        %v10012 = vshll.u32 %v9401, 16
        %v10014 = vrot.slane %v10012, 4
        %v10015 = vor.u32 %v10011, %v10014
        %v10016 = vsel %vm979, %v10007, %v10015
        %v10018 = vshrl.u32 %v9503, 16
        %v10020 = vrot.slane %v10018, 3
        %v10021 = vshll.u32 %v9503, 16
        %v10023 = vrot.slane %v10021, 4
        %v10024 = vor.u32 %v10020, %v10023
        %v10025 = vsel %vm979, %v10024, %v10024
        %v10027 = vshrl.u32 %v9632, 16
        %v10029 = vrot.slane %v10027, 3
        %v10030 = vshll.u32 %v9632, 16
        %v10032 = vrot.slane %v10030, 4
        %v10033 = vor.u32 %v10029, %v10032
        %v10035 = vshrl.u32 %v9634, 16
        %v10037 = vrot.slane %v10035, 3
        %v10038 = vshll.u32 %v9634, 16
        %v10040 = vrot.slane %v10038, 4
        %v10041 = vor.u32 %v10037, %v10040
        %v10042 = vsel %vm979, %v10033, %v10041
        %v10044 = vshrl.u32 %v9402, 16
        %v10046 = vrot.slane %v10044, 3
        %v10047 = vshll.u32 %v9402, 16
        %v10049 = vrot.slane %v10047, 4
        %v10050 = vor.u32 %v10046, %v10049
        %v10052 = vshrl.u32 %v9403, 16
        %v10054 = vrot.slane %v10052, 3
        %v10055 = vshll.u32 %v9403, 16
        %v10057 = vrot.slane %v10055, 4
        %v10058 = vor.u32 %v10054, %v10057
        %v10059 = vsel %vm979, %v10050, %v10058
        %v10061 = vshrl.u32 %v9511, 16
        %v10063 = vrot.slane %v10061, 3
        %v10064 = vshll.u32 %v9511, 16
        %v10066 = vrot.slane %v10064, 4
        %v10067 = vor.u32 %v10063, %v10066
        %v10068 = vsel %vm979, %v10067, %v10067
        %v10070 = vshrl.u32 %v9635, 16
        %v10072 = vrot.slane %v10070, 3
        %v10073 = vshll.u32 %v9635, 16
        %v10075 = vrot.slane %v10073, 4
        %v10076 = vor.u32 %v10072, %v10075
        %v10078 = vshrl.u32 %v9637, 16
        %v10080 = vrot.slane %v10078, 3
        %v10081 = vshll.u32 %v9637, 16
        %v10083 = vrot.slane %v10081, 4
        %v10084 = vor.u32 %v10080, %v10083
        %v10085 = vsel %vm979, %v10076, %v10084
        %v10087 = vshrl.u32 %v9404, 16
        %v10089 = vrot.slane %v10087, 3
        %v10090 = vshll.u32 %v9404, 16
        %v10092 = vrot.slane %v10090, 4
        %v10093 = vor.u32 %v10089, %v10092
        %v10095 = vshrl.u32 %v9405, 16
        %v10097 = vrot.slane %v10095, 3
        %v10098 = vshll.u32 %v9405, 16
        %v10100 = vrot.slane %v10098, 4
        %v10101 = vor.u32 %v10097, %v10100
        %v10102 = vsel %vm979, %v10093, %v10101
        %v10104 = vshrl.u32 %v9519, 16
        %v10106 = vrot.slane %v10104, 3
        %v10107 = vshll.u32 %v9519, 16
        %v10109 = vrot.slane %v10107, 4
        %v10110 = vor.u32 %v10106, %v10109
        %v10111 = vsel %vm979, %v10110, %v10110
        %v10113 = vshrl.u32 %v9638, 16
        %v10115 = vrot.slane %v10113, 3
        %v10116 = vshll.u32 %v9638, 16
        %v10118 = vrot.slane %v10116, 4
        %v10119 = vor.u32 %v10115, %v10118
        %v10121 = vshrl.u32 %v9640, 16
        %v10123 = vrot.slane %v10121, 3
        %v10124 = vshll.u32 %v9640, 16
        %v10126 = vrot.slane %v10124, 4
        %v10127 = vor.u32 %v10123, %v10126
        %v10128 = vsel %vm979, %v10119, %v10127
        %v10130 = vshrl.u32 %v9406, 16
        %v10132 = vrot.slane %v10130, 3
        %v10133 = vshll.u32 %v9406, 16
        %v10135 = vrot.slane %v10133, 4
        %v10136 = vor.u32 %v10132, %v10135
        %v10138 = vshrl.u32 %v9407, 16
        %v10140 = vrot.slane %v10138, 3
        %v10141 = vshll.u32 %v9407, 16
        %v10143 = vrot.slane %v10141, 4
        %v10144 = vor.u32 %v10140, %v10143
        %v10145 = vsel %vm979, %v10136, %v10144
        %v10147 = vshrl.u32 %v9527, 16
        %v10149 = vrot.slane %v10147, 3
        %v10150 = vshll.u32 %v9527, 16
        %v10152 = vrot.slane %v10150, 4
        %v10153 = vor.u32 %v10149, %v10152
        %v10154 = vsel %vm979, %v10153, %v10153
        %v10156 = vshrl.u32 %v9641, 16
        %v10158 = vrot.slane %v10156, 3
        %v10159 = vshll.u32 %v9641, 16
        %v10161 = vrot.slane %v10159, 4
        %v10162 = vor.u32 %v10158, %v10161
        %v10164 = vshrl.u32 %v9643, 16
        %v10166 = vrot.slane %v10164, 3
        %v10167 = vshll.u32 %v9643, 16
        %v10169 = vrot.slane %v10167, 4
        %v10170 = vor.u32 %v10166, %v10169
        %v10171 = vsel %vm979, %v10162, %v10170
        %v10173 = vshrl.u32 %v9408, 16
        %v10175 = vrot.slane %v10173, 3
        %v10176 = vshll.u32 %v9408, 16
        %v10178 = vrot.slane %v10176, 4
        %v10179 = vor.u32 %v10175, %v10178
        %v10181 = vshrl.u32 %v9409, 16
        %v10183 = vrot.slane %v10181, 3
        %v10184 = vshll.u32 %v9409, 16
        %v10186 = vrot.slane %v10184, 4
        %v10187 = vor.u32 %v10183, %v10186
        %v10188 = vsel %vm979, %v10179, %v10187
        %v10190 = vshrl.u32 %v9535, 16
        %v10192 = vrot.slane %v10190, 3
        %v10193 = vshll.u32 %v9535, 16
        %v10195 = vrot.slane %v10193, 4
        %v10196 = vor.u32 %v10192, %v10195
        %v10197 = vsel %vm979, %v10196, %v10196
        %v10199 = vshrl.u32 %v9644, 16
        %v10201 = vrot.slane %v10199, 3
        %v10202 = vshll.u32 %v9644, 16
        %v10204 = vrot.slane %v10202, 4
        %v10205 = vor.u32 %v10201, %v10204
        %v10207 = vshrl.u32 %v9646, 16
        %v10209 = vrot.slane %v10207, 3
        %v10210 = vshll.u32 %v9646, 16
        %v10212 = vrot.slane %v10210, 4
        %v10213 = vor.u32 %v10209, %v10212
        %v10214 = vsel %vm979, %v10205, %v10213
        %v10216 = vshrl.u32 %v9410, 16
        %v10218 = vrot.slane %v10216, 3
        %v10219 = vshll.u32 %v9410, 16
        %v10221 = vrot.slane %v10219, 4
        %v10222 = vor.u32 %v10218, %v10221
        %v10224 = vshrl.u32 %v9411, 16
        %v10226 = vrot.slane %v10224, 3
        %v10227 = vshll.u32 %v9411, 16
        %v10229 = vrot.slane %v10227, 4
        %v10230 = vor.u32 %v10226, %v10229
        %v10231 = vsel %vm979, %v10222, %v10230
        %v10233 = vshrl.u32 %v9543, 16
        %v10235 = vrot.slane %v10233, 3
        %v10236 = vshll.u32 %v9543, 16
        %v10238 = vrot.slane %v10236, 4
        %v10239 = vor.u32 %v10235, %v10238
        %v10240 = vsel %vm979, %v10239, %v10239
        %v10242 = vshrl.u32 %v9647, 16
        %v10244 = vrot.slane %v10242, 3
        %v10245 = vshll.u32 %v9647, 16
        %v10247 = vrot.slane %v10245, 4
        %v10248 = vor.u32 %v10244, %v10247
        %v10250 = vshrl.u32 %v9649, 16
        %v10252 = vrot.slane %v10250, 3
        %v10253 = vshll.u32 %v9649, 16
        %v10255 = vrot.slane %v10253, 4
        %v10256 = vor.u32 %v10252, %v10255
        %v10257 = vsel %vm979, %v10248, %v10256
        %v10259 = vshrl.u32 %v9412, 16
        %v10261 = vrot.slane %v10259, 3
        %v10262 = vshll.u32 %v9412, 16
        %v10264 = vrot.slane %v10262, 4
        %v10265 = vor.u32 %v10261, %v10264
        %v10267 = vshrl.u32 %v9413, 16
        %v10269 = vrot.slane %v10267, 3
        %v10270 = vshll.u32 %v9413, 16
        %v10272 = vrot.slane %v10270, 4
        %v10273 = vor.u32 %v10269, %v10272
        %v10274 = vsel %vm979, %v10265, %v10273
        %v10276 = vshrl.u32 %v9551, 16
        %v10278 = vrot.slane %v10276, 3
        %v10279 = vshll.u32 %v9551, 16
        %v10281 = vrot.slane %v10279, 4
        %v10282 = vor.u32 %v10278, %v10281
        %v10283 = vsel %vm979, %v10282, %v10282
        %v10285 = vshrl.u32 %v9650, 16
        %v10287 = vrot.slane %v10285, 3
        %v10288 = vshll.u32 %v9650, 16
        %v10290 = vrot.slane %v10288, 4
        %v10291 = vor.u32 %v10287, %v10290
        %v10293 = vshrl.u32 %v9652, 16
        %v10295 = vrot.slane %v10293, 3
        %v10296 = vshll.u32 %v9652, 16
        %v10298 = vrot.slane %v10296, 4
        %v10299 = vor.u32 %v10295, %v10298
        %v10300 = vsel %vm979, %v10291, %v10299
        %v10302 = vshrl.u32 %v9414, 16
        %v10304 = vrot.slane %v10302, 3
        %v10305 = vshll.u32 %v9414, 16
        %v10307 = vrot.slane %v10305, 4
        %v10308 = vor.u32 %v10304, %v10307
        %v10310 = vshrl.u32 %v9415, 16
        %v10312 = vrot.slane %v10310, 3
        %v10313 = vshll.u32 %v9415, 16
        %v10315 = vrot.slane %v10313, 4
        %v10316 = vor.u32 %v10312, %v10315
        %v10317 = vsel %vm979, %v10308, %v10316
        %v10319 = vshrl.u32 %v9559, 16
        %v10321 = vrot.slane %v10319, 3
        %v10322 = vshll.u32 %v9559, 16
        %v10324 = vrot.slane %v10322, 4
        %v10325 = vor.u32 %v10321, %v10324
        %v10326 = vsel %vm979, %v10325, %v10325
        %v10328 = vshrl.u32 %v9653, 16
        %v10330 = vrot.slane %v10328, 3
        %v10331 = vshll.u32 %v9653, 16
        %v10333 = vrot.slane %v10331, 4
        %v10334 = vor.u32 %v10330, %v10333
        %v10336 = vshrl.u32 %v9655, 16
        %v10338 = vrot.slane %v10336, 3
        %v10339 = vshll.u32 %v9655, 16
        %v10341 = vrot.slane %v10339, 4
        %v10342 = vor.u32 %v10338, %v10341
        %v10343 = vsel %vm979, %v10334, %v10342
        %v10392 = vld [vmem:[#allocation4 + $0x180] sm:$0xf]
        %v10393 = vld [vmem:[#allocation4 + $0x184] sm:$0xf]
        %v10394 = vld [vmem:[#allocation4 + $0x188] sm:$0xf]
        %v10395 = vld [vmem:[#allocation4 + $0x18c] sm:$0xf]
        %v10396 = vld [vmem:[#allocation4 + $0x190] sm:$0xf]
        %v10397 = vld [vmem:[#allocation4 + $0x194] sm:$0xf]
        %v10398 = vld [vmem:[#allocation4 + $0x198] sm:$0xf]
        %v10399 = vld [vmem:[#allocation4 + $0x19c] sm:$0xf]
        %v10400 = vld [vmem:[#allocation4 + $0x1a0] sm:$0xf]
        %v10401 = vld [vmem:[#allocation4 + $0x1a4] sm:$0xf]
        %v10402 = vld [vmem:[#allocation4 + $0x1a8] sm:$0xf]
        %v10403 = vld [vmem:[#allocation4 + $0x1ac] sm:$0xf]
        %v10404 = vld [vmem:[#allocation4 + $0x1b0] sm:$0xf]
        %v10405 = vld [vmem:[#allocation4 + $0x1b4] sm:$0xf]
        %v10406 = vld [vmem:[#allocation4 + $0x1b8] sm:$0xf]
        %v10407 = vld [vmem:[#allocation4 + $0x1bc] sm:$0xf]
        %v10408 = vld [vmem:[#allocation4 + $0x1c0] sm:$0xf]
        %v10409 = vld [vmem:[#allocation4 + $0x1c4] sm:$0xf]
        %v10410 = vld [vmem:[#allocation4 + $0x1c8] sm:$0xf]
        %v10411 = vld [vmem:[#allocation4 + $0x1cc] sm:$0xf]
        %v10412 = vld [vmem:[#allocation4 + $0x1d0] sm:$0xf]
        %v10413 = vld [vmem:[#allocation4 + $0x1d4] sm:$0xf]
        %v10414 = vld [vmem:[#allocation4 + $0x1d8] sm:$0xf]
        %v10415 = vld [vmem:[#allocation4 + $0x1dc] sm:$0xf]
        %v10416 = vld [vmem:[#allocation4 + $0x1e0] sm:$0xf]
        %v10417 = vld [vmem:[#allocation4 + $0x1e4] sm:$0xf]
        %v10418 = vld [vmem:[#allocation4 + $0x1e8] sm:$0xf]
        %v10419 = vld [vmem:[#allocation4 + $0x1ec] sm:$0xf]
        %v10420 = vld [vmem:[#allocation4 + $0x1f0] sm:$0xf]
        %v10421 = vld [vmem:[#allocation4 + $0x1f4] sm:$0xf]
        %v10422 = vld [vmem:[#allocation4 + $0x1f8] sm:$0xf]
        %v10423 = vld [vmem:[#allocation4 + $0x1fc] sm:$0xf]
        %v10424 = vld [vmem:[#allocation4 + $0x200] sm:$0xf]
        %v10425 = vld [vmem:[#allocation4 + $0x204] sm:$0xf]
        %v10426 = vld [vmem:[#allocation4 + $0x208] sm:$0xf]
        %v10427 = vld [vmem:[#allocation4 + $0x20c] sm:$0xf]
        %v10428 = vld [vmem:[#allocation4 + $0x210] sm:$0xf]
        %v10429 = vld [vmem:[#allocation4 + $0x214] sm:$0xf]
        %v10430 = vld [vmem:[#allocation4 + $0x218] sm:$0xf]
        %v10431 = vld [vmem:[#allocation4 + $0x21c] sm:$0xf]
        %v10432 = vld [vmem:[#allocation4 + $0x220] sm:$0xf]
        %v10433 = vld [vmem:[#allocation4 + $0x224] sm:$0xf]
        %v10434 = vld [vmem:[#allocation4 + $0x228] sm:$0xf]
        %v10435 = vld [vmem:[#allocation4 + $0x22c] sm:$0xf]
        %v10436 = vld [vmem:[#allocation4 + $0x230] sm:$0xf]
        %v10437 = vld [vmem:[#allocation4 + $0x234] sm:$0xf]
        %v10438 = vld [vmem:[#allocation4 + $0x238] sm:$0xf]
        %v10439 = vld [vmem:[#allocation4 + $0x23c] sm:$0xf]
        %v10488 = vunpack.c.l.b16 %v10392
        %v10489 = vunpack.c.l.b16 %v10393
        %v10490 = vunpack.c.l.b16 %v10394
        %v10491 = vunpack.c.l.b16 %v10395
        %v10492 = vunpack.c.l.b16 %v10396
        %v10493 = vunpack.c.l.b16 %v10397
        %v10494 = vunpack.c.l.b16 %v10398
        %v10495 = vunpack.c.l.b16 %v10399
        %v10496 = vunpack.c.l.b16 %v10400
        %v10497 = vunpack.c.l.b16 %v10401
        %v10498 = vunpack.c.l.b16 %v10402
        %v10499 = vunpack.c.l.b16 %v10403
        %v10500 = vunpack.c.l.b16 %v10404
        %v10501 = vunpack.c.l.b16 %v10405
        %v10502 = vunpack.c.l.b16 %v10406
        %v10503 = vunpack.c.l.b16 %v10407
        %v10504 = vunpack.c.l.b16 %v10408
        %v10505 = vunpack.c.l.b16 %v10409
        %v10506 = vunpack.c.l.b16 %v10410
        %v10507 = vunpack.c.l.b16 %v10411
        %v10508 = vunpack.c.l.b16 %v10412
        %v10509 = vunpack.c.l.b16 %v10413
        %v10510 = vunpack.c.l.b16 %v10414
        %v10511 = vunpack.c.l.b16 %v10415
        %v10512 = vunpack.c.l.b16 %v10416
        %v10513 = vunpack.c.l.b16 %v10417
        %v10514 = vunpack.c.l.b16 %v10418
        %v10515 = vunpack.c.l.b16 %v10419
        %v10516 = vunpack.c.l.b16 %v10420
        %v10517 = vunpack.c.l.b16 %v10421
        %v10518 = vunpack.c.l.b16 %v10422
        %v10519 = vunpack.c.l.b16 %v10423
        %v10520 = vunpack.c.l.b16 %v10424
        %v10521 = vunpack.c.l.b16 %v10425
        %v10522 = vunpack.c.l.b16 %v10426
        %v10523 = vunpack.c.l.b16 %v10427
        %v10524 = vunpack.c.l.b16 %v10428
        %v10525 = vunpack.c.l.b16 %v10429
        %v10526 = vunpack.c.l.b16 %v10430
        %v10527 = vunpack.c.l.b16 %v10431
        %v10528 = vunpack.c.l.b16 %v10432
        %v10529 = vunpack.c.l.b16 %v10433
        %v10530 = vunpack.c.l.b16 %v10434
        %v10531 = vunpack.c.l.b16 %v10435
        %v10532 = vunpack.c.l.b16 %v10436
        %v10533 = vunpack.c.l.b16 %v10437
        %v10534 = vunpack.c.l.b16 %v10438
        %v10535 = vunpack.c.l.b16 %v10439
        %v10536 = vpack.c.b16 %v10489, %v10488
        %v10537 = vpack.c.b16 %v10491, %v10490
        %v10538 = vpack.c.b16 %v10493, %v10492
        %v10539 = vpack.c.b16 %v10495, %v10494
        %v10540 = vpack.c.b16 %v10497, %v10496
        %v10541 = vpack.c.b16 %v10499, %v10498
        %v10542 = vpack.c.b16 %v10501, %v10500
        %v10543 = vpack.c.b16 %v10503, %v10502
        %v10544 = vpack.c.b16 %v10505, %v10504
        %v10545 = vpack.c.b16 %v10507, %v10506
        %v10546 = vpack.c.b16 %v10509, %v10508
        %v10547 = vpack.c.b16 %v10511, %v10510
        %v10548 = vpack.c.b16 %v10513, %v10512
        %v10549 = vpack.c.b16 %v10515, %v10514
        %v10550 = vpack.c.b16 %v10517, %v10516
        %v10551 = vpack.c.b16 %v10519, %v10518
        %v10552 = vpack.c.b16 %v10521, %v10520
        %v10553 = vpack.c.b16 %v10523, %v10522
        %v10554 = vpack.c.b16 %v10525, %v10524
        %v10555 = vpack.c.b16 %v10527, %v10526
        %v10556 = vpack.c.b16 %v10529, %v10528
        %v10557 = vpack.c.b16 %v10531, %v10530
        %v10558 = vpack.c.b16 %v10533, %v10532
        %v10559 = vpack.c.b16 %v10535, %v10534
        %10584 = vmatprep.subr.bf16.mxu0 0
        %10585 = vmatpush1.bf16.msra.mxu0 %v10543
        %10586 = vmatprep.subr.bf16.mxu0 0
        %10587 = vmatpush1.bf16.msra.mxu0 %v10542
        %10588 = vmatprep.subr.bf16.mxu0 0
        %10589 = vmatpush1.bf16.msra.mxu0 %v10541
        %10590 = vmatprep.subr.bf16.mxu0 0
        %10591 = vmatpush1.bf16.msra.mxu0 %v10540
        %10592 = vmatprep.subr.bf16.mxu0 0
        %10593 = vmatpush1.bf16.msra.mxu0 %v10539
        %10594 = vmatprep.subr.bf16.mxu0 0
        %10595 = vmatpush1.bf16.msra.mxu0 %v10538
        %10596 = vmatprep.subr.bf16.mxu0 0
        %10597 = vmatpush1.bf16.msra.mxu0 %v10537
        %10598 = vmatprep.subr.bf16.mxu0 0
        %10599 = vmatpush1.bf16.msra.mxu0 %v10536
        %10600 = vmatprep.subr.bf16.mxu0 0
        %10601 = vmatpush2.bf16.msra.mxu0 %v10551
        %10602 = vmatprep.subr.bf16.mxu0 0
        %10603 = vmatpush2.bf16.msra.mxu0 %v10550
        %10604 = vmatprep.subr.bf16.mxu0 0
        %10605 = vmatpush2.bf16.msra.mxu0 %v10549
        %10606 = vmatprep.subr.bf16.mxu0 0
        %10607 = vmatpush2.bf16.msra.mxu0 %v10548
        %10608 = vmatprep.subr.bf16.mxu0 0
        %10609 = vmatpush2.bf16.msra.mxu0 %v10547
        %10610 = vmatprep.subr.bf16.mxu0 0
        %10611 = vmatpush2.bf16.msra.mxu0 %v10546
        %10612 = vmatprep.subr.bf16.mxu0 0
        %10613 = vmatpush2.bf16.msra.mxu0 %v10545
        %10614 = vmatprep.subr.bf16.mxu0 0
        %10615 = vmatpush2.bf16.msra.mxu0 %v10544
        %10616 = vmatprep.mubr.bf16.mxu0 %v9681
        %10617 = vmatmul.mubr.bf16.gmra.mxu0 %v9672
        %v10618 = vpop.f32.mrf.mxu0
        %v10619 = vadd.f32 0.0, %v10618
        %v10620 = vpop.f32.mrf.mxu0
        %v10621 = vpop.f32.mrf.mxu0
        %v10622 = vadd.f32 0.0, %v10621
        %v10623 = vpop.f32.mrf.mxu0
        %10624 = vmatprep.mubr.bf16.mxu0 %v9724
        %10625 = vmatmul.mubr.bf16.gmra.mxu0 %v9715
        %v10626 = vpop.f32.mrf.mxu0
        %v10627 = vadd.f32 0.0, %v10626
        %v10628 = vpop.f32.mrf.mxu0
        %v10629 = vpop.f32.mrf.mxu0
        %v10630 = vadd.f32 0.0, %v10629
        %v10631 = vpop.f32.mrf.mxu0
        %10632 = vmatprep.mubr.bf16.mxu0 %v9767
        %10633 = vmatmul.mubr.bf16.gmra.mxu0 %v9758
        %v10634 = vpop.f32.mrf.mxu0
        %v10635 = vadd.f32 0.0, %v10634
        %v10636 = vpop.f32.mrf.mxu0
        %v10637 = vpop.f32.mrf.mxu0
        %v10638 = vadd.f32 0.0, %v10637
        %v10639 = vpop.f32.mrf.mxu0
        %10640 = vmatprep.mubr.bf16.mxu0 %v9810
        %10641 = vmatmul.mubr.bf16.gmra.mxu0 %v9801
        %v10642 = vpop.f32.mrf.mxu0
        %v10643 = vadd.f32 0.0, %v10642
        %v10644 = vpop.f32.mrf.mxu0
        %v10645 = vpop.f32.mrf.mxu0
        %v10646 = vadd.f32 0.0, %v10645
        %v10647 = vpop.f32.mrf.mxu0
        %10648 = vmatprep.mubr.bf16.mxu0 %v9853
        %10649 = vmatmul.mubr.bf16.gmra.mxu0 %v9844
        %v10650 = vpop.f32.mrf.mxu0
        %v10651 = vadd.f32 0.0, %v10650
        %v10652 = vpop.f32.mrf.mxu0
        %v10653 = vpop.f32.mrf.mxu0
        %v10654 = vadd.f32 0.0, %v10653
        %v10655 = vpop.f32.mrf.mxu0
        %10656 = vmatprep.mubr.bf16.mxu0 %v9896
        %10657 = vmatmul.mubr.bf16.gmra.mxu0 %v9887
        %v10658 = vpop.f32.mrf.mxu0
        %v10659 = vadd.f32 0.0, %v10658
        %v10660 = vpop.f32.mrf.mxu0
        %v10661 = vpop.f32.mrf.mxu0
        %v10662 = vadd.f32 0.0, %v10661
        %v10663 = vpop.f32.mrf.mxu0
        %10664 = vmatprep.mubr.bf16.mxu0 %v9939
        %10665 = vmatmul.mubr.bf16.gmra.mxu0 %v9930
        %v10666 = vpop.f32.mrf.mxu0
        %v10667 = vadd.f32 0.0, %v10666
        %v10668 = vpop.f32.mrf.mxu0
        %v10669 = vpop.f32.mrf.mxu0
        %v10670 = vadd.f32 0.0, %v10669
        %v10671 = vpop.f32.mrf.mxu0
        %10672 = vmatprep.mubr.bf16.mxu0 %v9982
        %10673 = vmatmul.mubr.bf16.gmra.mxu0 %v9973
        %v10674 = vpop.f32.mrf.mxu0
        %v10675 = vadd.f32 0.0, %v10674
        %v10676 = vpop.f32.mrf.mxu0
        %v10677 = vpop.f32.mrf.mxu0
        %v10678 = vadd.f32 0.0, %v10677
        %v10679 = vpop.f32.mrf.mxu0
        %10680 = vmatprep.mubr.bf16.mxu0 %v10025
        %10681 = vmatmul.mubr.bf16.gmra.mxu0 %v10016
        %v10682 = vpop.f32.mrf.mxu0
        %v10683 = vadd.f32 0.0, %v10682
        %v10684 = vpop.f32.mrf.mxu0
        %v10685 = vpop.f32.mrf.mxu0
        %v10686 = vadd.f32 0.0, %v10685
        %v10687 = vpop.f32.mrf.mxu0
        %10688 = vmatprep.mubr.bf16.mxu0 %v10068
        %10689 = vmatmul.mubr.bf16.gmra.mxu0 %v10059
        %v10690 = vpop.f32.mrf.mxu0
        %v10691 = vadd.f32 0.0, %v10690
        %v10692 = vpop.f32.mrf.mxu0
        %v10693 = vpop.f32.mrf.mxu0
        %v10694 = vadd.f32 0.0, %v10693
        %v10695 = vpop.f32.mrf.mxu0
        %10696 = vmatprep.mubr.bf16.mxu0 %v10111
        %10697 = vmatmul.mubr.bf16.gmra.mxu0 %v10102
        %v10698 = vpop.f32.mrf.mxu0
        %v10699 = vadd.f32 0.0, %v10698
        %v10700 = vpop.f32.mrf.mxu0
        %v10701 = vpop.f32.mrf.mxu0
        %v10702 = vadd.f32 0.0, %v10701
        %v10703 = vpop.f32.mrf.mxu0
        %10704 = vmatprep.mubr.bf16.mxu0 %v10154
        %10705 = vmatmul.mubr.bf16.gmra.mxu0 %v10145
        %v10706 = vpop.f32.mrf.mxu0
        %v10707 = vadd.f32 0.0, %v10706
        %v10708 = vpop.f32.mrf.mxu0
        %v10709 = vpop.f32.mrf.mxu0
        %v10710 = vadd.f32 0.0, %v10709
        %v10711 = vpop.f32.mrf.mxu0
        %10712 = vmatprep.mubr.bf16.mxu0 %v10197
        %10713 = vmatmul.mubr.bf16.gmra.mxu0 %v10188
        %v10714 = vpop.f32.mrf.mxu0
        %v10715 = vadd.f32 0.0, %v10714
        %v10716 = vpop.f32.mrf.mxu0
        %v10717 = vpop.f32.mrf.mxu0
        %v10718 = vadd.f32 0.0, %v10717
        %v10719 = vpop.f32.mrf.mxu0
        %10720 = vmatprep.mubr.bf16.mxu0 %v10240
        %10721 = vmatmul.mubr.bf16.gmra.mxu0 %v10231
        %v10722 = vpop.f32.mrf.mxu0
        %v10723 = vadd.f32 0.0, %v10722
        %v10724 = vpop.f32.mrf.mxu0
        %v10725 = vpop.f32.mrf.mxu0
        %v10726 = vadd.f32 0.0, %v10725
        %v10727 = vpop.f32.mrf.mxu0
        %10728 = vmatprep.mubr.bf16.mxu0 %v10283
        %10729 = vmatmul.mubr.bf16.gmra.mxu0 %v10274
        %v10730 = vpop.f32.mrf.mxu0
        %v10731 = vadd.f32 0.0, %v10730
        %v10732 = vpop.f32.mrf.mxu0
        %v10733 = vpop.f32.mrf.mxu0
        %v10734 = vadd.f32 0.0, %v10733
        %v10735 = vpop.f32.mrf.mxu0
        %10736 = vmatprep.mubr.bf16.mxu0 %v10326
        %10737 = vmatmul.mubr.bf16.gmra.mxu0 %v10317
        %v10738 = vpop.f32.mrf.mxu0
        %v10739 = vadd.f32 0.0, %v10738
        %v10740 = vpop.f32.mrf.mxu0
        %v10741 = vpop.f32.mrf.mxu0
        %v10742 = vadd.f32 0.0, %v10741
        %v10743 = vpop.f32.mrf.mxu0
        %10744 = vdwg.mxu0
        %10745 = vmatprep.subr.bf16.mxu0 0
        %10746 = vmatpush1.bf16.msra.mxu0 %v10559
        %10747 = vmatprep.subr.bf16.mxu0 0
        %10748 = vmatpush1.bf16.msra.mxu0 %v10558
        %10749 = vmatprep.subr.bf16.mxu0 0
        %10750 = vmatpush1.bf16.msra.mxu0 %v10557
        %10751 = vmatprep.subr.bf16.mxu0 0
        %10752 = vmatpush1.bf16.msra.mxu0 %v10556
        %10753 = vmatprep.subr.bf16.mxu0 0
        %10754 = vmatpush1.bf16.msra.mxu0 %v10555
        %10755 = vmatprep.subr.bf16.mxu0 0
        %10756 = vmatpush1.bf16.msra.mxu0 %v10554
        %10757 = vmatprep.subr.bf16.mxu0 0
        %10758 = vmatpush1.bf16.msra.mxu0 %v10553
        %10759 = vmatprep.subr.bf16.mxu0 0
        %10760 = vmatpush1.bf16.msra.mxu0 %v10552
        %10761 = vmatprep.subr.bf16.mxu0 0
        %10762 = vmatpush2.bf16.msra.mxu0 0
        %10763 = vmatprep.subr.bf16.mxu0 0
        %10764 = vmatpush2.bf16.msra.mxu0 0
        %10765 = vmatprep.subr.bf16.mxu0 0
        %10766 = vmatpush2.bf16.msra.mxu0 0
        %10767 = vmatprep.subr.bf16.mxu0 0
        %10768 = vmatpush2.bf16.msra.mxu0 0
        %10769 = vmatprep.subr.bf16.mxu0 0
        %10770 = vmatpush2.bf16.msra.mxu0 0
        %10771 = vmatprep.subr.bf16.mxu0 0
        %10772 = vmatpush2.bf16.msra.mxu0 0
        %10773 = vmatprep.subr.bf16.mxu0 0
        %10774 = vmatpush2.bf16.msra.mxu0 0
        %10775 = vmatprep.subr.bf16.mxu0 0
        %10776 = vmatpush2.bf16.msra.mxu0 0
        %10777 = vmatprep.mubr.bf16.mxu0 0
        %10778 = vmatmul.mubr.bf16.gmra.mxu0 %v9698
        %v10779 = vpop.f32.mrf.mxu0
        %v10780 = vadd.f32 %v10619, %v10779
        %v10781 = vpop.f32.mrf.mxu0
        %v10782 = vpop.f32.mrf.mxu0
        %v10783 = vadd.f32 %v10622, %v10782
        %v10784 = vpop.f32.mrf.mxu0
        %10785 = vmatprep.mubr.bf16.mxu0 0
        %10786 = vmatmul.mubr.bf16.gmra.mxu0 %v9741
        %v10787 = vpop.f32.mrf.mxu0
        %v10788 = vadd.f32 %v10627, %v10787
        %v10789 = vpop.f32.mrf.mxu0
        %v10790 = vpop.f32.mrf.mxu0
        %v10791 = vadd.f32 %v10630, %v10790
        %v10792 = vpop.f32.mrf.mxu0
        %10793 = vmatprep.mubr.bf16.mxu0 0
        %10794 = vmatmul.mubr.bf16.gmra.mxu0 %v9784
        %v10795 = vpop.f32.mrf.mxu0
        %v10796 = vadd.f32 %v10635, %v10795
        %v10797 = vpop.f32.mrf.mxu0
        %v10798 = vpop.f32.mrf.mxu0
        %v10799 = vadd.f32 %v10638, %v10798
        %v10800 = vpop.f32.mrf.mxu0
        %10801 = vmatprep.mubr.bf16.mxu0 0
        %10802 = vmatmul.mubr.bf16.gmra.mxu0 %v9827
        %v10803 = vpop.f32.mrf.mxu0
        %v10804 = vadd.f32 %v10643, %v10803
        %v10805 = vpop.f32.mrf.mxu0
        %v10806 = vpop.f32.mrf.mxu0
        %v10807 = vadd.f32 %v10646, %v10806
        %v10808 = vpop.f32.mrf.mxu0
        %10809 = vmatprep.mubr.bf16.mxu0 0
        %10810 = vmatmul.mubr.bf16.gmra.mxu0 %v9870
        %v10811 = vpop.f32.mrf.mxu0
        %v10812 = vadd.f32 %v10651, %v10811
        %v10813 = vpop.f32.mrf.mxu0
        %v10814 = vpop.f32.mrf.mxu0
        %v10815 = vadd.f32 %v10654, %v10814
        %v10816 = vpop.f32.mrf.mxu0
        %10817 = vmatprep.mubr.bf16.mxu0 0
        %10818 = vmatmul.mubr.bf16.gmra.mxu0 %v9913
        %v10819 = vpop.f32.mrf.mxu0
        %v10820 = vadd.f32 %v10659, %v10819
        %v10821 = vpop.f32.mrf.mxu0
        %v10822 = vpop.f32.mrf.mxu0
        %v10823 = vadd.f32 %v10662, %v10822
        %v10824 = vpop.f32.mrf.mxu0
        %10825 = vmatprep.mubr.bf16.mxu0 0
        %10826 = vmatmul.mubr.bf16.gmra.mxu0 %v9956
        %v10827 = vpop.f32.mrf.mxu0
        %v10828 = vadd.f32 %v10667, %v10827
        %v10829 = vpop.f32.mrf.mxu0
        %v10830 = vpop.f32.mrf.mxu0
        %v10831 = vadd.f32 %v10670, %v10830
        %v10832 = vpop.f32.mrf.mxu0
        %10833 = vmatprep.mubr.bf16.mxu0 0
        %10834 = vmatmul.mubr.bf16.gmra.mxu0 %v9999
        %v10835 = vpop.f32.mrf.mxu0
        %v10836 = vadd.f32 %v10675, %v10835
        %v10837 = vpop.f32.mrf.mxu0
        %v10838 = vpop.f32.mrf.mxu0
        %v10839 = vadd.f32 %v10678, %v10838
        %v10840 = vpop.f32.mrf.mxu0
        %10841 = vmatprep.mubr.bf16.mxu0 0
        %10842 = vmatmul.mubr.bf16.gmra.mxu0 %v10042
        %v10843 = vpop.f32.mrf.mxu0
        %v10844 = vadd.f32 %v10683, %v10843
        %v10845 = vpop.f32.mrf.mxu0
        %v10846 = vpop.f32.mrf.mxu0
        %v10847 = vadd.f32 %v10686, %v10846
        %v10848 = vpop.f32.mrf.mxu0
        %10849 = vmatprep.mubr.bf16.mxu0 0
        %10850 = vmatmul.mubr.bf16.gmra.mxu0 %v10085
        %v10851 = vpop.f32.mrf.mxu0
        %v10852 = vadd.f32 %v10691, %v10851
        %v10853 = vpop.f32.mrf.mxu0
        %v10854 = vpop.f32.mrf.mxu0
        %v10855 = vadd.f32 %v10694, %v10854
        %v10856 = vpop.f32.mrf.mxu0
        %10857 = vmatprep.mubr.bf16.mxu0 0
        %10858 = vmatmul.mubr.bf16.gmra.mxu0 %v10128
        %v10859 = vpop.f32.mrf.mxu0
        %v10860 = vadd.f32 %v10699, %v10859
        %v10861 = vpop.f32.mrf.mxu0
        %v10862 = vpop.f32.mrf.mxu0
        %v10863 = vadd.f32 %v10702, %v10862
        %v10864 = vpop.f32.mrf.mxu0
        %10865 = vmatprep.mubr.bf16.mxu0 0
        %10866 = vmatmul.mubr.bf16.gmra.mxu0 %v10171
        %v10867 = vpop.f32.mrf.mxu0
        %v10868 = vadd.f32 %v10707, %v10867
        %v10869 = vpop.f32.mrf.mxu0
        %v10870 = vpop.f32.mrf.mxu0
        %v10871 = vadd.f32 %v10710, %v10870
        %v10872 = vpop.f32.mrf.mxu0
        %10873 = vmatprep.mubr.bf16.mxu0 0
        %10874 = vmatmul.mubr.bf16.gmra.mxu0 %v10214
        %v10875 = vpop.f32.mrf.mxu0
        %v10876 = vadd.f32 %v10715, %v10875
        %v10877 = vpop.f32.mrf.mxu0
        %v10878 = vpop.f32.mrf.mxu0
        %v10879 = vadd.f32 %v10718, %v10878
        %v10880 = vpop.f32.mrf.mxu0
        %10881 = vmatprep.mubr.bf16.mxu0 0
        %10882 = vmatmul.mubr.bf16.gmra.mxu0 %v10257
        %v10883 = vpop.f32.mrf.mxu0
        %v10884 = vadd.f32 %v10723, %v10883
        %v10885 = vpop.f32.mrf.mxu0
        %v10886 = vpop.f32.mrf.mxu0
        %v10887 = vadd.f32 %v10726, %v10886
        %v10888 = vpop.f32.mrf.mxu0
        %10889 = vmatprep.mubr.bf16.mxu0 0
        %10890 = vmatmul.mubr.bf16.gmra.mxu0 %v10300
        %v10891 = vpop.f32.mrf.mxu0
        %v10892 = vadd.f32 %v10731, %v10891
        %v10893 = vpop.f32.mrf.mxu0
        %v10894 = vpop.f32.mrf.mxu0
        %v10895 = vadd.f32 %v10734, %v10894
        %v10896 = vpop.f32.mrf.mxu0
        %10897 = vmatprep.mubr.bf16.mxu0 0
        %10898 = vmatmul.mubr.bf16.gmra.mxu0 %v10343
        %v10899 = vpop.f32.mrf.mxu0
        %v10900 = vadd.f32 %v10739, %v10899
        %v10901 = vpop.f32.mrf.mxu0
        %v10902 = vpop.f32.mrf.mxu0
        %v10903 = vadd.f32 %v10742, %v10902
        %v10904 = vpop.f32.mrf.mxu0
        %10905 = vdwg.mxu0
        %v10906 = vadd.f32 %v9097, %v10780
        %v10907 = vadd.f32 %v9100, %v10783
        %v10908 = vadd.f32 %v9105, %v10788
        %v10909 = vadd.f32 %v9108, %v10791
        %v10910 = vadd.f32 %v9113, %v10796
        %v10911 = vadd.f32 %v9116, %v10799
        %v10912 = vadd.f32 %v9121, %v10804
        %v10913 = vadd.f32 %v9124, %v10807
        %v10914 = vadd.f32 %v9129, %v10812
        %v10915 = vadd.f32 %v9132, %v10815
        %v10916 = vadd.f32 %v9137, %v10820
        %v10917 = vadd.f32 %v9140, %v10823
        %v10918 = vadd.f32 %v9145, %v10828
        %v10919 = vadd.f32 %v9148, %v10831
        %v10920 = vadd.f32 %v9153, %v10836
        %v10921 = vadd.f32 %v9156, %v10839
        %v10922 = vadd.f32 %v9161, %v10844
        %v10923 = vadd.f32 %v9164, %v10847
        %v10924 = vadd.f32 %v9169, %v10852
        %v10925 = vadd.f32 %v9172, %v10855
        %v10926 = vadd.f32 %v9177, %v10860
        %v10927 = vadd.f32 %v9180, %v10863
        %v10928 = vadd.f32 %v9185, %v10868
        %v10929 = vadd.f32 %v9188, %v10871
        %v10930 = vadd.f32 %v9193, %v10876
        %v10931 = vadd.f32 %v9196, %v10879
        %v10932 = vadd.f32 %v9201, %v10884
        %v10933 = vadd.f32 %v9204, %v10887
        %v10934 = vadd.f32 %v9209, %v10892
        %v10935 = vadd.f32 %v9212, %v10895
        %v10936 = vadd.f32 %v9217, %v10900
        %v10937 = vadd.f32 %v9220, %v10903
        %v10938 = vld [vmem:[%s4] sm:$0x1]
        %v10940 = vlaneseq
        %v10941 = vshrl.u32 %v10940, 7
        %v10942 = vsub.s32 0, %v10941
        %v10943 = vrot.slane %v10938, %v10942
        %v10945 = vadd.f32 %v10906, %v10943
        %v10946 = vadd.f32 %v10907, %v10943
        %v10947 = vadd.f32 %v10908, %v10943
        %v10948 = vadd.f32 %v10909, %v10943
        %v10949 = vadd.f32 %v10910, %v10943
        %v10950 = vadd.f32 %v10911, %v10943
        %v10951 = vadd.f32 %v10912, %v10943
        %v10952 = vadd.f32 %v10913, %v10943
        %v10953 = vadd.f32 %v10914, %v10943
        %v10954 = vadd.f32 %v10915, %v10943
        %v10955 = vadd.f32 %v10916, %v10943
        %v10956 = vadd.f32 %v10917, %v10943
        %v10957 = vadd.f32 %v10918, %v10943
        %v10958 = vadd.f32 %v10919, %v10943
        %v10959 = vadd.f32 %v10920, %v10943
        %v10960 = vadd.f32 %v10921, %v10943
        %v10961 = vadd.f32 %v10922, %v10943
        %v10962 = vadd.f32 %v10923, %v10943
        %v10963 = vadd.f32 %v10924, %v10943
        %v10964 = vadd.f32 %v10925, %v10943
        %v10965 = vadd.f32 %v10926, %v10943
        %v10966 = vadd.f32 %v10927, %v10943
        %v10967 = vadd.f32 %v10928, %v10943
        %v10968 = vadd.f32 %v10929, %v10943
        %v10969 = vadd.f32 %v10930, %v10943
        %v10970 = vadd.f32 %v10931, %v10943
        %v10971 = vadd.f32 %v10932, %v10943
        %v10972 = vadd.f32 %v10933, %v10943
        %v10973 = vadd.f32 %v10934, %v10943
        %v10974 = vadd.f32 %v10935, %v10943
        %v10975 = vadd.f32 %v10936, %v10943
        %v10976 = vadd.f32 %v10937, %v10943
        %v10977 = vld [vmem:[%s234] sm:$0xf]
        %v10978 = vld [vmem:[%s234 + $0x4] sm:$0xf]
        %v10979 = vld [vmem:[%s234 + $0x8] sm:$0xf]
        %v10980 = vld [vmem:[%s234 + $0xc] sm:$0xf]
        %v10981 = vld [vmem:[%s234 + $0x10] sm:$0xf]
        %v10982 = vld [vmem:[%s234 + $0x14] sm:$0xf]
        %v10983 = vld [vmem:[%s234 + $0x18] sm:$0xf]
        %v10984 = vld [vmem:[%s234 + $0x1c] sm:$0xf]
        %v10985 = vld [vmem:[%s234 + $0x20] sm:$0xf]
        %v10986 = vld [vmem:[%s234 + $0x24] sm:$0xf]
        %v10987 = vld [vmem:[%s234 + $0x28] sm:$0xf]
        %v10988 = vld [vmem:[%s234 + $0x2c] sm:$0xf]
        %v10989 = vld [vmem:[%s234 + $0x30] sm:$0xf]
        %v10990 = vld [vmem:[%s234 + $0x34] sm:$0xf]
        %v10991 = vld [vmem:[%s234 + $0x38] sm:$0xf]
        %v10992 = vld [vmem:[%s234 + $0x3c] sm:$0xf]
        %v10993 = vld [vmem:[%s234 + $0x40] sm:$0xf]
        %v10994 = vld [vmem:[%s234 + $0x44] sm:$0xf]
        %v10995 = vld [vmem:[%s234 + $0x48] sm:$0xf]
        %v10996 = vld [vmem:[%s234 + $0x4c] sm:$0xf]
        %v10997 = vld [vmem:[%s234 + $0x50] sm:$0xf]
        %v10998 = vld [vmem:[%s234 + $0x54] sm:$0xf]
        %v10999 = vld [vmem:[%s234 + $0x58] sm:$0xf]
        %v11000 = vld [vmem:[%s234 + $0x5c] sm:$0xf]
        %v11001 = vld [vmem:[%s234 + $0x60] sm:$0xf]
        %v11002 = vld [vmem:[%s234 + $0x64] sm:$0xf]
        %v11003 = vld [vmem:[%s234 + $0x68] sm:$0xf]
        %v11004 = vld [vmem:[%s234 + $0x6c] sm:$0xf]
        %v11005 = vld [vmem:[%s234 + $0x70] sm:$0xf]
        %v11006 = vld [vmem:[%s234 + $0x74] sm:$0xf]
        %v11007 = vld [vmem:[%s234 + $0x78] sm:$0xf]
        %v11008 = vld [vmem:[%s234 + $0x7c] sm:$0xf]
        %v11009 = vunpack.c.l.bf16 %v10977
        %v11010 = vunpack.c.l.bf16 %v10978
        %v11011 = vunpack.c.l.bf16 %v10979
        %v11012 = vunpack.c.l.bf16 %v10980
        %v11013 = vunpack.c.l.bf16 %v10981
        %v11014 = vunpack.c.l.bf16 %v10982
        %v11015 = vunpack.c.l.bf16 %v10983
        %v11016 = vunpack.c.l.bf16 %v10984
        %v11017 = vunpack.c.l.bf16 %v10985
        %v11018 = vunpack.c.l.bf16 %v10986
        %v11019 = vunpack.c.l.bf16 %v10987
        %v11020 = vunpack.c.l.bf16 %v10988
        %v11021 = vunpack.c.l.bf16 %v10989
        %v11022 = vunpack.c.l.bf16 %v10990
        %v11023 = vunpack.c.l.bf16 %v10991
        %v11024 = vunpack.c.l.bf16 %v10992
        %v11025 = vunpack.c.l.bf16 %v10993
        %v11026 = vunpack.c.l.bf16 %v10994
        %v11027 = vunpack.c.l.bf16 %v10995
        %v11028 = vunpack.c.l.bf16 %v10996
        %v11029 = vunpack.c.l.bf16 %v10997
        %v11030 = vunpack.c.l.bf16 %v10998
        %v11031 = vunpack.c.l.bf16 %v10999
        %v11032 = vunpack.c.l.bf16 %v11000
        %v11033 = vunpack.c.l.bf16 %v11001
        %v11034 = vunpack.c.l.bf16 %v11002
        %v11035 = vunpack.c.l.bf16 %v11003
        %v11036 = vunpack.c.l.bf16 %v11004
        %v11037 = vunpack.c.l.bf16 %v11005
        %v11038 = vunpack.c.l.bf16 %v11006
        %v11039 = vunpack.c.l.bf16 %v11007
        %v11040 = vunpack.c.l.bf16 %v11008
        %v11041 = vadd.f32 %v10945, %v11009
        %v11042 = vadd.f32 %v10946, %v11010
        %v11043 = vadd.f32 %v10947, %v11011
        %v11044 = vadd.f32 %v10948, %v11012
        %v11045 = vadd.f32 %v10949, %v11013
        %v11046 = vadd.f32 %v10950, %v11014
        %v11047 = vadd.f32 %v10951, %v11015
        %v11048 = vadd.f32 %v10952, %v11016
        %v11049 = vadd.f32 %v10953, %v11017
        %v11050 = vadd.f32 %v10954, %v11018
        %v11051 = vadd.f32 %v10955, %v11019
        %v11052 = vadd.f32 %v10956, %v11020
        %v11053 = vadd.f32 %v10957, %v11021
        %v11054 = vadd.f32 %v10958, %v11022
        %v11055 = vadd.f32 %v10959, %v11023
        %v11056 = vadd.f32 %v10960, %v11024
        %v11057 = vadd.f32 %v10961, %v11025
        %v11058 = vadd.f32 %v10962, %v11026
        %v11059 = vadd.f32 %v10963, %v11027
        %v11060 = vadd.f32 %v10964, %v11028
        %v11061 = vadd.f32 %v10965, %v11029
        %v11062 = vadd.f32 %v10966, %v11030
        %v11063 = vadd.f32 %v10967, %v11031
        %v11064 = vadd.f32 %v10968, %v11032
        %v11065 = vadd.f32 %v10969, %v11033
        %v11066 = vadd.f32 %v10970, %v11034
        %v11067 = vadd.f32 %v10971, %v11035
        %v11068 = vadd.f32 %v10972, %v11036
        %v11069 = vadd.f32 %v10973, %v11037
        %v11070 = vadd.f32 %v10974, %v11038
        %v11071 = vadd.f32 %v10975, %v11039
        %v11072 = vadd.f32 %v10976, %v11040
        %v11073 = vmax.f32 %v11041, 0.0
        %v11074 = vmax.f32 %v11042, 0.0
        %v11075 = vmax.f32 %v11043, 0.0
        %v11076 = vmax.f32 %v11044, 0.0
        %v11077 = vmax.f32 %v11045, 0.0
        %v11078 = vmax.f32 %v11046, 0.0
        %v11079 = vmax.f32 %v11047, 0.0
        %v11080 = vmax.f32 %v11048, 0.0
        %v11081 = vmax.f32 %v11049, 0.0
        %v11082 = vmax.f32 %v11050, 0.0
        %v11083 = vmax.f32 %v11051, 0.0
        %v11084 = vmax.f32 %v11052, 0.0
        %v11085 = vmax.f32 %v11053, 0.0
        %v11086 = vmax.f32 %v11054, 0.0
        %v11087 = vmax.f32 %v11055, 0.0
        %v11088 = vmax.f32 %v11056, 0.0
        %v11089 = vmax.f32 %v11057, 0.0
        %v11090 = vmax.f32 %v11058, 0.0
        %v11091 = vmax.f32 %v11059, 0.0
        %v11092 = vmax.f32 %v11060, 0.0
        %v11093 = vmax.f32 %v11061, 0.0
        %v11094 = vmax.f32 %v11062, 0.0
        %v11095 = vmax.f32 %v11063, 0.0
        %v11096 = vmax.f32 %v11064, 0.0
        %v11097 = vmax.f32 %v11065, 0.0
        %v11098 = vmax.f32 %v11066, 0.0
        %v11099 = vmax.f32 %v11067, 0.0
        %v11100 = vmax.f32 %v11068, 0.0
        %v11101 = vmax.f32 %v11069, 0.0
        %v11102 = vmax.f32 %v11070, 0.0
        %v11103 = vmax.f32 %v11071, 0.0
        %v11104 = vmax.f32 %v11072, 0.0
        %v11105 = vpack.c.bf16 %v11074, %v11073
        %v11106 = vpack.c.bf16 %v11076, %v11075
        %v11107 = vpack.c.bf16 %v11078, %v11077
        %v11108 = vpack.c.bf16 %v11080, %v11079
        %v11109 = vpack.c.bf16 %v11082, %v11081
        %v11110 = vpack.c.bf16 %v11084, %v11083
        %v11111 = vpack.c.bf16 %v11086, %v11085
        %v11112 = vpack.c.bf16 %v11088, %v11087
        %v11113 = vpack.c.bf16 %v11090, %v11089
        %v11114 = vpack.c.bf16 %v11092, %v11091
        %v11115 = vpack.c.bf16 %v11094, %v11093
        %v11116 = vpack.c.bf16 %v11096, %v11095
        %v11117 = vpack.c.bf16 %v11098, %v11097
        %v11118 = vpack.c.bf16 %v11100, %v11099
        %v11119 = vpack.c.bf16 %v11102, %v11101
        %v11120 = vpack.c.bf16 %v11104, %v11103
        %v11137 = vunpack.c.l.b16 %v11105
        %v11138 = vunpack.c.h.b16 %v11105
        %v11139 = vunpack.c.l.b16 %v11106
        %v11140 = vunpack.c.h.b16 %v11106
        %v11141 = vunpack.c.l.b16 %v11107
        %v11142 = vunpack.c.h.b16 %v11107
        %v11143 = vunpack.c.l.b16 %v11108
        %v11144 = vunpack.c.h.b16 %v11108
        %v11145 = vunpack.c.l.b16 %v11109
        %v11146 = vunpack.c.h.b16 %v11109
        %v11147 = vunpack.c.l.b16 %v11110
        %v11148 = vunpack.c.h.b16 %v11110
        %v11149 = vunpack.c.l.b16 %v11111
        %v11150 = vunpack.c.h.b16 %v11111
        %v11151 = vunpack.c.l.b16 %v11112
        %v11152 = vunpack.c.h.b16 %v11112
        %v11153 = vunpack.c.l.b16 %v11113
        %v11154 = vunpack.c.h.b16 %v11113
        %v11155 = vunpack.c.l.b16 %v11114
        %v11156 = vunpack.c.h.b16 %v11114
        %v11157 = vunpack.c.l.b16 %v11115
        %v11158 = vunpack.c.h.b16 %v11115
        %v11159 = vunpack.c.l.b16 %v11116
        %v11160 = vunpack.c.h.b16 %v11116
        %v11161 = vunpack.c.l.b16 %v11117
        %v11162 = vunpack.c.h.b16 %v11117
        %v11163 = vunpack.c.l.b16 %v11118
        %v11164 = vunpack.c.h.b16 %v11118
        %v11165 = vunpack.c.l.b16 %v11119
        %v11166 = vunpack.c.h.b16 %v11119
        %v11167 = vunpack.c.l.b16 %v11120
        %v11168 = vunpack.c.h.b16 %v11120
        %v11169 = vpack.c.b16 %v11137, %v11137
        %v11170 = vpack.c.b16 %v11138, %v11138
        %v11171 = vpack.c.b16 %v11139, %v11139
        %v11172 = vpack.c.b16 %v11140, %v11140
        %v11173 = vpack.c.b16 %v11141, %v11141
        %v11174 = vpack.c.b16 %v11142, %v11142
        %v11175 = vpack.c.b16 %v11143, %v11143
        %v11176 = vpack.c.b16 %v11144, %v11144
        %v11177 = vpack.c.b16 %v11145, %v11145
        %v11178 = vpack.c.b16 %v11146, %v11146
        %v11179 = vpack.c.b16 %v11147, %v11147
        %v11180 = vpack.c.b16 %v11148, %v11148
        %v11181 = vpack.c.b16 %v11149, %v11149
        %v11182 = vpack.c.b16 %v11150, %v11150
        %v11183 = vpack.c.b16 %v11151, %v11151
        %v11184 = vpack.c.b16 %v11152, %v11152
        %v11185 = vpack.c.b16 %v11153, %v11153
        %v11186 = vpack.c.b16 %v11154, %v11154
        %v11187 = vpack.c.b16 %v11155, %v11155
        %v11188 = vpack.c.b16 %v11156, %v11156
        %v11189 = vpack.c.b16 %v11157, %v11157
        %v11190 = vpack.c.b16 %v11158, %v11158
        %v11191 = vpack.c.b16 %v11159, %v11159
        %v11192 = vpack.c.b16 %v11160, %v11160
        %v11193 = vpack.c.b16 %v11161, %v11161
        %v11194 = vpack.c.b16 %v11162, %v11162
        %v11195 = vpack.c.b16 %v11163, %v11163
        %v11196 = vpack.c.b16 %v11164, %v11164
        %v11197 = vpack.c.b16 %v11165, %v11165
        %v11198 = vpack.c.b16 %v11166, %v11166
        %v11199 = vpack.c.b16 %v11167, %v11167
        %v11200 = vpack.c.b16 %v11168, %v11168
        %11233 = vst [vmem:[%s239] sm:$0xf] %v11169
        %11234 = vst [vmem:[%s239 + $0x4] sm:$0xf] %v11170
        %11235 = vst [vmem:[%s239 + $0x8] sm:$0xf] %v11171
        %11236 = vst [vmem:[%s239 + $0xc] sm:$0xf] %v11172
        %11237 = vst [vmem:[%s239 + $0x10] sm:$0xf] %v11173
        %11238 = vst [vmem:[%s239 + $0x14] sm:$0xf] %v11174
        %11239 = vst [vmem:[%s239 + $0x18] sm:$0xf] %v11175
        %11240 = vst [vmem:[%s239 + $0x1c] sm:$0xf] %v11176
        %11241 = vst [vmem:[%s239 + $0x20] sm:$0xf] %v11177
        %11242 = vst [vmem:[%s239 + $0x24] sm:$0xf] %v11178
        %11243 = vst [vmem:[%s239 + $0x28] sm:$0xf] %v11179
        %11244 = vst [vmem:[%s239 + $0x2c] sm:$0xf] %v11180
        %11245 = vst [vmem:[%s239 + $0x30] sm:$0xf] %v11181
        %11246 = vst [vmem:[%s239 + $0x34] sm:$0xf] %v11182
        %11247 = vst [vmem:[%s239 + $0x38] sm:$0xf] %v11183
        %11248 = vst [vmem:[%s239 + $0x3c] sm:$0xf] %v11184
        %11249 = vst [vmem:[%s239 + $0x40] sm:$0xf] %v11185
        %11250 = vst [vmem:[%s239 + $0x44] sm:$0xf] %v11186
        %11251 = vst [vmem:[%s239 + $0x48] sm:$0xf] %v11187
        %11252 = vst [vmem:[%s239 + $0x4c] sm:$0xf] %v11188
        %11253 = vst [vmem:[%s239 + $0x50] sm:$0xf] %v11189
        %11254 = vst [vmem:[%s239 + $0x54] sm:$0xf] %v11190
        %11255 = vst [vmem:[%s239 + $0x58] sm:$0xf] %v11191
        %11256 = vst [vmem:[%s239 + $0x5c] sm:$0xf] %v11192
        %11257 = vst [vmem:[%s239 + $0x60] sm:$0xf] %v11193
        %11258 = vst [vmem:[%s239 + $0x64] sm:$0xf] %v11194
        %11259 = vst [vmem:[%s239 + $0x68] sm:$0xf] %v11195
        %11260 = vst [vmem:[%s239 + $0x6c] sm:$0xf] %v11196
        %11261 = vst [vmem:[%s239 + $0x70] sm:$0xf] %v11197
        %11262 = vst [vmem:[%s239 + $0x74] sm:$0xf] %v11198
        %11263 = vst [vmem:[%s239 + $0x78] sm:$0xf] %v11199
        %11264 = vst [vmem:[%s239 + $0x7c] sm:$0xf] %v11200
        %p11265 = scmp.lt.s32.totalorder %s17, 1
        %s11266 = scalar_select %p11265, %s17, 1
        %s11267 = smul.addr %s11266, 32
        %s11268 = smul.addr %s11267, 4
        %s11269 = scalar_lea.vmem %s5, %s11268
        // Predicated region
        $region45: #{resblock2_forward.1} parent=39 // pred_check
          %p11270 = pneg %p145
        $region46: #{resblock2_forward.1} parent=39 // pred_check_branch
          %11272 = sbr.rel (%p11270) target = $region48
        $region47: #{resblock2_forward.1} parent=39 // pred_region
          _
        $region48: #{resblock2_forward.1} parent=39 // pred_fallthru
          _
      $region40: #{resblock2_forward.1} parent=5 // pred_fallthru
        _
      %p11273 = scmp.le.s32.totalorder 2, %s12
      // Predicated region
      $region49: #{resblock2_forward.1} parent=5 // pred_check
        %p11274 = pneg %p11273
      $region50: #{resblock2_forward.1} parent=5 // pred_check_branch
        %11276 = sbr.rel (%p11274) target = $region52
      $region51: #{resblock2_forward.1} parent=5 // pred_region
        %s11277 = ssub.s32 %s12, 2
        // Predicated region
        $region53: #{resblock2_forward.1} parent=51 // pred_check
          %p11278 = pneg %p151
        $region54: #{resblock2_forward.1} parent=51 // pred_check_branch
          %11280 = sbr.rel (%p11278) target = $region56
        $region55: #{resblock2_forward.1} parent=51 // pred_region
          %p11281 = scmp.lt.s32.totalorder %s18, 1
          %s11282 = scalar_select %p11281, %s18, 1
          %s11283 = smul.addr %s11282, 32
          %s11284 = smul.addr %s11283, 4
          %s11285 = scalar_lea.vmem %s5, %s11284
        $region56: #{resblock2_forward.1} parent=51 // pred_fallthru
          _
      $region52: #{resblock2_forward.1} parent=5 // pred_fallthru
        _
    $region6: #{resblock2_forward.1} parent=1 // loop_footer
      %s16 = sadd.s32 1, %s12
    $region7: #{resblock2_forward.1} parent=1 // loop_footer_branch
      %11 = sbr.rel target = $region3
    $region8: #{resblock2_forward.1} parent=1 // loop_exit
      _
    %11286 = vsyncpa [#allocation5], 1
    %s11287 = scalar_lea.sflag [#allocation5], 1
    %11288 = vsyncpa %s11287, 1

</llo_original>
